<compile_context>
chip_gen: v6e
topology: v6e:2x2x1
jax: 0.10.0
libtpu: 0.0.40
codegen_flags: <defaults>
</compile_context>

<pallas_src>
import math

import jax
import jax.numpy as jnp
from jax.experimental import pallas as pl
from jax.experimental.pallas import tpu as pltpu  # noqa: F401  (kept per template)

# ---------------- small, consistent model hyper-parameters ------------------
BLOCK_SIZE = 8                      # config.block_size
VOCAB = 64                          # config.vocab_size
N_LAYER = 4                         # config.n_layer
N_HEAD = 2                          # config.n_head
N_EMBD = 32                         # config.n_embd
HEAD_DIM = N_EMBD // N_HEAD
EXPANSION = 4                       # config.expansion_factor
EXPERT_K = 2                        # config.expert_k
MAX_ROUTER_ITER = N_LAYER // EXPERT_K   # == config.max_router_iter
LSTM_HIDDEN = 16                    # config.LSTM_hidden_size
N_LSTM_LAYER = 2                    # config.n_LSTM_layer
ROUTER_PROJ = EXPERT_K              # open_choice=False, meta_controller=False
LN_EPS = 1e-5


# --------------------------- in-kernel helpers -------------------------------
def _layernorm(x, w, b):
    mu = jnp.mean(x, axis=-1, keepdims=True)
    var = jnp.mean(jnp.square(x - mu), axis=-1, keepdims=True)
    return (x - mu) * jax.lax.rsqrt(var + LN_EPS) * w + b


def _erf(x):
    # Abramowitz & Stegun 7.1.26 polynomial (|err| < 1.5e-7 ~ f32 precision);
    # reproduces torch.nn.GELU() (exact erf form) to float32 accuracy using
    # only exp/mul/add/where, which lower cleanly in Mosaic.
    p = 0.3275911
    a1, a2, a3, a4, a5 = 0.254829592, -0.284496736, 1.421413741, -1.453152027, 1.061405429
    sgn = jnp.where(x >= 0.0, 1.0, -1.0)
    ax = jnp.abs(x)
    t = 1.0 / (1.0 + p * ax)
    poly = ((((a5 * t + a4) * t + a3) * t + a2) * t + a1) * t
    return sgn * (1.0 - poly * jnp.exp(-ax * ax))


def _gelu(x):
    return 0.5 * x * (1.0 + _erf(x * (1.0 / math.sqrt(2.0))))


# ----------------------- single fused forward kernel -------------------------
def gwgpt_kernel(
    x_ref, attn_bias_ref, sel_ref,
    ln1_w_ref, ln1_b_ref, wqkv_ref, bqkv_ref, wproj_ref, bproj_ref,
    ln2_w_ref, ln2_b_ref, wfc_ref, bfc_ref, wmlp_ref, bmlp_ref,
    wih0_ref, whh0_ref, blstm0_ref, wih1_ref, whh1_ref, blstm1_ref,
    rw_ref, rbias_ref, lnf_w_ref, lnf_b_ref, wte_t_ref,
    logits_ref,
):
    BT, C = x_ref.shape
    T = wih0_ref.shape[0] // C          # block_size
    B = BT // T                         # batch
    LH = whh0_ref.shape[0]              # LSTM hidden size

    x = x_ref[...]                      # (B*T, C) activations (stay on-chip)
    attn_bias = attn_bias_ref[...]      # (BT, BT) block-diagonal causal additive mask
    sel = sel_ref[...]                  # (BT, B)  row -> batch one-hot selector

    wih0 = wih0_ref[...]
    whh0 = whh0_ref[...]
    b0 = blstm0_ref[...]
    wih1 = wih1_ref[...]
    whh1 = whh1_ref[...]
    b1 = blstm1_ref[...]
    rw = rw_ref[...]
    rbias = rbias_ref[...]

    # LSTM state carried across router iterations (values, loop is unrolled)
    h_st = [jnp.zeros((B, LH), jnp.float32) for _ in range(N_LSTM_LAYER)]
    c_st = [jnp.zeros((B, LH), jnp.float32) for _ in range(N_LSTM_LAYER)]

    def lstm_step(gates, c_prev):
        # PyTorch gate order: i, f, g, o
        i = jax.nn.sigmoid(gates[:, 0:LH])
        f = jax.nn.sigmoid(gates[:, LH:2 * LH])
        g = jnp.tanh(gates[:, 2 * LH:3 * LH])
        o = jax.nn.sigmoid(gates[:, 3 * LH:4 * LH])
        c_new = f * c_prev + i * g
        return o * jnp.tanh(c_new), c_new

    att_scale = 1.0 / math.sqrt(HEAD_DIM)

    def block_apply(xf, e):
        # ---- attention: x + c_proj(causal_attn(LN1(x))) ----
        h = _layernorm(xf, ln1_w_ref[e], ln1_b_ref[e])
        qkv = jnp.dot(h, wqkv_ref[e], preferred_element_type=jnp.float32) + bqkv_ref[e]
        wproj = wproj_ref[e]                                       # (C, C)
        attn_out = jnp.zeros((BT, C), jnp.float32) + bproj_ref[e]
        for hh in range(N_HEAD):
            lo = hh * HEAD_DIM
            q = qkv[:, lo:lo + HEAD_DIM]
            k = qkv[:, C + lo:C + lo + HEAD_DIM]
            v = qkv[:, 2 * C + lo:2 * C + lo + HEAD_DIM]
            # batch folded into one attention matmul via block-diag causal mask
            att = jax.lax.dot_general(q, k, (((1,), (1,)), ((), ())),
                                      preferred_element_type=jnp.float32) * att_scale
            att = att + attn_bias
            m = jnp.max(att, axis=-1, keepdims=True)
            p = jnp.exp(att - m)
            p = p * pl.reciprocal(jnp.sum(p, axis=-1, keepdims=True), approx=True)
            ctx = jnp.dot(p, v, preferred_element_type=jnp.float32)           # (BT, D)
            # head concat folded into per-head slices of the projection weight
            attn_out = attn_out + jnp.dot(ctx, wproj[lo:lo + HEAD_DIM, :],
                                          preferred_element_type=jnp.float32)
        x1 = xf + attn_out

        # ---- MLP: x1 + c_proj(gelu(fc(LN2(x1)))) ----
        h2 = _layernorm(x1, ln2_w_ref[e], ln2_b_ref[e])
        m1 = _gelu(jnp.dot(h2, wfc_ref[e], preferred_element_type=jnp.float32)
                   + bfc_ref[e])
        m2 = jnp.dot(m1, wmlp_ref[e], preferred_element_type=jnp.float32) + bmlp_ref[e]
        return x1 + m2

    for it in range(MAX_ROUTER_ITER):
        # ---- router: 2-layer LSTM, one timestep, state carried across iters ----
        # Build the (B, T*C) flattened input from contiguous row slices (avoids
        # in-kernel minor-dim reshapes; pure static slices + concat).
        rows = []
        for b in range(B):
            pieces = [x[b * T + t: b * T + t + 1, :] for t in range(T)]
            rows.append(jnp.concatenate(pieces, axis=-1))          # (1, T*C)
        lstm_in = jnp.concatenate(rows, axis=0)                    # (B, T*C)

        g0 = (jnp.dot(lstm_in, wih0, preferred_element_type=jnp.float32)
              + jnp.dot(h_st[0], whh0, preferred_element_type=jnp.float32) + b0)
        h_st[0], c_st[0] = lstm_step(g0, c_st[0])

        g1 = (jnp.dot(h_st[0], wih1, preferred_element_type=jnp.float32)
              + jnp.dot(h_st[1], whh1, preferred_element_type=jnp.float32) + b1)
        h_st[1], c_st[1] = lstm_step(g1, c_st[1])

        r_logits = jnp.dot(h_st[1], rw, preferred_element_type=jnp.float32) + rbias
        rm = jnp.max(r_logits, axis=-1, keepdims=True)
        rp = jnp.exp(r_logits - rm)
        routing = rp / jnp.sum(rp, axis=-1, keepdims=True)         # (B, EXPERT_K)

        # ---- fixed block group, expert outputs weighted by routing ----
        new_x = jnp.zeros((BT, C), jnp.float32)
        for e_i in range(EXPERT_K):
            e = it * EXPERT_K + e_i
            out = block_apply(x, e)                                # (BT, C)
            row_w = jnp.dot(sel, routing[:, e_i:e_i + 1],
                            preferred_element_type=jnp.float32)    # (BT, 1) per-row weight
            new_x = new_x + out * row_w
        x = new_x

    # ---- ln_f + tied lm_head on the last position only (targets=None) ----
    last_rows = [x[(b + 1) * T - 1:(b + 1) * T, :] for b in range(B)]
    x_last = jnp.concatenate(last_rows, axis=0)                    # (B, C)
    hf = _layernorm(x_last, lnf_w_ref[...], lnf_b_ref[...])
    logits_ref[...] = jnp.dot(hf, wte_t_ref[...], preferred_element_type=jnp.float32)


# ------------------------------- full forward ---------------------------------
@jax.jit
def gw_gpt_forward(params, idx):
    B, t = idx.shape
    assert t <= BLOCK_SIZE
    tok = params['wte'][idx]                                   # (B, t, C) gather (XLA glue)
    pos = params['wpe'][:t]                                    # (t, C)
    x = (tok + pos).astype(jnp.float32)                        # dropout p=0 -> identity

    # GW_GPT prepends zero padding up to block_size inside its loop; after the
    # first iteration the pad width is 0, so padding once up front is equivalent.
    pad = jnp.zeros((B, BLOCK_SIZE - t, N_EMBD), jnp.float32)
    x = jnp.concatenate([pad, x], axis=1)                      # (B, T, C)
    x_flat = x.reshape(B * BLOCK_SIZE, N_EMBD)                 # (B*T, C)

    # Precompute (hoisted out of the kernel): block-diagonal causal additive
    # mask and the row->batch one-hot selector used to broadcast routing
    # weights across rows without any in-kernel reshape.
    BT = B * BLOCK_SIZE
    r = jnp.arange(BT, dtype=jnp.int32)
    rbatch = r // BLOCK_SIZE
    rtime = r % BLOCK_SIZE
    allowed = (rbatch[:, None] == rbatch[None, :]) & (rtime[:, None] >= rtime[None, :])
    attn_bias = jnp.where(allowed, 0.0, -1e30).astype(jnp.float32)          # (BT, BT)
    sel = (rbatch[:, None] == jnp.arange(B, dtype=jnp.int32)[None, :]
           ).astype(jnp.float32)                                            # (BT, B)

    logits = pl.pallas_call(
        gwgpt_kernel,
        out_shape=jax.ShapeDtypeStruct((B, VOCAB), jnp.float32),
    )(x_flat, attn_bias, sel,
      params['ln1_w'], params['ln1_b'], params['w_qkv'], params['b_qkv'],
      params['w_attn_proj'], params['b_attn_proj'],
      params['ln2_w'], params['ln2_b'], params['w_fc'], params['b_fc'],
      params['w_mlp_proj'], params['b_mlp_proj'],
      params['lstm_wih0'], params['lstm_whh0'], params['lstm_b0'],
      params['lstm_wih1'], params['lstm_whh1'], params['lstm_b1'],
      params['router_w_t'], params['router_b'],
      params['lnf_w'], params['lnf_b'], params['wte_t'])

    return logits[:, None, :], None                            # (B, 1, vocab), loss=None


# ------------------------------ parameter init --------------------------------
def init_params(key):
    def nkey():
        nonlocal key
        key, sub = jax.random.split(key)
        return sub

    std = 0.02
    proj_std = 0.02 / math.sqrt(2 * N_LAYER)                   # c_proj.weight special init
    L, C = N_LAYER, N_EMBD

    wte = jax.random.normal(nkey(), (VOCAB, C), jnp.float32) * std
    wpe = jax.random.normal(nkey(), (BLOCK_SIZE, C), jnp.float32) * std

    params = dict(
        wte=wte, wpe=wpe, wte_t=wte.T,                         # lm_head tied to wte, bias=False
        ln1_w=jnp.ones((L, 1, C), jnp.float32),
        ln1_b=jnp.zeros((L, 1, C), jnp.float32),
        w_qkv=jax.random.normal(nkey(), (L, C, 3 * C), jnp.float32) * std,
        b_qkv=jnp.zeros((L, 1, 3 * C), jnp.float32),
        w_attn_proj=jax.random.normal(nkey(), (L, C, C), jnp.float32) * proj_std,
        b_attn_proj=jnp.zeros((L, 1, C), jnp.float32),
        ln2_w=jnp.ones((L, 1, C), jnp.float32),
        ln2_b=jnp.zeros((L, 1, C), jnp.float32),
        w_fc=jax.random.normal(nkey(), (L, C, EXPANSION * C), jnp.float32) * std,
        b_fc=jnp.zeros((L, 1, EXPANSION * C), jnp.float32),
        w_mlp_proj=jax.random.normal(nkey(), (L, EXPANSION * C, C), jnp.float32) * proj_std,
        b_mlp_proj=jnp.zeros((L, 1, C), jnp.float32),
        lnf_w=jnp.ones((1, C), jnp.float32),
        lnf_b=jnp.zeros((1, C), jnp.float32),
    )

    bound = 1.0 / math.sqrt(LSTM_HIDDEN)                       # PyTorch LSTM default init
    in0 = BLOCK_SIZE * N_EMBD

    def uni(shape):
        return jax.random.uniform(nkey(), shape, jnp.float32, -bound, bound)

    wih0 = uni((4 * LSTM_HIDDEN, in0))
    whh0 = uni((4 * LSTM_HIDDEN, LSTM_HIDDEN))
    b0 = uni((4 * LSTM_HIDDEN,)) + uni((4 * LSTM_HIDDEN,))     # b_ih + b_hh
    wih1 = uni((4 * LSTM_HIDDEN, LSTM_HIDDEN))
    whh1 = uni((4 * LSTM_HIDDEN, LSTM_HIDDEN))
    b1 = uni((4 * LSTM_HIDDEN,)) + uni((4 * LSTM_HIDDEN,))

    params.update(
        lstm_wih0=wih0.T, lstm_whh0=whh0.T, lstm_b0=b0[None, :],
        lstm_wih1=wih1.T, lstm_whh1=whh1.T, lstm_b1=b1[None, :],
        router_w_t=uni((ROUTER_PROJ, LSTM_HIDDEN)).T,
        router_b=jnp.zeros((1, ROUTER_PROJ), jnp.float32),
    )
    # TODO(synk): config.meta_controller is referenced by GW_GPT but absent from
    # GPTConfig; treated as False (router_proj_size == expert_k).
    return params


if __name__ == "__main__":
    key = jax.random.PRNGKey(0)
    pkey, ikey = jax.random.split(key)
    params = init_params(pkey)

    B, t = 2, 6                                                # t < block_size exercises padding
    idx = jax.random.randint(ikey, (B, t), 0, VOCAB, dtype=jnp.int32)

    logits, loss = gw_gpt_forward(params, idx)
    logits = jax.block_until_ready(logits)
    assert logits.shape == (B, 1, VOCAB)
    assert loss is None
    assert bool(jnp.all(jnp.isfinite(logits)))
    print("KERNEL_OK")
</pallas_src>

<mosaic_0001>
module attributes {stable_mosaic.version = 11 : i64} {
  func.func @gwgpt_kernel(%arg0: memref<16x32xf32, #tpu.memory_space<vmem>>, %arg1: memref<16x16xf32, #tpu.memory_space<vmem>>, %arg2: memref<16x2xf32, #tpu.memory_space<vmem>>, %arg3: memref<4x1x32xf32, #tpu.memory_space<vmem>>, %arg4: memref<4x1x32xf32, #tpu.memory_space<vmem>>, %arg5: memref<4x32x96xf32, #tpu.memory_space<vmem>>, %arg6: memref<4x1x96xf32, #tpu.memory_space<vmem>>, %arg7: memref<4x32x32xf32, #tpu.memory_space<vmem>>, %arg8: memref<4x1x32xf32, #tpu.memory_space<vmem>>, %arg9: memref<4x1x32xf32, #tpu.memory_space<vmem>>, %arg10: memref<4x1x32xf32, #tpu.memory_space<vmem>>, %arg11: memref<4x32x128xf32, #tpu.memory_space<vmem>>, %arg12: memref<4x1x128xf32, #tpu.memory_space<vmem>>, %arg13: memref<4x128x32xf32, #tpu.memory_space<vmem>>, %arg14: memref<4x1x32xf32, #tpu.memory_space<vmem>>, %arg15: memref<256x64xf32, #tpu.memory_space<vmem>>, %arg16: memref<16x64xf32, #tpu.memory_space<vmem>>, %arg17: memref<1x64xf32, #tpu.memory_space<vmem>>, %arg18: memref<16x64xf32, #tpu.memory_space<vmem>>, %arg19: memref<16x64xf32, #tpu.memory_space<vmem>>, %arg20: memref<1x64xf32, #tpu.memory_space<vmem>>, %arg21: memref<16x2xf32, #tpu.memory_space<vmem>>, %arg22: memref<1x2xf32, #tpu.memory_space<vmem>>, %arg23: memref<1x32xf32, #tpu.memory_space<vmem>>, %arg24: memref<1x32xf32, #tpu.memory_space<vmem>>, %arg25: memref<32x64xf32, #tpu.memory_space<vmem>>, %arg26: memref<2x64xf32, #tpu.memory_space<vmem>>) attributes {dimension_semantics = [], scalar_prefetch = 0 : i64, scratch_operands = 0 : i64, tpu.core_type = #tpu.core_type<tc>} {
    %c0 = arith.constant 0 : index
    %c0_0 = arith.constant 0 : index
    %0 = vector.load %arg0[%c0, %c0_0] : memref<16x32xf32, #tpu.memory_space<vmem>>, vector<16x32xf32>
    %c0_1 = arith.constant 0 : index
    %c0_2 = arith.constant 0 : index
    %1 = vector.load %arg1[%c0_1, %c0_2] : memref<16x16xf32, #tpu.memory_space<vmem>>, vector<16x16xf32>
    %c0_3 = arith.constant 0 : index
    %c0_4 = arith.constant 0 : index
    %2 = vector.load %arg2[%c0_3, %c0_4] : memref<16x2xf32, #tpu.memory_space<vmem>>, vector<16x2xf32>
    %c0_5 = arith.constant 0 : index
    %c0_6 = arith.constant 0 : index
    %3 = vector.load %arg15[%c0_5, %c0_6] : memref<256x64xf32, #tpu.memory_space<vmem>>, vector<256x64xf32>
    %c0_7 = arith.constant 0 : index
    %c0_8 = arith.constant 0 : index
    %4 = vector.load %arg16[%c0_7, %c0_8] : memref<16x64xf32, #tpu.memory_space<vmem>>, vector<16x64xf32>
    %c0_9 = arith.constant 0 : index
    %c0_10 = arith.constant 0 : index
    %5 = vector.load %arg17[%c0_9, %c0_10] : memref<1x64xf32, #tpu.memory_space<vmem>>, vector<1x64xf32>
    %c0_11 = arith.constant 0 : index
    %c0_12 = arith.constant 0 : index
    %6 = vector.load %arg18[%c0_11, %c0_12] : memref<16x64xf32, #tpu.memory_space<vmem>>, vector<16x64xf32>
    %c0_13 = arith.constant 0 : index
    %c0_14 = arith.constant 0 : index
    %7 = vector.load %arg19[%c0_13, %c0_14] : memref<16x64xf32, #tpu.memory_space<vmem>>, vector<16x64xf32>
    %c0_15 = arith.constant 0 : index
    %c0_16 = arith.constant 0 : index
    %8 = vector.load %arg20[%c0_15, %c0_16] : memref<1x64xf32, #tpu.memory_space<vmem>>, vector<1x64xf32>
    %c0_17 = arith.constant 0 : index
    %c0_18 = arith.constant 0 : index
    %9 = vector.load %arg21[%c0_17, %c0_18] : memref<16x2xf32, #tpu.memory_space<vmem>>, vector<16x2xf32>
    %c0_19 = arith.constant 0 : index
    %c0_20 = arith.constant 0 : index
    %10 = vector.load %arg22[%c0_19, %c0_20] : memref<1x2xf32, #tpu.memory_space<vmem>>, vector<1x2xf32>
    %cst = arith.constant 0.000000e+00 : f32
    %11 = vector.broadcast %cst : f32 to vector<2x16xf32>
    %cst_21 = arith.constant 0.000000e+00 : f32
    %12 = vector.broadcast %cst_21 : f32 to vector<2x16xf32>
    %cst_22 = arith.constant 0.000000e+00 : f32
    %13 = vector.broadcast %cst_22 : f32 to vector<2x16xf32>
    %cst_23 = arith.constant 0.000000e+00 : f32
    %14 = vector.broadcast %cst_23 : f32 to vector<2x16xf32>
    %15 = vector.extract_strided_slice %0 {offsets = [0, 0], sizes = [1, 32], strides = [1, 1]} : vector<16x32xf32> to vector<1x32xf32>
    %16 = vector.extract_strided_slice %0 {offsets = [1, 0], sizes = [1, 32], strides = [1, 1]} : vector<16x32xf32> to vector<1x32xf32>
    %17 = vector.extract_strided_slice %0 {offsets = [2, 0], sizes = [1, 32], strides = [1, 1]} : vector<16x32xf32> to vector<1x32xf32>
    %18 = vector.extract_strided_slice %0 {offsets = [3, 0], sizes = [1, 32], strides = [1, 1]} : vector<16x32xf32> to vector<1x32xf32>
    %19 = vector.extract_strided_slice %0 {offsets = [4, 0], sizes = [1, 32], strides = [1, 1]} : vector<16x32xf32> to vector<1x32xf32>
    %20 = vector.extract_strided_slice %0 {offsets = [5, 0], sizes = [1, 32], strides = [1, 1]} : vector<16x32xf32> to vector<1x32xf32>
    %21 = vector.extract_strided_slice %0 {offsets = [6, 0], sizes = [1, 32], strides = [1, 1]} : vector<16x32xf32> to vector<1x32xf32>
    %22 = vector.extract_strided_slice %0 {offsets = [7, 0], sizes = [1, 32], strides = [1, 1]} : vector<16x32xf32> to vector<1x32xf32>
    %23 = tpu.concatenate %15, %16, %17, %18, %19, %20, %21, %22 in 1 : vector<1x32xf32>, vector<1x32xf32>, vector<1x32xf32>, vector<1x32xf32>, vector<1x32xf32>, vector<1x32xf32>, vector<1x32xf32>, vector<1x32xf32> -> vector<1x256xf32>
    %24 = vector.extract_strided_slice %0 {offsets = [8, 0], sizes = [1, 32], strides = [1, 1]} : vector<16x32xf32> to vector<1x32xf32>
    %25 = vector.extract_strided_slice %0 {offsets = [9, 0], sizes = [1, 32], strides = [1, 1]} : vector<16x32xf32> to vector<1x32xf32>
    %26 = vector.extract_strided_slice %0 {offsets = [10, 0], sizes = [1, 32], strides = [1, 1]} : vector<16x32xf32> to vector<1x32xf32>
    %27 = vector.extract_strided_slice %0 {offsets = [11, 0], sizes = [1, 32], strides = [1, 1]} : vector<16x32xf32> to vector<1x32xf32>
    %28 = vector.extract_strided_slice %0 {offsets = [12, 0], sizes = [1, 32], strides = [1, 1]} : vector<16x32xf32> to vector<1x32xf32>
    %29 = vector.extract_strided_slice %0 {offsets = [13, 0], sizes = [1, 32], strides = [1, 1]} : vector<16x32xf32> to vector<1x32xf32>
    %30 = vector.extract_strided_slice %0 {offsets = [14, 0], sizes = [1, 32], strides = [1, 1]} : vector<16x32xf32> to vector<1x32xf32>
    %31 = vector.extract_strided_slice %0 {offsets = [15, 0], sizes = [1, 32], strides = [1, 1]} : vector<16x32xf32> to vector<1x32xf32>
    %32 = tpu.concatenate %24, %25, %26, %27, %28, %29, %30, %31 in 1 : vector<1x32xf32>, vector<1x32xf32>, vector<1x32xf32>, vector<1x32xf32>, vector<1x32xf32>, vector<1x32xf32>, vector<1x32xf32>, vector<1x32xf32> -> vector<1x256xf32>
    %33 = tpu.concatenate %23, %32 in 0 : vector<1x256xf32>, vector<1x256xf32> -> vector<2x256xf32>
    %cst_24 = arith.constant dense<0.000000e+00> : vector<2x64xf32>
    %34 = tpu.matmul %33, %3, %cst_24 {dimension_numbers = #tpu.dot_dimension_numbers<[1], [0], [0], [1], [0, 0, 1, 1], [], []>} : vector<2x256xf32>, vector<256x64xf32>, vector<2x64xf32> -> vector<2x64xf32>
    %cst_25 = arith.constant dense<0.000000e+00> : vector<2x64xf32>
    %35 = tpu.matmul %11, %4, %cst_25 {dimension_numbers = #tpu.dot_dimension_numbers<[1], [0], [0], [1], [0, 0, 1, 1], [], []>} : vector<2x16xf32>, vector<16x64xf32>, vector<2x64xf32> -> vector<2x64xf32>
    %36 = arith.addf %34, %35 : vector<2x64xf32>
    %37 = vector.broadcast %5 : vector<1x64xf32> to vector<2x64xf32>
    %38 = arith.addf %36, %37 : vector<2x64xf32>
    %39 = vector.extract_strided_slice %38 {offsets = [0, 0], sizes = [2, 16], strides = [1, 1]} : vector<2x64xf32> to vector<2x16xf32>
    %40 = arith.negf %39 : vector<2x16xf32>
    %41 = math.exp %40 : vector<2x16xf32>
    %cst_26 = arith.constant 1.000000e+00 : f32
    %42 = vector.broadcast %cst_26 : f32 to vector<2x16xf32>
    %43 = arith.addf %42, %41 : vector<2x16xf32>
    %44 = arith.divf %42, %43 : vector<2x16xf32>
    %45 = vector.extract_strided_slice %38 {offsets = [0, 16], sizes = [2, 16], strides = [1, 1]} : vector<2x64xf32> to vector<2x16xf32>
    %46 = arith.negf %45 : vector<2x16xf32>
    %47 = math.exp %46 : vector<2x16xf32>
    %cst_27 = arith.constant 1.000000e+00 : f32
    %48 = vector.broadcast %cst_27 : f32 to vector<2x16xf32>
    %49 = arith.addf %48, %47 : vector<2x16xf32>
    %50 = arith.divf %48, %49 : vector<2x16xf32>
    %51 = vector.extract_strided_slice %38 {offsets = [0, 32], sizes = [2, 16], strides = [1, 1]} : vector<2x64xf32> to vector<2x16xf32>
    %52 = math.tanh %51 : vector<2x16xf32>
    %53 = vector.extract_strided_slice %38 {offsets = [0, 48], sizes = [2, 16], strides = [1, 1]} : vector<2x64xf32> to vector<2x16xf32>
    %54 = arith.negf %53 : vector<2x16xf32>
    %55 = math.exp %54 : vector<2x16xf32>
    %cst_28 = arith.constant 1.000000e+00 : f32
    %56 = vector.broadcast %cst_28 : f32 to vector<2x16xf32>
    %57 = arith.addf %56, %55 : vector<2x16xf32>
    %58 = arith.divf %56, %57 : vector<2x16xf32>
    %59 = arith.mulf %50, %13 : vector<2x16xf32>
    %60 = arith.mulf %44, %52 : vector<2x16xf32>
    %61 = arith.addf %59, %60 : vector<2x16xf32>
    %62 = math.tanh %61 : vector<2x16xf32>
    %63 = arith.mulf %58, %62 : vector<2x16xf32>
    %cst_29 = arith.constant dense<0.000000e+00> : vector<2x64xf32>
    %64 = tpu.matmul %63, %6, %cst_29 {dimension_numbers = #tpu.dot_dimension_numbers<[1], [0], [0], [1], [0, 0, 1, 1], [], []>} : vector<2x16xf32>, vector<16x64xf32>, vector<2x64xf32> -> vector<2x64xf32>
    %cst_30 = arith.constant dense<0.000000e+00> : vector<2x64xf32>
    %65 = tpu.matmul %12, %7, %cst_30 {dimension_numbers = #tpu.dot_dimension_numbers<[1], [0], [0], [1], [0, 0, 1, 1], [], []>} : vector<2x16xf32>, vector<16x64xf32>, vector<2x64xf32> -> vector<2x64xf32>
    %66 = arith.addf %64, %65 : vector<2x64xf32>
    %67 = vector.broadcast %8 : vector<1x64xf32> to vector<2x64xf32>
    %68 = arith.addf %66, %67 : vector<2x64xf32>
    %69 = vector.extract_strided_slice %68 {offsets = [0, 0], sizes = [2, 16], strides = [1, 1]} : vector<2x64xf32> to vector<2x16xf32>
    %70 = arith.negf %69 : vector<2x16xf32>
    %71 = math.exp %70 : vector<2x16xf32>
    %cst_31 = arith.constant 1.000000e+00 : f32
    %72 = vector.broadcast %cst_31 : f32 to vector<2x16xf32>
    %73 = arith.addf %72, %71 : vector<2x16xf32>
    %74 = arith.divf %72, %73 : vector<2x16xf32>
    %75 = vector.extract_strided_slice %68 {offsets = [0, 16], sizes = [2, 16], strides = [1, 1]} : vector<2x64xf32> to vector<2x16xf32>
    %76 = arith.negf %75 : vector<2x16xf32>
    %77 = math.exp %76 : vector<2x16xf32>
    %cst_32 = arith.constant 1.000000e+00 : f32
    %78 = vector.broadcast %cst_32 : f32 to vector<2x16xf32>
    %79 = arith.addf %78, %77 : vector<2x16xf32>
    %80 = arith.divf %78, %79 : vector<2x16xf32>
    %81 = vector.extract_strided_slice %68 {offsets = [0, 32], sizes = [2, 16], strides = [1, 1]} : vector<2x64xf32> to vector<2x16xf32>
    %82 = math.tanh %81 : vector<2x16xf32>
    %83 = vector.extract_strided_slice %68 {offsets = [0, 48], sizes = [2, 16], strides = [1, 1]} : vector<2x64xf32> to vector<2x16xf32>
    %84 = arith.negf %83 : vector<2x16xf32>
    %85 = math.exp %84 : vector<2x16xf32>
    %cst_33 = arith.constant 1.000000e+00 : f32
    %86 = vector.broadcast %cst_33 : f32 to vector<2x16xf32>
    %87 = arith.addf %86, %85 : vector<2x16xf32>
    %88 = arith.divf %86, %87 : vector<2x16xf32>
    %89 = arith.mulf %80, %14 : vector<2x16xf32>
    %90 = arith.mulf %74, %82 : vector<2x16xf32>
    %91 = arith.addf %89, %90 : vector<2x16xf32>
    %92 = math.tanh %91 : vector<2x16xf32>
    %93 = arith.mulf %88, %92 : vector<2x16xf32>
    %cst_34 = arith.constant dense<0.000000e+00> : vector<2x2xf32>
    %94 = tpu.matmul %93, %9, %cst_34 {dimension_numbers = #tpu.dot_dimension_numbers<[1], [0], [0], [1], [0, 0, 1, 1], [], []>} : vector<2x16xf32>, vector<16x2xf32>, vector<2x2xf32> -> vector<2x2xf32>
    %95 = vector.broadcast %10 : vector<1x2xf32> to vector<2x2xf32>
    %96 = arith.addf %94, %95 : vector<2x2xf32>
    %cst_35 = arith.constant dense<0xFF800000> : vector<2xf32>
    %97 = vector.multi_reduction <maximumf>, %96, %cst_35 [1] : vector<2x2xf32> to vector<2xf32>
    %98 = vector.shape_cast %97 : vector<2xf32> to vector<2x1xf32>
    %99 = vector.broadcast %98 : vector<2x1xf32> to vector<2x2xf32>
    %100 = arith.subf %96, %99 : vector<2x2xf32>
    %101 = math.exp %100 : vector<2x2xf32>
    %cst_36 = arith.constant dense<0.000000e+00> : vector<2xf32>
    %102 = vector.multi_reduction <add>, %101, %cst_36 [1] : vector<2x2xf32> to vector<2xf32>
    %103 = vector.shape_cast %102 : vector<2xf32> to vector<2x1xf32>
    %104 = vector.broadcast %103 : vector<2x1xf32> to vector<2x2xf32>
    %105 = arith.divf %101, %104 : vector<2x2xf32>
    %cst_37 = arith.constant 0.000000e+00 : f32
    %106 = vector.broadcast %cst_37 : f32 to vector<16x32xf32>
    %c0_38 = arith.constant 0 : index
    %c0_39 = arith.constant 0 : index
    %c0_40 = arith.constant 0 : index
    %107 = vector.load %arg3[%c0_38, %c0_39, %c0_40] : memref<4x1x32xf32, #tpu.memory_space<vmem>>, vector<1x1x32xf32>
    %108 = vector.shape_cast %107 : vector<1x1x32xf32> to vector<1x32xf32>
    %c0_41 = arith.constant 0 : index
    %c0_42 = arith.constant 0 : index
    %c0_43 = arith.constant 0 : index
    %109 = vector.load %arg4[%c0_41, %c0_42, %c0_43] : memref<4x1x32xf32, #tpu.memory_space<vmem>>, vector<1x1x32xf32>
    %110 = vector.shape_cast %109 : vector<1x1x32xf32> to vector<1x32xf32>
    %cst_44 = arith.constant dense<0.000000e+00> : vector<16xf32>
    %111 = vector.multi_reduction <add>, %0, %cst_44 [1] : vector<16x32xf32> to vector<16xf32>
    %112 = vector.shape_cast %111 : vector<16xf32> to vector<16x1xf32>
    %cst_45 = arith.constant 3.200000e+01 : f32
    %113 = vector.broadcast %cst_45 : f32 to vector<16x1xf32>
    %114 = arith.divf %112, %113 : vector<16x1xf32>
    %115 = vector.broadcast %114 : vector<16x1xf32> to vector<16x32xf32>
    %116 = arith.subf %0, %115 : vector<16x32xf32>
    %117 = arith.mulf %116, %116 : vector<16x32xf32>
    %cst_46 = arith.constant dense<0.000000e+00> : vector<16xf32>
    %118 = vector.multi_reduction <add>, %117, %cst_46 [1] : vector<16x32xf32> to vector<16xf32>
    %119 = vector.shape_cast %118 : vector<16xf32> to vector<16x1xf32>
    %cst_47 = arith.constant 3.200000e+01 : f32
    %120 = vector.broadcast %cst_47 : f32 to vector<16x1xf32>
    %121 = arith.divf %119, %120 : vector<16x1xf32>
    %122 = vector.broadcast %114 : vector<16x1xf32> to vector<16x32xf32>
    %123 = arith.subf %0, %122 : vector<16x32xf32>
    %cst_48 = arith.constant 9.99999974E-6 : f32
    %124 = vector.broadcast %cst_48 : f32 to vector<16x1xf32>
    %125 = arith.addf %121, %124 : vector<16x1xf32>
    %126 = math.rsqrt %125 : vector<16x1xf32>
    %127 = vector.broadcast %126 : vector<16x1xf32> to vector<16x32xf32>
    %128 = arith.mulf %123, %127 : vector<16x32xf32>
    %129 = vector.broadcast %108 : vector<1x32xf32> to vector<16x32xf32>
    %130 = arith.mulf %128, %129 : vector<16x32xf32>
    %131 = vector.broadcast %110 : vector<1x32xf32> to vector<16x32xf32>
    %132 = arith.addf %130, %131 : vector<16x32xf32>
    %c0_49 = arith.constant 0 : index
    %c0_50 = arith.constant 0 : index
    %c0_51 = arith.constant 0 : index
    %133 = vector.load %arg5[%c0_49, %c0_50, %c0_51] : memref<4x32x96xf32, #tpu.memory_space<vmem>>, vector<1x32x96xf32>
    %134 = vector.shape_cast %133 : vector<1x32x96xf32> to vector<32x96xf32>
    %cst_52 = arith.constant dense<0.000000e+00> : vector<16x96xf32>
    %135 = tpu.matmul %132, %134, %cst_52 {dimension_numbers = #tpu.dot_dimension_numbers<[1], [0], [0], [1], [0, 0, 1, 1], [], []>} : vector<16x32xf32>, vector<32x96xf32>, vector<16x96xf32> -> vector<16x96xf32>
    %c0_53 = arith.constant 0 : index
    %c0_54 = arith.constant 0 : index
    %c0_55 = arith.constant 0 : index
    %136 = vector.load %arg6[%c0_53, %c0_54, %c0_55] : memref<4x1x96xf32, #tpu.memory_space<vmem>>, vector<1x1x96xf32>
    %137 = vector.shape_cast %136 : vector<1x1x96xf32> to vector<1x96xf32>
    %138 = vector.broadcast %137 : vector<1x96xf32> to vector<16x96xf32>
    %139 = arith.addf %135, %138 : vector<16x96xf32>
    %c0_56 = arith.constant 0 : index
    %c0_57 = arith.constant 0 : index
    %c0_58 = arith.constant 0 : index
    %140 = vector.load %arg7[%c0_56, %c0_57, %c0_58] : memref<4x32x32xf32, #tpu.memory_space<vmem>>, vector<1x32x32xf32>
    %141 = vector.shape_cast %140 : vector<1x32x32xf32> to vector<32x32xf32>
    %cst_59 = arith.constant 0.000000e+00 : f32
    %142 = vector.broadcast %cst_59 : f32 to vector<16x32xf32>
    %c0_60 = arith.constant 0 : index
    %c0_61 = arith.constant 0 : index
    %c0_62 = arith.constant 0 : index
    %143 = vector.load %arg8[%c0_60, %c0_61, %c0_62] : memref<4x1x32xf32, #tpu.memory_space<vmem>>, vector<1x1x32xf32>
    %144 = vector.shape_cast %143 : vector<1x1x32xf32> to vector<1x32xf32>
    %145 = vector.broadcast %144 : vector<1x32xf32> to vector<16x32xf32>
    %146 = arith.addf %142, %145 : vector<16x32xf32>
    %147 = vector.extract_strided_slice %139 {offsets = [0, 0], sizes = [16, 16], strides = [1, 1]} : vector<16x96xf32> to vector<16x16xf32>
    %148 = vector.extract_strided_slice %139 {offsets = [0, 32], sizes = [16, 16], strides = [1, 1]} : vector<16x96xf32> to vector<16x16xf32>
    %149 = vector.extract_strided_slice %139 {offsets = [0, 64], sizes = [16, 16], strides = [1, 1]} : vector<16x96xf32> to vector<16x16xf32>
    %cst_63 = arith.constant dense<0.000000e+00> : vector<16x16xf32>
    %150 = tpu.matmul %147, %148, %cst_63 {dimension_numbers = #tpu.dot_dimension_numbers<[1], [1], [0], [0], [0, 0, 1, 0], [], []>} : vector<16x16xf32>, vector<16x16xf32>, vector<16x16xf32> -> vector<16x16xf32>
    %cst_64 = arith.constant 2.500000e-01 : f32
    %151 = vector.broadcast %cst_64 : f32 to vector<16x16xf32>
    %152 = arith.mulf %150, %151 : vector<16x16xf32>
    %153 = arith.addf %152, %1 : vector<16x16xf32>
    %cst_65 = arith.constant dense<0xFF800000> : vector<16xf32>
    %154 = vector.multi_reduction <maximumf>, %153, %cst_65 [1] : vector<16x16xf32> to vector<16xf32>
    %155 = vector.shape_cast %154 : vector<16xf32> to vector<16x1xf32>
    %156 = vector.broadcast %155 : vector<16x1xf32> to vector<16x16xf32>
    %157 = arith.subf %153, %156 : vector<16x16xf32>
    %158 = math.exp %157 : vector<16x16xf32>
    %cst_66 = arith.constant dense<0.000000e+00> : vector<16xf32>
    %159 = vector.multi_reduction <add>, %158, %cst_66 [1] : vector<16x16xf32> to vector<16xf32>
    %160 = vector.shape_cast %159 : vector<16xf32> to vector<16x1xf32>
    %161 = tpu.reciprocal %160 {approx = true} : vector<16x1xf32> -> vector<16x1xf32>
    %162 = vector.broadcast %161 : vector<16x1xf32> to vector<16x16xf32>
    %163 = arith.mulf %158, %162 : vector<16x16xf32>
    %cst_67 = arith.constant dense<0.000000e+00> : vector<16x16xf32>
    %164 = tpu.matmul %163, %149, %cst_67 {dimension_numbers = #tpu.dot_dimension_numbers<[1], [0], [0], [1], [0, 0, 1, 1], [], []>} : vector<16x16xf32>, vector<16x16xf32>, vector<16x16xf32> -> vector<16x16xf32>
    %165 = vector.extract_strided_slice %141 {offsets = [0, 0], sizes = [16, 32], strides = [1, 1]} : vector<32x32xf32> to vector<16x32xf32>
    %cst_68 = arith.constant dense<0.000000e+00> : vector<16x32xf32>
    %166 = tpu.matmul %164, %165, %cst_68 {dimension_numbers = #tpu.dot_dimension_numbers<[1], [0], [0], [1], [0, 0, 1, 1], [], []>} : vector<16x16xf32>, vector<16x32xf32>, vector<16x32xf32> -> vector<16x32xf32>
    %167 = arith.addf %146, %166 : vector<16x32xf32>
    %168 = vector.extract_strided_slice %139 {offsets = [0, 16], sizes = [16, 16], strides = [1, 1]} : vector<16x96xf32> to vector<16x16xf32>
    %169 = vector.extract_strided_slice %139 {offsets = [0, 48], sizes = [16, 16], strides = [1, 1]} : vector<16x96xf32> to vector<16x16xf32>
    %170 = vector.extract_strided_slice %139 {offsets = [0, 80], sizes = [16, 16], strides = [1, 1]} : vector<16x96xf32> to vector<16x16xf32>
    %cst_69 = arith.constant dense<0.000000e+00> : vector<16x16xf32>
    %171 = tpu.matmul %168, %169, %cst_69 {dimension_numbers = #tpu.dot_dimension_numbers<[1], [1], [0], [0], [0, 0, 1, 0], [], []>} : vector<16x16xf32>, vector<16x16xf32>, vector<16x16xf32> -> vector<16x16xf32>
    %cst_70 = arith.constant 2.500000e-01 : f32
    %172 = vector.broadcast %cst_70 : f32 to vector<16x16xf32>
    %173 = arith.mulf %171, %172 : vector<16x16xf32>
    %174 = arith.addf %173, %1 : vector<16x16xf32>
    %cst_71 = arith.constant dense<0xFF800000> : vector<16xf32>
    %175 = vector.multi_reduction <maximumf>, %174, %cst_71 [1] : vector<16x16xf32> to vector<16xf32>
    %176 = vector.shape_cast %175 : vector<16xf32> to vector<16x1xf32>
    %177 = vector.broadcast %176 : vector<16x1xf32> to vector<16x16xf32>
    %178 = arith.subf %174, %177 : vector<16x16xf32>
    %179 = math.exp %178 : vector<16x16xf32>
    %cst_72 = arith.constant dense<0.000000e+00> : vector<16xf32>
    %180 = vector.multi_reduction <add>, %179, %cst_72 [1] : vector<16x16xf32> to vector<16xf32>
    %181 = vector.shape_cast %180 : vector<16xf32> to vector<16x1xf32>
    %182 = tpu.reciprocal %181 {approx = true} : vector<16x1xf32> -> vector<16x1xf32>
    %183 = vector.broadcast %182 : vector<16x1xf32> to vector<16x16xf32>
    %184 = arith.mulf %179, %183 : vector<16x16xf32>
    %cst_73 = arith.constant dense<0.000000e+00> : vector<16x16xf32>
    %185 = tpu.matmul %184, %170, %cst_73 {dimension_numbers = #tpu.dot_dimension_numbers<[1], [0], [0], [1], [0, 0, 1, 1], [], []>} : vector<16x16xf32>, vector<16x16xf32>, vector<16x16xf32> -> vector<16x16xf32>
    %186 = vector.extract_strided_slice %141 {offsets = [16, 0], sizes = [16, 32], strides = [1, 1]} : vector<32x32xf32> to vector<16x32xf32>
    %cst_74 = arith.constant dense<0.000000e+00> : vector<16x32xf32>
    %187 = tpu.matmul %185, %186, %cst_74 {dimension_numbers = #tpu.dot_dimension_numbers<[1], [0], [0], [1], [0, 0, 1, 1], [], []>} : vector<16x16xf32>, vector<16x32xf32>, vector<16x32xf32> -> vector<16x32xf32>
    %188 = arith.addf %167, %187 : vector<16x32xf32>
    %189 = arith.addf %0, %188 : vector<16x32xf32>
    %c0_75 = arith.constant 0 : index
    %c0_76 = arith.constant 0 : index
    %c0_77 = arith.constant 0 : index
    %190 = vector.load %arg9[%c0_75, %c0_76, %c0_77] : memref<4x1x32xf32, #tpu.memory_space<vmem>>, vector<1x1x32xf32>
    %191 = vector.shape_cast %190 : vector<1x1x32xf32> to vector<1x32xf32>
    %c0_78 = arith.constant 0 : index
    %c0_79 = arith.constant 0 : index
    %c0_80 = arith.constant 0 : index
    %192 = vector.load %arg10[%c0_78, %c0_79, %c0_80] : memref<4x1x32xf32, #tpu.memory_space<vmem>>, vector<1x1x32xf32>
    %193 = vector.shape_cast %192 : vector<1x1x32xf32> to vector<1x32xf32>
    %cst_81 = arith.constant dense<0.000000e+00> : vector<16xf32>
    %194 = vector.multi_reduction <add>, %189, %cst_81 [1] : vector<16x32xf32> to vector<16xf32>
    %195 = vector.shape_cast %194 : vector<16xf32> to vector<16x1xf32>
    %cst_82 = arith.constant 3.200000e+01 : f32
    %196 = vector.broadcast %cst_82 : f32 to vector<16x1xf32>
    %197 = arith.divf %195, %196 : vector<16x1xf32>
    %198 = vector.broadcast %197 : vector<16x1xf32> to vector<16x32xf32>
    %199 = arith.subf %189, %198 : vector<16x32xf32>
    %200 = arith.mulf %199, %199 : vector<16x32xf32>
    %cst_83 = arith.constant dense<0.000000e+00> : vector<16xf32>
    %201 = vector.multi_reduction <add>, %200, %cst_83 [1] : vector<16x32xf32> to vector<16xf32>
    %202 = vector.shape_cast %201 : vector<16xf32> to vector<16x1xf32>
    %cst_84 = arith.constant 3.200000e+01 : f32
    %203 = vector.broadcast %cst_84 : f32 to vector<16x1xf32>
    %204 = arith.divf %202, %203 : vector<16x1xf32>
    %205 = vector.broadcast %197 : vector<16x1xf32> to vector<16x32xf32>
    %206 = arith.subf %189, %205 : vector<16x32xf32>
    %cst_85 = arith.constant 9.99999974E-6 : f32
    %207 = vector.broadcast %cst_85 : f32 to vector<16x1xf32>
    %208 = arith.addf %204, %207 : vector<16x1xf32>
    %209 = math.rsqrt %208 : vector<16x1xf32>
    %210 = vector.broadcast %209 : vector<16x1xf32> to vector<16x32xf32>
    %211 = arith.mulf %206, %210 : vector<16x32xf32>
    %212 = vector.broadcast %191 : vector<1x32xf32> to vector<16x32xf32>
    %213 = arith.mulf %211, %212 : vector<16x32xf32>
    %214 = vector.broadcast %193 : vector<1x32xf32> to vector<16x32xf32>
    %215 = arith.addf %213, %214 : vector<16x32xf32>
    %c0_86 = arith.constant 0 : index
    %c0_87 = arith.constant 0 : index
    %c0_88 = arith.constant 0 : index
    %216 = vector.load %arg11[%c0_86, %c0_87, %c0_88] : memref<4x32x128xf32, #tpu.memory_space<vmem>>, vector<1x32x128xf32>
    %217 = vector.shape_cast %216 : vector<1x32x128xf32> to vector<32x128xf32>
    %cst_89 = arith.constant dense<0.000000e+00> : vector<16x128xf32>
    %218 = tpu.matmul %215, %217, %cst_89 {dimension_numbers = #tpu.dot_dimension_numbers<[1], [0], [0], [1], [0, 0, 1, 1], [], []>} : vector<16x32xf32>, vector<32x128xf32>, vector<16x128xf32> -> vector<16x128xf32>
    %c0_90 = arith.constant 0 : index
    %c0_91 = arith.constant 0 : index
    %c0_92 = arith.constant 0 : index
    %219 = vector.load %arg12[%c0_90, %c0_91, %c0_92] : memref<4x1x128xf32, #tpu.memory_space<vmem>>, vector<1x1x128xf32>
    %220 = vector.shape_cast %219 : vector<1x1x128xf32> to vector<1x128xf32>
    %221 = vector.broadcast %220 : vector<1x128xf32> to vector<16x128xf32>
    %222 = arith.addf %218, %221 : vector<16x128xf32>
    %cst_93 = arith.constant 5.000000e-01 : f32
    %223 = vector.broadcast %cst_93 : f32 to vector<16x128xf32>
    %224 = arith.mulf %223, %222 : vector<16x128xf32>
    %cst_94 = arith.constant 0.707106769 : f32
    %225 = vector.broadcast %cst_94 : f32 to vector<16x128xf32>
    %226 = arith.mulf %222, %225 : vector<16x128xf32>
    %cst_95 = arith.constant 0.000000e+00 : f32
    %227 = vector.broadcast %cst_95 : f32 to vector<16x128xf32>
    %228 = arith.cmpf oge, %226, %227 : vector<16x128xf32>
    %cst_96 = arith.constant 1.000000e+00 : f32
    %cst_97 = arith.constant -1.000000e+00 : f32
    %229 = vector.broadcast %cst_96 : f32 to vector<16x128xf32>
    %230 = vector.broadcast %cst_97 : f32 to vector<16x128xf32>
    %231 = arith.select %228, %229, %230 : vector<16x128xi1>, vector<16x128xf32>
    %232 = math.absf %226 : vector<16x128xf32>
    %cst_98 = arith.constant 0.327591091 : f32
    %233 = vector.broadcast %cst_98 : f32 to vector<16x128xf32>
    %234 = arith.mulf %233, %232 : vector<16x128xf32>
    %cst_99 = arith.constant 1.000000e+00 : f32
    %235 = vector.broadcast %cst_99 : f32 to vector<16x128xf32>
    %236 = arith.addf %235, %234 : vector<16x128xf32>
    %cst_100 = arith.constant 1.000000e+00 : f32
    %237 = vector.broadcast %cst_100 : f32 to vector<16x128xf32>
    %238 = arith.divf %237, %236 : vector<16x128xf32>
    %cst_101 = arith.constant 1.06140542 : f32
    %239 = vector.broadcast %cst_101 : f32 to vector<16x128xf32>
    %240 = arith.mulf %239, %238 : vector<16x128xf32>
    %cst_102 = arith.constant -1.45315206 : f32
    %241 = vector.broadcast %cst_102 : f32 to vector<16x128xf32>
    %242 = arith.addf %240, %241 : vector<16x128xf32>
    %243 = arith.mulf %242, %238 : vector<16x128xf32>
    %cst_103 = arith.constant 1.42141378 : f32
    %244 = vector.broadcast %cst_103 : f32 to vector<16x128xf32>
    %245 = arith.addf %243, %244 : vector<16x128xf32>
    %246 = arith.mulf %245, %238 : vector<16x128xf32>
    %cst_104 = arith.constant -0.284496725 : f32
    %247 = vector.broadcast %cst_104 : f32 to vector<16x128xf32>
    %248 = arith.addf %246, %247 : vector<16x128xf32>
    %249 = arith.mulf %248, %238 : vector<16x128xf32>
    %cst_105 = arith.constant 0.254829586 : f32
    %250 = vector.broadcast %cst_105 : f32 to vector<16x128xf32>
    %251 = arith.addf %249, %250 : vector<16x128xf32>
    %252 = arith.mulf %251, %238 : vector<16x128xf32>
    %cst_106 = arith.constant 0.000000e+00 : f32
    %253 = vector.broadcast %cst_106 : f32 to vector<16x128xf32>
    %254 = arith.subf %253, %232 : vector<16x128xf32>
    %255 = arith.mulf %254, %232 : vector<16x128xf32>
    %256 = math.exp %255 : vector<16x128xf32>
    %257 = arith.mulf %252, %256 : vector<16x128xf32>
    %cst_107 = arith.constant 1.000000e+00 : f32
    %258 = vector.broadcast %cst_107 : f32 to vector<16x128xf32>
    %259 = arith.subf %258, %257 : vector<16x128xf32>
    %260 = arith.mulf %231, %259 : vector<16x128xf32>
    %cst_108 = arith.constant 1.000000e+00 : f32
    %261 = vector.broadcast %cst_108 : f32 to vector<16x128xf32>
    %262 = arith.addf %261, %260 : vector<16x128xf32>
    %263 = arith.mulf %224, %262 : vector<16x128xf32>
    %c0_109 = arith.constant 0 : index
    %c0_110 = arith.constant 0 : index
    %c0_111 = arith.constant 0 : index
    %264 = vector.load %arg13[%c0_109, %c0_110, %c0_111] : memref<4x128x32xf32, #tpu.memory_space<vmem>>, vector<1x128x32xf32>
    %265 = vector.shape_cast %264 : vector<1x128x32xf32> to vector<128x32xf32>
    %cst_112 = arith.constant dense<0.000000e+00> : vector<16x32xf32>
    %266 = tpu.matmul %263, %265, %cst_112 {dimension_numbers = #tpu.dot_dimension_numbers<[1], [0], [0], [1], [0, 0, 1, 1], [], []>} : vector<16x128xf32>, vector<128x32xf32>, vector<16x32xf32> -> vector<16x32xf32>
    %c0_113 = arith.constant 0 : index
    %c0_114 = arith.constant 0 : index
    %c0_115 = arith.constant 0 : index
    %267 = vector.load %arg14[%c0_113, %c0_114, %c0_115] : memref<4x1x32xf32, #tpu.memory_space<vmem>>, vector<1x1x32xf32>
    %268 = vector.shape_cast %267 : vector<1x1x32xf32> to vector<1x32xf32>
    %269 = vector.broadcast %268 : vector<1x32xf32> to vector<16x32xf32>
    %270 = arith.addf %266, %269 : vector<16x32xf32>
    %271 = arith.addf %189, %270 : vector<16x32xf32>
    %272 = vector.extract_strided_slice %105 {offsets = [0, 0], sizes = [2, 1], strides = [1, 1]} : vector<2x2xf32> to vector<2x1xf32>
    %cst_116 = arith.constant dense<0.000000e+00> : vector<16x1xf32>
    %273 = tpu.matmul %2, %272, %cst_116 {dimension_numbers = #tpu.dot_dimension_numbers<[1], [0], [0], [1], [0, 0, 1, 1], [], []>} : vector<16x2xf32>, vector<2x1xf32>, vector<16x1xf32> -> vector<16x1xf32>
    %274 = vector.broadcast %273 : vector<16x1xf32> to vector<16x32xf32>
    %275 = arith.mulf %271, %274 : vector<16x32xf32>
    %276 = arith.addf %106, %275 : vector<16x32xf32>
    %c1 = arith.constant 1 : index
    %c0_117 = arith.constant 0 : index
    %c0_118 = arith.constant 0 : index
    %277 = vector.load %arg3[%c1, %c0_117, %c0_118] : memref<4x1x32xf32, #tpu.memory_space<vmem>>, vector<1x1x32xf32>
    %278 = vector.shape_cast %277 : vector<1x1x32xf32> to vector<1x32xf32>
    %c1_119 = arith.constant 1 : index
    %c0_120 = arith.constant 0 : index
    %c0_121 = arith.constant 0 : index
    %279 = vector.load %arg4[%c1_119, %c0_120, %c0_121] : memref<4x1x32xf32, #tpu.memory_space<vmem>>, vector<1x1x32xf32>
    %280 = vector.shape_cast %279 : vector<1x1x32xf32> to vector<1x32xf32>
    %cst_122 = arith.constant dense<0.000000e+00> : vector<16xf32>
    %281 = vector.multi_reduction <add>, %0, %cst_122 [1] : vector<16x32xf32> to vector<16xf32>
    %282 = vector.shape_cast %281 : vector<16xf32> to vector<16x1xf32>
    %cst_123 = arith.constant 3.200000e+01 : f32
    %283 = vector.broadcast %cst_123 : f32 to vector<16x1xf32>
    %284 = arith.divf %282, %283 : vector<16x1xf32>
    %285 = vector.broadcast %284 : vector<16x1xf32> to vector<16x32xf32>
    %286 = arith.subf %0, %285 : vector<16x32xf32>
    %287 = arith.mulf %286, %286 : vector<16x32xf32>
    %cst_124 = arith.constant dense<0.000000e+00> : vector<16xf32>
    %288 = vector.multi_reduction <add>, %287, %cst_124 [1] : vector<16x32xf32> to vector<16xf32>
    %289 = vector.shape_cast %288 : vector<16xf32> to vector<16x1xf32>
    %cst_125 = arith.constant 3.200000e+01 : f32
    %290 = vector.broadcast %cst_125 : f32 to vector<16x1xf32>
    %291 = arith.divf %289, %290 : vector<16x1xf32>
    %292 = vector.broadcast %284 : vector<16x1xf32> to vector<16x32xf32>
    %293 = arith.subf %0, %292 : vector<16x32xf32>
    %cst_126 = arith.constant 9.99999974E-6 : f32
    %294 = vector.broadcast %cst_126 : f32 to vector<16x1xf32>
    %295 = arith.addf %291, %294 : vector<16x1xf32>
    %296 = math.rsqrt %295 : vector<16x1xf32>
    %297 = vector.broadcast %296 : vector<16x1xf32> to vector<16x32xf32>
    %298 = arith.mulf %293, %297 : vector<16x32xf32>
    %299 = vector.broadcast %278 : vector<1x32xf32> to vector<16x32xf32>
    %300 = arith.mulf %298, %299 : vector<16x32xf32>
    %301 = vector.broadcast %280 : vector<1x32xf32> to vector<16x32xf32>
    %302 = arith.addf %300, %301 : vector<16x32xf32>
    %c1_127 = arith.constant 1 : index
    %c0_128 = arith.constant 0 : index
    %c0_129 = arith.constant 0 : index
    %303 = vector.load %arg5[%c1_127, %c0_128, %c0_129] : memref<4x32x96xf32, #tpu.memory_space<vmem>>, vector<1x32x96xf32>
    %304 = vector.shape_cast %303 : vector<1x32x96xf32> to vector<32x96xf32>
    %cst_130 = arith.constant dense<0.000000e+00> : vector<16x96xf32>
    %305 = tpu.matmul %302, %304, %cst_130 {dimension_numbers = #tpu.dot_dimension_numbers<[1], [0], [0], [1], [0, 0, 1, 1], [], []>} : vector<16x32xf32>, vector<32x96xf32>, vector<16x96xf32> -> vector<16x96xf32>
    %c1_131 = arith.constant 1 : index
    %c0_132 = arith.constant 0 : index
    %c0_133 = arith.constant 0 : index
    %306 = vector.load %arg6[%c1_131, %c0_132, %c0_133] : memref<4x1x96xf32, #tpu.memory_space<vmem>>, vector<1x1x96xf32>
    %307 = vector.shape_cast %306 : vector<1x1x96xf32> to vector<1x96xf32>
    %308 = vector.broadcast %307 : vector<1x96xf32> to vector<16x96xf32>
    %309 = arith.addf %305, %308 : vector<16x96xf32>
    %c1_134 = arith.constant 1 : index
    %c0_135 = arith.constant 0 : index
    %c0_136 = arith.constant 0 : index
    %310 = vector.load %arg7[%c1_134, %c0_135, %c0_136] : memref<4x32x32xf32, #tpu.memory_space<vmem>>, vector<1x32x32xf32>
    %311 = vector.shape_cast %310 : vector<1x32x32xf32> to vector<32x32xf32>
    %cst_137 = arith.constant 0.000000e+00 : f32
    %312 = vector.broadcast %cst_137 : f32 to vector<16x32xf32>
    %c1_138 = arith.constant 1 : index
    %c0_139 = arith.constant 0 : index
    %c0_140 = arith.constant 0 : index
    %313 = vector.load %arg8[%c1_138, %c0_139, %c0_140] : memref<4x1x32xf32, #tpu.memory_space<vmem>>, vector<1x1x32xf32>
    %314 = vector.shape_cast %313 : vector<1x1x32xf32> to vector<1x32xf32>
    %315 = vector.broadcast %314 : vector<1x32xf32> to vector<16x32xf32>
    %316 = arith.addf %312, %315 : vector<16x32xf32>
    %317 = vector.extract_strided_slice %309 {offsets = [0, 0], sizes = [16, 16], strides = [1, 1]} : vector<16x96xf32> to vector<16x16xf32>
    %318 = vector.extract_strided_slice %309 {offsets = [0, 32], sizes = [16, 16], strides = [1, 1]} : vector<16x96xf32> to vector<16x16xf32>
    %319 = vector.extract_strided_slice %309 {offsets = [0, 64], sizes = [16, 16], strides = [1, 1]} : vector<16x96xf32> to vector<16x16xf32>
    %cst_141 = arith.constant dense<0.000000e+00> : vector<16x16xf32>
    %320 = tpu.matmul %317, %318, %cst_141 {dimension_numbers = #tpu.dot_dimension_numbers<[1], [1], [0], [0], [0, 0, 1, 0], [], []>} : vector<16x16xf32>, vector<16x16xf32>, vector<16x16xf32> -> vector<16x16xf32>
    %cst_142 = arith.constant 2.500000e-01 : f32
    %321 = vector.broadcast %cst_142 : f32 to vector<16x16xf32>
    %322 = arith.mulf %320, %321 : vector<16x16xf32>
    %323 = arith.addf %322, %1 : vector<16x16xf32>
    %cst_143 = arith.constant dense<0xFF800000> : vector<16xf32>
    %324 = vector.multi_reduction <maximumf>, %323, %cst_143 [1] : vector<16x16xf32> to vector<16xf32>
    %325 = vector.shape_cast %324 : vector<16xf32> to vector<16x1xf32>
    %326 = vector.broadcast %325 : vector<16x1xf32> to vector<16x16xf32>
    %327 = arith.subf %323, %326 : vector<16x16xf32>
    %328 = math.exp %327 : vector<16x16xf32>
    %cst_144 = arith.constant dense<0.000000e+00> : vector<16xf32>
    %329 = vector.multi_reduction <add>, %328, %cst_144 [1] : vector<16x16xf32> to vector<16xf32>
    %330 = vector.shape_cast %329 : vector<16xf32> to vector<16x1xf32>
    %331 = tpu.reciprocal %330 {approx = true} : vector<16x1xf32> -> vector<16x1xf32>
    %332 = vector.broadcast %331 : vector<16x1xf32> to vector<16x16xf32>
    %333 = arith.mulf %328, %332 : vector<16x16xf32>
    %cst_145 = arith.constant dense<0.000000e+00> : vector<16x16xf32>
    %334 = tpu.matmul %333, %319, %cst_145 {dimension_numbers = #tpu.dot_dimension_numbers<[1], [0], [0], [1], [0, 0, 1, 1], [], []>} : vector<16x16xf32>, vector<16x16xf32>, vector<16x16xf32> -> vector<16x16xf32>
    %335 = vector.extract_strided_slice %311 {offsets = [0, 0], sizes = [16, 32], strides = [1, 1]} : vector<32x32xf32> to vector<16x32xf32>
    %cst_146 = arith.constant dense<0.000000e+00> : vector<16x32xf32>
    %336 = tpu.matmul %334, %335, %cst_146 {dimension_numbers = #tpu.dot_dimension_numbers<[1], [0], [0], [1], [0, 0, 1, 1], [], []>} : vector<16x16xf32>, vector<16x32xf32>, vector<16x32xf32> -> vector<16x32xf32>
    %337 = arith.addf %316, %336 : vector<16x32xf32>
    %338 = vector.extract_strided_slice %309 {offsets = [0, 16], sizes = [16, 16], strides = [1, 1]} : vector<16x96xf32> to vector<16x16xf32>
    %339 = vector.extract_strided_slice %309 {offsets = [0, 48], sizes = [16, 16], strides = [1, 1]} : vector<16x96xf32> to vector<16x16xf32>
    %340 = vector.extract_strided_slice %309 {offsets = [0, 80], sizes = [16, 16], strides = [1, 1]} : vector<16x96xf32> to vector<16x16xf32>
    %cst_147 = arith.constant dense<0.000000e+00> : vector<16x16xf32>
    %341 = tpu.matmul %338, %339, %cst_147 {dimension_numbers = #tpu.dot_dimension_numbers<[1], [1], [0], [0], [0, 0, 1, 0], [], []>} : vector<16x16xf32>, vector<16x16xf32>, vector<16x16xf32> -> vector<16x16xf32>
    %cst_148 = arith.constant 2.500000e-01 : f32
    %342 = vector.broadcast %cst_148 : f32 to vector<16x16xf32>
    %343 = arith.mulf %341, %342 : vector<16x16xf32>
    %344 = arith.addf %343, %1 : vector<16x16xf32>
    %cst_149 = arith.constant dense<0xFF800000> : vector<16xf32>
    %345 = vector.multi_reduction <maximumf>, %344, %cst_149 [1] : vector<16x16xf32> to vector<16xf32>
    %346 = vector.shape_cast %345 : vector<16xf32> to vector<16x1xf32>
    %347 = vector.broadcast %346 : vector<16x1xf32> to vector<16x16xf32>
    %348 = arith.subf %344, %347 : vector<16x16xf32>
    %349 = math.exp %348 : vector<16x16xf32>
    %cst_150 = arith.constant dense<0.000000e+00> : vector<16xf32>
    %350 = vector.multi_reduction <add>, %349, %cst_150 [1] : vector<16x16xf32> to vector<16xf32>
    %351 = vector.shape_cast %350 : vector<16xf32> to vector<16x1xf32>
    %352 = tpu.reciprocal %351 {approx = true} : vector<16x1xf32> -> vector<16x1xf32>
    %353 = vector.broadcast %352 : vector<16x1xf32> to vector<16x16xf32>
    %354 = arith.mulf %349, %353 : vector<16x16xf32>
    %cst_151 = arith.constant dense<0.000000e+00> : vector<16x16xf32>
    %355 = tpu.matmul %354, %340, %cst_151 {dimension_numbers = #tpu.dot_dimension_numbers<[1], [0], [0], [1], [0, 0, 1, 1], [], []>} : vector<16x16xf32>, vector<16x16xf32>, vector<16x16xf32> -> vector<16x16xf32>
    %356 = vector.extract_strided_slice %311 {offsets = [16, 0], sizes = [16, 32], strides = [1, 1]} : vector<32x32xf32> to vector<16x32xf32>
    %cst_152 = arith.constant dense<0.000000e+00> : vector<16x32xf32>
    %357 = tpu.matmul %355, %356, %cst_152 {dimension_numbers = #tpu.dot_dimension_numbers<[1], [0], [0], [1], [0, 0, 1, 1], [], []>} : vector<16x16xf32>, vector<16x32xf32>, vector<16x32xf32> -> vector<16x32xf32>
    %358 = arith.addf %337, %357 : vector<16x32xf32>
    %359 = arith.addf %0, %358 : vector<16x32xf32>
    %c1_153 = arith.constant 1 : index
    %c0_154 = arith.constant 0 : index
    %c0_155 = arith.constant 0 : index
    %360 = vector.load %arg9[%c1_153, %c0_154, %c0_155] : memref<4x1x32xf32, #tpu.memory_space<vmem>>, vector<1x1x32xf32>
    %361 = vector.shape_cast %360 : vector<1x1x32xf32> to vector<1x32xf32>
    %c1_156 = arith.constant 1 : index
    %c0_157 = arith.constant 0 : index
    %c0_158 = arith.constant 0 : index
    %362 = vector.load %arg10[%c1_156, %c0_157, %c0_158] : memref<4x1x32xf32, #tpu.memory_space<vmem>>, vector<1x1x32xf32>
    %363 = vector.shape_cast %362 : vector<1x1x32xf32> to vector<1x32xf32>
    %cst_159 = arith.constant dense<0.000000e+00> : vector<16xf32>
    %364 = vector.multi_reduction <add>, %359, %cst_159 [1] : vector<16x32xf32> to vector<16xf32>
    %365 = vector.shape_cast %364 : vector<16xf32> to vector<16x1xf32>
    %cst_160 = arith.constant 3.200000e+01 : f32
    %366 = vector.broadcast %cst_160 : f32 to vector<16x1xf32>
    %367 = arith.divf %365, %366 : vector<16x1xf32>
    %368 = vector.broadcast %367 : vector<16x1xf32> to vector<16x32xf32>
    %369 = arith.subf %359, %368 : vector<16x32xf32>
    %370 = arith.mulf %369, %369 : vector<16x32xf32>
    %cst_161 = arith.constant dense<0.000000e+00> : vector<16xf32>
    %371 = vector.multi_reduction <add>, %370, %cst_161 [1] : vector<16x32xf32> to vector<16xf32>
    %372 = vector.shape_cast %371 : vector<16xf32> to vector<16x1xf32>
    %cst_162 = arith.constant 3.200000e+01 : f32
    %373 = vector.broadcast %cst_162 : f32 to vector<16x1xf32>
    %374 = arith.divf %372, %373 : vector<16x1xf32>
    %375 = vector.broadcast %367 : vector<16x1xf32> to vector<16x32xf32>
    %376 = arith.subf %359, %375 : vector<16x32xf32>
    %cst_163 = arith.constant 9.99999974E-6 : f32
    %377 = vector.broadcast %cst_163 : f32 to vector<16x1xf32>
    %378 = arith.addf %374, %377 : vector<16x1xf32>
    %379 = math.rsqrt %378 : vector<16x1xf32>
    %380 = vector.broadcast %379 : vector<16x1xf32> to vector<16x32xf32>
    %381 = arith.mulf %376, %380 : vector<16x32xf32>
    %382 = vector.broadcast %361 : vector<1x32xf32> to vector<16x32xf32>
    %383 = arith.mulf %381, %382 : vector<16x32xf32>
    %384 = vector.broadcast %363 : vector<1x32xf32> to vector<16x32xf32>
    %385 = arith.addf %383, %384 : vector<16x32xf32>
    %c1_164 = arith.constant 1 : index
    %c0_165 = arith.constant 0 : index
    %c0_166 = arith.constant 0 : index
    %386 = vector.load %arg11[%c1_164, %c0_165, %c0_166] : memref<4x32x128xf32, #tpu.memory_space<vmem>>, vector<1x32x128xf32>
    %387 = vector.shape_cast %386 : vector<1x32x128xf32> to vector<32x128xf32>
    %cst_167 = arith.constant dense<0.000000e+00> : vector<16x128xf32>
    %388 = tpu.matmul %385, %387, %cst_167 {dimension_numbers = #tpu.dot_dimension_numbers<[1], [0], [0], [1], [0, 0, 1, 1], [], []>} : vector<16x32xf32>, vector<32x128xf32>, vector<16x128xf32> -> vector<16x128xf32>
    %c1_168 = arith.constant 1 : index
    %c0_169 = arith.constant 0 : index
    %c0_170 = arith.constant 0 : index
    %389 = vector.load %arg12[%c1_168, %c0_169, %c0_170] : memref<4x1x128xf32, #tpu.memory_space<vmem>>, vector<1x1x128xf32>
    %390 = vector.shape_cast %389 : vector<1x1x128xf32> to vector<1x128xf32>
    %391 = vector.broadcast %390 : vector<1x128xf32> to vector<16x128xf32>
    %392 = arith.addf %388, %391 : vector<16x128xf32>
    %cst_171 = arith.constant 5.000000e-01 : f32
    %393 = vector.broadcast %cst_171 : f32 to vector<16x128xf32>
    %394 = arith.mulf %393, %392 : vector<16x128xf32>
    %cst_172 = arith.constant 0.707106769 : f32
    %395 = vector.broadcast %cst_172 : f32 to vector<16x128xf32>
    %396 = arith.mulf %392, %395 : vector<16x128xf32>
    %cst_173 = arith.constant 0.000000e+00 : f32
    %397 = vector.broadcast %cst_173 : f32 to vector<16x128xf32>
    %398 = arith.cmpf oge, %396, %397 : vector<16x128xf32>
    %cst_174 = arith.constant 1.000000e+00 : f32
    %cst_175 = arith.constant -1.000000e+00 : f32
    %399 = vector.broadcast %cst_174 : f32 to vector<16x128xf32>
    %400 = vector.broadcast %cst_175 : f32 to vector<16x128xf32>
    %401 = arith.select %398, %399, %400 : vector<16x128xi1>, vector<16x128xf32>
    %402 = math.absf %396 : vector<16x128xf32>
    %cst_176 = arith.constant 0.327591091 : f32
    %403 = vector.broadcast %cst_176 : f32 to vector<16x128xf32>
    %404 = arith.mulf %403, %402 : vector<16x128xf32>
    %cst_177 = arith.constant 1.000000e+00 : f32
    %405 = vector.broadcast %cst_177 : f32 to vector<16x128xf32>
    %406 = arith.addf %405, %404 : vector<16x128xf32>
    %cst_178 = arith.constant 1.000000e+00 : f32
    %407 = vector.broadcast %cst_178 : f32 to vector<16x128xf32>
    %408 = arith.divf %407, %406 : vector<16x128xf32>
    %cst_179 = arith.constant 1.06140542 : f32
    %409 = vector.broadcast %cst_179 : f32 to vector<16x128xf32>
    %410 = arith.mulf %409, %408 : vector<16x128xf32>
    %cst_180 = arith.constant -1.45315206 : f32
    %411 = vector.broadcast %cst_180 : f32 to vector<16x128xf32>
    %412 = arith.addf %410, %411 : vector<16x128xf32>
    %413 = arith.mulf %412, %408 : vector<16x128xf32>
    %cst_181 = arith.constant 1.42141378 : f32
    %414 = vector.broadcast %cst_181 : f32 to vector<16x128xf32>
    %415 = arith.addf %413, %414 : vector<16x128xf32>
    %416 = arith.mulf %415, %408 : vector<16x128xf32>
    %cst_182 = arith.constant -0.284496725 : f32
    %417 = vector.broadcast %cst_182 : f32 to vector<16x128xf32>
    %418 = arith.addf %416, %417 : vector<16x128xf32>
    %419 = arith.mulf %418, %408 : vector<16x128xf32>
    %cst_183 = arith.constant 0.254829586 : f32
    %420 = vector.broadcast %cst_183 : f32 to vector<16x128xf32>
    %421 = arith.addf %419, %420 : vector<16x128xf32>
    %422 = arith.mulf %421, %408 : vector<16x128xf32>
    %cst_184 = arith.constant 0.000000e+00 : f32
    %423 = vector.broadcast %cst_184 : f32 to vector<16x128xf32>
    %424 = arith.subf %423, %402 : vector<16x128xf32>
    %425 = arith.mulf %424, %402 : vector<16x128xf32>
    %426 = math.exp %425 : vector<16x128xf32>
    %427 = arith.mulf %422, %426 : vector<16x128xf32>
    %cst_185 = arith.constant 1.000000e+00 : f32
    %428 = vector.broadcast %cst_185 : f32 to vector<16x128xf32>
    %429 = arith.subf %428, %427 : vector<16x128xf32>
    %430 = arith.mulf %401, %429 : vector<16x128xf32>
    %cst_186 = arith.constant 1.000000e+00 : f32
    %431 = vector.broadcast %cst_186 : f32 to vector<16x128xf32>
    %432 = arith.addf %431, %430 : vector<16x128xf32>
    %433 = arith.mulf %394, %432 : vector<16x128xf32>
    %c1_187 = arith.constant 1 : index
    %c0_188 = arith.constant 0 : index
    %c0_189 = arith.constant 0 : index
    %434 = vector.load %arg13[%c1_187, %c0_188, %c0_189] : memref<4x128x32xf32, #tpu.memory_space<vmem>>, vector<1x128x32xf32>
    %435 = vector.shape_cast %434 : vector<1x128x32xf32> to vector<128x32xf32>
    %cst_190 = arith.constant dense<0.000000e+00> : vector<16x32xf32>
    %436 = tpu.matmul %433, %435, %cst_190 {dimension_numbers = #tpu.dot_dimension_numbers<[1], [0], [0], [1], [0, 0, 1, 1], [], []>} : vector<16x128xf32>, vector<128x32xf32>, vector<16x32xf32> -> vector<16x32xf32>
    %c1_191 = arith.constant 1 : index
    %c0_192 = arith.constant 0 : index
    %c0_193 = arith.constant 0 : index
    %437 = vector.load %arg14[%c1_191, %c0_192, %c0_193] : memref<4x1x32xf32, #tpu.memory_space<vmem>>, vector<1x1x32xf32>
    %438 = vector.shape_cast %437 : vector<1x1x32xf32> to vector<1x32xf32>
    %439 = vector.broadcast %438 : vector<1x32xf32> to vector<16x32xf32>
    %440 = arith.addf %436, %439 : vector<16x32xf32>
    %441 = arith.addf %359, %440 : vector<16x32xf32>
    %442 = vector.extract_strided_slice %105 {offsets = [0, 1], sizes = [2, 1], strides = [1, 1]} : vector<2x2xf32> to vector<2x1xf32>
    %cst_194 = arith.constant dense<0.000000e+00> : vector<16x1xf32>
    %443 = tpu.matmul %2, %442, %cst_194 {dimension_numbers = #tpu.dot_dimension_numbers<[1], [0], [0], [1], [0, 0, 1, 1], [], []>} : vector<16x2xf32>, vector<2x1xf32>, vector<16x1xf32> -> vector<16x1xf32>
    %444 = vector.broadcast %443 : vector<16x1xf32> to vector<16x32xf32>
    %445 = arith.mulf %441, %444 : vector<16x32xf32>
    %446 = arith.addf %276, %445 : vector<16x32xf32>
    %447 = vector.extract_strided_slice %446 {offsets = [0, 0], sizes = [1, 32], strides = [1, 1]} : vector<16x32xf32> to vector<1x32xf32>
    %448 = vector.extract_strided_slice %446 {offsets = [1, 0], sizes = [1, 32], strides = [1, 1]} : vector<16x32xf32> to vector<1x32xf32>
    %449 = vector.extract_strided_slice %446 {offsets = [2, 0], sizes = [1, 32], strides = [1, 1]} : vector<16x32xf32> to vector<1x32xf32>
    %450 = vector.extract_strided_slice %446 {offsets = [3, 0], sizes = [1, 32], strides = [1, 1]} : vector<16x32xf32> to vector<1x32xf32>
    %451 = vector.extract_strided_slice %446 {offsets = [4, 0], sizes = [1, 32], strides = [1, 1]} : vector<16x32xf32> to vector<1x32xf32>
    %452 = vector.extract_strided_slice %446 {offsets = [5, 0], sizes = [1, 32], strides = [1, 1]} : vector<16x32xf32> to vector<1x32xf32>
    %453 = vector.extract_strided_slice %446 {offsets = [6, 0], sizes = [1, 32], strides = [1, 1]} : vector<16x32xf32> to vector<1x32xf32>
    %454 = vector.extract_strided_slice %446 {offsets = [7, 0], sizes = [1, 32], strides = [1, 1]} : vector<16x32xf32> to vector<1x32xf32>
    %455 = tpu.concatenate %447, %448, %449, %450, %451, %452, %453, %454 in 1 : vector<1x32xf32>, vector<1x32xf32>, vector<1x32xf32>, vector<1x32xf32>, vector<1x32xf32>, vector<1x32xf32>, vector<1x32xf32>, vector<1x32xf32> -> vector<1x256xf32>
    %456 = vector.extract_strided_slice %446 {offsets = [8, 0], sizes = [1, 32], strides = [1, 1]} : vector<16x32xf32> to vector<1x32xf32>
    %457 = vector.extract_strided_slice %446 {offsets = [9, 0], sizes = [1, 32], strides = [1, 1]} : vector<16x32xf32> to vector<1x32xf32>
    %458 = vector.extract_strided_slice %446 {offsets = [10, 0], sizes = [1, 32], strides = [1, 1]} : vector<16x32xf32> to vector<1x32xf32>
    %459 = vector.extract_strided_slice %446 {offsets = [11, 0], sizes = [1, 32], strides = [1, 1]} : vector<16x32xf32> to vector<1x32xf32>
    %460 = vector.extract_strided_slice %446 {offsets = [12, 0], sizes = [1, 32], strides = [1, 1]} : vector<16x32xf32> to vector<1x32xf32>
    %461 = vector.extract_strided_slice %446 {offsets = [13, 0], sizes = [1, 32], strides = [1, 1]} : vector<16x32xf32> to vector<1x32xf32>
    %462 = vector.extract_strided_slice %446 {offsets = [14, 0], sizes = [1, 32], strides = [1, 1]} : vector<16x32xf32> to vector<1x32xf32>
    %463 = vector.extract_strided_slice %446 {offsets = [15, 0], sizes = [1, 32], strides = [1, 1]} : vector<16x32xf32> to vector<1x32xf32>
    %464 = tpu.concatenate %456, %457, %458, %459, %460, %461, %462, %463 in 1 : vector<1x32xf32>, vector<1x32xf32>, vector<1x32xf32>, vector<1x32xf32>, vector<1x32xf32>, vector<1x32xf32>, vector<1x32xf32>, vector<1x32xf32> -> vector<1x256xf32>
    %465 = tpu.concatenate %455, %464 in 0 : vector<1x256xf32>, vector<1x256xf32> -> vector<2x256xf32>
    %cst_195 = arith.constant dense<0.000000e+00> : vector<2x64xf32>
    %466 = tpu.matmul %465, %3, %cst_195 {dimension_numbers = #tpu.dot_dimension_numbers<[1], [0], [0], [1], [0, 0, 1, 1], [], []>} : vector<2x256xf32>, vector<256x64xf32>, vector<2x64xf32> -> vector<2x64xf32>
    %cst_196 = arith.constant dense<0.000000e+00> : vector<2x64xf32>
    %467 = tpu.matmul %63, %4, %cst_196 {dimension_numbers = #tpu.dot_dimension_numbers<[1], [0], [0], [1], [0, 0, 1, 1], [], []>} : vector<2x16xf32>, vector<16x64xf32>, vector<2x64xf32> -> vector<2x64xf32>
    %468 = arith.addf %466, %467 : vector<2x64xf32>
    %469 = vector.broadcast %5 : vector<1x64xf32> to vector<2x64xf32>
    %470 = arith.addf %468, %469 : vector<2x64xf32>
    %471 = vector.extract_strided_slice %470 {offsets = [0, 0], sizes = [2, 16], strides = [1, 1]} : vector<2x64xf32> to vector<2x16xf32>
    %472 = arith.negf %471 : vector<2x16xf32>
    %473 = math.exp %472 : vector<2x16xf32>
    %cst_197 = arith.constant 1.000000e+00 : f32
    %474 = vector.broadcast %cst_197 : f32 to vector<2x16xf32>
    %475 = arith.addf %474, %473 : vector<2x16xf32>
    %476 = arith.divf %474, %475 : vector<2x16xf32>
    %477 = vector.extract_strided_slice %470 {offsets = [0, 16], sizes = [2, 16], strides = [1, 1]} : vector<2x64xf32> to vector<2x16xf32>
    %478 = arith.negf %477 : vector<2x16xf32>
    %479 = math.exp %478 : vector<2x16xf32>
    %cst_198 = arith.constant 1.000000e+00 : f32
    %480 = vector.broadcast %cst_198 : f32 to vector<2x16xf32>
    %481 = arith.addf %480, %479 : vector<2x16xf32>
    %482 = arith.divf %480, %481 : vector<2x16xf32>
    %483 = vector.extract_strided_slice %470 {offsets = [0, 32], sizes = [2, 16], strides = [1, 1]} : vector<2x64xf32> to vector<2x16xf32>
    %484 = math.tanh %483 : vector<2x16xf32>
    %485 = vector.extract_strided_slice %470 {offsets = [0, 48], sizes = [2, 16], strides = [1, 1]} : vector<2x64xf32> to vector<2x16xf32>
    %486 = arith.negf %485 : vector<2x16xf32>
    %487 = math.exp %486 : vector<2x16xf32>
    %cst_199 = arith.constant 1.000000e+00 : f32
    %488 = vector.broadcast %cst_199 : f32 to vector<2x16xf32>
    %489 = arith.addf %488, %487 : vector<2x16xf32>
    %490 = arith.divf %488, %489 : vector<2x16xf32>
    %491 = arith.mulf %482, %61 : vector<2x16xf32>
    %492 = arith.mulf %476, %484 : vector<2x16xf32>
    %493 = arith.addf %491, %492 : vector<2x16xf32>
    %494 = math.tanh %493 : vector<2x16xf32>
    %495 = arith.mulf %490, %494 : vector<2x16xf32>
    %cst_200 = arith.constant dense<0.000000e+00> : vector<2x64xf32>
    %496 = tpu.matmul %495, %6, %cst_200 {dimension_numbers = #tpu.dot_dimension_numbers<[1], [0], [0], [1], [0, 0, 1, 1], [], []>} : vector<2x16xf32>, vector<16x64xf32>, vector<2x64xf32> -> vector<2x64xf32>
    %cst_201 = arith.constant dense<0.000000e+00> : vector<2x64xf32>
    %497 = tpu.matmul %93, %7, %cst_201 {dimension_numbers = #tpu.dot_dimension_numbers<[1], [0], [0], [1], [0, 0, 1, 1], [], []>} : vector<2x16xf32>, vector<16x64xf32>, vector<2x64xf32> -> vector<2x64xf32>
    %498 = arith.addf %496, %497 : vector<2x64xf32>
    %499 = vector.broadcast %8 : vector<1x64xf32> to vector<2x64xf32>
    %500 = arith.addf %498, %499 : vector<2x64xf32>
    %501 = vector.extract_strided_slice %500 {offsets = [0, 0], sizes = [2, 16], strides = [1, 1]} : vector<2x64xf32> to vector<2x16xf32>
    %502 = arith.negf %501 : vector<2x16xf32>
    %503 = math.exp %502 : vector<2x16xf32>
    %cst_202 = arith.constant 1.000000e+00 : f32
    %504 = vector.broadcast %cst_202 : f32 to vector<2x16xf32>
    %505 = arith.addf %504, %503 : vector<2x16xf32>
    %506 = arith.divf %504, %505 : vector<2x16xf32>
    %507 = vector.extract_strided_slice %500 {offsets = [0, 16], sizes = [2, 16], strides = [1, 1]} : vector<2x64xf32> to vector<2x16xf32>
    %508 = arith.negf %507 : vector<2x16xf32>
    %509 = math.exp %508 : vector<2x16xf32>
    %cst_203 = arith.constant 1.000000e+00 : f32
    %510 = vector.broadcast %cst_203 : f32 to vector<2x16xf32>
    %511 = arith.addf %510, %509 : vector<2x16xf32>
    %512 = arith.divf %510, %511 : vector<2x16xf32>
    %513 = vector.extract_strided_slice %500 {offsets = [0, 32], sizes = [2, 16], strides = [1, 1]} : vector<2x64xf32> to vector<2x16xf32>
    %514 = math.tanh %513 : vector<2x16xf32>
    %515 = vector.extract_strided_slice %500 {offsets = [0, 48], sizes = [2, 16], strides = [1, 1]} : vector<2x64xf32> to vector<2x16xf32>
    %516 = arith.negf %515 : vector<2x16xf32>
    %517 = math.exp %516 : vector<2x16xf32>
    %cst_204 = arith.constant 1.000000e+00 : f32
    %518 = vector.broadcast %cst_204 : f32 to vector<2x16xf32>
    %519 = arith.addf %518, %517 : vector<2x16xf32>
    %520 = arith.divf %518, %519 : vector<2x16xf32>
    %521 = arith.mulf %512, %91 : vector<2x16xf32>
    %522 = arith.mulf %506, %514 : vector<2x16xf32>
    %523 = arith.addf %521, %522 : vector<2x16xf32>
    %524 = math.tanh %523 : vector<2x16xf32>
    %525 = arith.mulf %520, %524 : vector<2x16xf32>
    %cst_205 = arith.constant dense<0.000000e+00> : vector<2x2xf32>
    %526 = tpu.matmul %525, %9, %cst_205 {dimension_numbers = #tpu.dot_dimension_numbers<[1], [0], [0], [1], [0, 0, 1, 1], [], []>} : vector<2x16xf32>, vector<16x2xf32>, vector<2x2xf32> -> vector<2x2xf32>
    %527 = vector.broadcast %10 : vector<1x2xf32> to vector<2x2xf32>
    %528 = arith.addf %526, %527 : vector<2x2xf32>
    %cst_206 = arith.constant dense<0xFF800000> : vector<2xf32>
    %529 = vector.multi_reduction <maximumf>, %528, %cst_206 [1] : vector<2x2xf32> to vector<2xf32>
    %530 = vector.shape_cast %529 : vector<2xf32> to vector<2x1xf32>
    %531 = vector.broadcast %530 : vector<2x1xf32> to vector<2x2xf32>
    %532 = arith.subf %528, %531 : vector<2x2xf32>
    %533 = math.exp %532 : vector<2x2xf32>
    %cst_207 = arith.constant dense<0.000000e+00> : vector<2xf32>
    %534 = vector.multi_reduction <add>, %533, %cst_207 [1] : vector<2x2xf32> to vector<2xf32>
    %535 = vector.shape_cast %534 : vector<2xf32> to vector<2x1xf32>
    %536 = vector.broadcast %535 : vector<2x1xf32> to vector<2x2xf32>
    %537 = arith.divf %533, %536 : vector<2x2xf32>
    %cst_208 = arith.constant 0.000000e+00 : f32
    %538 = vector.broadcast %cst_208 : f32 to vector<16x32xf32>
    %c2 = arith.constant 2 : index
    %c0_209 = arith.constant 0 : index
    %c0_210 = arith.constant 0 : index
    %539 = vector.load %arg3[%c2, %c0_209, %c0_210] : memref<4x1x32xf32, #tpu.memory_space<vmem>>, vector<1x1x32xf32>
    %540 = vector.shape_cast %539 : vector<1x1x32xf32> to vector<1x32xf32>
    %c2_211 = arith.constant 2 : index
    %c0_212 = arith.constant 0 : index
    %c0_213 = arith.constant 0 : index
    %541 = vector.load %arg4[%c2_211, %c0_212, %c0_213] : memref<4x1x32xf32, #tpu.memory_space<vmem>>, vector<1x1x32xf32>
    %542 = vector.shape_cast %541 : vector<1x1x32xf32> to vector<1x32xf32>
    %cst_214 = arith.constant dense<0.000000e+00> : vector<16xf32>
    %543 = vector.multi_reduction <add>, %446, %cst_214 [1] : vector<16x32xf32> to vector<16xf32>
    %544 = vector.shape_cast %543 : vector<16xf32> to vector<16x1xf32>
    %cst_215 = arith.constant 3.200000e+01 : f32
    %545 = vector.broadcast %cst_215 : f32 to vector<16x1xf32>
    %546 = arith.divf %544, %545 : vector<16x1xf32>
    %547 = vector.broadcast %546 : vector<16x1xf32> to vector<16x32xf32>
    %548 = arith.subf %446, %547 : vector<16x32xf32>
    %549 = arith.mulf %548, %548 : vector<16x32xf32>
    %cst_216 = arith.constant dense<0.000000e+00> : vector<16xf32>
    %550 = vector.multi_reduction <add>, %549, %cst_216 [1] : vector<16x32xf32> to vector<16xf32>
    %551 = vector.shape_cast %550 : vector<16xf32> to vector<16x1xf32>
    %cst_217 = arith.constant 3.200000e+01 : f32
    %552 = vector.broadcast %cst_217 : f32 to vector<16x1xf32>
    %553 = arith.divf %551, %552 : vector<16x1xf32>
    %554 = vector.broadcast %546 : vector<16x1xf32> to vector<16x32xf32>
    %555 = arith.subf %446, %554 : vector<16x32xf32>
    %cst_218 = arith.constant 9.99999974E-6 : f32
    %556 = vector.broadcast %cst_218 : f32 to vector<16x1xf32>
    %557 = arith.addf %553, %556 : vector<16x1xf32>
    %558 = math.rsqrt %557 : vector<16x1xf32>
    %559 = vector.broadcast %558 : vector<16x1xf32> to vector<16x32xf32>
    %560 = arith.mulf %555, %559 : vector<16x32xf32>
    %561 = vector.broadcast %540 : vector<1x32xf32> to vector<16x32xf32>
    %562 = arith.mulf %560, %561 : vector<16x32xf32>
    %563 = vector.broadcast %542 : vector<1x32xf32> to vector<16x32xf32>
    %564 = arith.addf %562, %563 : vector<16x32xf32>
    %c2_219 = arith.constant 2 : index
    %c0_220 = arith.constant 0 : index
    %c0_221 = arith.constant 0 : index
    %565 = vector.load %arg5[%c2_219, %c0_220, %c0_221] : memref<4x32x96xf32, #tpu.memory_space<vmem>>, vector<1x32x96xf32>
    %566 = vector.shape_cast %565 : vector<1x32x96xf32> to vector<32x96xf32>
    %cst_222 = arith.constant dense<0.000000e+00> : vector<16x96xf32>
    %567 = tpu.matmul %564, %566, %cst_222 {dimension_numbers = #tpu.dot_dimension_numbers<[1], [0], [0], [1], [0, 0, 1, 1], [], []>} : vector<16x32xf32>, vector<32x96xf32>, vector<16x96xf32> -> vector<16x96xf32>
    %c2_223 = arith.constant 2 : index
    %c0_224 = arith.constant 0 : index
    %c0_225 = arith.constant 0 : index
    %568 = vector.load %arg6[%c2_223, %c0_224, %c0_225] : memref<4x1x96xf32, #tpu.memory_space<vmem>>, vector<1x1x96xf32>
    %569 = vector.shape_cast %568 : vector<1x1x96xf32> to vector<1x96xf32>
    %570 = vector.broadcast %569 : vector<1x96xf32> to vector<16x96xf32>
    %571 = arith.addf %567, %570 : vector<16x96xf32>
    %c2_226 = arith.constant 2 : index
    %c0_227 = arith.constant 0 : index
    %c0_228 = arith.constant 0 : index
    %572 = vector.load %arg7[%c2_226, %c0_227, %c0_228] : memref<4x32x32xf32, #tpu.memory_space<vmem>>, vector<1x32x32xf32>
    %573 = vector.shape_cast %572 : vector<1x32x32xf32> to vector<32x32xf32>
    %cst_229 = arith.constant 0.000000e+00 : f32
    %574 = vector.broadcast %cst_229 : f32 to vector<16x32xf32>
    %c2_230 = arith.constant 2 : index
    %c0_231 = arith.constant 0 : index
    %c0_232 = arith.constant 0 : index
    %575 = vector.load %arg8[%c2_230, %c0_231, %c0_232] : memref<4x1x32xf32, #tpu.memory_space<vmem>>, vector<1x1x32xf32>
    %576 = vector.shape_cast %575 : vector<1x1x32xf32> to vector<1x32xf32>
    %577 = vector.broadcast %576 : vector<1x32xf32> to vector<16x32xf32>
    %578 = arith.addf %574, %577 : vector<16x32xf32>
    %579 = vector.extract_strided_slice %571 {offsets = [0, 0], sizes = [16, 16], strides = [1, 1]} : vector<16x96xf32> to vector<16x16xf32>
    %580 = vector.extract_strided_slice %571 {offsets = [0, 32], sizes = [16, 16], strides = [1, 1]} : vector<16x96xf32> to vector<16x16xf32>
    %581 = vector.extract_strided_slice %571 {offsets = [0, 64], sizes = [16, 16], strides = [1, 1]} : vector<16x96xf32> to vector<16x16xf32>
    %cst_233 = arith.constant dense<0.000000e+00> : vector<16x16xf32>
    %582 = tpu.matmul %579, %580, %cst_233 {dimension_numbers = #tpu.dot_dimension_numbers<[1], [1], [0], [0], [0, 0, 1, 0], [], []>} : vector<16x16xf32>, vector<16x16xf32>, vector<16x16xf32> -> vector<16x16xf32>
    %cst_234 = arith.constant 2.500000e-01 : f32
    %583 = vector.broadcast %cst_234 : f32 to vector<16x16xf32>
    %584 = arith.mulf %582, %583 : vector<16x16xf32>
    %585 = arith.addf %584, %1 : vector<16x16xf32>
    %cst_235 = arith.constant dense<0xFF800000> : vector<16xf32>
    %586 = vector.multi_reduction <maximumf>, %585, %cst_235 [1] : vector<16x16xf32> to vector<16xf32>
    %587 = vector.shape_cast %586 : vector<16xf32> to vector<16x1xf32>
    %588 = vector.broadcast %587 : vector<16x1xf32> to vector<16x16xf32>
    %589 = arith.subf %585, %588 : vector<16x16xf32>
    %590 = math.exp %589 : vector<16x16xf32>
    %cst_236 = arith.constant dense<0.000000e+00> : vector<16xf32>
    %591 = vector.multi_reduction <add>, %590, %cst_236 [1] : vector<16x16xf32> to vector<16xf32>
    %592 = vector.shape_cast %591 : vector<16xf32> to vector<16x1xf32>
    %593 = tpu.reciprocal %592 {approx = true} : vector<16x1xf32> -> vector<16x1xf32>
    %594 = vector.broadcast %593 : vector<16x1xf32> to vector<16x16xf32>
    %595 = arith.mulf %590, %594 : vector<16x16xf32>
    %cst_237 = arith.constant dense<0.000000e+00> : vector<16x16xf32>
    %596 = tpu.matmul %595, %581, %cst_237 {dimension_numbers = #tpu.dot_dimension_numbers<[1], [0], [0], [1], [0, 0, 1, 1], [], []>} : vector<16x16xf32>, vector<16x16xf32>, vector<16x16xf32> -> vector<16x16xf32>
    %597 = vector.extract_strided_slice %573 {offsets = [0, 0], sizes = [16, 32], strides = [1, 1]} : vector<32x32xf32> to vector<16x32xf32>
    %cst_238 = arith.constant dense<0.000000e+00> : vector<16x32xf32>
    %598 = tpu.matmul %596, %597, %cst_238 {dimension_numbers = #tpu.dot_dimension_numbers<[1], [0], [0], [1], [0, 0, 1, 1], [], []>} : vector<16x16xf32>, vector<16x32xf32>, vector<16x32xf32> -> vector<16x32xf32>
    %599 = arith.addf %578, %598 : vector<16x32xf32>
    %600 = vector.extract_strided_slice %571 {offsets = [0, 16], sizes = [16, 16], strides = [1, 1]} : vector<16x96xf32> to vector<16x16xf32>
    %601 = vector.extract_strided_slice %571 {offsets = [0, 48], sizes = [16, 16], strides = [1, 1]} : vector<16x96xf32> to vector<16x16xf32>
    %602 = vector.extract_strided_slice %571 {offsets = [0, 80], sizes = [16, 16], strides = [1, 1]} : vector<16x96xf32> to vector<16x16xf32>
    %cst_239 = arith.constant dense<0.000000e+00> : vector<16x16xf32>
    %603 = tpu.matmul %600, %601, %cst_239 {dimension_numbers = #tpu.dot_dimension_numbers<[1], [1], [0], [0], [0, 0, 1, 0], [], []>} : vector<16x16xf32>, vector<16x16xf32>, vector<16x16xf32> -> vector<16x16xf32>
    %cst_240 = arith.constant 2.500000e-01 : f32
    %604 = vector.broadcast %cst_240 : f32 to vector<16x16xf32>
    %605 = arith.mulf %603, %604 : vector<16x16xf32>
    %606 = arith.addf %605, %1 : vector<16x16xf32>
    %cst_241 = arith.constant dense<0xFF800000> : vector<16xf32>
    %607 = vector.multi_reduction <maximumf>, %606, %cst_241 [1] : vector<16x16xf32> to vector<16xf32>
    %608 = vector.shape_cast %607 : vector<16xf32> to vector<16x1xf32>
    %609 = vector.broadcast %608 : vector<16x1xf32> to vector<16x16xf32>
    %610 = arith.subf %606, %609 : vector<16x16xf32>
    %611 = math.exp %610 : vector<16x16xf32>
    %cst_242 = arith.constant dense<0.000000e+00> : vector<16xf32>
    %612 = vector.multi_reduction <add>, %611, %cst_242 [1] : vector<16x16xf32> to vector<16xf32>
    %613 = vector.shape_cast %612 : vector<16xf32> to vector<16x1xf32>
    %614 = tpu.reciprocal %613 {approx = true} : vector<16x1xf32> -> vector<16x1xf32>
    %615 = vector.broadcast %614 : vector<16x1xf32> to vector<16x16xf32>
    %616 = arith.mulf %611, %615 : vector<16x16xf32>
    %cst_243 = arith.constant dense<0.000000e+00> : vector<16x16xf32>
    %617 = tpu.matmul %616, %602, %cst_243 {dimension_numbers = #tpu.dot_dimension_numbers<[1], [0], [0], [1], [0, 0, 1, 1], [], []>} : vector<16x16xf32>, vector<16x16xf32>, vector<16x16xf32> -> vector<16x16xf32>
    %618 = vector.extract_strided_slice %573 {offsets = [16, 0], sizes = [16, 32], strides = [1, 1]} : vector<32x32xf32> to vector<16x32xf32>
    %cst_244 = arith.constant dense<0.000000e+00> : vector<16x32xf32>
    %619 = tpu.matmul %617, %618, %cst_244 {dimension_numbers = #tpu.dot_dimension_numbers<[1], [0], [0], [1], [0, 0, 1, 1], [], []>} : vector<16x16xf32>, vector<16x32xf32>, vector<16x32xf32> -> vector<16x32xf32>
    %620 = arith.addf %599, %619 : vector<16x32xf32>
    %621 = arith.addf %446, %620 : vector<16x32xf32>
    %c2_245 = arith.constant 2 : index
    %c0_246 = arith.constant 0 : index
    %c0_247 = arith.constant 0 : index
    %622 = vector.load %arg9[%c2_245, %c0_246, %c0_247] : memref<4x1x32xf32, #tpu.memory_space<vmem>>, vector<1x1x32xf32>
    %623 = vector.shape_cast %622 : vector<1x1x32xf32> to vector<1x32xf32>
    %c2_248 = arith.constant 2 : index
    %c0_249 = arith.constant 0 : index
    %c0_250 = arith.constant 0 : index
    %624 = vector.load %arg10[%c2_248, %c0_249, %c0_250] : memref<4x1x32xf32, #tpu.memory_space<vmem>>, vector<1x1x32xf32>
    %625 = vector.shape_cast %624 : vector<1x1x32xf32> to vector<1x32xf32>
    %cst_251 = arith.constant dense<0.000000e+00> : vector<16xf32>
    %626 = vector.multi_reduction <add>, %621, %cst_251 [1] : vector<16x32xf32> to vector<16xf32>
    %627 = vector.shape_cast %626 : vector<16xf32> to vector<16x1xf32>
    %cst_252 = arith.constant 3.200000e+01 : f32
    %628 = vector.broadcast %cst_252 : f32 to vector<16x1xf32>
    %629 = arith.divf %627, %628 : vector<16x1xf32>
    %630 = vector.broadcast %629 : vector<16x1xf32> to vector<16x32xf32>
    %631 = arith.subf %621, %630 : vector<16x32xf32>
    %632 = arith.mulf %631, %631 : vector<16x32xf32>
    %cst_253 = arith.constant dense<0.000000e+00> : vector<16xf32>
    %633 = vector.multi_reduction <add>, %632, %cst_253 [1] : vector<16x32xf32> to vector<16xf32>
    %634 = vector.shape_cast %633 : vector<16xf32> to vector<16x1xf32>
    %cst_254 = arith.constant 3.200000e+01 : f32
    %635 = vector.broadcast %cst_254 : f32 to vector<16x1xf32>
    %636 = arith.divf %634, %635 : vector<16x1xf32>
    %637 = vector.broadcast %629 : vector<16x1xf32> to vector<16x32xf32>
    %638 = arith.subf %621, %637 : vector<16x32xf32>
    %cst_255 = arith.constant 9.99999974E-6 : f32
    %639 = vector.broadcast %cst_255 : f32 to vector<16x1xf32>
    %640 = arith.addf %636, %639 : vector<16x1xf32>
    %641 = math.rsqrt %640 : vector<16x1xf32>
    %642 = vector.broadcast %641 : vector<16x1xf32> to vector<16x32xf32>
    %643 = arith.mulf %638, %642 : vector<16x32xf32>
    %644 = vector.broadcast %623 : vector<1x32xf32> to vector<16x32xf32>
    %645 = arith.mulf %643, %644 : vector<16x32xf32>
    %646 = vector.broadcast %625 : vector<1x32xf32> to vector<16x32xf32>
    %647 = arith.addf %645, %646 : vector<16x32xf32>
    %c2_256 = arith.constant 2 : index
    %c0_257 = arith.constant 0 : index
    %c0_258 = arith.constant 0 : index
    %648 = vector.load %arg11[%c2_256, %c0_257, %c0_258] : memref<4x32x128xf32, #tpu.memory_space<vmem>>, vector<1x32x128xf32>
    %649 = vector.shape_cast %648 : vector<1x32x128xf32> to vector<32x128xf32>
    %cst_259 = arith.constant dense<0.000000e+00> : vector<16x128xf32>
    %650 = tpu.matmul %647, %649, %cst_259 {dimension_numbers = #tpu.dot_dimension_numbers<[1], [0], [0], [1], [0, 0, 1, 1], [], []>} : vector<16x32xf32>, vector<32x128xf32>, vector<16x128xf32> -> vector<16x128xf32>
    %c2_260 = arith.constant 2 : index
    %c0_261 = arith.constant 0 : index
    %c0_262 = arith.constant 0 : index
    %651 = vector.load %arg12[%c2_260, %c0_261, %c0_262] : memref<4x1x128xf32, #tpu.memory_space<vmem>>, vector<1x1x128xf32>
    %652 = vector.shape_cast %651 : vector<1x1x128xf32> to vector<1x128xf32>
    %653 = vector.broadcast %652 : vector<1x128xf32> to vector<16x128xf32>
    %654 = arith.addf %650, %653 : vector<16x128xf32>
    %cst_263 = arith.constant 5.000000e-01 : f32
    %655 = vector.broadcast %cst_263 : f32 to vector<16x128xf32>
    %656 = arith.mulf %655, %654 : vector<16x128xf32>
    %cst_264 = arith.constant 0.707106769 : f32
    %657 = vector.broadcast %cst_264 : f32 to vector<16x128xf32>
    %658 = arith.mulf %654, %657 : vector<16x128xf32>
    %cst_265 = arith.constant 0.000000e+00 : f32
    %659 = vector.broadcast %cst_265 : f32 to vector<16x128xf32>
    %660 = arith.cmpf oge, %658, %659 : vector<16x128xf32>
    %cst_266 = arith.constant 1.000000e+00 : f32
    %cst_267 = arith.constant -1.000000e+00 : f32
    %661 = vector.broadcast %cst_266 : f32 to vector<16x128xf32>
    %662 = vector.broadcast %cst_267 : f32 to vector<16x128xf32>
    %663 = arith.select %660, %661, %662 : vector<16x128xi1>, vector<16x128xf32>
    %664 = math.absf %658 : vector<16x128xf32>
    %cst_268 = arith.constant 0.327591091 : f32
    %665 = vector.broadcast %cst_268 : f32 to vector<16x128xf32>
    %666 = arith.mulf %665, %664 : vector<16x128xf32>
    %cst_269 = arith.constant 1.000000e+00 : f32
    %667 = vector.broadcast %cst_269 : f32 to vector<16x128xf32>
    %668 = arith.addf %667, %666 : vector<16x128xf32>
    %cst_270 = arith.constant 1.000000e+00 : f32
    %669 = vector.broadcast %cst_270 : f32 to vector<16x128xf32>
    %670 = arith.divf %669, %668 : vector<16x128xf32>
    %cst_271 = arith.constant 1.06140542 : f32
    %671 = vector.broadcast %cst_271 : f32 to vector<16x128xf32>
    %672 = arith.mulf %671, %670 : vector<16x128xf32>
    %cst_272 = arith.constant -1.45315206 : f32
    %673 = vector.broadcast %cst_272 : f32 to vector<16x128xf32>
    %674 = arith.addf %672, %673 : vector<16x128xf32>
    %675 = arith.mulf %674, %670 : vector<16x128xf32>
    %cst_273 = arith.constant 1.42141378 : f32
    %676 = vector.broadcast %cst_273 : f32 to vector<16x128xf32>
    %677 = arith.addf %675, %676 : vector<16x128xf32>
    %678 = arith.mulf %677, %670 : vector<16x128xf32>
    %cst_274 = arith.constant -0.284496725 : f32
    %679 = vector.broadcast %cst_274 : f32 to vector<16x128xf32>
    %680 = arith.addf %678, %679 : vector<16x128xf32>
    %681 = arith.mulf %680, %670 : vector<16x128xf32>
    %cst_275 = arith.constant 0.254829586 : f32
    %682 = vector.broadcast %cst_275 : f32 to vector<16x128xf32>
    %683 = arith.addf %681, %682 : vector<16x128xf32>
    %684 = arith.mulf %683, %670 : vector<16x128xf32>
    %cst_276 = arith.constant 0.000000e+00 : f32
    %685 = vector.broadcast %cst_276 : f32 to vector<16x128xf32>
    %686 = arith.subf %685, %664 : vector<16x128xf32>
    %687 = arith.mulf %686, %664 : vector<16x128xf32>
    %688 = math.exp %687 : vector<16x128xf32>
    %689 = arith.mulf %684, %688 : vector<16x128xf32>
    %cst_277 = arith.constant 1.000000e+00 : f32
    %690 = vector.broadcast %cst_277 : f32 to vector<16x128xf32>
    %691 = arith.subf %690, %689 : vector<16x128xf32>
    %692 = arith.mulf %663, %691 : vector<16x128xf32>
    %cst_278 = arith.constant 1.000000e+00 : f32
    %693 = vector.broadcast %cst_278 : f32 to vector<16x128xf32>
    %694 = arith.addf %693, %692 : vector<16x128xf32>
    %695 = arith.mulf %656, %694 : vector<16x128xf32>
    %c2_279 = arith.constant 2 : index
    %c0_280 = arith.constant 0 : index
    %c0_281 = arith.constant 0 : index
    %696 = vector.load %arg13[%c2_279, %c0_280, %c0_281] : memref<4x128x32xf32, #tpu.memory_space<vmem>>, vector<1x128x32xf32>
    %697 = vector.shape_cast %696 : vector<1x128x32xf32> to vector<128x32xf32>
    %cst_282 = arith.constant dense<0.000000e+00> : vector<16x32xf32>
    %698 = tpu.matmul %695, %697, %cst_282 {dimension_numbers = #tpu.dot_dimension_numbers<[1], [0], [0], [1], [0, 0, 1, 1], [], []>} : vector<16x128xf32>, vector<128x32xf32>, vector<16x32xf32> -> vector<16x32xf32>
    %c2_283 = arith.constant 2 : index
    %c0_284 = arith.constant 0 : index
    %c0_285 = arith.constant 0 : index
    %699 = vector.load %arg14[%c2_283, %c0_284, %c0_285] : memref<4x1x32xf32, #tpu.memory_space<vmem>>, vector<1x1x32xf32>
    %700 = vector.shape_cast %699 : vector<1x1x32xf32> to vector<1x32xf32>
    %701 = vector.broadcast %700 : vector<1x32xf32> to vector<16x32xf32>
    %702 = arith.addf %698, %701 : vector<16x32xf32>
    %703 = arith.addf %621, %702 : vector<16x32xf32>
    %704 = vector.extract_strided_slice %537 {offsets = [0, 0], sizes = [2, 1], strides = [1, 1]} : vector<2x2xf32> to vector<2x1xf32>
    %cst_286 = arith.constant dense<0.000000e+00> : vector<16x1xf32>
    %705 = tpu.matmul %2, %704, %cst_286 {dimension_numbers = #tpu.dot_dimension_numbers<[1], [0], [0], [1], [0, 0, 1, 1], [], []>} : vector<16x2xf32>, vector<2x1xf32>, vector<16x1xf32> -> vector<16x1xf32>
    %706 = vector.broadcast %705 : vector<16x1xf32> to vector<16x32xf32>
    %707 = arith.mulf %703, %706 : vector<16x32xf32>
    %708 = arith.addf %538, %707 : vector<16x32xf32>
    %c3 = arith.constant 3 : index
    %c0_287 = arith.constant 0 : index
    %c0_288 = arith.constant 0 : index
    %709 = vector.load %arg3[%c3, %c0_287, %c0_288] : memref<4x1x32xf32, #tpu.memory_space<vmem>>, vector<1x1x32xf32>
    %710 = vector.shape_cast %709 : vector<1x1x32xf32> to vector<1x32xf32>
    %c3_289 = arith.constant 3 : index
    %c0_290 = arith.constant 0 : index
    %c0_291 = arith.constant 0 : index
    %711 = vector.load %arg4[%c3_289, %c0_290, %c0_291] : memref<4x1x32xf32, #tpu.memory_space<vmem>>, vector<1x1x32xf32>
    %712 = vector.shape_cast %711 : vector<1x1x32xf32> to vector<1x32xf32>
    %cst_292 = arith.constant dense<0.000000e+00> : vector<16xf32>
    %713 = vector.multi_reduction <add>, %446, %cst_292 [1] : vector<16x32xf32> to vector<16xf32>
    %714 = vector.shape_cast %713 : vector<16xf32> to vector<16x1xf32>
    %cst_293 = arith.constant 3.200000e+01 : f32
    %715 = vector.broadcast %cst_293 : f32 to vector<16x1xf32>
    %716 = arith.divf %714, %715 : vector<16x1xf32>
    %717 = vector.broadcast %716 : vector<16x1xf32> to vector<16x32xf32>
    %718 = arith.subf %446, %717 : vector<16x32xf32>
    %719 = arith.mulf %718, %718 : vector<16x32xf32>
    %cst_294 = arith.constant dense<0.000000e+00> : vector<16xf32>
    %720 = vector.multi_reduction <add>, %719, %cst_294 [1] : vector<16x32xf32> to vector<16xf32>
    %721 = vector.shape_cast %720 : vector<16xf32> to vector<16x1xf32>
    %cst_295 = arith.constant 3.200000e+01 : f32
    %722 = vector.broadcast %cst_295 : f32 to vector<16x1xf32>
    %723 = arith.divf %721, %722 : vector<16x1xf32>
    %724 = vector.broadcast %716 : vector<16x1xf32> to vector<16x32xf32>
    %725 = arith.subf %446, %724 : vector<16x32xf32>
    %cst_296 = arith.constant 9.99999974E-6 : f32
    %726 = vector.broadcast %cst_296 : f32 to vector<16x1xf32>
    %727 = arith.addf %723, %726 : vector<16x1xf32>
    %728 = math.rsqrt %727 : vector<16x1xf32>
    %729 = vector.broadcast %728 : vector<16x1xf32> to vector<16x32xf32>
    %730 = arith.mulf %725, %729 : vector<16x32xf32>
    %731 = vector.broadcast %710 : vector<1x32xf32> to vector<16x32xf32>
    %732 = arith.mulf %730, %731 : vector<16x32xf32>
    %733 = vector.broadcast %712 : vector<1x32xf32> to vector<16x32xf32>
    %734 = arith.addf %732, %733 : vector<16x32xf32>
    %c3_297 = arith.constant 3 : index
    %c0_298 = arith.constant 0 : index
    %c0_299 = arith.constant 0 : index
    %735 = vector.load %arg5[%c3_297, %c0_298, %c0_299] : memref<4x32x96xf32, #tpu.memory_space<vmem>>, vector<1x32x96xf32>
    %736 = vector.shape_cast %735 : vector<1x32x96xf32> to vector<32x96xf32>
    %cst_300 = arith.constant dense<0.000000e+00> : vector<16x96xf32>
    %737 = tpu.matmul %734, %736, %cst_300 {dimension_numbers = #tpu.dot_dimension_numbers<[1], [0], [0], [1], [0, 0, 1, 1], [], []>} : vector<16x32xf32>, vector<32x96xf32>, vector<16x96xf32> -> vector<16x96xf32>
    %c3_301 = arith.constant 3 : index
    %c0_302 = arith.constant 0 : index
    %c0_303 = arith.constant 0 : index
    %738 = vector.load %arg6[%c3_301, %c0_302, %c0_303] : memref<4x1x96xf32, #tpu.memory_space<vmem>>, vector<1x1x96xf32>
    %739 = vector.shape_cast %738 : vector<1x1x96xf32> to vector<1x96xf32>
    %740 = vector.broadcast %739 : vector<1x96xf32> to vector<16x96xf32>
    %741 = arith.addf %737, %740 : vector<16x96xf32>
    %c3_304 = arith.constant 3 : index
    %c0_305 = arith.constant 0 : index
    %c0_306 = arith.constant 0 : index
    %742 = vector.load %arg7[%c3_304, %c0_305, %c0_306] : memref<4x32x32xf32, #tpu.memory_space<vmem>>, vector<1x32x32xf32>
    %743 = vector.shape_cast %742 : vector<1x32x32xf32> to vector<32x32xf32>
    %cst_307 = arith.constant 0.000000e+00 : f32
    %744 = vector.broadcast %cst_307 : f32 to vector<16x32xf32>
    %c3_308 = arith.constant 3 : index
    %c0_309 = arith.constant 0 : index
    %c0_310 = arith.constant 0 : index
    %745 = vector.load %arg8[%c3_308, %c0_309, %c0_310] : memref<4x1x32xf32, #tpu.memory_space<vmem>>, vector<1x1x32xf32>
    %746 = vector.shape_cast %745 : vector<1x1x32xf32> to vector<1x32xf32>
    %747 = vector.broadcast %746 : vector<1x32xf32> to vector<16x32xf32>
    %748 = arith.addf %744, %747 : vector<16x32xf32>
    %749 = vector.extract_strided_slice %741 {offsets = [0, 0], sizes = [16, 16], strides = [1, 1]} : vector<16x96xf32> to vector<16x16xf32>
    %750 = vector.extract_strided_slice %741 {offsets = [0, 32], sizes = [16, 16], strides = [1, 1]} : vector<16x96xf32> to vector<16x16xf32>
    %751 = vector.extract_strided_slice %741 {offsets = [0, 64], sizes = [16, 16], strides = [1, 1]} : vector<16x96xf32> to vector<16x16xf32>
    %cst_311 = arith.constant dense<0.000000e+00> : vector<16x16xf32>
    %752 = tpu.matmul %749, %750, %cst_311 {dimension_numbers = #tpu.dot_dimension_numbers<[1], [1], [0], [0], [0, 0, 1, 0], [], []>} : vector<16x16xf32>, vector<16x16xf32>, vector<16x16xf32> -> vector<16x16xf32>
    %cst_312 = arith.constant 2.500000e-01 : f32
    %753 = vector.broadcast %cst_312 : f32 to vector<16x16xf32>
    %754 = arith.mulf %752, %753 : vector<16x16xf32>
    %755 = arith.addf %754, %1 : vector<16x16xf32>
    %cst_313 = arith.constant dense<0xFF800000> : vector<16xf32>
    %756 = vector.multi_reduction <maximumf>, %755, %cst_313 [1] : vector<16x16xf32> to vector<16xf32>
    %757 = vector.shape_cast %756 : vector<16xf32> to vector<16x1xf32>
    %758 = vector.broadcast %757 : vector<16x1xf32> to vector<16x16xf32>
    %759 = arith.subf %755, %758 : vector<16x16xf32>
    %760 = math.exp %759 : vector<16x16xf32>
    %cst_314 = arith.constant dense<0.000000e+00> : vector<16xf32>
    %761 = vector.multi_reduction <add>, %760, %cst_314 [1] : vector<16x16xf32> to vector<16xf32>
    %762 = vector.shape_cast %761 : vector<16xf32> to vector<16x1xf32>
    %763 = tpu.reciprocal %762 {approx = true} : vector<16x1xf32> -> vector<16x1xf32>
    %764 = vector.broadcast %763 : vector<16x1xf32> to vector<16x16xf32>
    %765 = arith.mulf %760, %764 : vector<16x16xf32>
    %cst_315 = arith.constant dense<0.000000e+00> : vector<16x16xf32>
    %766 = tpu.matmul %765, %751, %cst_315 {dimension_numbers = #tpu.dot_dimension_numbers<[1], [0], [0], [1], [0, 0, 1, 1], [], []>} : vector<16x16xf32>, vector<16x16xf32>, vector<16x16xf32> -> vector<16x16xf32>
    %767 = vector.extract_strided_slice %743 {offsets = [0, 0], sizes = [16, 32], strides = [1, 1]} : vector<32x32xf32> to vector<16x32xf32>
    %cst_316 = arith.constant dense<0.000000e+00> : vector<16x32xf32>
    %768 = tpu.matmul %766, %767, %cst_316 {dimension_numbers = #tpu.dot_dimension_numbers<[1], [0], [0], [1], [0, 0, 1, 1], [], []>} : vector<16x16xf32>, vector<16x32xf32>, vector<16x32xf32> -> vector<16x32xf32>
    %769 = arith.addf %748, %768 : vector<16x32xf32>
    %770 = vector.extract_strided_slice %741 {offsets = [0, 16], sizes = [16, 16], strides = [1, 1]} : vector<16x96xf32> to vector<16x16xf32>
    %771 = vector.extract_strided_slice %741 {offsets = [0, 48], sizes = [16, 16], strides = [1, 1]} : vector<16x96xf32> to vector<16x16xf32>
    %772 = vector.extract_strided_slice %741 {offsets = [0, 80], sizes = [16, 16], strides = [1, 1]} : vector<16x96xf32> to vector<16x16xf32>
    %cst_317 = arith.constant dense<0.000000e+00> : vector<16x16xf32>
    %773 = tpu.matmul %770, %771, %cst_317 {dimension_numbers = #tpu.dot_dimension_numbers<[1], [1], [0], [0], [0, 0, 1, 0], [], []>} : vector<16x16xf32>, vector<16x16xf32>, vector<16x16xf32> -> vector<16x16xf32>
    %cst_318 = arith.constant 2.500000e-01 : f32
    %774 = vector.broadcast %cst_318 : f32 to vector<16x16xf32>
    %775 = arith.mulf %773, %774 : vector<16x16xf32>
    %776 = arith.addf %775, %1 : vector<16x16xf32>
    %cst_319 = arith.constant dense<0xFF800000> : vector<16xf32>
    %777 = vector.multi_reduction <maximumf>, %776, %cst_319 [1] : vector<16x16xf32> to vector<16xf32>
    %778 = vector.shape_cast %777 : vector<16xf32> to vector<16x1xf32>
    %779 = vector.broadcast %778 : vector<16x1xf32> to vector<16x16xf32>
    %780 = arith.subf %776, %779 : vector<16x16xf32>
    %781 = math.exp %780 : vector<16x16xf32>
    %cst_320 = arith.constant dense<0.000000e+00> : vector<16xf32>
    %782 = vector.multi_reduction <add>, %781, %cst_320 [1] : vector<16x16xf32> to vector<16xf32>
    %783 = vector.shape_cast %782 : vector<16xf32> to vector<16x1xf32>
    %784 = tpu.reciprocal %783 {approx = true} : vector<16x1xf32> -> vector<16x1xf32>
    %785 = vector.broadcast %784 : vector<16x1xf32> to vector<16x16xf32>
    %786 = arith.mulf %781, %785 : vector<16x16xf32>
    %cst_321 = arith.constant dense<0.000000e+00> : vector<16x16xf32>
    %787 = tpu.matmul %786, %772, %cst_321 {dimension_numbers = #tpu.dot_dimension_numbers<[1], [0], [0], [1], [0, 0, 1, 1], [], []>} : vector<16x16xf32>, vector<16x16xf32>, vector<16x16xf32> -> vector<16x16xf32>
    %788 = vector.extract_strided_slice %743 {offsets = [16, 0], sizes = [16, 32], strides = [1, 1]} : vector<32x32xf32> to vector<16x32xf32>
    %cst_322 = arith.constant dense<0.000000e+00> : vector<16x32xf32>
    %789 = tpu.matmul %787, %788, %cst_322 {dimension_numbers = #tpu.dot_dimension_numbers<[1], [0], [0], [1], [0, 0, 1, 1], [], []>} : vector<16x16xf32>, vector<16x32xf32>, vector<16x32xf32> -> vector<16x32xf32>
    %790 = arith.addf %769, %789 : vector<16x32xf32>
    %791 = arith.addf %446, %790 : vector<16x32xf32>
    %c3_323 = arith.constant 3 : index
    %c0_324 = arith.constant 0 : index
    %c0_325 = arith.constant 0 : index
    %792 = vector.load %arg9[%c3_323, %c0_324, %c0_325] : memref<4x1x32xf32, #tpu.memory_space<vmem>>, vector<1x1x32xf32>
    %793 = vector.shape_cast %792 : vector<1x1x32xf32> to vector<1x32xf32>
    %c3_326 = arith.constant 3 : index
    %c0_327 = arith.constant 0 : index
    %c0_328 = arith.constant 0 : index
    %794 = vector.load %arg10[%c3_326, %c0_327, %c0_328] : memref<4x1x32xf32, #tpu.memory_space<vmem>>, vector<1x1x32xf32>
    %795 = vector.shape_cast %794 : vector<1x1x32xf32> to vector<1x32xf32>
    %cst_329 = arith.constant dense<0.000000e+00> : vector<16xf32>
    %796 = vector.multi_reduction <add>, %791, %cst_329 [1] : vector<16x32xf32> to vector<16xf32>
    %797 = vector.shape_cast %796 : vector<16xf32> to vector<16x1xf32>
    %cst_330 = arith.constant 3.200000e+01 : f32
    %798 = vector.broadcast %cst_330 : f32 to vector<16x1xf32>
    %799 = arith.divf %797, %798 : vector<16x1xf32>
    %800 = vector.broadcast %799 : vector<16x1xf32> to vector<16x32xf32>
    %801 = arith.subf %791, %800 : vector<16x32xf32>
    %802 = arith.mulf %801, %801 : vector<16x32xf32>
    %cst_331 = arith.constant dense<0.000000e+00> : vector<16xf32>
    %803 = vector.multi_reduction <add>, %802, %cst_331 [1] : vector<16x32xf32> to vector<16xf32>
    %804 = vector.shape_cast %803 : vector<16xf32> to vector<16x1xf32>
    %cst_332 = arith.constant 3.200000e+01 : f32
    %805 = vector.broadcast %cst_332 : f32 to vector<16x1xf32>
    %806 = arith.divf %804, %805 : vector<16x1xf32>
    %807 = vector.broadcast %799 : vector<16x1xf32> to vector<16x32xf32>
    %808 = arith.subf %791, %807 : vector<16x32xf32>
    %cst_333 = arith.constant 9.99999974E-6 : f32
    %809 = vector.broadcast %cst_333 : f32 to vector<16x1xf32>
    %810 = arith.addf %806, %809 : vector<16x1xf32>
    %811 = math.rsqrt %810 : vector<16x1xf32>
    %812 = vector.broadcast %811 : vector<16x1xf32> to vector<16x32xf32>
    %813 = arith.mulf %808, %812 : vector<16x32xf32>
    %814 = vector.broadcast %793 : vector<1x32xf32> to vector<16x32xf32>
    %815 = arith.mulf %813, %814 : vector<16x32xf32>
    %816 = vector.broadcast %795 : vector<1x32xf32> to vector<16x32xf32>
    %817 = arith.addf %815, %816 : vector<16x32xf32>
    %c3_334 = arith.constant 3 : index
    %c0_335 = arith.constant 0 : index
    %c0_336 = arith.constant 0 : index
    %818 = vector.load %arg11[%c3_334, %c0_335, %c0_336] : memref<4x32x128xf32, #tpu.memory_space<vmem>>, vector<1x32x128xf32>
    %819 = vector.shape_cast %818 : vector<1x32x128xf32> to vector<32x128xf32>
    %cst_337 = arith.constant dense<0.000000e+00> : vector<16x128xf32>
    %820 = tpu.matmul %817, %819, %cst_337 {dimension_numbers = #tpu.dot_dimension_numbers<[1], [0], [0], [1], [0, 0, 1, 1], [], []>} : vector<16x32xf32>, vector<32x128xf32>, vector<16x128xf32> -> vector<16x128xf32>
    %c3_338 = arith.constant 3 : index
    %c0_339 = arith.constant 0 : index
    %c0_340 = arith.constant 0 : index
    %821 = vector.load %arg12[%c3_338, %c0_339, %c0_340] : memref<4x1x128xf32, #tpu.memory_space<vmem>>, vector<1x1x128xf32>
    %822 = vector.shape_cast %821 : vector<1x1x128xf32> to vector<1x128xf32>
    %823 = vector.broadcast %822 : vector<1x128xf32> to vector<16x128xf32>
    %824 = arith.addf %820, %823 : vector<16x128xf32>
    %cst_341 = arith.constant 5.000000e-01 : f32
    %825 = vector.broadcast %cst_341 : f32 to vector<16x128xf32>
    %826 = arith.mulf %825, %824 : vector<16x128xf32>
    %cst_342 = arith.constant 0.707106769 : f32
    %827 = vector.broadcast %cst_342 : f32 to vector<16x128xf32>
    %828 = arith.mulf %824, %827 : vector<16x128xf32>
    %cst_343 = arith.constant 0.000000e+00 : f32
    %829 = vector.broadcast %cst_343 : f32 to vector<16x128xf32>
    %830 = arith.cmpf oge, %828, %829 : vector<16x128xf32>
    %cst_344 = arith.constant 1.000000e+00 : f32
    %cst_345 = arith.constant -1.000000e+00 : f32
    %831 = vector.broadcast %cst_344 : f32 to vector<16x128xf32>
    %832 = vector.broadcast %cst_345 : f32 to vector<16x128xf32>
    %833 = arith.select %830, %831, %832 : vector<16x128xi1>, vector<16x128xf32>
    %834 = math.absf %828 : vector<16x128xf32>
    %cst_346 = arith.constant 0.327591091 : f32
    %835 = vector.broadcast %cst_346 : f32 to vector<16x128xf32>
    %836 = arith.mulf %835, %834 : vector<16x128xf32>
    %cst_347 = arith.constant 1.000000e+00 : f32
    %837 = vector.broadcast %cst_347 : f32 to vector<16x128xf32>
    %838 = arith.addf %837, %836 : vector<16x128xf32>
    %cst_348 = arith.constant 1.000000e+00 : f32
    %839 = vector.broadcast %cst_348 : f32 to vector<16x128xf32>
    %840 = arith.divf %839, %838 : vector<16x128xf32>
    %cst_349 = arith.constant 1.06140542 : f32
    %841 = vector.broadcast %cst_349 : f32 to vector<16x128xf32>
    %842 = arith.mulf %841, %840 : vector<16x128xf32>
    %cst_350 = arith.constant -1.45315206 : f32
    %843 = vector.broadcast %cst_350 : f32 to vector<16x128xf32>
    %844 = arith.addf %842, %843 : vector<16x128xf32>
    %845 = arith.mulf %844, %840 : vector<16x128xf32>
    %cst_351 = arith.constant 1.42141378 : f32
    %846 = vector.broadcast %cst_351 : f32 to vector<16x128xf32>
    %847 = arith.addf %845, %846 : vector<16x128xf32>
    %848 = arith.mulf %847, %840 : vector<16x128xf32>
    %cst_352 = arith.constant -0.284496725 : f32
    %849 = vector.broadcast %cst_352 : f32 to vector<16x128xf32>
    %850 = arith.addf %848, %849 : vector<16x128xf32>
    %851 = arith.mulf %850, %840 : vector<16x128xf32>
    %cst_353 = arith.constant 0.254829586 : f32
    %852 = vector.broadcast %cst_353 : f32 to vector<16x128xf32>
    %853 = arith.addf %851, %852 : vector<16x128xf32>
    %854 = arith.mulf %853, %840 : vector<16x128xf32>
    %cst_354 = arith.constant 0.000000e+00 : f32
    %855 = vector.broadcast %cst_354 : f32 to vector<16x128xf32>
    %856 = arith.subf %855, %834 : vector<16x128xf32>
    %857 = arith.mulf %856, %834 : vector<16x128xf32>
    %858 = math.exp %857 : vector<16x128xf32>
    %859 = arith.mulf %854, %858 : vector<16x128xf32>
    %cst_355 = arith.constant 1.000000e+00 : f32
    %860 = vector.broadcast %cst_355 : f32 to vector<16x128xf32>
    %861 = arith.subf %860, %859 : vector<16x128xf32>
    %862 = arith.mulf %833, %861 : vector<16x128xf32>
    %cst_356 = arith.constant 1.000000e+00 : f32
    %863 = vector.broadcast %cst_356 : f32 to vector<16x128xf32>
    %864 = arith.addf %863, %862 : vector<16x128xf32>
    %865 = arith.mulf %826, %864 : vector<16x128xf32>
    %c3_357 = arith.constant 3 : index
    %c0_358 = arith.constant 0 : index
    %c0_359 = arith.constant 0 : index
    %866 = vector.load %arg13[%c3_357, %c0_358, %c0_359] : memref<4x128x32xf32, #tpu.memory_space<vmem>>, vector<1x128x32xf32>
    %867 = vector.shape_cast %866 : vector<1x128x32xf32> to vector<128x32xf32>
    %cst_360 = arith.constant dense<0.000000e+00> : vector<16x32xf32>
    %868 = tpu.matmul %865, %867, %cst_360 {dimension_numbers = #tpu.dot_dimension_numbers<[1], [0], [0], [1], [0, 0, 1, 1], [], []>} : vector<16x128xf32>, vector<128x32xf32>, vector<16x32xf32> -> vector<16x32xf32>
    %c3_361 = arith.constant 3 : index
    %c0_362 = arith.constant 0 : index
    %c0_363 = arith.constant 0 : index
    %869 = vector.load %arg14[%c3_361, %c0_362, %c0_363] : memref<4x1x32xf32, #tpu.memory_space<vmem>>, vector<1x1x32xf32>
    %870 = vector.shape_cast %869 : vector<1x1x32xf32> to vector<1x32xf32>
    %871 = vector.broadcast %870 : vector<1x32xf32> to vector<16x32xf32>
    %872 = arith.addf %868, %871 : vector<16x32xf32>
    %873 = arith.addf %791, %872 : vector<16x32xf32>
    %874 = vector.extract_strided_slice %537 {offsets = [0, 1], sizes = [2, 1], strides = [1, 1]} : vector<2x2xf32> to vector<2x1xf32>
    %cst_364 = arith.constant dense<0.000000e+00> : vector<16x1xf32>
    %875 = tpu.matmul %2, %874, %cst_364 {dimension_numbers = #tpu.dot_dimension_numbers<[1], [0], [0], [1], [0, 0, 1, 1], [], []>} : vector<16x2xf32>, vector<2x1xf32>, vector<16x1xf32> -> vector<16x1xf32>
    %876 = vector.broadcast %875 : vector<16x1xf32> to vector<16x32xf32>
    %877 = arith.mulf %873, %876 : vector<16x32xf32>
    %878 = arith.addf %708, %877 : vector<16x32xf32>
    %879 = vector.extract_strided_slice %878 {offsets = [7, 0], sizes = [1, 32], strides = [1, 1]} : vector<16x32xf32> to vector<1x32xf32>
    %880 = vector.extract_strided_slice %878 {offsets = [15, 0], sizes = [1, 32], strides = [1, 1]} : vector<16x32xf32> to vector<1x32xf32>
    %881 = tpu.concatenate %879, %880 in 0 : vector<1x32xf32>, vector<1x32xf32> -> vector<2x32xf32>
    %c0_365 = arith.constant 0 : index
    %c0_366 = arith.constant 0 : index
    %882 = vector.load %arg23[%c0_365, %c0_366] : memref<1x32xf32, #tpu.memory_space<vmem>>, vector<1x32xf32>
    %c0_367 = arith.constant 0 : index
    %c0_368 = arith.constant 0 : index
    %883 = vector.load %arg24[%c0_367, %c0_368] : memref<1x32xf32, #tpu.memory_space<vmem>>, vector<1x32xf32>
    %cst_369 = arith.constant dense<0.000000e+00> : vector<2xf32>
    %884 = vector.multi_reduction <add>, %881, %cst_369 [1] : vector<2x32xf32> to vector<2xf32>
    %885 = vector.shape_cast %884 : vector<2xf32> to vector<2x1xf32>
    %cst_370 = arith.constant 3.200000e+01 : f32
    %886 = vector.broadcast %cst_370 : f32 to vector<2x1xf32>
    %887 = arith.divf %885, %886 : vector<2x1xf32>
    %888 = vector.broadcast %887 : vector<2x1xf32> to vector<2x32xf32>
    %889 = arith.subf %881, %888 : vector<2x32xf32>
    %890 = arith.mulf %889, %889 : vector<2x32xf32>
    %cst_371 = arith.constant dense<0.000000e+00> : vector<2xf32>
    %891 = vector.multi_reduction <add>, %890, %cst_371 [1] : vector<2x32xf32> to vector<2xf32>
    %892 = vector.shape_cast %891 : vector<2xf32> to vector<2x1xf32>
    %cst_372 = arith.constant 3.200000e+01 : f32
    %893 = vector.broadcast %cst_372 : f32 to vector<2x1xf32>
    %894 = arith.divf %892, %893 : vector<2x1xf32>
    %895 = vector.broadcast %887 : vector<2x1xf32> to vector<2x32xf32>
    %896 = arith.subf %881, %895 : vector<2x32xf32>
    %cst_373 = arith.constant 9.99999974E-6 : f32
    %897 = vector.broadcast %cst_373 : f32 to vector<2x1xf32>
    %898 = arith.addf %894, %897 : vector<2x1xf32>
    %899 = math.rsqrt %898 : vector<2x1xf32>
    %900 = vector.broadcast %899 : vector<2x1xf32> to vector<2x32xf32>
    %901 = arith.mulf %896, %900 : vector<2x32xf32>
    %902 = vector.broadcast %882 : vector<1x32xf32> to vector<2x32xf32>
    %903 = arith.mulf %901, %902 : vector<2x32xf32>
    %904 = vector.broadcast %883 : vector<1x32xf32> to vector<2x32xf32>
    %905 = arith.addf %903, %904 : vector<2x32xf32>
    %c0_374 = arith.constant 0 : index
    %c0_375 = arith.constant 0 : index
    %906 = vector.load %arg25[%c0_374, %c0_375] : memref<32x64xf32, #tpu.memory_space<vmem>>, vector<32x64xf32>
    %cst_376 = arith.constant dense<0.000000e+00> : vector<2x64xf32>
    %907 = tpu.matmul %905, %906, %cst_376 {dimension_numbers = #tpu.dot_dimension_numbers<[1], [0], [0], [1], [0, 0, 1, 1], [], []>} : vector<2x32xf32>, vector<32x64xf32>, vector<2x64xf32> -> vector<2x64xf32>
    %c0_377 = arith.constant 0 : index
    %c0_378 = arith.constant 0 : index
    %908 = vector.load %arg26[%c0_377, %c0_378] : memref<2x64xf32, #tpu.memory_space<vmem>>, vector<2x64xf32>
    tpu.vector_store %arg26[%c0_377, %c0_378], %907 {strides = array<i32>} : memref<2x64xf32, #tpu.memory_space<vmem>>, vector<2x64xf32>,
    return
  }
}

</mosaic_0001>

<llo_original>
// kernel: gw_gpt_forward.1
$region0: #{gw_gpt_forward.1}
  #allocation0 [shape = 'u32[]', space=smem, size = 0x4, offset = 0x4, fixed_abs, tag = 'smem constant byte address 0x4 - core index']
  #allocation1 [shape = 'u32[144,128]{1,0:T(1,128)}', space=vmem, size = 0x12000, scoped, tag = 'internal scratch']
  %s0 = inlined_call_operand.vmem [shape: f32[16,32], index: 0, kind: input, shape index: {}]
  %s1 = inlined_call_operand.vmem [shape: f32[16,16], index: 1, kind: input, shape index: {}]
  %s2 = inlined_call_operand.vmem [shape: f32[16,2], index: 2, kind: input, shape index: {}]
  %s3 = inlined_call_operand.vmem [shape: f32[4,1,32], index: 3, kind: input, shape index: {}]
  %s4 = inlined_call_operand.vmem [shape: f32[4,1,32], index: 4, kind: input, shape index: {}]
  %s5 = inlined_call_operand.vmem [shape: f32[4,32,96], index: 5, kind: input, shape index: {}]
  %s6 = inlined_call_operand.vmem [shape: f32[4,1,96], index: 6, kind: input, shape index: {}]
  %s7 = inlined_call_operand.vmem [shape: f32[4,32,32], index: 7, kind: input, shape index: {}]
  %s8 = inlined_call_operand.vmem [shape: f32[4,1,32], index: 8, kind: input, shape index: {}]
  %s9 = inlined_call_operand.vmem [shape: f32[4,1,32], index: 9, kind: input, shape index: {}]
  %s10 = inlined_call_operand.vmem [shape: f32[4,1,32], index: 10, kind: input, shape index: {}]
  %s11 = inlined_call_operand.vmem [shape: f32[4,32,128], index: 11, kind: input, shape index: {}]
  %s12 = inlined_call_operand.vmem [shape: f32[4,1,128], index: 12, kind: input, shape index: {}]
  %s13 = inlined_call_operand.vmem [shape: f32[4,128,32], index: 13, kind: input, shape index: {}]
  %s14 = inlined_call_operand.vmem [shape: f32[4,1,32], index: 14, kind: input, shape index: {}]
  %s15 = inlined_call_operand.vmem [shape: f32[256,64], index: 15, kind: input, shape index: {}]
  %s16 = inlined_call_operand.vmem [shape: f32[16,64], index: 16, kind: input, shape index: {}]
  %s17 = inlined_call_operand.vmem [shape: f32[1,64], index: 17, kind: input, shape index: {}]
  %s18 = inlined_call_operand.vmem [shape: f32[16,64], index: 18, kind: input, shape index: {}]
  %s19 = inlined_call_operand.vmem [shape: f32[16,64], index: 19, kind: input, shape index: {}]
  %s20 = inlined_call_operand.vmem [shape: f32[1,64], index: 20, kind: input, shape index: {}]
  %s21 = inlined_call_operand.vmem [shape: f32[16,2], index: 21, kind: input, shape index: {}]
  %s22 = inlined_call_operand.vmem [shape: f32[1,2], index: 22, kind: input, shape index: {}]
  %s23 = inlined_call_operand.vmem [shape: f32[1,32], index: 23, kind: input, shape index: {}]
  %s24 = inlined_call_operand.vmem [shape: f32[1,32], index: 24, kind: input, shape index: {}]
  %s25 = inlined_call_operand.vmem [shape: f32[32,64], index: 25, kind: input, shape index: {}]
  %s26 = inlined_call_operand.hbm [shape: f32[2,64], index: 26, kind: output, shape index: {}]
  %s27 = sld [smem:[#allocation0]]
  $region114: #{gw_gpt_forward.1} parent=0
    _
  %s29 = ssub.s32 1, %s27
  %s30 = scalar_select 0, %s29, %s27
  $region1: #{gw_gpt_forward.1} parent=0
    #allocation2 [shape = 'u8[1024]{0}', space=vmem, size = 0x400, scoped, tag = 'output window, operand 0, single buffered']
    #allocation3 [shape = 's32[1]{0}', space=sflag, size = 0x4, scoped, tag = 'scoped memory for gw_gpt_forward.1']
    %31 = vsyncpa [#allocation3], 0
    // Predicated region
    $region2: #{gw_gpt_forward.1} parent=1 // pred_check
      _
    $region3: #{gw_gpt_forward.1} parent=1 // pred_check_branch
      %33 = sbr.rel (0) target = $region5
    $region4: #{gw_gpt_forward.1} parent=1 // pred_region
      _
    $region5: #{gw_gpt_forward.1} parent=1 // pred_fallthru
      _
    // Predicated region
    $region6: #{gw_gpt_forward.1} parent=1 // pred_check
      _
    $region7: #{gw_gpt_forward.1} parent=1 // pred_check_branch
      %35 = sbr.rel (0) target = $region9
    $region8: #{gw_gpt_forward.1} parent=1 // pred_region
      _
    $region9: #{gw_gpt_forward.1} parent=1 // pred_fallthru
      _
    // Predicated region
    $region10: #{gw_gpt_forward.1} parent=1 // pred_check
      _
    $region11: #{gw_gpt_forward.1} parent=1 // pred_check_branch
      %37 = sbr.rel (0) target = $region13
    $region12: #{gw_gpt_forward.1} parent=1 // pred_region
      _
    $region13: #{gw_gpt_forward.1} parent=1 // pred_fallthru
      _
    // Predicated region
    $region14: #{gw_gpt_forward.1} parent=1 // pred_check
      _
    $region15: #{gw_gpt_forward.1} parent=1 // pred_check_branch
      %39 = sbr.rel (0) target = $region17
    $region16: #{gw_gpt_forward.1} parent=1 // pred_region
      _
    $region17: #{gw_gpt_forward.1} parent=1 // pred_fallthru
      _
    // Predicated region
    $region18: #{gw_gpt_forward.1} parent=1 // pred_check
      _
    $region19: #{gw_gpt_forward.1} parent=1 // pred_check_branch
      %41 = sbr.rel (0) target = $region21
    $region20: #{gw_gpt_forward.1} parent=1 // pred_region
      _
    $region21: #{gw_gpt_forward.1} parent=1 // pred_fallthru
      _
    // Predicated region
    $region22: #{gw_gpt_forward.1} parent=1 // pred_check
      _
    $region23: #{gw_gpt_forward.1} parent=1 // pred_check_branch
      %43 = sbr.rel (0) target = $region25
    $region24: #{gw_gpt_forward.1} parent=1 // pred_region
      _
    $region25: #{gw_gpt_forward.1} parent=1 // pred_fallthru
      _
    // Predicated region
    $region26: #{gw_gpt_forward.1} parent=1 // pred_check
      _
    $region27: #{gw_gpt_forward.1} parent=1 // pred_check_branch
      %45 = sbr.rel (0) target = $region29
    $region28: #{gw_gpt_forward.1} parent=1 // pred_region
      _
    $region29: #{gw_gpt_forward.1} parent=1 // pred_fallthru
      _
    // Predicated region
    $region30: #{gw_gpt_forward.1} parent=1 // pred_check
      _
    $region31: #{gw_gpt_forward.1} parent=1 // pred_check_branch
      %47 = sbr.rel (0) target = $region33
    $region32: #{gw_gpt_forward.1} parent=1 // pred_region
      _
    $region33: #{gw_gpt_forward.1} parent=1 // pred_fallthru
      _
    // Predicated region
    $region34: #{gw_gpt_forward.1} parent=1 // pred_check
      _
    $region35: #{gw_gpt_forward.1} parent=1 // pred_check_branch
      %49 = sbr.rel (0) target = $region37
    $region36: #{gw_gpt_forward.1} parent=1 // pred_region
      _
    $region37: #{gw_gpt_forward.1} parent=1 // pred_fallthru
      _
    // Predicated region
    $region38: #{gw_gpt_forward.1} parent=1 // pred_check
      _
    $region39: #{gw_gpt_forward.1} parent=1 // pred_check_branch
      %51 = sbr.rel (0) target = $region41
    $region40: #{gw_gpt_forward.1} parent=1 // pred_region
      _
    $region41: #{gw_gpt_forward.1} parent=1 // pred_fallthru
      _
    // Predicated region
    $region42: #{gw_gpt_forward.1} parent=1 // pred_check
      _
    $region43: #{gw_gpt_forward.1} parent=1 // pred_check_branch
      %53 = sbr.rel (0) target = $region45
    $region44: #{gw_gpt_forward.1} parent=1 // pred_region
      _
    $region45: #{gw_gpt_forward.1} parent=1 // pred_fallthru
      _
    // Predicated region
    $region46: #{gw_gpt_forward.1} parent=1 // pred_check
      _
    $region47: #{gw_gpt_forward.1} parent=1 // pred_check_branch
      %55 = sbr.rel (0) target = $region49
    $region48: #{gw_gpt_forward.1} parent=1 // pred_region
      _
    $region49: #{gw_gpt_forward.1} parent=1 // pred_fallthru
      _
    // Predicated region
    $region50: #{gw_gpt_forward.1} parent=1 // pred_check
      _
    $region51: #{gw_gpt_forward.1} parent=1 // pred_check_branch
      %57 = sbr.rel (0) target = $region53
    $region52: #{gw_gpt_forward.1} parent=1 // pred_region
      _
    $region53: #{gw_gpt_forward.1} parent=1 // pred_fallthru
      _
    // Predicated region
    $region54: #{gw_gpt_forward.1} parent=1 // pred_check
      _
    $region55: #{gw_gpt_forward.1} parent=1 // pred_check_branch
      %59 = sbr.rel (0) target = $region57
    $region56: #{gw_gpt_forward.1} parent=1 // pred_region
      _
    $region57: #{gw_gpt_forward.1} parent=1 // pred_fallthru
      _
    // Predicated region
    $region58: #{gw_gpt_forward.1} parent=1 // pred_check
      _
    $region59: #{gw_gpt_forward.1} parent=1 // pred_check_branch
      %61 = sbr.rel (0) target = $region61
    $region60: #{gw_gpt_forward.1} parent=1 // pred_region
      _
    $region61: #{gw_gpt_forward.1} parent=1 // pred_fallthru
      _
    // Predicated region
    $region62: #{gw_gpt_forward.1} parent=1 // pred_check
      _
    $region63: #{gw_gpt_forward.1} parent=1 // pred_check_branch
      %63 = sbr.rel (0) target = $region65
    $region64: #{gw_gpt_forward.1} parent=1 // pred_region
      _
    $region65: #{gw_gpt_forward.1} parent=1 // pred_fallthru
      _
    // Predicated region
    $region66: #{gw_gpt_forward.1} parent=1 // pred_check
      _
    $region67: #{gw_gpt_forward.1} parent=1 // pred_check_branch
      %65 = sbr.rel (0) target = $region69
    $region68: #{gw_gpt_forward.1} parent=1 // pred_region
      _
    $region69: #{gw_gpt_forward.1} parent=1 // pred_fallthru
      _
    // Predicated region
    $region70: #{gw_gpt_forward.1} parent=1 // pred_check
      _
    $region71: #{gw_gpt_forward.1} parent=1 // pred_check_branch
      %67 = sbr.rel (0) target = $region73
    $region72: #{gw_gpt_forward.1} parent=1 // pred_region
      _
    $region73: #{gw_gpt_forward.1} parent=1 // pred_fallthru
      _
    // Predicated region
    $region74: #{gw_gpt_forward.1} parent=1 // pred_check
      _
    $region75: #{gw_gpt_forward.1} parent=1 // pred_check_branch
      %69 = sbr.rel (0) target = $region77
    $region76: #{gw_gpt_forward.1} parent=1 // pred_region
      _
    $region77: #{gw_gpt_forward.1} parent=1 // pred_fallthru
      _
    // Predicated region
    $region78: #{gw_gpt_forward.1} parent=1 // pred_check
      _
    $region79: #{gw_gpt_forward.1} parent=1 // pred_check_branch
      %71 = sbr.rel (0) target = $region81
    $region80: #{gw_gpt_forward.1} parent=1 // pred_region
      _
    $region81: #{gw_gpt_forward.1} parent=1 // pred_fallthru
      _
    // Predicated region
    $region82: #{gw_gpt_forward.1} parent=1 // pred_check
      _
    $region83: #{gw_gpt_forward.1} parent=1 // pred_check_branch
      %73 = sbr.rel (0) target = $region85
    $region84: #{gw_gpt_forward.1} parent=1 // pred_region
      _
    $region85: #{gw_gpt_forward.1} parent=1 // pred_fallthru
      _
    // Predicated region
    $region86: #{gw_gpt_forward.1} parent=1 // pred_check
      _
    $region87: #{gw_gpt_forward.1} parent=1 // pred_check_branch
      %75 = sbr.rel (0) target = $region89
    $region88: #{gw_gpt_forward.1} parent=1 // pred_region
      _
    $region89: #{gw_gpt_forward.1} parent=1 // pred_fallthru
      _
    // Predicated region
    $region90: #{gw_gpt_forward.1} parent=1 // pred_check
      _
    $region91: #{gw_gpt_forward.1} parent=1 // pred_check_branch
      %77 = sbr.rel (0) target = $region93
    $region92: #{gw_gpt_forward.1} parent=1 // pred_region
      _
    $region93: #{gw_gpt_forward.1} parent=1 // pred_fallthru
      _
    // Predicated region
    $region94: #{gw_gpt_forward.1} parent=1 // pred_check
      _
    $region95: #{gw_gpt_forward.1} parent=1 // pred_check_branch
      %79 = sbr.rel (0) target = $region97
    $region96: #{gw_gpt_forward.1} parent=1 // pred_region
      _
    $region97: #{gw_gpt_forward.1} parent=1 // pred_fallthru
      _
    // Predicated region
    $region98: #{gw_gpt_forward.1} parent=1 // pred_check
      _
    $region99: #{gw_gpt_forward.1} parent=1 // pred_check_branch
      %81 = sbr.rel (0) target = $region101
    $region100: #{gw_gpt_forward.1} parent=1 // pred_region
      _
    $region101: #{gw_gpt_forward.1} parent=1 // pred_fallthru
      _
    // Predicated region
    $region102: #{gw_gpt_forward.1} parent=1 // pred_check
      _
    $region103: #{gw_gpt_forward.1} parent=1 // pred_check_branch
      %83 = sbr.rel (0) target = $region105
    $region104: #{gw_gpt_forward.1} parent=1 // pred_region
      _
    $region105: #{gw_gpt_forward.1} parent=1 // pred_fallthru
      _
    %v84 = vld [vmem:[%s0] sm:$0xff]
    %v85 = vld [vmem:[%s0 + $0x8] sm:$0xff]
    %v86 = vld [vmem:[%s1] sm:$0xff]
    %v87 = vld [vmem:[%s1 + $0x8] sm:$0xff]
    %v88 = vld [vmem:[%s2] sm:$0xff]
    %v89 = vld [vmem:[%s2 + $0x8] sm:$0xff]
    %v90 = vld [vmem:[%s15] sm:$0xff]
    %v91 = vld [vmem:[%s15 + $0x8] sm:$0xff]
    %v92 = vld [vmem:[%s15 + $0x10] sm:$0xff]
    %v93 = vld [vmem:[%s15 + $0x18] sm:$0xff]
    %v94 = vld [vmem:[%s15 + $0x20] sm:$0xff]
    %v95 = vld [vmem:[%s15 + $0x28] sm:$0xff]
    %v96 = vld [vmem:[%s15 + $0x30] sm:$0xff]
    %v97 = vld [vmem:[%s15 + $0x38] sm:$0xff]
    %v98 = vld [vmem:[%s15 + $0x40] sm:$0xff]
    %v99 = vld [vmem:[%s15 + $0x48] sm:$0xff]
    %v100 = vld [vmem:[%s15 + $0x50] sm:$0xff]
    %v101 = vld [vmem:[%s15 + $0x58] sm:$0xff]
    %v102 = vld [vmem:[%s15 + $0x60] sm:$0xff]
    %v103 = vld [vmem:[%s15 + $0x68] sm:$0xff]
    %v104 = vld [vmem:[%s15 + $0x70] sm:$0xff]
    %v105 = vld [vmem:[%s15 + $0x78] sm:$0xff]
    %v106 = vld [vmem:[%s15 + $0x80] sm:$0xff]
    %v107 = vld [vmem:[%s15 + $0x88] sm:$0xff]
    %v108 = vld [vmem:[%s15 + $0x90] sm:$0xff]
    %v109 = vld [vmem:[%s15 + $0x98] sm:$0xff]
    %v110 = vld [vmem:[%s15 + $0xa0] sm:$0xff]
    %v111 = vld [vmem:[%s15 + $0xa8] sm:$0xff]
    %v112 = vld [vmem:[%s15 + $0xb0] sm:$0xff]
    %v113 = vld [vmem:[%s15 + $0xb8] sm:$0xff]
    %v114 = vld [vmem:[%s15 + $0xc0] sm:$0xff]
    %v115 = vld [vmem:[%s15 + $0xc8] sm:$0xff]
    %v116 = vld [vmem:[%s15 + $0xd0] sm:$0xff]
    %v117 = vld [vmem:[%s15 + $0xd8] sm:$0xff]
    %v118 = vld [vmem:[%s15 + $0xe0] sm:$0xff]
    %v119 = vld [vmem:[%s15 + $0xe8] sm:$0xff]
    %v120 = vld [vmem:[%s15 + $0xf0] sm:$0xff]
    %v121 = vld [vmem:[%s15 + $0xf8] sm:$0xff]
    %v122 = vld [vmem:[%s16] sm:$0xff]
    %v123 = vld [vmem:[%s16 + $0x8] sm:$0xff]
    %v124 = vld [vmem:[%s17] sm:$0x1]
    %v125 = vld [vmem:[%s18] sm:$0xff]
    %v126 = vld [vmem:[%s18 + $0x8] sm:$0xff]
    %v127 = vld [vmem:[%s19] sm:$0xff]
    %v128 = vld [vmem:[%s19 + $0x8] sm:$0xff]
    %v129 = vld [vmem:[%s20] sm:$0x1]
    %v130 = vld [vmem:[%s21] sm:$0xff]
    %v131 = vld [vmem:[%s21 + $0x8] sm:$0xff]
    %v132 = vld [vmem:[%s22] sm:$0x1]
    %v134 = vrot.slane %v84, 1
    %135 = vrot.lane.b32.xlu0 %v134, 32
    %v136 = vpop.permute.xlu0 %135
    %v138 = vrot.slane %v84, 2
    %139 = vrot.lane.b32.xlu0 %v138, 64
    %v140 = vpop.permute.xlu0 %139
    %v142 = vrot.slane %v84, 3
    %143 = vrot.lane.b32.xlu0 %v142, 96
    %v144 = vpop.permute.xlu0 %143
    %v146 = vrot.slane %v84, 4
    %v148 = vrot.slane %v84, 5
    %149 = vrot.lane.b32.xlu0 %v148, 32
    %v150 = vpop.permute.xlu0 %149
    %v152 = vrot.slane %v84, 6
    %153 = vrot.lane.b32.xlu0 %v152, 64
    %v154 = vpop.permute.xlu0 %153
    %v156 = vrot.slane %v84, 7
    %157 = vrot.lane.b32.xlu0 %v156, 96
    %v158 = vpop.permute.xlu0 %157
    %vm160 = vcmask 261120
    %v161 = vsel %vm160, %v84, %v136
    %vm162 = vcmask 523264
    %v163 = vsel %vm162, %v161, %v140
    %vm164 = vcmask 785408
    %v165 = vsel %vm164, %v163, %v144
    %v166 = vsel %vm160, %v146, %v150
    %v167 = vsel %vm162, %v166, %v154
    %v168 = vsel %vm164, %v167, %v158
    %v170 = vrot.slane %v85, 1
    %171 = vrot.lane.b32.xlu0 %v170, 32
    %v172 = vpop.permute.xlu0 %171
    %v174 = vrot.slane %v85, 2
    %175 = vrot.lane.b32.xlu0 %v174, 64
    %v176 = vpop.permute.xlu0 %175
    %v178 = vrot.slane %v85, 3
    %179 = vrot.lane.b32.xlu0 %v178, 96
    %v180 = vpop.permute.xlu0 %179
    %v182 = vrot.slane %v85, 4
    %v184 = vrot.slane %v85, 5
    %185 = vrot.lane.b32.xlu0 %v184, 32
    %v186 = vpop.permute.xlu0 %185
    %v188 = vrot.slane %v85, 6
    %189 = vrot.lane.b32.xlu0 %v188, 64
    %v190 = vpop.permute.xlu0 %189
    %v192 = vrot.slane %v85, 7
    %193 = vrot.lane.b32.xlu0 %v192, 96
    %v194 = vpop.permute.xlu0 %193
    %v196 = vsel %vm160, %v85, %v172
    %v197 = vsel %vm162, %v196, %v176
    %v198 = vsel %vm164, %v197, %v180
    %v199 = vsel %vm160, %v182, %v186
    %v200 = vsel %vm162, %v199, %v190
    %v201 = vsel %vm164, %v200, %v194
    %v204 = vrot.slane %v198, 7
    %v205 = vrot.slane %v201, 7
    %vm208 = vcmask 1040384
    %v209 = vsel %vm208, %v165, %v204
    %v210 = vsel %vm208, %v168, %v205
    %vm211 = vcmask 130048
    %v213 = vsel %vm211, 0.0, 0
    %215 = vmatprep.subr.mxu0 0.0
    %216 = vmatpush1.msra.mxu0 0.0
    %217 = vmatprep.subr.mxu0 0.0
    %218 = vmatpush1.msra.mxu0 0.0
    %219 = vmatprep.subr.mxu0 0.0
    %220 = vmatpush1.msra.mxu0 0.0
    %221 = vmatprep.subr.mxu0 0.0
    %222 = vmatpush1.msra.mxu0 0.0
    %223 = vmatprep.subr.mxu0 0.0
    %224 = vmatpush1.msra.mxu0 0.0
    %225 = vmatprep.subr.mxu0 0.0
    %226 = vmatpush1.msra.mxu0 0.0
    %227 = vmatprep.subr.mxu0 0.0
    %228 = vmatpush1.msra.mxu0 0.0
    %229 = vmatprep.subr.mxu0 0.0
    %230 = vmatpush1.msra.mxu0 0.0
    %231 = vmatprep.subr.mxu0 0.0
    %232 = vmatpush1.msra.mxu0 0.0
    %233 = vmatprep.subr.mxu0 0.0
    %234 = vmatpush1.msra.mxu0 0.0
    %235 = vmatprep.subr.mxu0 0.0
    %236 = vmatpush1.msra.mxu0 0.0
    %237 = vmatprep.subr.mxu0 0.0
    %238 = vmatpush1.msra.mxu0 0.0
    %239 = vmatprep.subr.mxu0 0.0
    %240 = vmatpush1.msra.mxu0 0.0
    %241 = vmatprep.subr.mxu0 0.0
    %242 = vmatpush1.msra.mxu0 0.0
    %243 = vmatprep.subr.mxu0 0.0
    %244 = vmatpush1.msra.mxu0 %v123
    %245 = vmatprep.subr.mxu0 0.0
    %246 = vmatpush1.msra.mxu0 %v122
    %247 = vmatprep.subr.mxu0 0.0
    %248 = vmatpush2.msra.mxu0 0.0
    %249 = vmatprep.subr.mxu0 0.0
    %250 = vmatpush2.msra.mxu0 0.0
    %251 = vmatprep.subr.mxu0 0.0
    %252 = vmatpush2.msra.mxu0 0.0
    %253 = vmatprep.subr.mxu0 0.0
    %254 = vmatpush2.msra.mxu0 0.0
    %255 = vmatprep.subr.mxu0 0.0
    %256 = vmatpush2.msra.mxu0 0.0
    %257 = vmatprep.subr.mxu0 0.0
    %258 = vmatpush2.msra.mxu0 0.0
    %259 = vmatprep.subr.mxu0 0.0
    %260 = vmatpush2.msra.mxu0 0.0
    %261 = vmatprep.subr.mxu0 0.0
    %262 = vmatpush2.msra.mxu0 0.0
    %263 = vmatprep.subr.mxu0 0.0
    %264 = vmatpush2.msra.mxu0 0.0
    %265 = vmatprep.subr.mxu0 0.0
    %266 = vmatpush2.msra.mxu0 0.0
    %267 = vmatprep.subr.mxu0 0.0
    %268 = vmatpush2.msra.mxu0 0.0
    %269 = vmatprep.subr.mxu0 0.0
    %270 = vmatpush2.msra.mxu0 0.0
    %271 = vmatprep.subr.mxu0 0.0
    %272 = vmatpush2.msra.mxu0 0.0
    %273 = vmatprep.subr.mxu0 0.0
    %274 = vmatpush2.msra.mxu0 0.0
    %275 = vmatprep.subr.mxu0 0.0
    %276 = vmatpush2.msra.mxu0 0.0
    %277 = vmatprep.subr.mxu0 0.0
    %278 = vmatpush2.msra.mxu0 0.0
    %279 = vmatprep.mubr.f32.mxu0 0.0
    %280 = vmatmul.mubr.f32.gmra.mxu0 %v213
    %v281 = vpop.f32.mrf.mxu0
    %v282 = vadd.f32 0.0, %v281
    %v283 = vpop.f32.mrf.mxu0
    %284 = vdwg.mxu0
    %285 = vmatprep.subr.mxu0 0.0
    %286 = vmatpush1.msra.mxu0 %v105
    %287 = vmatprep.subr.mxu0 0.0
    %288 = vmatpush1.msra.mxu0 %v104
    %289 = vmatprep.subr.mxu0 0.0
    %290 = vmatpush1.msra.mxu0 %v103
    %291 = vmatprep.subr.mxu0 0.0
    %292 = vmatpush1.msra.mxu0 %v102
    %293 = vmatprep.subr.mxu0 0.0
    %294 = vmatpush1.msra.mxu0 %v101
    %295 = vmatprep.subr.mxu0 0.0
    %296 = vmatpush1.msra.mxu0 %v100
    %297 = vmatprep.subr.mxu0 0.0
    %298 = vmatpush1.msra.mxu0 %v99
    %299 = vmatprep.subr.mxu0 0.0
    %300 = vmatpush1.msra.mxu0 %v98
    %301 = vmatprep.subr.mxu0 0.0
    %302 = vmatpush1.msra.mxu0 %v97
    %303 = vmatprep.subr.mxu0 0.0
    %304 = vmatpush1.msra.mxu0 %v96
    %305 = vmatprep.subr.mxu0 0.0
    %306 = vmatpush1.msra.mxu0 %v95
    %307 = vmatprep.subr.mxu0 0.0
    %308 = vmatpush1.msra.mxu0 %v94
    %309 = vmatprep.subr.mxu0 0.0
    %310 = vmatpush1.msra.mxu0 %v93
    %311 = vmatprep.subr.mxu0 0.0
    %312 = vmatpush1.msra.mxu0 %v92
    %313 = vmatprep.subr.mxu0 0.0
    %314 = vmatpush1.msra.mxu0 %v91
    %315 = vmatprep.subr.mxu0 0.0
    %316 = vmatpush1.msra.mxu0 %v90
    %317 = vmatprep.subr.mxu0 0.0
    %318 = vmatpush2.msra.mxu0 %v121
    %319 = vmatprep.subr.mxu0 0.0
    %320 = vmatpush2.msra.mxu0 %v120
    %321 = vmatprep.subr.mxu0 0.0
    %322 = vmatpush2.msra.mxu0 %v119
    %323 = vmatprep.subr.mxu0 0.0
    %324 = vmatpush2.msra.mxu0 %v118
    %325 = vmatprep.subr.mxu0 0.0
    %326 = vmatpush2.msra.mxu0 %v117
    %327 = vmatprep.subr.mxu0 0.0
    %328 = vmatpush2.msra.mxu0 %v116
    %329 = vmatprep.subr.mxu0 0.0
    %330 = vmatpush2.msra.mxu0 %v115
    %331 = vmatprep.subr.mxu0 0.0
    %332 = vmatpush2.msra.mxu0 %v114
    %333 = vmatprep.subr.mxu0 0.0
    %334 = vmatpush2.msra.mxu0 %v113
    %335 = vmatprep.subr.mxu0 0.0
    %336 = vmatpush2.msra.mxu0 %v112
    %337 = vmatprep.subr.mxu0 0.0
    %338 = vmatpush2.msra.mxu0 %v111
    %339 = vmatprep.subr.mxu0 0.0
    %340 = vmatpush2.msra.mxu0 %v110
    %341 = vmatprep.subr.mxu0 0.0
    %342 = vmatpush2.msra.mxu0 %v109
    %343 = vmatprep.subr.mxu0 0.0
    %344 = vmatpush2.msra.mxu0 %v108
    %345 = vmatprep.subr.mxu0 0.0
    %346 = vmatpush2.msra.mxu0 %v107
    %347 = vmatprep.subr.mxu0 0.0
    %348 = vmatpush2.msra.mxu0 %v106
    %349 = vmatprep.mubr.f32.mxu0 %v210
    %350 = vmatmul.mubr.f32.gmra.mxu0 %v209
    %v351 = vpop.f32.mrf.mxu0
    %v352 = vadd.f32 %v282, %v351
    %v353 = vpop.f32.mrf.mxu0
    %354 = vdwg.mxu0
    %v356 = vlaneseq
    %v357 = vshrl.u32 %v356, 7
    %v358 = vsub.s32 0, %v357
    %v359 = vrot.slane %v124, %v358
    %v361 = vadd.f32 %v352, %v359
    %v362 = vxor.u32 %v361, 2147483648
    %v363 = vmul.f32 %v362, 1.442695
    %v364 = vpow.pop %v363
    %v365 = vadd.f32 %v364, 1.0
    %v366 = vrcp.pop %v365
    %v367 = vmul.f32 1.0, %v366
    %v368 = vtanh.pop %v361
    %v369 = vmul.f32 %v367, 0.0
    %371 = vrot.lane.b32.xlu0 %v368, 96
    %v372 = vpop.permute.xlu0 %371
    %v374 = vmul.f32 %v367, %v372
    %376 = vrot.lane.b32.xlu0 %v374, 16
    %v377 = vpop.permute.xlu0 %376
    %v379 = vadd.f32 %v369, %v377
    %v380 = vtanh.pop %v379
    %382 = vrot.lane.b32.xlu0 %v380, 32
    %v383 = vpop.permute.xlu0 %382
    %v385 = vmul.f32 %v367, %v383
    %386 = vmatprep.subr.mxu0 0.0
    %387 = vmatpush1.msra.mxu0 0.0
    %388 = vmatprep.subr.mxu0 0.0
    %389 = vmatpush1.msra.mxu0 0.0
    %390 = vmatprep.subr.mxu0 0.0
    %391 = vmatpush1.msra.mxu0 0.0
    %392 = vmatprep.subr.mxu0 0.0
    %393 = vmatpush1.msra.mxu0 0.0
    %394 = vmatprep.subr.mxu0 0.0
    %395 = vmatpush1.msra.mxu0 0.0
    %396 = vmatprep.subr.mxu0 0.0
    %397 = vmatpush1.msra.mxu0 0.0
    %398 = vmatprep.subr.mxu0 0.0
    %399 = vmatpush1.msra.mxu0 0.0
    %400 = vmatprep.subr.mxu0 0.0
    %401 = vmatpush1.msra.mxu0 0.0
    %402 = vmatprep.subr.mxu0 0.0
    %403 = vmatpush1.msra.mxu0 0.0
    %404 = vmatprep.subr.mxu0 0.0
    %405 = vmatpush1.msra.mxu0 0.0
    %406 = vmatprep.subr.mxu0 0.0
    %407 = vmatpush1.msra.mxu0 0.0
    %408 = vmatprep.subr.mxu0 0.0
    %409 = vmatpush1.msra.mxu0 0.0
    %410 = vmatprep.subr.mxu0 0.0
    %411 = vmatpush1.msra.mxu0 0.0
    %412 = vmatprep.subr.mxu0 0.0
    %413 = vmatpush1.msra.mxu0 0.0
    %414 = vmatprep.subr.mxu0 0.0
    %415 = vmatpush1.msra.mxu0 %v128
    %416 = vmatprep.subr.mxu0 0.0
    %417 = vmatpush1.msra.mxu0 %v127
    %418 = vmatprep.subr.mxu0 0.0
    %419 = vmatpush2.msra.mxu0 0.0
    %420 = vmatprep.subr.mxu0 0.0
    %421 = vmatpush2.msra.mxu0 0.0
    %422 = vmatprep.subr.mxu0 0.0
    %423 = vmatpush2.msra.mxu0 0.0
    %424 = vmatprep.subr.mxu0 0.0
    %425 = vmatpush2.msra.mxu0 0.0
    %426 = vmatprep.subr.mxu0 0.0
    %427 = vmatpush2.msra.mxu0 0.0
    %428 = vmatprep.subr.mxu0 0.0
    %429 = vmatpush2.msra.mxu0 0.0
    %430 = vmatprep.subr.mxu0 0.0
    %431 = vmatpush2.msra.mxu0 0.0
    %432 = vmatprep.subr.mxu0 0.0
    %433 = vmatpush2.msra.mxu0 0.0
    %434 = vmatprep.subr.mxu0 0.0
    %435 = vmatpush2.msra.mxu0 0.0
    %436 = vmatprep.subr.mxu0 0.0
    %437 = vmatpush2.msra.mxu0 0.0
    %438 = vmatprep.subr.mxu0 0.0
    %439 = vmatpush2.msra.mxu0 0.0
    %440 = vmatprep.subr.mxu0 0.0
    %441 = vmatpush2.msra.mxu0 0.0
    %442 = vmatprep.subr.mxu0 0.0
    %443 = vmatpush2.msra.mxu0 0.0
    %444 = vmatprep.subr.mxu0 0.0
    %445 = vmatpush2.msra.mxu0 0.0
    %446 = vmatprep.subr.mxu0 0.0
    %447 = vmatpush2.msra.mxu0 0.0
    %448 = vmatprep.subr.mxu0 0.0
    %449 = vmatpush2.msra.mxu0 0.0
    %450 = vmatprep.mubr.f32.mxu0 0.0
    %451 = vmatmul.mubr.f32.gmra.mxu0 %v213
    %v452 = vpop.f32.mrf.mxu0
    %v453 = vadd.f32 0.0, %v452
    %v454 = vpop.f32.mrf.mxu0
    %455 = vdwg.mxu0
    %457 = vrot.lane.b32.xlu0 %v385, 80
    %v458 = vpop.permute.xlu0 %457
    %v459 = vsel %vm211, %v458, 0
    %461 = vmatprep.subr.mxu0 0.0
    %462 = vmatpush1.msra.mxu0 0.0
    %463 = vmatprep.subr.mxu0 0.0
    %464 = vmatpush1.msra.mxu0 0.0
    %465 = vmatprep.subr.mxu0 0.0
    %466 = vmatpush1.msra.mxu0 0.0
    %467 = vmatprep.subr.mxu0 0.0
    %468 = vmatpush1.msra.mxu0 0.0
    %469 = vmatprep.subr.mxu0 0.0
    %470 = vmatpush1.msra.mxu0 0.0
    %471 = vmatprep.subr.mxu0 0.0
    %472 = vmatpush1.msra.mxu0 0.0
    %473 = vmatprep.subr.mxu0 0.0
    %474 = vmatpush1.msra.mxu0 0.0
    %475 = vmatprep.subr.mxu0 0.0
    %476 = vmatpush1.msra.mxu0 0.0
    %477 = vmatprep.subr.mxu0 0.0
    %478 = vmatpush1.msra.mxu0 0.0
    %479 = vmatprep.subr.mxu0 0.0
    %480 = vmatpush1.msra.mxu0 0.0
    %481 = vmatprep.subr.mxu0 0.0
    %482 = vmatpush1.msra.mxu0 0.0
    %483 = vmatprep.subr.mxu0 0.0
    %484 = vmatpush1.msra.mxu0 0.0
    %485 = vmatprep.subr.mxu0 0.0
    %486 = vmatpush1.msra.mxu0 0.0
    %487 = vmatprep.subr.mxu0 0.0
    %488 = vmatpush1.msra.mxu0 0.0
    %489 = vmatprep.subr.mxu0 0.0
    %490 = vmatpush1.msra.mxu0 %v126
    %491 = vmatprep.subr.mxu0 0.0
    %492 = vmatpush1.msra.mxu0 %v125
    %493 = vmatprep.subr.mxu0 0.0
    %494 = vmatpush2.msra.mxu0 0.0
    %495 = vmatprep.subr.mxu0 0.0
    %496 = vmatpush2.msra.mxu0 0.0
    %497 = vmatprep.subr.mxu0 0.0
    %498 = vmatpush2.msra.mxu0 0.0
    %499 = vmatprep.subr.mxu0 0.0
    %500 = vmatpush2.msra.mxu0 0.0
    %501 = vmatprep.subr.mxu0 0.0
    %502 = vmatpush2.msra.mxu0 0.0
    %503 = vmatprep.subr.mxu0 0.0
    %504 = vmatpush2.msra.mxu0 0.0
    %505 = vmatprep.subr.mxu0 0.0
    %506 = vmatpush2.msra.mxu0 0.0
    %507 = vmatprep.subr.mxu0 0.0
    %508 = vmatpush2.msra.mxu0 0.0
    %509 = vmatprep.subr.mxu0 0.0
    %510 = vmatpush2.msra.mxu0 0.0
    %511 = vmatprep.subr.mxu0 0.0
    %512 = vmatpush2.msra.mxu0 0.0
    %513 = vmatprep.subr.mxu0 0.0
    %514 = vmatpush2.msra.mxu0 0.0
    %515 = vmatprep.subr.mxu0 0.0
    %516 = vmatpush2.msra.mxu0 0.0
    %517 = vmatprep.subr.mxu0 0.0
    %518 = vmatpush2.msra.mxu0 0.0
    %519 = vmatprep.subr.mxu0 0.0
    %520 = vmatpush2.msra.mxu0 0.0
    %521 = vmatprep.subr.mxu0 0.0
    %522 = vmatpush2.msra.mxu0 0.0
    %523 = vmatprep.subr.mxu0 0.0
    %524 = vmatpush2.msra.mxu0 0.0
    %525 = vmatprep.mubr.f32.mxu0 0.0
    %526 = vmatmul.mubr.f32.gmra.mxu0 %v459
    %v527 = vpop.f32.mrf.mxu0
    %v528 = vadd.f32 %v453, %v527
    %v529 = vpop.f32.mrf.mxu0
    %530 = vdwg.mxu0
    %v532 = vlaneseq
    %v533 = vshrl.u32 %v532, 7
    %v534 = vsub.s32 0, %v533
    %v535 = vrot.slane %v129, %v534
    %v537 = vadd.f32 %v528, %v535
    %v538 = vxor.u32 %v537, 2147483648
    %v539 = vmul.f32 %v538, 1.442695
    %v540 = vpow.pop %v539
    %v541 = vadd.f32 %v540, 1.0
    %v542 = vrcp.pop %v541
    %v543 = vmul.f32 1.0, %v542
    %v544 = vtanh.pop %v537
    %v545 = vmul.f32 %v543, 0.0
    %547 = vrot.lane.b32.xlu0 %v544, 96
    %v548 = vpop.permute.xlu0 %547
    %v550 = vmul.f32 %v543, %v548
    %552 = vrot.lane.b32.xlu0 %v550, 16
    %v553 = vpop.permute.xlu0 %552
    %v555 = vadd.f32 %v545, %v553
    %v556 = vtanh.pop %v555
    %558 = vrot.lane.b32.xlu0 %v556, 32
    %v559 = vpop.permute.xlu0 %558
    %v561 = vmul.f32 %v543, %v559
    %v563 = vlaneseq
    %v564 = vshrl.u32 %v563, 7
    %v565 = vsub.s32 0, %v564
    %v566 = vrot.slane %v132, %v565
    %569 = vrot.lane.b32.xlu0 %v561, 80
    %v570 = vpop.permute.xlu0 %569
    %v571 = vsel %vm211, %v570, 0
    %573 = vmatprep.subr.mxu0 0.0
    %574 = vmatpush1.msra.mxu0 0.0
    %575 = vmatprep.subr.mxu0 0.0
    %576 = vmatpush1.msra.mxu0 0.0
    %577 = vmatprep.subr.mxu0 0.0
    %578 = vmatpush1.msra.mxu0 0.0
    %579 = vmatprep.subr.mxu0 0.0
    %580 = vmatpush1.msra.mxu0 0.0
    %581 = vmatprep.subr.mxu0 0.0
    %582 = vmatpush1.msra.mxu0 0.0
    %583 = vmatprep.subr.mxu0 0.0
    %584 = vmatpush1.msra.mxu0 0.0
    %585 = vmatprep.subr.mxu0 0.0
    %586 = vmatpush1.msra.mxu0 0.0
    %587 = vmatprep.subr.mxu0 0.0
    %588 = vmatpush1.msra.mxu0 0.0
    %589 = vmatprep.subr.mxu0 0.0
    %590 = vmatpush1.msra.mxu0 0.0
    %591 = vmatprep.subr.mxu0 0.0
    %592 = vmatpush1.msra.mxu0 0.0
    %593 = vmatprep.subr.mxu0 0.0
    %594 = vmatpush1.msra.mxu0 0.0
    %595 = vmatprep.subr.mxu0 0.0
    %596 = vmatpush1.msra.mxu0 0.0
    %597 = vmatprep.subr.mxu0 0.0
    %598 = vmatpush1.msra.mxu0 0.0
    %599 = vmatprep.subr.mxu0 0.0
    %600 = vmatpush1.msra.mxu0 0.0
    %601 = vmatprep.subr.mxu0 0.0
    %602 = vmatpush1.msra.mxu0 %v131
    %603 = vmatprep.subr.mxu0 0.0
    %604 = vmatpush1.msra.mxu0 %v130
    %605 = vmatprep.subr.mxu0 0.0
    %606 = vmatpush2.msra.mxu0 0.0
    %607 = vmatprep.subr.mxu0 0.0
    %608 = vmatpush2.msra.mxu0 0.0
    %609 = vmatprep.subr.mxu0 0.0
    %610 = vmatpush2.msra.mxu0 0.0
    %611 = vmatprep.subr.mxu0 0.0
    %612 = vmatpush2.msra.mxu0 0.0
    %613 = vmatprep.subr.mxu0 0.0
    %614 = vmatpush2.msra.mxu0 0.0
    %615 = vmatprep.subr.mxu0 0.0
    %616 = vmatpush2.msra.mxu0 0.0
    %617 = vmatprep.subr.mxu0 0.0
    %618 = vmatpush2.msra.mxu0 0.0
    %619 = vmatprep.subr.mxu0 0.0
    %620 = vmatpush2.msra.mxu0 0.0
    %621 = vmatprep.subr.mxu0 0.0
    %622 = vmatpush2.msra.mxu0 0.0
    %623 = vmatprep.subr.mxu0 0.0
    %624 = vmatpush2.msra.mxu0 0.0
    %625 = vmatprep.subr.mxu0 0.0
    %626 = vmatpush2.msra.mxu0 0.0
    %627 = vmatprep.subr.mxu0 0.0
    %628 = vmatpush2.msra.mxu0 0.0
    %629 = vmatprep.subr.mxu0 0.0
    %630 = vmatpush2.msra.mxu0 0.0
    %631 = vmatprep.subr.mxu0 0.0
    %632 = vmatpush2.msra.mxu0 0.0
    %633 = vmatprep.subr.mxu0 0.0
    %634 = vmatpush2.msra.mxu0 0.0
    %635 = vmatprep.subr.mxu0 0.0
    %636 = vmatpush2.msra.mxu0 0.0
    %637 = vmatprep.mubr.f32.mxu0 0.0
    %638 = vmatmul.mubr.f32.gmra.mxu0 %v571
    %v639 = vpop.f32.mrf.mxu0
    %v640 = vadd.f32 %v566, %v639
    %v641 = vpop.f32.mrf.mxu0
    %642 = vdwg.mxu0
    %vm643 = vcmask 9216
    %v644 = vsel %vm643, %v640, -inf
    %645 = vmax.xlane.f32.xlu0 %v644
    %v646 = vpop.xlane.xlu0 %645
    %v647 = vsub.f32 %v640, %v646
    %v648 = vmul.f32 %v647, 1.442695
    %v649 = vpow.pop %v648
    %v650 = vsel %vm643, %v649, 0.0
    %651 = vadd.xlane.f32.xlu0 %v650
    %v652 = vpop.xlane.xlu0 %651
    %v653 = vrcp.pop %v652
    %v654 = vmul.f32 %v649, %v653
    %v655 = vld [vmem:[%s3] sm:$0x1]
    %v656 = vld [vmem:[%s4] sm:$0x1]
    %v657 = vsel %vm160, %v84, 0.0
    %658 = vadd.xlane.f32.xlu0 %v657
    %v659 = vpop.xlane.xlu0 %658
    %v660 = vsel %vm160, %v85, 0.0
    %661 = vadd.xlane.f32.xlu0 %v660
    %v662 = vpop.xlane.xlu0 %661
    %v663 = vrcp.pop 32.0
    %v664 = vmul.f32 %v659, %v663
    %v665 = vmul.f32 %v662, %v663
    %v666 = vsub.f32 %v84, %v664
    %v667 = vsub.f32 %v85, %v665
    %v668 = vmul.f32 %v666, %v666
    %v669 = vmul.f32 %v667, %v667
    %v670 = vsel %vm160, %v668, 0.0
    %671 = vadd.xlane.f32.xlu0 %v670
    %v672 = vpop.xlane.xlu0 %671
    %v673 = vsel %vm160, %v669, 0.0
    %674 = vadd.xlane.f32.xlu0 %v673
    %v675 = vpop.xlane.xlu0 %674
    %v676 = vmul.f32 %v672, %v663
    %v677 = vmul.f32 %v675, %v663
    %v678 = vadd.f32 %v676, 1e-05
    %v679 = vadd.f32 %v677, 1e-05
    %v680 = vrsqrt.pop %v678
    %v681 = vrsqrt.pop %v679
    %v682 = vmul.f32 %v666, %v680
    %v683 = vmul.f32 %v667, %v681
    %v685 = vlaneseq
    %v686 = vshrl.u32 %v685, 7
    %v687 = vsub.s32 0, %v686
    %v688 = vrot.slane %v655, %v687
    %v690 = vmul.f32 %v682, %v688
    %v691 = vmul.f32 %v683, %v688
    %v693 = vlaneseq
    %v694 = vshrl.u32 %v693, 7
    %v695 = vsub.s32 0, %v694
    %v696 = vrot.slane %v656, %v695
    %v698 = vadd.f32 %v690, %v696
    %v699 = vadd.f32 %v691, %v696
    %v700 = vld [vmem:[%s5] sm:$0xff]
    %v701 = vld [vmem:[%s5 + $0x8] sm:$0xff]
    %v702 = vld [vmem:[%s5 + $0x10] sm:$0xff]
    %v703 = vld [vmem:[%s5 + $0x18] sm:$0xff]
    %v704 = vld [vmem:[%s6] sm:$0x1]
    %v706 = vlaneseq
    %v707 = vshrl.u32 %v706, 7
    %v708 = vsub.s32 0, %v707
    %v709 = vrot.slane %v704, %v708
    %v712 = vsel %vm160, %v698, 0
    %v715 = vsel %vm160, %v699, 0
    %717 = vmatprep.subr.mxu0 0.0
    %718 = vmatpush1.msra.mxu0 0.0
    %719 = vmatprep.subr.mxu0 0.0
    %720 = vmatpush1.msra.mxu0 0.0
    %721 = vmatprep.subr.mxu0 0.0
    %722 = vmatpush1.msra.mxu0 0.0
    %723 = vmatprep.subr.mxu0 0.0
    %724 = vmatpush1.msra.mxu0 0.0
    %725 = vmatprep.subr.mxu0 0.0
    %726 = vmatpush1.msra.mxu0 0.0
    %727 = vmatprep.subr.mxu0 0.0
    %728 = vmatpush1.msra.mxu0 0.0
    %729 = vmatprep.subr.mxu0 0.0
    %730 = vmatpush1.msra.mxu0 0.0
    %731 = vmatprep.subr.mxu0 0.0
    %732 = vmatpush1.msra.mxu0 0.0
    %733 = vmatprep.subr.mxu0 0.0
    %734 = vmatpush1.msra.mxu0 0.0
    %735 = vmatprep.subr.mxu0 0.0
    %736 = vmatpush1.msra.mxu0 0.0
    %737 = vmatprep.subr.mxu0 0.0
    %738 = vmatpush1.msra.mxu0 0.0
    %739 = vmatprep.subr.mxu0 0.0
    %740 = vmatpush1.msra.mxu0 0.0
    %741 = vmatprep.subr.mxu0 0.0
    %742 = vmatpush1.msra.mxu0 %v703
    %743 = vmatprep.subr.mxu0 0.0
    %744 = vmatpush1.msra.mxu0 %v702
    %745 = vmatprep.subr.mxu0 0.0
    %746 = vmatpush1.msra.mxu0 %v701
    %747 = vmatprep.subr.mxu0 0.0
    %748 = vmatpush1.msra.mxu0 %v700
    %749 = vmatprep.subr.mxu0 0.0
    %750 = vmatpush2.msra.mxu0 0.0
    %751 = vmatprep.subr.mxu0 0.0
    %752 = vmatpush2.msra.mxu0 0.0
    %753 = vmatprep.subr.mxu0 0.0
    %754 = vmatpush2.msra.mxu0 0.0
    %755 = vmatprep.subr.mxu0 0.0
    %756 = vmatpush2.msra.mxu0 0.0
    %757 = vmatprep.subr.mxu0 0.0
    %758 = vmatpush2.msra.mxu0 0.0
    %759 = vmatprep.subr.mxu0 0.0
    %760 = vmatpush2.msra.mxu0 0.0
    %761 = vmatprep.subr.mxu0 0.0
    %762 = vmatpush2.msra.mxu0 0.0
    %763 = vmatprep.subr.mxu0 0.0
    %764 = vmatpush2.msra.mxu0 0.0
    %765 = vmatprep.subr.mxu0 0.0
    %766 = vmatpush2.msra.mxu0 0.0
    %767 = vmatprep.subr.mxu0 0.0
    %768 = vmatpush2.msra.mxu0 0.0
    %769 = vmatprep.subr.mxu0 0.0
    %770 = vmatpush2.msra.mxu0 0.0
    %771 = vmatprep.subr.mxu0 0.0
    %772 = vmatpush2.msra.mxu0 0.0
    %773 = vmatprep.subr.mxu0 0.0
    %774 = vmatpush2.msra.mxu0 0.0
    %775 = vmatprep.subr.mxu0 0.0
    %776 = vmatpush2.msra.mxu0 0.0
    %777 = vmatprep.subr.mxu0 0.0
    %778 = vmatpush2.msra.mxu0 0.0
    %779 = vmatprep.subr.mxu0 0.0
    %780 = vmatpush2.msra.mxu0 0.0
    %781 = vmatprep.mubr.f32.mxu0 0.0
    %782 = vmatmul.mubr.f32.gmra.mxu0 %v712
    %v783 = vpop.f32.mrf.mxu0
    %v784 = vadd.f32 %v709, %v783
    %v785 = vpop.f32.mrf.mxu0
    %786 = vmatprep.mubr.f32.mxu0 0.0
    %787 = vmatmul.mubr.f32.gmra.mxu0 %v715
    %v788 = vpop.f32.mrf.mxu0
    %v789 = vadd.f32 %v709, %v788
    %v790 = vpop.f32.mrf.mxu0
    %791 = vdwg.mxu0
    %v792 = vld [vmem:[%s7] sm:$0xff]
    %v793 = vld [vmem:[%s7 + $0x8] sm:$0xff]
    %v794 = vld [vmem:[%s7 + $0x10] sm:$0xff]
    %v795 = vld [vmem:[%s7 + $0x18] sm:$0xff]
    %v796 = vld [vmem:[%s8] sm:$0x1]
    %v798 = vlaneseq
    %v799 = vshrl.u32 %v798, 7
    %v800 = vsub.s32 0, %v799
    %v801 = vrot.slane %v796, %v800
    %v803 = vadd.f32 %v801, 0.0
    %806 = vrot.lane.b32.xlu0 %v784, 96
    %v807 = vpop.permute.xlu0 %806
    %808 = vrot.lane.b32.xlu0 %v789, 96
    %v809 = vpop.permute.xlu0 %808
    %v810 = vsel %vm211, %v784, 0
    %v812 = vsel %vm211, %v789, 0
    %v814 = vsel %vm211, %v807, 0
    %v816 = vsel %vm211, %v809, 0
    %818 = vmatprep.subr.mxu0 0.0
    %819 = vmatpush1.xpose.msra.mxu0 0.0
    %820 = vmatprep.subr.mxu0 0.0
    %821 = vmatpush1.xpose.msra.mxu0 0.0
    %822 = vmatprep.subr.mxu0 0.0
    %823 = vmatpush1.xpose.msra.mxu0 0.0
    %824 = vmatprep.subr.mxu0 0.0
    %825 = vmatpush1.xpose.msra.mxu0 0.0
    %826 = vmatprep.subr.mxu0 0.0
    %827 = vmatpush1.xpose.msra.mxu0 0.0
    %828 = vmatprep.subr.mxu0 0.0
    %829 = vmatpush1.xpose.msra.mxu0 0.0
    %830 = vmatprep.subr.mxu0 0.0
    %831 = vmatpush1.xpose.msra.mxu0 0.0
    %832 = vmatprep.subr.mxu0 0.0
    %833 = vmatpush1.xpose.msra.mxu0 0.0
    %834 = vmatprep.subr.mxu0 0.0
    %835 = vmatpush1.xpose.msra.mxu0 0.0
    %836 = vmatprep.subr.mxu0 0.0
    %837 = vmatpush1.xpose.msra.mxu0 0.0
    %838 = vmatprep.subr.mxu0 0.0
    %839 = vmatpush1.xpose.msra.mxu0 0.0
    %840 = vmatprep.subr.mxu0 0.0
    %841 = vmatpush1.xpose.msra.mxu0 0.0
    %842 = vmatprep.subr.mxu0 0.0
    %843 = vmatpush1.xpose.msra.mxu0 0.0
    %844 = vmatprep.subr.mxu0 0.0
    %845 = vmatpush1.xpose.msra.mxu0 0.0
    %846 = vmatprep.subr.mxu0 0.0
    %847 = vmatpush1.xpose.msra.mxu0 %v816
    %848 = vmatprep.subr.mxu0 0.0
    %849 = vmatpush1.xpose.msra.mxu0 %v814
    %850 = vmatprep.subr.mxu0 0.0
    %851 = vmatpush2.xpose.msra.mxu0 0.0
    %852 = vmatprep.subr.mxu0 0.0
    %853 = vmatpush2.xpose.msra.mxu0 0.0
    %854 = vmatprep.subr.mxu0 0.0
    %855 = vmatpush2.xpose.msra.mxu0 0.0
    %856 = vmatprep.subr.mxu0 0.0
    %857 = vmatpush2.xpose.msra.mxu0 0.0
    %858 = vmatprep.subr.mxu0 0.0
    %859 = vmatpush2.xpose.msra.mxu0 0.0
    %860 = vmatprep.subr.mxu0 0.0
    %861 = vmatpush2.xpose.msra.mxu0 0.0
    %862 = vmatprep.subr.mxu0 0.0
    %863 = vmatpush2.xpose.msra.mxu0 0.0
    %864 = vmatprep.subr.mxu0 0.0
    %865 = vmatpush2.xpose.msra.mxu0 0.0
    %866 = vmatprep.subr.mxu0 0.0
    %867 = vmatpush2.xpose.msra.mxu0 0.0
    %868 = vmatprep.subr.mxu0 0.0
    %869 = vmatpush2.xpose.msra.mxu0 0.0
    %870 = vmatprep.subr.mxu0 0.0
    %871 = vmatpush2.xpose.msra.mxu0 0.0
    %872 = vmatprep.subr.mxu0 0.0
    %873 = vmatpush2.xpose.msra.mxu0 0.0
    %874 = vmatprep.subr.mxu0 0.0
    %875 = vmatpush2.xpose.msra.mxu0 0.0
    %876 = vmatprep.subr.mxu0 0.0
    %877 = vmatpush2.xpose.msra.mxu0 0.0
    %878 = vmatprep.subr.mxu0 0.0
    %879 = vmatpush2.xpose.msra.mxu0 0.0
    %880 = vmatprep.subr.mxu0 0.0
    %881 = vmatpush2.xpose.msra.mxu0 0.0
    %882 = vmatprep.mubr.f32.mxu0 0.0
    %883 = vmatmul.mubr.f32.gmra.mxu0 %v810
    %v884 = vpop.f32.mrf.mxu0
    %v885 = vadd.f32 0.0, %v884
    %v886 = vpop.f32.mrf.mxu0
    %887 = vmatprep.mubr.f32.mxu0 0.0
    %888 = vmatmul.mubr.f32.gmra.mxu0 %v812
    %v889 = vpop.f32.mrf.mxu0
    %v890 = vadd.f32 0.0, %v889
    %v891 = vpop.f32.mrf.mxu0
    %892 = vdwg.mxu0
    %v893 = vmul.f32 %v885, 0.25
    %v894 = vmul.f32 %v890, 0.25
    %v895 = vadd.f32 %v893, %v86
    %v896 = vadd.f32 %v894, %v87
    %v897 = vsel %vm211, %v895, -inf
    %898 = vmax.xlane.f32.xlu0 %v897
    %v899 = vpop.xlane.xlu0 %898
    %v900 = vsel %vm211, %v896, -inf
    %901 = vmax.xlane.f32.xlu0 %v900
    %v902 = vpop.xlane.xlu0 %901
    %v903 = vsub.f32 %v895, %v899
    %v904 = vsub.f32 %v896, %v902
    %v905 = vmul.f32 %v903, 1.442695
    %v906 = vpow.pop %v905
    %v907 = vmul.f32 %v904, 1.442695
    %v908 = vpow.pop %v907
    %v909 = vsel %vm211, %v906, 0.0
    %910 = vadd.xlane.f32.xlu0 %v909
    %v911 = vpop.xlane.xlu0 %910
    %v912 = vsel %vm211, %v908, 0.0
    %913 = vadd.xlane.f32.xlu0 %v912
    %v914 = vpop.xlane.xlu0 %913
    %v915 = vrcp.pop %v911
    %v916 = vrcp.pop %v914
    %v917 = vmul.f32 %v906, %v915
    %v918 = vmul.f32 %v908, %v916
    %919 = vrot.lane.b32.xlu0 %v784, 64
    %v920 = vpop.permute.xlu0 %919
    %921 = vrot.lane.b32.xlu0 %v789, 64
    %v922 = vpop.permute.xlu0 %921
    %v926 = vsel %vm211, %v917, 0
    %v929 = vsel %vm211, %v918, 0
    %931 = vmatprep.subr.mxu0 0.0
    %932 = vmatpush1.msra.mxu0 0.0
    %933 = vmatprep.subr.mxu0 0.0
    %934 = vmatpush1.msra.mxu0 0.0
    %935 = vmatprep.subr.mxu0 0.0
    %936 = vmatpush1.msra.mxu0 0.0
    %937 = vmatprep.subr.mxu0 0.0
    %938 = vmatpush1.msra.mxu0 0.0
    %939 = vmatprep.subr.mxu0 0.0
    %940 = vmatpush1.msra.mxu0 0.0
    %941 = vmatprep.subr.mxu0 0.0
    %942 = vmatpush1.msra.mxu0 0.0
    %943 = vmatprep.subr.mxu0 0.0
    %944 = vmatpush1.msra.mxu0 0.0
    %945 = vmatprep.subr.mxu0 0.0
    %946 = vmatpush1.msra.mxu0 0.0
    %947 = vmatprep.subr.mxu0 0.0
    %948 = vmatpush1.msra.mxu0 0.0
    %949 = vmatprep.subr.mxu0 0.0
    %950 = vmatpush1.msra.mxu0 0.0
    %951 = vmatprep.subr.mxu0 0.0
    %952 = vmatpush1.msra.mxu0 0.0
    %953 = vmatprep.subr.mxu0 0.0
    %954 = vmatpush1.msra.mxu0 0.0
    %955 = vmatprep.subr.mxu0 0.0
    %956 = vmatpush1.msra.mxu0 0.0
    %957 = vmatprep.subr.mxu0 0.0
    %958 = vmatpush1.msra.mxu0 0.0
    %959 = vmatprep.subr.mxu0 0.0
    %960 = vmatpush1.msra.mxu0 %v922
    %961 = vmatprep.subr.mxu0 0.0
    %962 = vmatpush1.msra.mxu0 %v920
    %963 = vmatprep.subr.mxu0 0.0
    %964 = vmatpush2.msra.mxu0 0.0
    %965 = vmatprep.subr.mxu0 0.0
    %966 = vmatpush2.msra.mxu0 0.0
    %967 = vmatprep.subr.mxu0 0.0
    %968 = vmatpush2.msra.mxu0 0.0
    %969 = vmatprep.subr.mxu0 0.0
    %970 = vmatpush2.msra.mxu0 0.0
    %971 = vmatprep.subr.mxu0 0.0
    %972 = vmatpush2.msra.mxu0 0.0
    %973 = vmatprep.subr.mxu0 0.0
    %974 = vmatpush2.msra.mxu0 0.0
    %975 = vmatprep.subr.mxu0 0.0
    %976 = vmatpush2.msra.mxu0 0.0
    %977 = vmatprep.subr.mxu0 0.0
    %978 = vmatpush2.msra.mxu0 0.0
    %979 = vmatprep.subr.mxu0 0.0
    %980 = vmatpush2.msra.mxu0 0.0
    %981 = vmatprep.subr.mxu0 0.0
    %982 = vmatpush2.msra.mxu0 0.0
    %983 = vmatprep.subr.mxu0 0.0
    %984 = vmatpush2.msra.mxu0 0.0
    %985 = vmatprep.subr.mxu0 0.0
    %986 = vmatpush2.msra.mxu0 0.0
    %987 = vmatprep.subr.mxu0 0.0
    %988 = vmatpush2.msra.mxu0 0.0
    %989 = vmatprep.subr.mxu0 0.0
    %990 = vmatpush2.msra.mxu0 0.0
    %991 = vmatprep.subr.mxu0 0.0
    %992 = vmatpush2.msra.mxu0 0.0
    %993 = vmatprep.subr.mxu0 0.0
    %994 = vmatpush2.msra.mxu0 0.0
    %995 = vmatprep.mubr.f32.mxu0 0.0
    %996 = vmatmul.mubr.f32.gmra.mxu0 %v926
    %v997 = vpop.f32.mrf.mxu0
    %v998 = vadd.f32 0.0, %v997
    %v999 = vpop.f32.mrf.mxu0
    %1000 = vmatprep.mubr.f32.mxu0 0.0
    %1001 = vmatmul.mubr.f32.gmra.mxu0 %v929
    %v1002 = vpop.f32.mrf.mxu0
    %v1003 = vadd.f32 0.0, %v1002
    %v1004 = vpop.f32.mrf.mxu0
    %1005 = vdwg.mxu0
    %v1007 = vsel %vm211, %v998, 0
    %v1010 = vsel %vm211, %v1003, 0
    %1012 = vmatprep.subr.mxu0 0.0
    %1013 = vmatpush1.msra.mxu0 0.0
    %1014 = vmatprep.subr.mxu0 0.0
    %1015 = vmatpush1.msra.mxu0 0.0
    %1016 = vmatprep.subr.mxu0 0.0
    %1017 = vmatpush1.msra.mxu0 0.0
    %1018 = vmatprep.subr.mxu0 0.0
    %1019 = vmatpush1.msra.mxu0 0.0
    %1020 = vmatprep.subr.mxu0 0.0
    %1021 = vmatpush1.msra.mxu0 0.0
    %1022 = vmatprep.subr.mxu0 0.0
    %1023 = vmatpush1.msra.mxu0 0.0
    %1024 = vmatprep.subr.mxu0 0.0
    %1025 = vmatpush1.msra.mxu0 0.0
    %1026 = vmatprep.subr.mxu0 0.0
    %1027 = vmatpush1.msra.mxu0 0.0
    %1028 = vmatprep.subr.mxu0 0.0
    %1029 = vmatpush1.msra.mxu0 0.0
    %1030 = vmatprep.subr.mxu0 0.0
    %1031 = vmatpush1.msra.mxu0 0.0
    %1032 = vmatprep.subr.mxu0 0.0
    %1033 = vmatpush1.msra.mxu0 0.0
    %1034 = vmatprep.subr.mxu0 0.0
    %1035 = vmatpush1.msra.mxu0 0.0
    %1036 = vmatprep.subr.mxu0 0.0
    %1037 = vmatpush1.msra.mxu0 0.0
    %1038 = vmatprep.subr.mxu0 0.0
    %1039 = vmatpush1.msra.mxu0 0.0
    %1040 = vmatprep.subr.mxu0 0.0
    %1041 = vmatpush1.msra.mxu0 %v793
    %1042 = vmatprep.subr.mxu0 0.0
    %1043 = vmatpush1.msra.mxu0 %v792
    %1044 = vmatprep.subr.mxu0 0.0
    %1045 = vmatpush2.msra.mxu0 0.0
    %1046 = vmatprep.subr.mxu0 0.0
    %1047 = vmatpush2.msra.mxu0 0.0
    %1048 = vmatprep.subr.mxu0 0.0
    %1049 = vmatpush2.msra.mxu0 0.0
    %1050 = vmatprep.subr.mxu0 0.0
    %1051 = vmatpush2.msra.mxu0 0.0
    %1052 = vmatprep.subr.mxu0 0.0
    %1053 = vmatpush2.msra.mxu0 0.0
    %1054 = vmatprep.subr.mxu0 0.0
    %1055 = vmatpush2.msra.mxu0 0.0
    %1056 = vmatprep.subr.mxu0 0.0
    %1057 = vmatpush2.msra.mxu0 0.0
    %1058 = vmatprep.subr.mxu0 0.0
    %1059 = vmatpush2.msra.mxu0 0.0
    %1060 = vmatprep.subr.mxu0 0.0
    %1061 = vmatpush2.msra.mxu0 0.0
    %1062 = vmatprep.subr.mxu0 0.0
    %1063 = vmatpush2.msra.mxu0 0.0
    %1064 = vmatprep.subr.mxu0 0.0
    %1065 = vmatpush2.msra.mxu0 0.0
    %1066 = vmatprep.subr.mxu0 0.0
    %1067 = vmatpush2.msra.mxu0 0.0
    %1068 = vmatprep.subr.mxu0 0.0
    %1069 = vmatpush2.msra.mxu0 0.0
    %1070 = vmatprep.subr.mxu0 0.0
    %1071 = vmatpush2.msra.mxu0 0.0
    %1072 = vmatprep.subr.mxu0 0.0
    %1073 = vmatpush2.msra.mxu0 0.0
    %1074 = vmatprep.subr.mxu0 0.0
    %1075 = vmatpush2.msra.mxu0 0.0
    %1076 = vmatprep.mubr.f32.mxu0 0.0
    %1077 = vmatmul.mubr.f32.gmra.mxu0 %v1007
    %v1078 = vpop.f32.mrf.mxu0
    %v1079 = vadd.f32 0.0, %v1078
    %v1080 = vpop.f32.mrf.mxu0
    %1081 = vmatprep.mubr.f32.mxu0 0.0
    %1082 = vmatmul.mubr.f32.gmra.mxu0 %v1010
    %v1083 = vpop.f32.mrf.mxu0
    %v1084 = vadd.f32 0.0, %v1083
    %v1085 = vpop.f32.mrf.mxu0
    %1086 = vdwg.mxu0
    %v1087 = vadd.f32 %v803, %v1079
    %v1088 = vadd.f32 %v803, %v1084
    %1089 = vrot.lane.b32.xlu0 %v784, 112
    %v1090 = vpop.permute.xlu0 %1089
    %1091 = vrot.lane.b32.xlu0 %v789, 112
    %v1092 = vpop.permute.xlu0 %1091
    %1093 = vrot.lane.b32.xlu0 %v784, 80
    %v1094 = vpop.permute.xlu0 %1093
    %1095 = vrot.lane.b32.xlu0 %v789, 80
    %v1096 = vpop.permute.xlu0 %1095
    %v1097 = vsel %vm211, %v1090, 0
    %v1099 = vsel %vm211, %v1092, 0
    %v1101 = vsel %vm211, %v1094, 0
    %v1103 = vsel %vm211, %v1096, 0
    %1105 = vmatprep.subr.mxu0 0.0
    %1106 = vmatpush1.xpose.msra.mxu0 0.0
    %1107 = vmatprep.subr.mxu0 0.0
    %1108 = vmatpush1.xpose.msra.mxu0 0.0
    %1109 = vmatprep.subr.mxu0 0.0
    %1110 = vmatpush1.xpose.msra.mxu0 0.0
    %1111 = vmatprep.subr.mxu0 0.0
    %1112 = vmatpush1.xpose.msra.mxu0 0.0
    %1113 = vmatprep.subr.mxu0 0.0
    %1114 = vmatpush1.xpose.msra.mxu0 0.0
    %1115 = vmatprep.subr.mxu0 0.0
    %1116 = vmatpush1.xpose.msra.mxu0 0.0
    %1117 = vmatprep.subr.mxu0 0.0
    %1118 = vmatpush1.xpose.msra.mxu0 0.0
    %1119 = vmatprep.subr.mxu0 0.0
    %1120 = vmatpush1.xpose.msra.mxu0 0.0
    %1121 = vmatprep.subr.mxu0 0.0
    %1122 = vmatpush1.xpose.msra.mxu0 0.0
    %1123 = vmatprep.subr.mxu0 0.0
    %1124 = vmatpush1.xpose.msra.mxu0 0.0
    %1125 = vmatprep.subr.mxu0 0.0
    %1126 = vmatpush1.xpose.msra.mxu0 0.0
    %1127 = vmatprep.subr.mxu0 0.0
    %1128 = vmatpush1.xpose.msra.mxu0 0.0
    %1129 = vmatprep.subr.mxu0 0.0
    %1130 = vmatpush1.xpose.msra.mxu0 0.0
    %1131 = vmatprep.subr.mxu0 0.0
    %1132 = vmatpush1.xpose.msra.mxu0 0.0
    %1133 = vmatprep.subr.mxu0 0.0
    %1134 = vmatpush1.xpose.msra.mxu0 %v1103
    %1135 = vmatprep.subr.mxu0 0.0
    %1136 = vmatpush1.xpose.msra.mxu0 %v1101
    %1137 = vmatprep.subr.mxu0 0.0
    %1138 = vmatpush2.xpose.msra.mxu0 0.0
    %1139 = vmatprep.subr.mxu0 0.0
    %1140 = vmatpush2.xpose.msra.mxu0 0.0
    %1141 = vmatprep.subr.mxu0 0.0
    %1142 = vmatpush2.xpose.msra.mxu0 0.0
    %1143 = vmatprep.subr.mxu0 0.0
    %1144 = vmatpush2.xpose.msra.mxu0 0.0
    %1145 = vmatprep.subr.mxu0 0.0
    %1146 = vmatpush2.xpose.msra.mxu0 0.0
    %1147 = vmatprep.subr.mxu0 0.0
    %1148 = vmatpush2.xpose.msra.mxu0 0.0
    %1149 = vmatprep.subr.mxu0 0.0
    %1150 = vmatpush2.xpose.msra.mxu0 0.0
    %1151 = vmatprep.subr.mxu0 0.0
    %1152 = vmatpush2.xpose.msra.mxu0 0.0
    %1153 = vmatprep.subr.mxu0 0.0
    %1154 = vmatpush2.xpose.msra.mxu0 0.0
    %1155 = vmatprep.subr.mxu0 0.0
    %1156 = vmatpush2.xpose.msra.mxu0 0.0
    %1157 = vmatprep.subr.mxu0 0.0
    %1158 = vmatpush2.xpose.msra.mxu0 0.0
    %1159 = vmatprep.subr.mxu0 0.0
    %1160 = vmatpush2.xpose.msra.mxu0 0.0
    %1161 = vmatprep.subr.mxu0 0.0
    %1162 = vmatpush2.xpose.msra.mxu0 0.0
    %1163 = vmatprep.subr.mxu0 0.0
    %1164 = vmatpush2.xpose.msra.mxu0 0.0
    %1165 = vmatprep.subr.mxu0 0.0
    %1166 = vmatpush2.xpose.msra.mxu0 0.0
    %1167 = vmatprep.subr.mxu0 0.0
    %1168 = vmatpush2.xpose.msra.mxu0 0.0
    %1169 = vmatprep.mubr.f32.mxu0 0.0
    %1170 = vmatmul.mubr.f32.gmra.mxu0 %v1097
    %v1171 = vpop.f32.mrf.mxu0
    %v1172 = vadd.f32 0.0, %v1171
    %v1173 = vpop.f32.mrf.mxu0
    %1174 = vmatprep.mubr.f32.mxu0 0.0
    %1175 = vmatmul.mubr.f32.gmra.mxu0 %v1099
    %v1176 = vpop.f32.mrf.mxu0
    %v1177 = vadd.f32 0.0, %v1176
    %v1178 = vpop.f32.mrf.mxu0
    %1179 = vdwg.mxu0
    %v1180 = vmul.f32 %v1172, 0.25
    %v1181 = vmul.f32 %v1177, 0.25
    %v1182 = vadd.f32 %v1180, %v86
    %v1183 = vadd.f32 %v1181, %v87
    %v1184 = vsel %vm211, %v1182, -inf
    %1185 = vmax.xlane.f32.xlu0 %v1184
    %v1186 = vpop.xlane.xlu0 %1185
    %v1187 = vsel %vm211, %v1183, -inf
    %1188 = vmax.xlane.f32.xlu0 %v1187
    %v1189 = vpop.xlane.xlu0 %1188
    %v1190 = vsub.f32 %v1182, %v1186
    %v1191 = vsub.f32 %v1183, %v1189
    %v1192 = vmul.f32 %v1190, 1.442695
    %v1193 = vpow.pop %v1192
    %v1194 = vmul.f32 %v1191, 1.442695
    %v1195 = vpow.pop %v1194
    %v1196 = vsel %vm211, %v1193, 0.0
    %1197 = vadd.xlane.f32.xlu0 %v1196
    %v1198 = vpop.xlane.xlu0 %1197
    %v1199 = vsel %vm211, %v1195, 0.0
    %1200 = vadd.xlane.f32.xlu0 %v1199
    %v1201 = vpop.xlane.xlu0 %1200
    %v1202 = vrcp.pop %v1198
    %v1203 = vrcp.pop %v1201
    %v1204 = vmul.f32 %v1193, %v1202
    %v1205 = vmul.f32 %v1195, %v1203
    %1206 = vrot.lane.b32.xlu0 %v784, 48
    %v1207 = vpop.permute.xlu0 %1206
    %1208 = vrot.lane.b32.xlu0 %v789, 48
    %v1209 = vpop.permute.xlu0 %1208
    %v1213 = vsel %vm211, %v1204, 0
    %v1216 = vsel %vm211, %v1205, 0
    %1218 = vmatprep.subr.mxu0 0.0
    %1219 = vmatpush1.msra.mxu0 0.0
    %1220 = vmatprep.subr.mxu0 0.0
    %1221 = vmatpush1.msra.mxu0 0.0
    %1222 = vmatprep.subr.mxu0 0.0
    %1223 = vmatpush1.msra.mxu0 0.0
    %1224 = vmatprep.subr.mxu0 0.0
    %1225 = vmatpush1.msra.mxu0 0.0
    %1226 = vmatprep.subr.mxu0 0.0
    %1227 = vmatpush1.msra.mxu0 0.0
    %1228 = vmatprep.subr.mxu0 0.0
    %1229 = vmatpush1.msra.mxu0 0.0
    %1230 = vmatprep.subr.mxu0 0.0
    %1231 = vmatpush1.msra.mxu0 0.0
    %1232 = vmatprep.subr.mxu0 0.0
    %1233 = vmatpush1.msra.mxu0 0.0
    %1234 = vmatprep.subr.mxu0 0.0
    %1235 = vmatpush1.msra.mxu0 0.0
    %1236 = vmatprep.subr.mxu0 0.0
    %1237 = vmatpush1.msra.mxu0 0.0
    %1238 = vmatprep.subr.mxu0 0.0
    %1239 = vmatpush1.msra.mxu0 0.0
    %1240 = vmatprep.subr.mxu0 0.0
    %1241 = vmatpush1.msra.mxu0 0.0
    %1242 = vmatprep.subr.mxu0 0.0
    %1243 = vmatpush1.msra.mxu0 0.0
    %1244 = vmatprep.subr.mxu0 0.0
    %1245 = vmatpush1.msra.mxu0 0.0
    %1246 = vmatprep.subr.mxu0 0.0
    %1247 = vmatpush1.msra.mxu0 %v1209
    %1248 = vmatprep.subr.mxu0 0.0
    %1249 = vmatpush1.msra.mxu0 %v1207
    %1250 = vmatprep.subr.mxu0 0.0
    %1251 = vmatpush2.msra.mxu0 0.0
    %1252 = vmatprep.subr.mxu0 0.0
    %1253 = vmatpush2.msra.mxu0 0.0
    %1254 = vmatprep.subr.mxu0 0.0
    %1255 = vmatpush2.msra.mxu0 0.0
    %1256 = vmatprep.subr.mxu0 0.0
    %1257 = vmatpush2.msra.mxu0 0.0
    %1258 = vmatprep.subr.mxu0 0.0
    %1259 = vmatpush2.msra.mxu0 0.0
    %1260 = vmatprep.subr.mxu0 0.0
    %1261 = vmatpush2.msra.mxu0 0.0
    %1262 = vmatprep.subr.mxu0 0.0
    %1263 = vmatpush2.msra.mxu0 0.0
    %1264 = vmatprep.subr.mxu0 0.0
    %1265 = vmatpush2.msra.mxu0 0.0
    %1266 = vmatprep.subr.mxu0 0.0
    %1267 = vmatpush2.msra.mxu0 0.0
    %1268 = vmatprep.subr.mxu0 0.0
    %1269 = vmatpush2.msra.mxu0 0.0
    %1270 = vmatprep.subr.mxu0 0.0
    %1271 = vmatpush2.msra.mxu0 0.0
    %1272 = vmatprep.subr.mxu0 0.0
    %1273 = vmatpush2.msra.mxu0 0.0
    %1274 = vmatprep.subr.mxu0 0.0
    %1275 = vmatpush2.msra.mxu0 0.0
    %1276 = vmatprep.subr.mxu0 0.0
    %1277 = vmatpush2.msra.mxu0 0.0
    %1278 = vmatprep.subr.mxu0 0.0
    %1279 = vmatpush2.msra.mxu0 0.0
    %1280 = vmatprep.subr.mxu0 0.0
    %1281 = vmatpush2.msra.mxu0 0.0
    %1282 = vmatprep.mubr.f32.mxu0 0.0
    %1283 = vmatmul.mubr.f32.gmra.mxu0 %v1213
    %v1284 = vpop.f32.mrf.mxu0
    %v1285 = vadd.f32 0.0, %v1284
    %v1286 = vpop.f32.mrf.mxu0
    %1287 = vmatprep.mubr.f32.mxu0 0.0
    %1288 = vmatmul.mubr.f32.gmra.mxu0 %v1216
    %v1289 = vpop.f32.mrf.mxu0
    %v1290 = vadd.f32 0.0, %v1289
    %v1291 = vpop.f32.mrf.mxu0
    %1292 = vdwg.mxu0
    %v1294 = vsel %vm211, %v1285, 0
    %v1297 = vsel %vm211, %v1290, 0
    %1299 = vmatprep.subr.mxu0 0.0
    %1300 = vmatpush1.msra.mxu0 0.0
    %1301 = vmatprep.subr.mxu0 0.0
    %1302 = vmatpush1.msra.mxu0 0.0
    %1303 = vmatprep.subr.mxu0 0.0
    %1304 = vmatpush1.msra.mxu0 0.0
    %1305 = vmatprep.subr.mxu0 0.0
    %1306 = vmatpush1.msra.mxu0 0.0
    %1307 = vmatprep.subr.mxu0 0.0
    %1308 = vmatpush1.msra.mxu0 0.0
    %1309 = vmatprep.subr.mxu0 0.0
    %1310 = vmatpush1.msra.mxu0 0.0
    %1311 = vmatprep.subr.mxu0 0.0
    %1312 = vmatpush1.msra.mxu0 0.0
    %1313 = vmatprep.subr.mxu0 0.0
    %1314 = vmatpush1.msra.mxu0 0.0
    %1315 = vmatprep.subr.mxu0 0.0
    %1316 = vmatpush1.msra.mxu0 0.0
    %1317 = vmatprep.subr.mxu0 0.0
    %1318 = vmatpush1.msra.mxu0 0.0
    %1319 = vmatprep.subr.mxu0 0.0
    %1320 = vmatpush1.msra.mxu0 0.0
    %1321 = vmatprep.subr.mxu0 0.0
    %1322 = vmatpush1.msra.mxu0 0.0
    %1323 = vmatprep.subr.mxu0 0.0
    %1324 = vmatpush1.msra.mxu0 0.0
    %1325 = vmatprep.subr.mxu0 0.0
    %1326 = vmatpush1.msra.mxu0 0.0
    %1327 = vmatprep.subr.mxu0 0.0
    %1328 = vmatpush1.msra.mxu0 %v795
    %1329 = vmatprep.subr.mxu0 0.0
    %1330 = vmatpush1.msra.mxu0 %v794
    %1331 = vmatprep.subr.mxu0 0.0
    %1332 = vmatpush2.msra.mxu0 0.0
    %1333 = vmatprep.subr.mxu0 0.0
    %1334 = vmatpush2.msra.mxu0 0.0
    %1335 = vmatprep.subr.mxu0 0.0
    %1336 = vmatpush2.msra.mxu0 0.0
    %1337 = vmatprep.subr.mxu0 0.0
    %1338 = vmatpush2.msra.mxu0 0.0
    %1339 = vmatprep.subr.mxu0 0.0
    %1340 = vmatpush2.msra.mxu0 0.0
    %1341 = vmatprep.subr.mxu0 0.0
    %1342 = vmatpush2.msra.mxu0 0.0
    %1343 = vmatprep.subr.mxu0 0.0
    %1344 = vmatpush2.msra.mxu0 0.0
    %1345 = vmatprep.subr.mxu0 0.0
    %1346 = vmatpush2.msra.mxu0 0.0
    %1347 = vmatprep.subr.mxu0 0.0
    %1348 = vmatpush2.msra.mxu0 0.0
    %1349 = vmatprep.subr.mxu0 0.0
    %1350 = vmatpush2.msra.mxu0 0.0
    %1351 = vmatprep.subr.mxu0 0.0
    %1352 = vmatpush2.msra.mxu0 0.0
    %1353 = vmatprep.subr.mxu0 0.0
    %1354 = vmatpush2.msra.mxu0 0.0
    %1355 = vmatprep.subr.mxu0 0.0
    %1356 = vmatpush2.msra.mxu0 0.0
    %1357 = vmatprep.subr.mxu0 0.0
    %1358 = vmatpush2.msra.mxu0 0.0
    %1359 = vmatprep.subr.mxu0 0.0
    %1360 = vmatpush2.msra.mxu0 0.0
    %1361 = vmatprep.subr.mxu0 0.0
    %1362 = vmatpush2.msra.mxu0 0.0
    %1363 = vmatprep.mubr.f32.mxu0 0.0
    %1364 = vmatmul.mubr.f32.gmra.mxu0 %v1294
    %v1365 = vpop.f32.mrf.mxu0
    %v1366 = vadd.f32 0.0, %v1365
    %v1367 = vpop.f32.mrf.mxu0
    %1368 = vmatprep.mubr.f32.mxu0 0.0
    %1369 = vmatmul.mubr.f32.gmra.mxu0 %v1297
    %v1370 = vpop.f32.mrf.mxu0
    %v1371 = vadd.f32 0.0, %v1370
    %v1372 = vpop.f32.mrf.mxu0
    %1373 = vdwg.mxu0
    %v1374 = vadd.f32 %v1087, %v1366
    %v1375 = vadd.f32 %v1088, %v1371
    %v1376 = vadd.f32 %v84, %v1374
    %v1377 = vadd.f32 %v85, %v1375
    %v1378 = vld [vmem:[%s9] sm:$0x1]
    %v1379 = vld [vmem:[%s10] sm:$0x1]
    %v1380 = vsel %vm160, %v1376, 0.0
    %1381 = vadd.xlane.f32.xlu0 %v1380
    %v1382 = vpop.xlane.xlu0 %1381
    %v1383 = vsel %vm160, %v1377, 0.0
    %1384 = vadd.xlane.f32.xlu0 %v1383
    %v1385 = vpop.xlane.xlu0 %1384
    %v1386 = vmul.f32 %v1382, %v663
    %v1387 = vmul.f32 %v1385, %v663
    %v1388 = vsub.f32 %v1376, %v1386
    %v1389 = vsub.f32 %v1377, %v1387
    %v1390 = vmul.f32 %v1388, %v1388
    %v1391 = vmul.f32 %v1389, %v1389
    %v1392 = vsel %vm160, %v1390, 0.0
    %1393 = vadd.xlane.f32.xlu0 %v1392
    %v1394 = vpop.xlane.xlu0 %1393
    %v1395 = vsel %vm160, %v1391, 0.0
    %1396 = vadd.xlane.f32.xlu0 %v1395
    %v1397 = vpop.xlane.xlu0 %1396
    %v1398 = vmul.f32 %v1394, %v663
    %v1399 = vmul.f32 %v1397, %v663
    %v1400 = vadd.f32 %v1398, 1e-05
    %v1401 = vadd.f32 %v1399, 1e-05
    %v1402 = vrsqrt.pop %v1400
    %v1403 = vrsqrt.pop %v1401
    %v1404 = vmul.f32 %v1388, %v1402
    %v1405 = vmul.f32 %v1389, %v1403
    %v1407 = vlaneseq
    %v1408 = vshrl.u32 %v1407, 7
    %v1409 = vsub.s32 0, %v1408
    %v1410 = vrot.slane %v1378, %v1409
    %v1412 = vmul.f32 %v1404, %v1410
    %v1413 = vmul.f32 %v1405, %v1410
    %v1415 = vlaneseq
    %v1416 = vshrl.u32 %v1415, 7
    %v1417 = vsub.s32 0, %v1416
    %v1418 = vrot.slane %v1379, %v1417
    %v1420 = vadd.f32 %v1412, %v1418
    %v1421 = vadd.f32 %v1413, %v1418
    %v1422 = vld [vmem:[%s11] sm:$0xff]
    %v1423 = vld [vmem:[%s11 + $0x8] sm:$0xff]
    %v1424 = vld [vmem:[%s11 + $0x10] sm:$0xff]
    %v1425 = vld [vmem:[%s11 + $0x18] sm:$0xff]
    %v1426 = vld [vmem:[%s12] sm:$0x1]
    %v1428 = vlaneseq
    %v1429 = vshrl.u32 %v1428, 7
    %v1430 = vsub.s32 0, %v1429
    %v1431 = vrot.slane %v1426, %v1430
    %v1434 = vsel %vm160, %v1420, 0
    %v1437 = vsel %vm160, %v1421, 0
    %1439 = vmatprep.subr.mxu0 0.0
    %1440 = vmatpush1.msra.mxu0 0.0
    %1441 = vmatprep.subr.mxu0 0.0
    %1442 = vmatpush1.msra.mxu0 0.0
    %1443 = vmatprep.subr.mxu0 0.0
    %1444 = vmatpush1.msra.mxu0 0.0
    %1445 = vmatprep.subr.mxu0 0.0
    %1446 = vmatpush1.msra.mxu0 0.0
    %1447 = vmatprep.subr.mxu0 0.0
    %1448 = vmatpush1.msra.mxu0 0.0
    %1449 = vmatprep.subr.mxu0 0.0
    %1450 = vmatpush1.msra.mxu0 0.0
    %1451 = vmatprep.subr.mxu0 0.0
    %1452 = vmatpush1.msra.mxu0 0.0
    %1453 = vmatprep.subr.mxu0 0.0
    %1454 = vmatpush1.msra.mxu0 0.0
    %1455 = vmatprep.subr.mxu0 0.0
    %1456 = vmatpush1.msra.mxu0 0.0
    %1457 = vmatprep.subr.mxu0 0.0
    %1458 = vmatpush1.msra.mxu0 0.0
    %1459 = vmatprep.subr.mxu0 0.0
    %1460 = vmatpush1.msra.mxu0 0.0
    %1461 = vmatprep.subr.mxu0 0.0
    %1462 = vmatpush1.msra.mxu0 0.0
    %1463 = vmatprep.subr.mxu0 0.0
    %1464 = vmatpush1.msra.mxu0 %v1425
    %1465 = vmatprep.subr.mxu0 0.0
    %1466 = vmatpush1.msra.mxu0 %v1424
    %1467 = vmatprep.subr.mxu0 0.0
    %1468 = vmatpush1.msra.mxu0 %v1423
    %1469 = vmatprep.subr.mxu0 0.0
    %1470 = vmatpush1.msra.mxu0 %v1422
    %1471 = vmatprep.subr.mxu0 0.0
    %1472 = vmatpush2.msra.mxu0 0.0
    %1473 = vmatprep.subr.mxu0 0.0
    %1474 = vmatpush2.msra.mxu0 0.0
    %1475 = vmatprep.subr.mxu0 0.0
    %1476 = vmatpush2.msra.mxu0 0.0
    %1477 = vmatprep.subr.mxu0 0.0
    %1478 = vmatpush2.msra.mxu0 0.0
    %1479 = vmatprep.subr.mxu0 0.0
    %1480 = vmatpush2.msra.mxu0 0.0
    %1481 = vmatprep.subr.mxu0 0.0
    %1482 = vmatpush2.msra.mxu0 0.0
    %1483 = vmatprep.subr.mxu0 0.0
    %1484 = vmatpush2.msra.mxu0 0.0
    %1485 = vmatprep.subr.mxu0 0.0
    %1486 = vmatpush2.msra.mxu0 0.0
    %1487 = vmatprep.subr.mxu0 0.0
    %1488 = vmatpush2.msra.mxu0 0.0
    %1489 = vmatprep.subr.mxu0 0.0
    %1490 = vmatpush2.msra.mxu0 0.0
    %1491 = vmatprep.subr.mxu0 0.0
    %1492 = vmatpush2.msra.mxu0 0.0
    %1493 = vmatprep.subr.mxu0 0.0
    %1494 = vmatpush2.msra.mxu0 0.0
    %1495 = vmatprep.subr.mxu0 0.0
    %1496 = vmatpush2.msra.mxu0 0.0
    %1497 = vmatprep.subr.mxu0 0.0
    %1498 = vmatpush2.msra.mxu0 0.0
    %1499 = vmatprep.subr.mxu0 0.0
    %1500 = vmatpush2.msra.mxu0 0.0
    %1501 = vmatprep.subr.mxu0 0.0
    %1502 = vmatpush2.msra.mxu0 0.0
    %1503 = vmatprep.mubr.f32.mxu0 0.0
    %1504 = vmatmul.mubr.f32.gmra.mxu0 %v1434
    %v1505 = vpop.f32.mrf.mxu0
    %v1506 = vadd.f32 %v1431, %v1505
    %v1507 = vpop.f32.mrf.mxu0
    %1508 = vmatprep.mubr.f32.mxu0 0.0
    %1509 = vmatmul.mubr.f32.gmra.mxu0 %v1437
    %v1510 = vpop.f32.mrf.mxu0
    %v1511 = vadd.f32 %v1431, %v1510
    %v1512 = vpop.f32.mrf.mxu0
    %1513 = vdwg.mxu0
    %v1514 = vmul.f32 %v1506, 0.5
    %v1515 = vmul.f32 %v1511, 0.5
    %v1516 = vmul.f32 %v1506, 0.70710677
    %v1517 = vmul.f32 %v1511, 0.70710677
    %vm1518 = vcmp.ge.f32.partialorder %v1516, 0.0
    %vm1519 = vcmp.ge.f32.partialorder %v1517, 0.0
    %v1520 = vsel %vm1518, 1.0, -1.0
    %v1521 = vsel %vm1519, 1.0, -1.0
    %v1522 = vand.u32 2147483647, %v1516
    %v1523 = vand.u32 2147483647, %v1517
    %v1524 = vmul.f32 %v1522, 0.3275911
    %v1525 = vmul.f32 %v1523, 0.3275911
    %v1526 = vadd.f32 %v1524, 1.0
    %v1527 = vadd.f32 %v1525, 1.0
    %v1528 = vrcp.pop %v1526
    %v1529 = vmul.f32 1.0, %v1528
    %v1530 = vrcp.pop %v1527
    %v1531 = vmul.f32 1.0, %v1530
    %v1532 = vmul.f32 %v1529, 1.0614054
    %v1533 = vmul.f32 %v1531, 1.0614054
    %v1534 = vadd.f32 %v1532, -1.4531521
    %v1535 = vadd.f32 %v1533, -1.4531521
    %v1536 = vmul.f32 %v1534, %v1529
    %v1537 = vmul.f32 %v1535, %v1531
    %v1538 = vadd.f32 %v1536, 1.4214138
    %v1539 = vadd.f32 %v1537, 1.4214138
    %v1540 = vmul.f32 %v1538, %v1529
    %v1541 = vmul.f32 %v1539, %v1531
    %v1542 = vadd.f32 %v1540, -0.28449672
    %v1543 = vadd.f32 %v1541, -0.28449672
    %v1544 = vmul.f32 %v1542, %v1529
    %v1545 = vmul.f32 %v1543, %v1531
    %v1546 = vadd.f32 %v1544, 0.2548296
    %v1547 = vadd.f32 %v1545, 0.2548296
    %v1548 = vmul.f32 %v1546, %v1529
    %v1549 = vmul.f32 %v1547, %v1531
    %v1550 = vsub.f32 0.0, %v1522
    %v1551 = vsub.f32 0.0, %v1523
    %v1552 = vmul.f32 %v1550, %v1522
    %v1553 = vmul.f32 %v1551, %v1523
    %v1554 = vmul.f32 %v1552, 1.442695
    %v1555 = vpow.pop %v1554
    %v1556 = vmul.f32 %v1553, 1.442695
    %v1557 = vpow.pop %v1556
    %v1558 = vmul.f32 %v1548, %v1555
    %v1559 = vmul.f32 %v1549, %v1557
    %v1560 = vsub.f32 1.0, %v1558
    %v1561 = vsub.f32 1.0, %v1559
    %v1562 = vmul.f32 %v1520, %v1560
    %v1563 = vmul.f32 %v1521, %v1561
    %v1564 = vadd.f32 %v1562, 1.0
    %v1565 = vadd.f32 %v1563, 1.0
    %v1566 = vmul.f32 %v1514, %v1564
    %v1567 = vmul.f32 %v1515, %v1565
    %v1568 = vld [vmem:[%s13] sm:$0xff]
    %v1569 = vld [vmem:[%s13 + $0x8] sm:$0xff]
    %v1570 = vld [vmem:[%s13 + $0x10] sm:$0xff]
    %v1571 = vld [vmem:[%s13 + $0x18] sm:$0xff]
    %v1572 = vld [vmem:[%s13 + $0x20] sm:$0xff]
    %v1573 = vld [vmem:[%s13 + $0x28] sm:$0xff]
    %v1574 = vld [vmem:[%s13 + $0x30] sm:$0xff]
    %v1575 = vld [vmem:[%s13 + $0x38] sm:$0xff]
    %v1576 = vld [vmem:[%s13 + $0x40] sm:$0xff]
    %v1577 = vld [vmem:[%s13 + $0x48] sm:$0xff]
    %v1578 = vld [vmem:[%s13 + $0x50] sm:$0xff]
    %v1579 = vld [vmem:[%s13 + $0x58] sm:$0xff]
    %v1580 = vld [vmem:[%s13 + $0x60] sm:$0xff]
    %v1581 = vld [vmem:[%s13 + $0x68] sm:$0xff]
    %v1582 = vld [vmem:[%s13 + $0x70] sm:$0xff]
    %v1583 = vld [vmem:[%s13 + $0x78] sm:$0xff]
    %v1584 = vld [vmem:[%s14] sm:$0x1]
    %v1586 = vlaneseq
    %v1587 = vshrl.u32 %v1586, 7
    %v1588 = vsub.s32 0, %v1587
    %v1589 = vrot.slane %v1584, %v1588
    %1591 = vmatprep.subr.mxu0 0.0
    %1592 = vmatpush1.msra.mxu0 %v1583
    %1593 = vmatprep.subr.mxu0 0.0
    %1594 = vmatpush1.msra.mxu0 %v1582
    %1595 = vmatprep.subr.mxu0 0.0
    %1596 = vmatpush1.msra.mxu0 %v1581
    %1597 = vmatprep.subr.mxu0 0.0
    %1598 = vmatpush1.msra.mxu0 %v1580
    %1599 = vmatprep.subr.mxu0 0.0
    %1600 = vmatpush1.msra.mxu0 %v1579
    %1601 = vmatprep.subr.mxu0 0.0
    %1602 = vmatpush1.msra.mxu0 %v1578
    %1603 = vmatprep.subr.mxu0 0.0
    %1604 = vmatpush1.msra.mxu0 %v1577
    %1605 = vmatprep.subr.mxu0 0.0
    %1606 = vmatpush1.msra.mxu0 %v1576
    %1607 = vmatprep.subr.mxu0 0.0
    %1608 = vmatpush1.msra.mxu0 %v1575
    %1609 = vmatprep.subr.mxu0 0.0
    %1610 = vmatpush1.msra.mxu0 %v1574
    %1611 = vmatprep.subr.mxu0 0.0
    %1612 = vmatpush1.msra.mxu0 %v1573
    %1613 = vmatprep.subr.mxu0 0.0
    %1614 = vmatpush1.msra.mxu0 %v1572
    %1615 = vmatprep.subr.mxu0 0.0
    %1616 = vmatpush1.msra.mxu0 %v1571
    %1617 = vmatprep.subr.mxu0 0.0
    %1618 = vmatpush1.msra.mxu0 %v1570
    %1619 = vmatprep.subr.mxu0 0.0
    %1620 = vmatpush1.msra.mxu0 %v1569
    %1621 = vmatprep.subr.mxu0 0.0
    %1622 = vmatpush1.msra.mxu0 %v1568
    %1623 = vmatprep.subr.mxu0 0.0
    %1624 = vmatpush2.msra.mxu0 0.0
    %1625 = vmatprep.subr.mxu0 0.0
    %1626 = vmatpush2.msra.mxu0 0.0
    %1627 = vmatprep.subr.mxu0 0.0
    %1628 = vmatpush2.msra.mxu0 0.0
    %1629 = vmatprep.subr.mxu0 0.0
    %1630 = vmatpush2.msra.mxu0 0.0
    %1631 = vmatprep.subr.mxu0 0.0
    %1632 = vmatpush2.msra.mxu0 0.0
    %1633 = vmatprep.subr.mxu0 0.0
    %1634 = vmatpush2.msra.mxu0 0.0
    %1635 = vmatprep.subr.mxu0 0.0
    %1636 = vmatpush2.msra.mxu0 0.0
    %1637 = vmatprep.subr.mxu0 0.0
    %1638 = vmatpush2.msra.mxu0 0.0
    %1639 = vmatprep.subr.mxu0 0.0
    %1640 = vmatpush2.msra.mxu0 0.0
    %1641 = vmatprep.subr.mxu0 0.0
    %1642 = vmatpush2.msra.mxu0 0.0
    %1643 = vmatprep.subr.mxu0 0.0
    %1644 = vmatpush2.msra.mxu0 0.0
    %1645 = vmatprep.subr.mxu0 0.0
    %1646 = vmatpush2.msra.mxu0 0.0
    %1647 = vmatprep.subr.mxu0 0.0
    %1648 = vmatpush2.msra.mxu0 0.0
    %1649 = vmatprep.subr.mxu0 0.0
    %1650 = vmatpush2.msra.mxu0 0.0
    %1651 = vmatprep.subr.mxu0 0.0
    %1652 = vmatpush2.msra.mxu0 0.0
    %1653 = vmatprep.subr.mxu0 0.0
    %1654 = vmatpush2.msra.mxu0 0.0
    %1655 = vmatprep.mubr.f32.mxu0 0.0
    %1656 = vmatmul.mubr.f32.gmra.mxu0 %v1566
    %v1657 = vpop.f32.mrf.mxu0
    %v1658 = vadd.f32 %v1589, %v1657
    %v1659 = vpop.f32.mrf.mxu0
    %1660 = vmatprep.mubr.f32.mxu0 0.0
    %1661 = vmatmul.mubr.f32.gmra.mxu0 %v1567
    %v1662 = vpop.f32.mrf.mxu0
    %v1663 = vadd.f32 %v1589, %v1662
    %v1664 = vpop.f32.mrf.mxu0
    %1665 = vdwg.mxu0
    %v1666 = vadd.f32 %v1376, %v1658
    %v1667 = vadd.f32 %v1377, %v1663
    %vm1668 = vcmask 15360
    %v1670 = vsel %vm1668, %v88, 0
    %v1673 = vsel %vm1668, %v89, 0
    %vm1675 = vcmask 1041408
    %v1677 = vsel %vm1675, %v654, 0
    %1679 = vmatprep.subr.mxu0 0.0
    %1680 = vmatpush1.msra.mxu0 0.0
    %1681 = vmatprep.subr.mxu0 0.0
    %1682 = vmatpush1.msra.mxu0 0.0
    %1683 = vmatprep.subr.mxu0 0.0
    %1684 = vmatpush1.msra.mxu0 0.0
    %1685 = vmatprep.subr.mxu0 0.0
    %1686 = vmatpush1.msra.mxu0 0.0
    %1687 = vmatprep.subr.mxu0 0.0
    %1688 = vmatpush1.msra.mxu0 0.0
    %1689 = vmatprep.subr.mxu0 0.0
    %1690 = vmatpush1.msra.mxu0 0.0
    %1691 = vmatprep.subr.mxu0 0.0
    %1692 = vmatpush1.msra.mxu0 0.0
    %1693 = vmatprep.subr.mxu0 0.0
    %1694 = vmatpush1.msra.mxu0 0.0
    %1695 = vmatprep.subr.mxu0 0.0
    %1696 = vmatpush1.msra.mxu0 0.0
    %1697 = vmatprep.subr.mxu0 0.0
    %1698 = vmatpush1.msra.mxu0 0.0
    %1699 = vmatprep.subr.mxu0 0.0
    %1700 = vmatpush1.msra.mxu0 0.0
    %1701 = vmatprep.subr.mxu0 0.0
    %1702 = vmatpush1.msra.mxu0 0.0
    %1703 = vmatprep.subr.mxu0 0.0
    %1704 = vmatpush1.msra.mxu0 0.0
    %1705 = vmatprep.subr.mxu0 0.0
    %1706 = vmatpush1.msra.mxu0 0.0
    %1707 = vmatprep.subr.mxu0 0.0
    %1708 = vmatpush1.msra.mxu0 0.0
    %1709 = vmatprep.subr.mxu0 0.0
    %1710 = vmatpush1.msra.mxu0 %v1677
    %1711 = vmatprep.subr.mxu0 0.0
    %1712 = vmatpush2.msra.mxu0 0.0
    %1713 = vmatprep.subr.mxu0 0.0
    %1714 = vmatpush2.msra.mxu0 0.0
    %1715 = vmatprep.subr.mxu0 0.0
    %1716 = vmatpush2.msra.mxu0 0.0
    %1717 = vmatprep.subr.mxu0 0.0
    %1718 = vmatpush2.msra.mxu0 0.0
    %1719 = vmatprep.subr.mxu0 0.0
    %1720 = vmatpush2.msra.mxu0 0.0
    %1721 = vmatprep.subr.mxu0 0.0
    %1722 = vmatpush2.msra.mxu0 0.0
    %1723 = vmatprep.subr.mxu0 0.0
    %1724 = vmatpush2.msra.mxu0 0.0
    %1725 = vmatprep.subr.mxu0 0.0
    %1726 = vmatpush2.msra.mxu0 0.0
    %1727 = vmatprep.subr.mxu0 0.0
    %1728 = vmatpush2.msra.mxu0 0.0
    %1729 = vmatprep.subr.mxu0 0.0
    %1730 = vmatpush2.msra.mxu0 0.0
    %1731 = vmatprep.subr.mxu0 0.0
    %1732 = vmatpush2.msra.mxu0 0.0
    %1733 = vmatprep.subr.mxu0 0.0
    %1734 = vmatpush2.msra.mxu0 0.0
    %1735 = vmatprep.subr.mxu0 0.0
    %1736 = vmatpush2.msra.mxu0 0.0
    %1737 = vmatprep.subr.mxu0 0.0
    %1738 = vmatpush2.msra.mxu0 0.0
    %1739 = vmatprep.subr.mxu0 0.0
    %1740 = vmatpush2.msra.mxu0 0.0
    %1741 = vmatprep.subr.mxu0 0.0
    %1742 = vmatpush2.msra.mxu0 0.0
    %1743 = vmatprep.mubr.f32.mxu0 0.0
    %1744 = vmatmul.mubr.f32.gmra.mxu0 %v1670
    %v1745 = vpop.f32.mrf.mxu0
    %v1746 = vadd.f32 0.0, %v1745
    %v1747 = vpop.f32.mrf.mxu0
    %1748 = vmatprep.mubr.f32.mxu0 0.0
    %1749 = vmatmul.mubr.f32.gmra.mxu0 %v1673
    %v1750 = vpop.f32.mrf.mxu0
    %v1751 = vadd.f32 0.0, %v1750
    %v1752 = vpop.f32.mrf.mxu0
    %1753 = vdwg.mxu0
    %1755 = vset.pattern.permute.xlu0 0
    %1756 = vperm.xlu0 %1755, %v1746
    %v1757 = vpop.permute.xlu0 %1756
    %1760 = vset.pattern.permute.xlu0 0
    %1761 = vperm.xlu0 %1760, %v1751
    %v1762 = vpop.permute.xlu0 %1761
    %v1764 = vmul.f32 %v1666, %v1757
    %v1765 = vmul.f32 %v1667, %v1762
    %v1766 = vadd.f32 %v1764, 0.0
    %v1767 = vadd.f32 %v1765, 0.0
    %s1768 = scalar_lea.vmem %s3, 1
    %v1769 = vld [vmem:[%s1768] sm:$0x1]
    %s1770 = scalar_lea.vmem %s4, 1
    %v1771 = vld [vmem:[%s1770] sm:$0x1]
    %v1773 = vlaneseq
    %v1774 = vshrl.u32 %v1773, 7
    %v1775 = vsub.s32 0, %v1774
    %v1776 = vrot.slane %v1769, %v1775
    %v1778 = vmul.f32 %v682, %v1776
    %v1779 = vmul.f32 %v683, %v1776
    %v1781 = vlaneseq
    %v1782 = vshrl.u32 %v1781, 7
    %v1783 = vsub.s32 0, %v1782
    %v1784 = vrot.slane %v1771, %v1783
    %v1786 = vadd.f32 %v1778, %v1784
    %v1787 = vadd.f32 %v1779, %v1784
    %s1788 = scalar_lea.vmem %s5, 32
    %v1789 = vld [vmem:[%s1788] sm:$0xff]
    %v1790 = vld [vmem:[%s1788 + $0x8] sm:$0xff]
    %v1791 = vld [vmem:[%s1788 + $0x10] sm:$0xff]
    %v1792 = vld [vmem:[%s1788 + $0x18] sm:$0xff]
    %s1793 = scalar_lea.vmem %s6, 1
    %v1794 = vld [vmem:[%s1793] sm:$0x1]
    %v1796 = vlaneseq
    %v1797 = vshrl.u32 %v1796, 7
    %v1798 = vsub.s32 0, %v1797
    %v1799 = vrot.slane %v1794, %v1798
    %v1802 = vsel %vm160, %v1786, 0
    %v1805 = vsel %vm160, %v1787, 0
    %1807 = vmatprep.subr.mxu0 0.0
    %1808 = vmatpush1.msra.mxu0 0.0
    %1809 = vmatprep.subr.mxu0 0.0
    %1810 = vmatpush1.msra.mxu0 0.0
    %1811 = vmatprep.subr.mxu0 0.0
    %1812 = vmatpush1.msra.mxu0 0.0
    %1813 = vmatprep.subr.mxu0 0.0
    %1814 = vmatpush1.msra.mxu0 0.0
    %1815 = vmatprep.subr.mxu0 0.0
    %1816 = vmatpush1.msra.mxu0 0.0
    %1817 = vmatprep.subr.mxu0 0.0
    %1818 = vmatpush1.msra.mxu0 0.0
    %1819 = vmatprep.subr.mxu0 0.0
    %1820 = vmatpush1.msra.mxu0 0.0
    %1821 = vmatprep.subr.mxu0 0.0
    %1822 = vmatpush1.msra.mxu0 0.0
    %1823 = vmatprep.subr.mxu0 0.0
    %1824 = vmatpush1.msra.mxu0 0.0
    %1825 = vmatprep.subr.mxu0 0.0
    %1826 = vmatpush1.msra.mxu0 0.0
    %1827 = vmatprep.subr.mxu0 0.0
    %1828 = vmatpush1.msra.mxu0 0.0
    %1829 = vmatprep.subr.mxu0 0.0
    %1830 = vmatpush1.msra.mxu0 0.0
    %1831 = vmatprep.subr.mxu0 0.0
    %1832 = vmatpush1.msra.mxu0 %v1792
    %1833 = vmatprep.subr.mxu0 0.0
    %1834 = vmatpush1.msra.mxu0 %v1791
    %1835 = vmatprep.subr.mxu0 0.0
    %1836 = vmatpush1.msra.mxu0 %v1790
    %1837 = vmatprep.subr.mxu0 0.0
    %1838 = vmatpush1.msra.mxu0 %v1789
    %1839 = vmatprep.subr.mxu0 0.0
    %1840 = vmatpush2.msra.mxu0 0.0
    %1841 = vmatprep.subr.mxu0 0.0
    %1842 = vmatpush2.msra.mxu0 0.0
    %1843 = vmatprep.subr.mxu0 0.0
    %1844 = vmatpush2.msra.mxu0 0.0
    %1845 = vmatprep.subr.mxu0 0.0
    %1846 = vmatpush2.msra.mxu0 0.0
    %1847 = vmatprep.subr.mxu0 0.0
    %1848 = vmatpush2.msra.mxu0 0.0
    %1849 = vmatprep.subr.mxu0 0.0
    %1850 = vmatpush2.msra.mxu0 0.0
    %1851 = vmatprep.subr.mxu0 0.0
    %1852 = vmatpush2.msra.mxu0 0.0
    %1853 = vmatprep.subr.mxu0 0.0
    %1854 = vmatpush2.msra.mxu0 0.0
    %1855 = vmatprep.subr.mxu0 0.0
    %1856 = vmatpush2.msra.mxu0 0.0
    %1857 = vmatprep.subr.mxu0 0.0
    %1858 = vmatpush2.msra.mxu0 0.0
    %1859 = vmatprep.subr.mxu0 0.0
    %1860 = vmatpush2.msra.mxu0 0.0
    %1861 = vmatprep.subr.mxu0 0.0
    %1862 = vmatpush2.msra.mxu0 0.0
    %1863 = vmatprep.subr.mxu0 0.0
    %1864 = vmatpush2.msra.mxu0 0.0
    %1865 = vmatprep.subr.mxu0 0.0
    %1866 = vmatpush2.msra.mxu0 0.0
    %1867 = vmatprep.subr.mxu0 0.0
    %1868 = vmatpush2.msra.mxu0 0.0
    %1869 = vmatprep.subr.mxu0 0.0
    %1870 = vmatpush2.msra.mxu0 0.0
    %1871 = vmatprep.mubr.f32.mxu0 0.0
    %1872 = vmatmul.mubr.f32.gmra.mxu0 %v1802
    %v1873 = vpop.f32.mrf.mxu0
    %v1874 = vadd.f32 %v1799, %v1873
    %v1875 = vpop.f32.mrf.mxu0
    %1876 = vmatprep.mubr.f32.mxu0 0.0
    %1877 = vmatmul.mubr.f32.gmra.mxu0 %v1805
    %v1878 = vpop.f32.mrf.mxu0
    %v1879 = vadd.f32 %v1799, %v1878
    %v1880 = vpop.f32.mrf.mxu0
    %1881 = vdwg.mxu0
    %s1882 = scalar_lea.vmem %s7, 32
    %v1883 = vld [vmem:[%s1882] sm:$0xff]
    %v1884 = vld [vmem:[%s1882 + $0x8] sm:$0xff]
    %v1885 = vld [vmem:[%s1882 + $0x10] sm:$0xff]
    %v1886 = vld [vmem:[%s1882 + $0x18] sm:$0xff]
    %s1887 = scalar_lea.vmem %s8, 1
    %v1888 = vld [vmem:[%s1887] sm:$0x1]
    %v1890 = vlaneseq
    %v1891 = vshrl.u32 %v1890, 7
    %v1892 = vsub.s32 0, %v1891
    %v1893 = vrot.slane %v1888, %v1892
    %v1895 = vadd.f32 %v1893, 0.0
    %1898 = vrot.lane.b32.xlu0 %v1874, 96
    %v1899 = vpop.permute.xlu0 %1898
    %1900 = vrot.lane.b32.xlu0 %v1879, 96
    %v1901 = vpop.permute.xlu0 %1900
    %v1902 = vsel %vm211, %v1874, 0
    %v1904 = vsel %vm211, %v1879, 0
    %v1906 = vsel %vm211, %v1899, 0
    %v1908 = vsel %vm211, %v1901, 0
    %1910 = vmatprep.subr.mxu0 0.0
    %1911 = vmatpush1.xpose.msra.mxu0 0.0
    %1912 = vmatprep.subr.mxu0 0.0
    %1913 = vmatpush1.xpose.msra.mxu0 0.0
    %1914 = vmatprep.subr.mxu0 0.0
    %1915 = vmatpush1.xpose.msra.mxu0 0.0
    %1916 = vmatprep.subr.mxu0 0.0
    %1917 = vmatpush1.xpose.msra.mxu0 0.0
    %1918 = vmatprep.subr.mxu0 0.0
    %1919 = vmatpush1.xpose.msra.mxu0 0.0
    %1920 = vmatprep.subr.mxu0 0.0
    %1921 = vmatpush1.xpose.msra.mxu0 0.0
    %1922 = vmatprep.subr.mxu0 0.0
    %1923 = vmatpush1.xpose.msra.mxu0 0.0
    %1924 = vmatprep.subr.mxu0 0.0
    %1925 = vmatpush1.xpose.msra.mxu0 0.0
    %1926 = vmatprep.subr.mxu0 0.0
    %1927 = vmatpush1.xpose.msra.mxu0 0.0
    %1928 = vmatprep.subr.mxu0 0.0
    %1929 = vmatpush1.xpose.msra.mxu0 0.0
    %1930 = vmatprep.subr.mxu0 0.0
    %1931 = vmatpush1.xpose.msra.mxu0 0.0
    %1932 = vmatprep.subr.mxu0 0.0
    %1933 = vmatpush1.xpose.msra.mxu0 0.0
    %1934 = vmatprep.subr.mxu0 0.0
    %1935 = vmatpush1.xpose.msra.mxu0 0.0
    %1936 = vmatprep.subr.mxu0 0.0
    %1937 = vmatpush1.xpose.msra.mxu0 0.0
    %1938 = vmatprep.subr.mxu0 0.0
    %1939 = vmatpush1.xpose.msra.mxu0 %v1908
    %1940 = vmatprep.subr.mxu0 0.0
    %1941 = vmatpush1.xpose.msra.mxu0 %v1906
    %1942 = vmatprep.subr.mxu0 0.0
    %1943 = vmatpush2.xpose.msra.mxu0 0.0
    %1944 = vmatprep.subr.mxu0 0.0
    %1945 = vmatpush2.xpose.msra.mxu0 0.0
    %1946 = vmatprep.subr.mxu0 0.0
    %1947 = vmatpush2.xpose.msra.mxu0 0.0
    %1948 = vmatprep.subr.mxu0 0.0
    %1949 = vmatpush2.xpose.msra.mxu0 0.0
    %1950 = vmatprep.subr.mxu0 0.0
    %1951 = vmatpush2.xpose.msra.mxu0 0.0
    %1952 = vmatprep.subr.mxu0 0.0
    %1953 = vmatpush2.xpose.msra.mxu0 0.0
    %1954 = vmatprep.subr.mxu0 0.0
    %1955 = vmatpush2.xpose.msra.mxu0 0.0
    %1956 = vmatprep.subr.mxu0 0.0
    %1957 = vmatpush2.xpose.msra.mxu0 0.0
    %1958 = vmatprep.subr.mxu0 0.0
    %1959 = vmatpush2.xpose.msra.mxu0 0.0
    %1960 = vmatprep.subr.mxu0 0.0
    %1961 = vmatpush2.xpose.msra.mxu0 0.0
    %1962 = vmatprep.subr.mxu0 0.0
    %1963 = vmatpush2.xpose.msra.mxu0 0.0
    %1964 = vmatprep.subr.mxu0 0.0
    %1965 = vmatpush2.xpose.msra.mxu0 0.0
    %1966 = vmatprep.subr.mxu0 0.0
    %1967 = vmatpush2.xpose.msra.mxu0 0.0
    %1968 = vmatprep.subr.mxu0 0.0
    %1969 = vmatpush2.xpose.msra.mxu0 0.0
    %1970 = vmatprep.subr.mxu0 0.0
    %1971 = vmatpush2.xpose.msra.mxu0 0.0
    %1972 = vmatprep.subr.mxu0 0.0
    %1973 = vmatpush2.xpose.msra.mxu0 0.0
    %1974 = vmatprep.mubr.f32.mxu0 0.0
    %1975 = vmatmul.mubr.f32.gmra.mxu0 %v1902
    %v1976 = vpop.f32.mrf.mxu0
    %v1977 = vadd.f32 0.0, %v1976
    %v1978 = vpop.f32.mrf.mxu0
    %1979 = vmatprep.mubr.f32.mxu0 0.0
    %1980 = vmatmul.mubr.f32.gmra.mxu0 %v1904
    %v1981 = vpop.f32.mrf.mxu0
    %v1982 = vadd.f32 0.0, %v1981
    %v1983 = vpop.f32.mrf.mxu0
    %1984 = vdwg.mxu0
    %v1985 = vmul.f32 %v1977, 0.25
    %v1986 = vmul.f32 %v1982, 0.25
    %v1987 = vadd.f32 %v1985, %v86
    %v1988 = vadd.f32 %v1986, %v87
    %v1989 = vsel %vm211, %v1987, -inf
    %1990 = vmax.xlane.f32.xlu0 %v1989
    %v1991 = vpop.xlane.xlu0 %1990
    %v1992 = vsel %vm211, %v1988, -inf
    %1993 = vmax.xlane.f32.xlu0 %v1992
    %v1994 = vpop.xlane.xlu0 %1993
    %v1995 = vsub.f32 %v1987, %v1991
    %v1996 = vsub.f32 %v1988, %v1994
    %v1997 = vmul.f32 %v1995, 1.442695
    %v1998 = vpow.pop %v1997
    %v1999 = vmul.f32 %v1996, 1.442695
    %v2000 = vpow.pop %v1999
    %v2001 = vsel %vm211, %v1998, 0.0
    %2002 = vadd.xlane.f32.xlu0 %v2001
    %v2003 = vpop.xlane.xlu0 %2002
    %v2004 = vsel %vm211, %v2000, 0.0
    %2005 = vadd.xlane.f32.xlu0 %v2004
    %v2006 = vpop.xlane.xlu0 %2005
    %v2007 = vrcp.pop %v2003
    %v2008 = vrcp.pop %v2006
    %v2009 = vmul.f32 %v1998, %v2007
    %v2010 = vmul.f32 %v2000, %v2008
    %2011 = vrot.lane.b32.xlu0 %v1874, 64
    %v2012 = vpop.permute.xlu0 %2011
    %2013 = vrot.lane.b32.xlu0 %v1879, 64
    %v2014 = vpop.permute.xlu0 %2013
    %v2018 = vsel %vm211, %v2009, 0
    %v2021 = vsel %vm211, %v2010, 0
    %2023 = vmatprep.subr.mxu0 0.0
    %2024 = vmatpush1.msra.mxu0 0.0
    %2025 = vmatprep.subr.mxu0 0.0
    %2026 = vmatpush1.msra.mxu0 0.0
    %2027 = vmatprep.subr.mxu0 0.0
    %2028 = vmatpush1.msra.mxu0 0.0
    %2029 = vmatprep.subr.mxu0 0.0
    %2030 = vmatpush1.msra.mxu0 0.0
    %2031 = vmatprep.subr.mxu0 0.0
    %2032 = vmatpush1.msra.mxu0 0.0
    %2033 = vmatprep.subr.mxu0 0.0
    %2034 = vmatpush1.msra.mxu0 0.0
    %2035 = vmatprep.subr.mxu0 0.0
    %2036 = vmatpush1.msra.mxu0 0.0
    %2037 = vmatprep.subr.mxu0 0.0
    %2038 = vmatpush1.msra.mxu0 0.0
    %2039 = vmatprep.subr.mxu0 0.0
    %2040 = vmatpush1.msra.mxu0 0.0
    %2041 = vmatprep.subr.mxu0 0.0
    %2042 = vmatpush1.msra.mxu0 0.0
    %2043 = vmatprep.subr.mxu0 0.0
    %2044 = vmatpush1.msra.mxu0 0.0
    %2045 = vmatprep.subr.mxu0 0.0
    %2046 = vmatpush1.msra.mxu0 0.0
    %2047 = vmatprep.subr.mxu0 0.0
    %2048 = vmatpush1.msra.mxu0 0.0
    %2049 = vmatprep.subr.mxu0 0.0
    %2050 = vmatpush1.msra.mxu0 0.0
    %2051 = vmatprep.subr.mxu0 0.0
    %2052 = vmatpush1.msra.mxu0 %v2014
    %2053 = vmatprep.subr.mxu0 0.0
    %2054 = vmatpush1.msra.mxu0 %v2012
    %2055 = vmatprep.subr.mxu0 0.0
    %2056 = vmatpush2.msra.mxu0 0.0
    %2057 = vmatprep.subr.mxu0 0.0
    %2058 = vmatpush2.msra.mxu0 0.0
    %2059 = vmatprep.subr.mxu0 0.0
    %2060 = vmatpush2.msra.mxu0 0.0
    %2061 = vmatprep.subr.mxu0 0.0
    %2062 = vmatpush2.msra.mxu0 0.0
    %2063 = vmatprep.subr.mxu0 0.0
    %2064 = vmatpush2.msra.mxu0 0.0
    %2065 = vmatprep.subr.mxu0 0.0
    %2066 = vmatpush2.msra.mxu0 0.0
    %2067 = vmatprep.subr.mxu0 0.0
    %2068 = vmatpush2.msra.mxu0 0.0
    %2069 = vmatprep.subr.mxu0 0.0
    %2070 = vmatpush2.msra.mxu0 0.0
    %2071 = vmatprep.subr.mxu0 0.0
    %2072 = vmatpush2.msra.mxu0 0.0
    %2073 = vmatprep.subr.mxu0 0.0
    %2074 = vmatpush2.msra.mxu0 0.0
    %2075 = vmatprep.subr.mxu0 0.0
    %2076 = vmatpush2.msra.mxu0 0.0
    %2077 = vmatprep.subr.mxu0 0.0
    %2078 = vmatpush2.msra.mxu0 0.0
    %2079 = vmatprep.subr.mxu0 0.0
    %2080 = vmatpush2.msra.mxu0 0.0
    %2081 = vmatprep.subr.mxu0 0.0
    %2082 = vmatpush2.msra.mxu0 0.0
    %2083 = vmatprep.subr.mxu0 0.0
    %2084 = vmatpush2.msra.mxu0 0.0
    %2085 = vmatprep.subr.mxu0 0.0
    %2086 = vmatpush2.msra.mxu0 0.0
    %2087 = vmatprep.mubr.f32.mxu0 0.0
    %2088 = vmatmul.mubr.f32.gmra.mxu0 %v2018
    %v2089 = vpop.f32.mrf.mxu0
    %v2090 = vadd.f32 0.0, %v2089
    %v2091 = vpop.f32.mrf.mxu0
    %2092 = vmatprep.mubr.f32.mxu0 0.0
    %2093 = vmatmul.mubr.f32.gmra.mxu0 %v2021
    %v2094 = vpop.f32.mrf.mxu0
    %v2095 = vadd.f32 0.0, %v2094
    %v2096 = vpop.f32.mrf.mxu0
    %2097 = vdwg.mxu0
    %v2099 = vsel %vm211, %v2090, 0
    %v2102 = vsel %vm211, %v2095, 0
    %2104 = vmatprep.subr.mxu0 0.0
    %2105 = vmatpush1.msra.mxu0 0.0
    %2106 = vmatprep.subr.mxu0 0.0
    %2107 = vmatpush1.msra.mxu0 0.0
    %2108 = vmatprep.subr.mxu0 0.0
    %2109 = vmatpush1.msra.mxu0 0.0
    %2110 = vmatprep.subr.mxu0 0.0
    %2111 = vmatpush1.msra.mxu0 0.0
    %2112 = vmatprep.subr.mxu0 0.0
    %2113 = vmatpush1.msra.mxu0 0.0
    %2114 = vmatprep.subr.mxu0 0.0
    %2115 = vmatpush1.msra.mxu0 0.0
    %2116 = vmatprep.subr.mxu0 0.0
    %2117 = vmatpush1.msra.mxu0 0.0
    %2118 = vmatprep.subr.mxu0 0.0
    %2119 = vmatpush1.msra.mxu0 0.0
    %2120 = vmatprep.subr.mxu0 0.0
    %2121 = vmatpush1.msra.mxu0 0.0
    %2122 = vmatprep.subr.mxu0 0.0
    %2123 = vmatpush1.msra.mxu0 0.0
    %2124 = vmatprep.subr.mxu0 0.0
    %2125 = vmatpush1.msra.mxu0 0.0
    %2126 = vmatprep.subr.mxu0 0.0
    %2127 = vmatpush1.msra.mxu0 0.0
    %2128 = vmatprep.subr.mxu0 0.0
    %2129 = vmatpush1.msra.mxu0 0.0
    %2130 = vmatprep.subr.mxu0 0.0
    %2131 = vmatpush1.msra.mxu0 0.0
    %2132 = vmatprep.subr.mxu0 0.0
    %2133 = vmatpush1.msra.mxu0 %v1884
    %2134 = vmatprep.subr.mxu0 0.0
    %2135 = vmatpush1.msra.mxu0 %v1883
    %2136 = vmatprep.subr.mxu0 0.0
    %2137 = vmatpush2.msra.mxu0 0.0
    %2138 = vmatprep.subr.mxu0 0.0
    %2139 = vmatpush2.msra.mxu0 0.0
    %2140 = vmatprep.subr.mxu0 0.0
    %2141 = vmatpush2.msra.mxu0 0.0
    %2142 = vmatprep.subr.mxu0 0.0
    %2143 = vmatpush2.msra.mxu0 0.0
    %2144 = vmatprep.subr.mxu0 0.0
    %2145 = vmatpush2.msra.mxu0 0.0
    %2146 = vmatprep.subr.mxu0 0.0
    %2147 = vmatpush2.msra.mxu0 0.0
    %2148 = vmatprep.subr.mxu0 0.0
    %2149 = vmatpush2.msra.mxu0 0.0
    %2150 = vmatprep.subr.mxu0 0.0
    %2151 = vmatpush2.msra.mxu0 0.0
    %2152 = vmatprep.subr.mxu0 0.0
    %2153 = vmatpush2.msra.mxu0 0.0
    %2154 = vmatprep.subr.mxu0 0.0
    %2155 = vmatpush2.msra.mxu0 0.0
    %2156 = vmatprep.subr.mxu0 0.0
    %2157 = vmatpush2.msra.mxu0 0.0
    %2158 = vmatprep.subr.mxu0 0.0
    %2159 = vmatpush2.msra.mxu0 0.0
    %2160 = vmatprep.subr.mxu0 0.0
    %2161 = vmatpush2.msra.mxu0 0.0
    %2162 = vmatprep.subr.mxu0 0.0
    %2163 = vmatpush2.msra.mxu0 0.0
    %2164 = vmatprep.subr.mxu0 0.0
    %2165 = vmatpush2.msra.mxu0 0.0
    %2166 = vmatprep.subr.mxu0 0.0
    %2167 = vmatpush2.msra.mxu0 0.0
    %2168 = vmatprep.mubr.f32.mxu0 0.0
    %2169 = vmatmul.mubr.f32.gmra.mxu0 %v2099
    %v2170 = vpop.f32.mrf.mxu0
    %v2171 = vadd.f32 0.0, %v2170
    %v2172 = vpop.f32.mrf.mxu0
    %2173 = vmatprep.mubr.f32.mxu0 0.0
    %2174 = vmatmul.mubr.f32.gmra.mxu0 %v2102
    %v2175 = vpop.f32.mrf.mxu0
    %v2176 = vadd.f32 0.0, %v2175
    %v2177 = vpop.f32.mrf.mxu0
    %2178 = vdwg.mxu0
    %v2179 = vadd.f32 %v1895, %v2171
    %v2180 = vadd.f32 %v1895, %v2176
    %2181 = vrot.lane.b32.xlu0 %v1874, 112
    %v2182 = vpop.permute.xlu0 %2181
    %2183 = vrot.lane.b32.xlu0 %v1879, 112
    %v2184 = vpop.permute.xlu0 %2183
    %2185 = vrot.lane.b32.xlu0 %v1874, 80
    %v2186 = vpop.permute.xlu0 %2185
    %2187 = vrot.lane.b32.xlu0 %v1879, 80
    %v2188 = vpop.permute.xlu0 %2187
    %v2189 = vsel %vm211, %v2182, 0
    %v2191 = vsel %vm211, %v2184, 0
    %v2193 = vsel %vm211, %v2186, 0
    %v2195 = vsel %vm211, %v2188, 0
    %2197 = vmatprep.subr.mxu0 0.0
    %2198 = vmatpush1.xpose.msra.mxu0 0.0
    %2199 = vmatprep.subr.mxu0 0.0
    %2200 = vmatpush1.xpose.msra.mxu0 0.0
    %2201 = vmatprep.subr.mxu0 0.0
    %2202 = vmatpush1.xpose.msra.mxu0 0.0
    %2203 = vmatprep.subr.mxu0 0.0
    %2204 = vmatpush1.xpose.msra.mxu0 0.0
    %2205 = vmatprep.subr.mxu0 0.0
    %2206 = vmatpush1.xpose.msra.mxu0 0.0
    %2207 = vmatprep.subr.mxu0 0.0
    %2208 = vmatpush1.xpose.msra.mxu0 0.0
    %2209 = vmatprep.subr.mxu0 0.0
    %2210 = vmatpush1.xpose.msra.mxu0 0.0
    %2211 = vmatprep.subr.mxu0 0.0
    %2212 = vmatpush1.xpose.msra.mxu0 0.0
    %2213 = vmatprep.subr.mxu0 0.0
    %2214 = vmatpush1.xpose.msra.mxu0 0.0
    %2215 = vmatprep.subr.mxu0 0.0
    %2216 = vmatpush1.xpose.msra.mxu0 0.0
    %2217 = vmatprep.subr.mxu0 0.0
    %2218 = vmatpush1.xpose.msra.mxu0 0.0
    %2219 = vmatprep.subr.mxu0 0.0
    %2220 = vmatpush1.xpose.msra.mxu0 0.0
    %2221 = vmatprep.subr.mxu0 0.0
    %2222 = vmatpush1.xpose.msra.mxu0 0.0
    %2223 = vmatprep.subr.mxu0 0.0
    %2224 = vmatpush1.xpose.msra.mxu0 0.0
    %2225 = vmatprep.subr.mxu0 0.0
    %2226 = vmatpush1.xpose.msra.mxu0 %v2195
    %2227 = vmatprep.subr.mxu0 0.0
    %2228 = vmatpush1.xpose.msra.mxu0 %v2193
    %2229 = vmatprep.subr.mxu0 0.0
    %2230 = vmatpush2.xpose.msra.mxu0 0.0
    %2231 = vmatprep.subr.mxu0 0.0
    %2232 = vmatpush2.xpose.msra.mxu0 0.0
    %2233 = vmatprep.subr.mxu0 0.0
    %2234 = vmatpush2.xpose.msra.mxu0 0.0
    %2235 = vmatprep.subr.mxu0 0.0
    %2236 = vmatpush2.xpose.msra.mxu0 0.0
    %2237 = vmatprep.subr.mxu0 0.0
    %2238 = vmatpush2.xpose.msra.mxu0 0.0
    %2239 = vmatprep.subr.mxu0 0.0
    %2240 = vmatpush2.xpose.msra.mxu0 0.0
    %2241 = vmatprep.subr.mxu0 0.0
    %2242 = vmatpush2.xpose.msra.mxu0 0.0
    %2243 = vmatprep.subr.mxu0 0.0
    %2244 = vmatpush2.xpose.msra.mxu0 0.0
    %2245 = vmatprep.subr.mxu0 0.0
    %2246 = vmatpush2.xpose.msra.mxu0 0.0
    %2247 = vmatprep.subr.mxu0 0.0
    %2248 = vmatpush2.xpose.msra.mxu0 0.0
    %2249 = vmatprep.subr.mxu0 0.0
    %2250 = vmatpush2.xpose.msra.mxu0 0.0
    %2251 = vmatprep.subr.mxu0 0.0
    %2252 = vmatpush2.xpose.msra.mxu0 0.0
    %2253 = vmatprep.subr.mxu0 0.0
    %2254 = vmatpush2.xpose.msra.mxu0 0.0
    %2255 = vmatprep.subr.mxu0 0.0
    %2256 = vmatpush2.xpose.msra.mxu0 0.0
    %2257 = vmatprep.subr.mxu0 0.0
    %2258 = vmatpush2.xpose.msra.mxu0 0.0
    %2259 = vmatprep.subr.mxu0 0.0
    %2260 = vmatpush2.xpose.msra.mxu0 0.0
    %2261 = vmatprep.mubr.f32.mxu0 0.0
    %2262 = vmatmul.mubr.f32.gmra.mxu0 %v2189
    %v2263 = vpop.f32.mrf.mxu0
    %v2264 = vadd.f32 0.0, %v2263
    %v2265 = vpop.f32.mrf.mxu0
    %2266 = vmatprep.mubr.f32.mxu0 0.0
    %2267 = vmatmul.mubr.f32.gmra.mxu0 %v2191
    %v2268 = vpop.f32.mrf.mxu0
    %v2269 = vadd.f32 0.0, %v2268
    %v2270 = vpop.f32.mrf.mxu0
    %2271 = vdwg.mxu0
    %v2272 = vmul.f32 %v2264, 0.25
    %v2273 = vmul.f32 %v2269, 0.25
    %v2274 = vadd.f32 %v2272, %v86
    %v2275 = vadd.f32 %v2273, %v87
    %v2276 = vsel %vm211, %v2274, -inf
    %2277 = vmax.xlane.f32.xlu0 %v2276
    %v2278 = vpop.xlane.xlu0 %2277
    %v2279 = vsel %vm211, %v2275, -inf
    %2280 = vmax.xlane.f32.xlu0 %v2279
    %v2281 = vpop.xlane.xlu0 %2280
    %v2282 = vsub.f32 %v2274, %v2278
    %v2283 = vsub.f32 %v2275, %v2281
    %v2284 = vmul.f32 %v2282, 1.442695
    %v2285 = vpow.pop %v2284
    %v2286 = vmul.f32 %v2283, 1.442695
    %v2287 = vpow.pop %v2286
    %v2288 = vsel %vm211, %v2285, 0.0
    %2289 = vadd.xlane.f32.xlu0 %v2288
    %v2290 = vpop.xlane.xlu0 %2289
    %v2291 = vsel %vm211, %v2287, 0.0
    %2292 = vadd.xlane.f32.xlu0 %v2291
    %v2293 = vpop.xlane.xlu0 %2292
    %v2294 = vrcp.pop %v2290
    %v2295 = vrcp.pop %v2293
    %v2296 = vmul.f32 %v2285, %v2294
    %v2297 = vmul.f32 %v2287, %v2295
    %2298 = vrot.lane.b32.xlu0 %v1874, 48
    %v2299 = vpop.permute.xlu0 %2298
    %2300 = vrot.lane.b32.xlu0 %v1879, 48
    %v2301 = vpop.permute.xlu0 %2300
    %v2305 = vsel %vm211, %v2296, 0
    %v2308 = vsel %vm211, %v2297, 0
    %2310 = vmatprep.subr.mxu0 0.0
    %2311 = vmatpush1.msra.mxu0 0.0
    %2312 = vmatprep.subr.mxu0 0.0
    %2313 = vmatpush1.msra.mxu0 0.0
    %2314 = vmatprep.subr.mxu0 0.0
    %2315 = vmatpush1.msra.mxu0 0.0
    %2316 = vmatprep.subr.mxu0 0.0
    %2317 = vmatpush1.msra.mxu0 0.0
    %2318 = vmatprep.subr.mxu0 0.0
    %2319 = vmatpush1.msra.mxu0 0.0
    %2320 = vmatprep.subr.mxu0 0.0
    %2321 = vmatpush1.msra.mxu0 0.0
    %2322 = vmatprep.subr.mxu0 0.0
    %2323 = vmatpush1.msra.mxu0 0.0
    %2324 = vmatprep.subr.mxu0 0.0
    %2325 = vmatpush1.msra.mxu0 0.0
    %2326 = vmatprep.subr.mxu0 0.0
    %2327 = vmatpush1.msra.mxu0 0.0
    %2328 = vmatprep.subr.mxu0 0.0
    %2329 = vmatpush1.msra.mxu0 0.0
    %2330 = vmatprep.subr.mxu0 0.0
    %2331 = vmatpush1.msra.mxu0 0.0
    %2332 = vmatprep.subr.mxu0 0.0
    %2333 = vmatpush1.msra.mxu0 0.0
    %2334 = vmatprep.subr.mxu0 0.0
    %2335 = vmatpush1.msra.mxu0 0.0
    %2336 = vmatprep.subr.mxu0 0.0
    %2337 = vmatpush1.msra.mxu0 0.0
    %2338 = vmatprep.subr.mxu0 0.0
    %2339 = vmatpush1.msra.mxu0 %v2301
    %2340 = vmatprep.subr.mxu0 0.0
    %2341 = vmatpush1.msra.mxu0 %v2299
    %2342 = vmatprep.subr.mxu0 0.0
    %2343 = vmatpush2.msra.mxu0 0.0
    %2344 = vmatprep.subr.mxu0 0.0
    %2345 = vmatpush2.msra.mxu0 0.0
    %2346 = vmatprep.subr.mxu0 0.0
    %2347 = vmatpush2.msra.mxu0 0.0
    %2348 = vmatprep.subr.mxu0 0.0
    %2349 = vmatpush2.msra.mxu0 0.0
    %2350 = vmatprep.subr.mxu0 0.0
    %2351 = vmatpush2.msra.mxu0 0.0
    %2352 = vmatprep.subr.mxu0 0.0
    %2353 = vmatpush2.msra.mxu0 0.0
    %2354 = vmatprep.subr.mxu0 0.0
    %2355 = vmatpush2.msra.mxu0 0.0
    %2356 = vmatprep.subr.mxu0 0.0
    %2357 = vmatpush2.msra.mxu0 0.0
    %2358 = vmatprep.subr.mxu0 0.0
    %2359 = vmatpush2.msra.mxu0 0.0
    %2360 = vmatprep.subr.mxu0 0.0
    %2361 = vmatpush2.msra.mxu0 0.0
    %2362 = vmatprep.subr.mxu0 0.0
    %2363 = vmatpush2.msra.mxu0 0.0
    %2364 = vmatprep.subr.mxu0 0.0
    %2365 = vmatpush2.msra.mxu0 0.0
    %2366 = vmatprep.subr.mxu0 0.0
    %2367 = vmatpush2.msra.mxu0 0.0
    %2368 = vmatprep.subr.mxu0 0.0
    %2369 = vmatpush2.msra.mxu0 0.0
    %2370 = vmatprep.subr.mxu0 0.0
    %2371 = vmatpush2.msra.mxu0 0.0
    %2372 = vmatprep.subr.mxu0 0.0
    %2373 = vmatpush2.msra.mxu0 0.0
    %2374 = vmatprep.mubr.f32.mxu0 0.0
    %2375 = vmatmul.mubr.f32.gmra.mxu0 %v2305
    %v2376 = vpop.f32.mrf.mxu0
    %v2377 = vadd.f32 0.0, %v2376
    %v2378 = vpop.f32.mrf.mxu0
    %2379 = vmatprep.mubr.f32.mxu0 0.0
    %2380 = vmatmul.mubr.f32.gmra.mxu0 %v2308
    %v2381 = vpop.f32.mrf.mxu0
    %v2382 = vadd.f32 0.0, %v2381
    %v2383 = vpop.f32.mrf.mxu0
    %2384 = vdwg.mxu0
    %v2386 = vsel %vm211, %v2377, 0
    %v2389 = vsel %vm211, %v2382, 0
    %2391 = vmatprep.subr.mxu0 0.0
    %2392 = vmatpush1.msra.mxu0 0.0
    %2393 = vmatprep.subr.mxu0 0.0
    %2394 = vmatpush1.msra.mxu0 0.0
    %2395 = vmatprep.subr.mxu0 0.0
    %2396 = vmatpush1.msra.mxu0 0.0
    %2397 = vmatprep.subr.mxu0 0.0
    %2398 = vmatpush1.msra.mxu0 0.0
    %2399 = vmatprep.subr.mxu0 0.0
    %2400 = vmatpush1.msra.mxu0 0.0
    %2401 = vmatprep.subr.mxu0 0.0
    %2402 = vmatpush1.msra.mxu0 0.0
    %2403 = vmatprep.subr.mxu0 0.0
    %2404 = vmatpush1.msra.mxu0 0.0
    %2405 = vmatprep.subr.mxu0 0.0
    %2406 = vmatpush1.msra.mxu0 0.0
    %2407 = vmatprep.subr.mxu0 0.0
    %2408 = vmatpush1.msra.mxu0 0.0
    %2409 = vmatprep.subr.mxu0 0.0
    %2410 = vmatpush1.msra.mxu0 0.0
    %2411 = vmatprep.subr.mxu0 0.0
    %2412 = vmatpush1.msra.mxu0 0.0
    %2413 = vmatprep.subr.mxu0 0.0
    %2414 = vmatpush1.msra.mxu0 0.0
    %2415 = vmatprep.subr.mxu0 0.0
    %2416 = vmatpush1.msra.mxu0 0.0
    %2417 = vmatprep.subr.mxu0 0.0
    %2418 = vmatpush1.msra.mxu0 0.0
    %2419 = vmatprep.subr.mxu0 0.0
    %2420 = vmatpush1.msra.mxu0 %v1886
    %2421 = vmatprep.subr.mxu0 0.0
    %2422 = vmatpush1.msra.mxu0 %v1885
    %2423 = vmatprep.subr.mxu0 0.0
    %2424 = vmatpush2.msra.mxu0 0.0
    %2425 = vmatprep.subr.mxu0 0.0
    %2426 = vmatpush2.msra.mxu0 0.0
    %2427 = vmatprep.subr.mxu0 0.0
    %2428 = vmatpush2.msra.mxu0 0.0
    %2429 = vmatprep.subr.mxu0 0.0
    %2430 = vmatpush2.msra.mxu0 0.0
    %2431 = vmatprep.subr.mxu0 0.0
    %2432 = vmatpush2.msra.mxu0 0.0
    %2433 = vmatprep.subr.mxu0 0.0
    %2434 = vmatpush2.msra.mxu0 0.0
    %2435 = vmatprep.subr.mxu0 0.0
    %2436 = vmatpush2.msra.mxu0 0.0
    %2437 = vmatprep.subr.mxu0 0.0
    %2438 = vmatpush2.msra.mxu0 0.0
    %2439 = vmatprep.subr.mxu0 0.0
    %2440 = vmatpush2.msra.mxu0 0.0
    %2441 = vmatprep.subr.mxu0 0.0
    %2442 = vmatpush2.msra.mxu0 0.0
    %2443 = vmatprep.subr.mxu0 0.0
    %2444 = vmatpush2.msra.mxu0 0.0
    %2445 = vmatprep.subr.mxu0 0.0
    %2446 = vmatpush2.msra.mxu0 0.0
    %2447 = vmatprep.subr.mxu0 0.0
    %2448 = vmatpush2.msra.mxu0 0.0
    %2449 = vmatprep.subr.mxu0 0.0
    %2450 = vmatpush2.msra.mxu0 0.0
    %2451 = vmatprep.subr.mxu0 0.0
    %2452 = vmatpush2.msra.mxu0 0.0
    %2453 = vmatprep.subr.mxu0 0.0
    %2454 = vmatpush2.msra.mxu0 0.0
    %2455 = vmatprep.mubr.f32.mxu0 0.0
    %2456 = vmatmul.mubr.f32.gmra.mxu0 %v2386
    %v2457 = vpop.f32.mrf.mxu0
    %v2458 = vadd.f32 0.0, %v2457
    %v2459 = vpop.f32.mrf.mxu0
    %2460 = vmatprep.mubr.f32.mxu0 0.0
    %2461 = vmatmul.mubr.f32.gmra.mxu0 %v2389
    %v2462 = vpop.f32.mrf.mxu0
    %v2463 = vadd.f32 0.0, %v2462
    %v2464 = vpop.f32.mrf.mxu0
    %2465 = vdwg.mxu0
    %v2466 = vadd.f32 %v2179, %v2458
    %v2467 = vadd.f32 %v2180, %v2463
    %v2468 = vadd.f32 %v84, %v2466
    %v2469 = vadd.f32 %v85, %v2467
    %s2470 = scalar_lea.vmem %s9, 1
    %v2471 = vld [vmem:[%s2470] sm:$0x1]
    %s2472 = scalar_lea.vmem %s10, 1
    %v2473 = vld [vmem:[%s2472] sm:$0x1]
    %v2474 = vsel %vm160, %v2468, 0.0
    %2475 = vadd.xlane.f32.xlu0 %v2474
    %v2476 = vpop.xlane.xlu0 %2475
    %v2477 = vsel %vm160, %v2469, 0.0
    %2478 = vadd.xlane.f32.xlu0 %v2477
    %v2479 = vpop.xlane.xlu0 %2478
    %v2480 = vmul.f32 %v2476, %v663
    %v2481 = vmul.f32 %v2479, %v663
    %v2482 = vsub.f32 %v2468, %v2480
    %v2483 = vsub.f32 %v2469, %v2481
    %v2484 = vmul.f32 %v2482, %v2482
    %v2485 = vmul.f32 %v2483, %v2483
    %v2486 = vsel %vm160, %v2484, 0.0
    %2487 = vadd.xlane.f32.xlu0 %v2486
    %v2488 = vpop.xlane.xlu0 %2487
    %v2489 = vsel %vm160, %v2485, 0.0
    %2490 = vadd.xlane.f32.xlu0 %v2489
    %v2491 = vpop.xlane.xlu0 %2490
    %v2492 = vmul.f32 %v2488, %v663
    %v2493 = vmul.f32 %v2491, %v663
    %v2494 = vadd.f32 %v2492, 1e-05
    %v2495 = vadd.f32 %v2493, 1e-05
    %v2496 = vrsqrt.pop %v2494
    %v2497 = vrsqrt.pop %v2495
    %v2498 = vmul.f32 %v2482, %v2496
    %v2499 = vmul.f32 %v2483, %v2497
    %v2501 = vlaneseq
    %v2502 = vshrl.u32 %v2501, 7
    %v2503 = vsub.s32 0, %v2502
    %v2504 = vrot.slane %v2471, %v2503
    %v2506 = vmul.f32 %v2498, %v2504
    %v2507 = vmul.f32 %v2499, %v2504
    %v2509 = vlaneseq
    %v2510 = vshrl.u32 %v2509, 7
    %v2511 = vsub.s32 0, %v2510
    %v2512 = vrot.slane %v2473, %v2511
    %v2514 = vadd.f32 %v2506, %v2512
    %v2515 = vadd.f32 %v2507, %v2512
    %s2516 = scalar_lea.vmem %s11, 32
    %v2517 = vld [vmem:[%s2516] sm:$0xff]
    %v2518 = vld [vmem:[%s2516 + $0x8] sm:$0xff]
    %v2519 = vld [vmem:[%s2516 + $0x10] sm:$0xff]
    %v2520 = vld [vmem:[%s2516 + $0x18] sm:$0xff]
    %s2521 = scalar_lea.vmem %s12, 1
    %v2522 = vld [vmem:[%s2521] sm:$0x1]
    %v2524 = vlaneseq
    %v2525 = vshrl.u32 %v2524, 7
    %v2526 = vsub.s32 0, %v2525
    %v2527 = vrot.slane %v2522, %v2526
    %v2530 = vsel %vm160, %v2514, 0
    %v2533 = vsel %vm160, %v2515, 0
    %2535 = vmatprep.subr.mxu0 0.0
    %2536 = vmatpush1.msra.mxu0 0.0
    %2537 = vmatprep.subr.mxu0 0.0
    %2538 = vmatpush1.msra.mxu0 0.0
    %2539 = vmatprep.subr.mxu0 0.0
    %2540 = vmatpush1.msra.mxu0 0.0
    %2541 = vmatprep.subr.mxu0 0.0
    %2542 = vmatpush1.msra.mxu0 0.0
    %2543 = vmatprep.subr.mxu0 0.0
    %2544 = vmatpush1.msra.mxu0 0.0
    %2545 = vmatprep.subr.mxu0 0.0
    %2546 = vmatpush1.msra.mxu0 0.0
    %2547 = vmatprep.subr.mxu0 0.0
    %2548 = vmatpush1.msra.mxu0 0.0
    %2549 = vmatprep.subr.mxu0 0.0
    %2550 = vmatpush1.msra.mxu0 0.0
    %2551 = vmatprep.subr.mxu0 0.0
    %2552 = vmatpush1.msra.mxu0 0.0
    %2553 = vmatprep.subr.mxu0 0.0
    %2554 = vmatpush1.msra.mxu0 0.0
    %2555 = vmatprep.subr.mxu0 0.0
    %2556 = vmatpush1.msra.mxu0 0.0
    %2557 = vmatprep.subr.mxu0 0.0
    %2558 = vmatpush1.msra.mxu0 0.0
    %2559 = vmatprep.subr.mxu0 0.0
    %2560 = vmatpush1.msra.mxu0 %v2520
    %2561 = vmatprep.subr.mxu0 0.0
    %2562 = vmatpush1.msra.mxu0 %v2519
    %2563 = vmatprep.subr.mxu0 0.0
    %2564 = vmatpush1.msra.mxu0 %v2518
    %2565 = vmatprep.subr.mxu0 0.0
    %2566 = vmatpush1.msra.mxu0 %v2517
    %2567 = vmatprep.subr.mxu0 0.0
    %2568 = vmatpush2.msra.mxu0 0.0
    %2569 = vmatprep.subr.mxu0 0.0
    %2570 = vmatpush2.msra.mxu0 0.0
    %2571 = vmatprep.subr.mxu0 0.0
    %2572 = vmatpush2.msra.mxu0 0.0
    %2573 = vmatprep.subr.mxu0 0.0
    %2574 = vmatpush2.msra.mxu0 0.0
    %2575 = vmatprep.subr.mxu0 0.0
    %2576 = vmatpush2.msra.mxu0 0.0
    %2577 = vmatprep.subr.mxu0 0.0
    %2578 = vmatpush2.msra.mxu0 0.0
    %2579 = vmatprep.subr.mxu0 0.0
    %2580 = vmatpush2.msra.mxu0 0.0
    %2581 = vmatprep.subr.mxu0 0.0
    %2582 = vmatpush2.msra.mxu0 0.0
    %2583 = vmatprep.subr.mxu0 0.0
    %2584 = vmatpush2.msra.mxu0 0.0
    %2585 = vmatprep.subr.mxu0 0.0
    %2586 = vmatpush2.msra.mxu0 0.0
    %2587 = vmatprep.subr.mxu0 0.0
    %2588 = vmatpush2.msra.mxu0 0.0
    %2589 = vmatprep.subr.mxu0 0.0
    %2590 = vmatpush2.msra.mxu0 0.0
    %2591 = vmatprep.subr.mxu0 0.0
    %2592 = vmatpush2.msra.mxu0 0.0
    %2593 = vmatprep.subr.mxu0 0.0
    %2594 = vmatpush2.msra.mxu0 0.0
    %2595 = vmatprep.subr.mxu0 0.0
    %2596 = vmatpush2.msra.mxu0 0.0
    %2597 = vmatprep.subr.mxu0 0.0
    %2598 = vmatpush2.msra.mxu0 0.0
    %2599 = vmatprep.mubr.f32.mxu0 0.0
    %2600 = vmatmul.mubr.f32.gmra.mxu0 %v2530
    %v2601 = vpop.f32.mrf.mxu0
    %v2602 = vadd.f32 %v2527, %v2601
    %v2603 = vpop.f32.mrf.mxu0
    %2604 = vmatprep.mubr.f32.mxu0 0.0
    %2605 = vmatmul.mubr.f32.gmra.mxu0 %v2533
    %v2606 = vpop.f32.mrf.mxu0
    %v2607 = vadd.f32 %v2527, %v2606
    %v2608 = vpop.f32.mrf.mxu0
    %2609 = vdwg.mxu0
    %v2610 = vmul.f32 %v2602, 0.5
    %v2611 = vmul.f32 %v2607, 0.5
    %v2612 = vmul.f32 %v2602, 0.70710677
    %v2613 = vmul.f32 %v2607, 0.70710677
    %vm2614 = vcmp.ge.f32.partialorder %v2612, 0.0
    %vm2615 = vcmp.ge.f32.partialorder %v2613, 0.0
    %v2616 = vsel %vm2614, 1.0, -1.0
    %v2617 = vsel %vm2615, 1.0, -1.0
    %v2618 = vand.u32 2147483647, %v2612
    %v2619 = vand.u32 2147483647, %v2613
    %v2620 = vmul.f32 %v2618, 0.3275911
    %v2621 = vmul.f32 %v2619, 0.3275911
    %v2622 = vadd.f32 %v2620, 1.0
    %v2623 = vadd.f32 %v2621, 1.0
    %v2624 = vrcp.pop %v2622
    %v2625 = vmul.f32 1.0, %v2624
    %v2626 = vrcp.pop %v2623
    %v2627 = vmul.f32 1.0, %v2626
    %v2628 = vmul.f32 %v2625, 1.0614054
    %v2629 = vmul.f32 %v2627, 1.0614054
    %v2630 = vadd.f32 %v2628, -1.4531521
    %v2631 = vadd.f32 %v2629, -1.4531521
    %v2632 = vmul.f32 %v2630, %v2625
    %v2633 = vmul.f32 %v2631, %v2627
    %v2634 = vadd.f32 %v2632, 1.4214138
    %v2635 = vadd.f32 %v2633, 1.4214138
    %v2636 = vmul.f32 %v2634, %v2625
    %v2637 = vmul.f32 %v2635, %v2627
    %v2638 = vadd.f32 %v2636, -0.28449672
    %v2639 = vadd.f32 %v2637, -0.28449672
    %v2640 = vmul.f32 %v2638, %v2625
    %v2641 = vmul.f32 %v2639, %v2627
    %v2642 = vadd.f32 %v2640, 0.2548296
    %v2643 = vadd.f32 %v2641, 0.2548296
    %v2644 = vmul.f32 %v2642, %v2625
    %v2645 = vmul.f32 %v2643, %v2627
    %v2646 = vsub.f32 0.0, %v2618
    %v2647 = vsub.f32 0.0, %v2619
    %v2648 = vmul.f32 %v2646, %v2618
    %v2649 = vmul.f32 %v2647, %v2619
    %v2650 = vmul.f32 %v2648, 1.442695
    %v2651 = vpow.pop %v2650
    %v2652 = vmul.f32 %v2649, 1.442695
    %v2653 = vpow.pop %v2652
    %v2654 = vmul.f32 %v2644, %v2651
    %v2655 = vmul.f32 %v2645, %v2653
    %v2656 = vsub.f32 1.0, %v2654
    %v2657 = vsub.f32 1.0, %v2655
    %v2658 = vmul.f32 %v2616, %v2656
    %v2659 = vmul.f32 %v2617, %v2657
    %v2660 = vadd.f32 %v2658, 1.0
    %v2661 = vadd.f32 %v2659, 1.0
    %v2662 = vmul.f32 %v2610, %v2660
    %v2663 = vmul.f32 %v2611, %v2661
    %s2664 = scalar_lea.vmem %s13, 128
    %v2665 = vld [vmem:[%s2664] sm:$0xff]
    %v2666 = vld [vmem:[%s2664 + $0x8] sm:$0xff]
    %v2667 = vld [vmem:[%s2664 + $0x10] sm:$0xff]
    %v2668 = vld [vmem:[%s2664 + $0x18] sm:$0xff]
    %v2669 = vld [vmem:[%s2664 + $0x20] sm:$0xff]
    %v2670 = vld [vmem:[%s2664 + $0x28] sm:$0xff]
    %v2671 = vld [vmem:[%s2664 + $0x30] sm:$0xff]
    %v2672 = vld [vmem:[%s2664 + $0x38] sm:$0xff]
    %v2673 = vld [vmem:[%s2664 + $0x40] sm:$0xff]
    %v2674 = vld [vmem:[%s2664 + $0x48] sm:$0xff]
    %v2675 = vld [vmem:[%s2664 + $0x50] sm:$0xff]
    %v2676 = vld [vmem:[%s2664 + $0x58] sm:$0xff]
    %v2677 = vld [vmem:[%s2664 + $0x60] sm:$0xff]
    %v2678 = vld [vmem:[%s2664 + $0x68] sm:$0xff]
    %v2679 = vld [vmem:[%s2664 + $0x70] sm:$0xff]
    %v2680 = vld [vmem:[%s2664 + $0x78] sm:$0xff]
    %s2681 = scalar_lea.vmem %s14, 1
    %v2682 = vld [vmem:[%s2681] sm:$0x1]
    %v2684 = vlaneseq
    %v2685 = vshrl.u32 %v2684, 7
    %v2686 = vsub.s32 0, %v2685
    %v2687 = vrot.slane %v2682, %v2686
    %2689 = vmatprep.subr.mxu0 0.0
    %2690 = vmatpush1.msra.mxu0 %v2680
    %2691 = vmatprep.subr.mxu0 0.0
    %2692 = vmatpush1.msra.mxu0 %v2679
    %2693 = vmatprep.subr.mxu0 0.0
    %2694 = vmatpush1.msra.mxu0 %v2678
    %2695 = vmatprep.subr.mxu0 0.0
    %2696 = vmatpush1.msra.mxu0 %v2677
    %2697 = vmatprep.subr.mxu0 0.0
    %2698 = vmatpush1.msra.mxu0 %v2676
    %2699 = vmatprep.subr.mxu0 0.0
    %2700 = vmatpush1.msra.mxu0 %v2675
    %2701 = vmatprep.subr.mxu0 0.0
    %2702 = vmatpush1.msra.mxu0 %v2674
    %2703 = vmatprep.subr.mxu0 0.0
    %2704 = vmatpush1.msra.mxu0 %v2673
    %2705 = vmatprep.subr.mxu0 0.0
    %2706 = vmatpush1.msra.mxu0 %v2672
    %2707 = vmatprep.subr.mxu0 0.0
    %2708 = vmatpush1.msra.mxu0 %v2671
    %2709 = vmatprep.subr.mxu0 0.0
    %2710 = vmatpush1.msra.mxu0 %v2670
    %2711 = vmatprep.subr.mxu0 0.0
    %2712 = vmatpush1.msra.mxu0 %v2669
    %2713 = vmatprep.subr.mxu0 0.0
    %2714 = vmatpush1.msra.mxu0 %v2668
    %2715 = vmatprep.subr.mxu0 0.0
    %2716 = vmatpush1.msra.mxu0 %v2667
    %2717 = vmatprep.subr.mxu0 0.0
    %2718 = vmatpush1.msra.mxu0 %v2666
    %2719 = vmatprep.subr.mxu0 0.0
    %2720 = vmatpush1.msra.mxu0 %v2665
    %2721 = vmatprep.subr.mxu0 0.0
    %2722 = vmatpush2.msra.mxu0 0.0
    %2723 = vmatprep.subr.mxu0 0.0
    %2724 = vmatpush2.msra.mxu0 0.0
    %2725 = vmatprep.subr.mxu0 0.0
    %2726 = vmatpush2.msra.mxu0 0.0
    %2727 = vmatprep.subr.mxu0 0.0
    %2728 = vmatpush2.msra.mxu0 0.0
    %2729 = vmatprep.subr.mxu0 0.0
    %2730 = vmatpush2.msra.mxu0 0.0
    %2731 = vmatprep.subr.mxu0 0.0
    %2732 = vmatpush2.msra.mxu0 0.0
    %2733 = vmatprep.subr.mxu0 0.0
    %2734 = vmatpush2.msra.mxu0 0.0
    %2735 = vmatprep.subr.mxu0 0.0
    %2736 = vmatpush2.msra.mxu0 0.0
    %2737 = vmatprep.subr.mxu0 0.0
    %2738 = vmatpush2.msra.mxu0 0.0
    %2739 = vmatprep.subr.mxu0 0.0
    %2740 = vmatpush2.msra.mxu0 0.0
    %2741 = vmatprep.subr.mxu0 0.0
    %2742 = vmatpush2.msra.mxu0 0.0
    %2743 = vmatprep.subr.mxu0 0.0
    %2744 = vmatpush2.msra.mxu0 0.0
    %2745 = vmatprep.subr.mxu0 0.0
    %2746 = vmatpush2.msra.mxu0 0.0
    %2747 = vmatprep.subr.mxu0 0.0
    %2748 = vmatpush2.msra.mxu0 0.0
    %2749 = vmatprep.subr.mxu0 0.0
    %2750 = vmatpush2.msra.mxu0 0.0
    %2751 = vmatprep.subr.mxu0 0.0
    %2752 = vmatpush2.msra.mxu0 0.0
    %2753 = vmatprep.mubr.f32.mxu0 0.0
    %2754 = vmatmul.mubr.f32.gmra.mxu0 %v2662
    %v2755 = vpop.f32.mrf.mxu0
    %v2756 = vadd.f32 %v2687, %v2755
    %v2757 = vpop.f32.mrf.mxu0
    %2758 = vmatprep.mubr.f32.mxu0 0.0
    %2759 = vmatmul.mubr.f32.gmra.mxu0 %v2663
    %v2760 = vpop.f32.mrf.mxu0
    %v2761 = vadd.f32 %v2687, %v2760
    %v2762 = vpop.f32.mrf.mxu0
    %2763 = vdwg.mxu0
    %v2764 = vadd.f32 %v2468, %v2756
    %v2765 = vadd.f32 %v2469, %v2761
    %2766 = vrot.lane.b32.xlu0 %v654, 127
    %v2767 = vpop.permute.xlu0 %2766
    %v2768 = vsel %vm1675, %v2767, 0
    %2770 = vmatprep.subr.mxu0 0.0
    %2771 = vmatpush1.msra.mxu0 0.0
    %2772 = vmatprep.subr.mxu0 0.0
    %2773 = vmatpush1.msra.mxu0 0.0
    %2774 = vmatprep.subr.mxu0 0.0
    %2775 = vmatpush1.msra.mxu0 0.0
    %2776 = vmatprep.subr.mxu0 0.0
    %2777 = vmatpush1.msra.mxu0 0.0
    %2778 = vmatprep.subr.mxu0 0.0
    %2779 = vmatpush1.msra.mxu0 0.0
    %2780 = vmatprep.subr.mxu0 0.0
    %2781 = vmatpush1.msra.mxu0 0.0
    %2782 = vmatprep.subr.mxu0 0.0
    %2783 = vmatpush1.msra.mxu0 0.0
    %2784 = vmatprep.subr.mxu0 0.0
    %2785 = vmatpush1.msra.mxu0 0.0
    %2786 = vmatprep.subr.mxu0 0.0
    %2787 = vmatpush1.msra.mxu0 0.0
    %2788 = vmatprep.subr.mxu0 0.0
    %2789 = vmatpush1.msra.mxu0 0.0
    %2790 = vmatprep.subr.mxu0 0.0
    %2791 = vmatpush1.msra.mxu0 0.0
    %2792 = vmatprep.subr.mxu0 0.0
    %2793 = vmatpush1.msra.mxu0 0.0
    %2794 = vmatprep.subr.mxu0 0.0
    %2795 = vmatpush1.msra.mxu0 0.0
    %2796 = vmatprep.subr.mxu0 0.0
    %2797 = vmatpush1.msra.mxu0 0.0
    %2798 = vmatprep.subr.mxu0 0.0
    %2799 = vmatpush1.msra.mxu0 0.0
    %2800 = vmatprep.subr.mxu0 0.0
    %2801 = vmatpush1.msra.mxu0 %v2768
    %2802 = vmatprep.subr.mxu0 0.0
    %2803 = vmatpush2.msra.mxu0 0.0
    %2804 = vmatprep.subr.mxu0 0.0
    %2805 = vmatpush2.msra.mxu0 0.0
    %2806 = vmatprep.subr.mxu0 0.0
    %2807 = vmatpush2.msra.mxu0 0.0
    %2808 = vmatprep.subr.mxu0 0.0
    %2809 = vmatpush2.msra.mxu0 0.0
    %2810 = vmatprep.subr.mxu0 0.0
    %2811 = vmatpush2.msra.mxu0 0.0
    %2812 = vmatprep.subr.mxu0 0.0
    %2813 = vmatpush2.msra.mxu0 0.0
    %2814 = vmatprep.subr.mxu0 0.0
    %2815 = vmatpush2.msra.mxu0 0.0
    %2816 = vmatprep.subr.mxu0 0.0
    %2817 = vmatpush2.msra.mxu0 0.0
    %2818 = vmatprep.subr.mxu0 0.0
    %2819 = vmatpush2.msra.mxu0 0.0
    %2820 = vmatprep.subr.mxu0 0.0
    %2821 = vmatpush2.msra.mxu0 0.0
    %2822 = vmatprep.subr.mxu0 0.0
    %2823 = vmatpush2.msra.mxu0 0.0
    %2824 = vmatprep.subr.mxu0 0.0
    %2825 = vmatpush2.msra.mxu0 0.0
    %2826 = vmatprep.subr.mxu0 0.0
    %2827 = vmatpush2.msra.mxu0 0.0
    %2828 = vmatprep.subr.mxu0 0.0
    %2829 = vmatpush2.msra.mxu0 0.0
    %2830 = vmatprep.subr.mxu0 0.0
    %2831 = vmatpush2.msra.mxu0 0.0
    %2832 = vmatprep.subr.mxu0 0.0
    %2833 = vmatpush2.msra.mxu0 0.0
    %2834 = vmatprep.mubr.f32.mxu0 0.0
    %2835 = vmatmul.mubr.f32.gmra.mxu0 %v1670
    %v2836 = vpop.f32.mrf.mxu0
    %v2837 = vadd.f32 0.0, %v2836
    %v2838 = vpop.f32.mrf.mxu0
    %2839 = vmatprep.mubr.f32.mxu0 0.0
    %2840 = vmatmul.mubr.f32.gmra.mxu0 %v1673
    %v2841 = vpop.f32.mrf.mxu0
    %v2842 = vadd.f32 0.0, %v2841
    %v2843 = vpop.f32.mrf.mxu0
    %2844 = vdwg.mxu0
    %2846 = vset.pattern.permute.xlu0 0
    %2847 = vperm.xlu0 %2846, %v2837
    %v2848 = vpop.permute.xlu0 %2847
    %2851 = vset.pattern.permute.xlu0 0
    %2852 = vperm.xlu0 %2851, %v2842
    %v2853 = vpop.permute.xlu0 %2852
    %v2855 = vmul.f32 %v2764, %v2848
    %v2856 = vmul.f32 %v2765, %v2853
    %v2857 = vadd.f32 %v1766, %v2855
    %v2858 = vadd.f32 %v1767, %v2856
    %v2860 = vrot.slane %v2857, 1
    %2861 = vrot.lane.b32.xlu0 %v2860, 32
    %v2862 = vpop.permute.xlu0 %2861
    %v2864 = vrot.slane %v2857, 2
    %2865 = vrot.lane.b32.xlu0 %v2864, 64
    %v2866 = vpop.permute.xlu0 %2865
    %v2868 = vrot.slane %v2857, 3
    %2869 = vrot.lane.b32.xlu0 %v2868, 96
    %v2870 = vpop.permute.xlu0 %2869
    %v2872 = vrot.slane %v2857, 4
    %v2874 = vrot.slane %v2857, 5
    %2875 = vrot.lane.b32.xlu0 %v2874, 32
    %v2876 = vpop.permute.xlu0 %2875
    %v2878 = vrot.slane %v2857, 6
    %2879 = vrot.lane.b32.xlu0 %v2878, 64
    %v2880 = vpop.permute.xlu0 %2879
    %v2882 = vrot.slane %v2857, 7
    %2883 = vrot.lane.b32.xlu0 %v2882, 96
    %v2884 = vpop.permute.xlu0 %2883
    %v2886 = vsel %vm160, %v2857, %v2862
    %v2887 = vsel %vm162, %v2886, %v2866
    %v2888 = vsel %vm164, %v2887, %v2870
    %v2889 = vsel %vm160, %v2872, %v2876
    %v2890 = vsel %vm162, %v2889, %v2880
    %v2891 = vsel %vm164, %v2890, %v2884
    %v2893 = vrot.slane %v2858, 1
    %2894 = vrot.lane.b32.xlu0 %v2893, 32
    %v2895 = vpop.permute.xlu0 %2894
    %v2897 = vrot.slane %v2858, 2
    %2898 = vrot.lane.b32.xlu0 %v2897, 64
    %v2899 = vpop.permute.xlu0 %2898
    %v2901 = vrot.slane %v2858, 3
    %2902 = vrot.lane.b32.xlu0 %v2901, 96
    %v2903 = vpop.permute.xlu0 %2902
    %v2905 = vrot.slane %v2858, 4
    %v2907 = vrot.slane %v2858, 5
    %2908 = vrot.lane.b32.xlu0 %v2907, 32
    %v2909 = vpop.permute.xlu0 %2908
    %v2911 = vrot.slane %v2858, 6
    %2912 = vrot.lane.b32.xlu0 %v2911, 64
    %v2913 = vpop.permute.xlu0 %2912
    %v2915 = vrot.slane %v2858, 7
    %2916 = vrot.lane.b32.xlu0 %v2915, 96
    %v2917 = vpop.permute.xlu0 %2916
    %v2919 = vsel %vm160, %v2858, %v2895
    %v2920 = vsel %vm162, %v2919, %v2899
    %v2921 = vsel %vm164, %v2920, %v2903
    %v2922 = vsel %vm160, %v2905, %v2909
    %v2923 = vsel %vm162, %v2922, %v2913
    %v2924 = vsel %vm164, %v2923, %v2917
    %v2927 = vrot.slane %v2921, 7
    %v2928 = vrot.slane %v2924, 7
    %v2931 = vsel %vm208, %v2888, %v2927
    %v2932 = vsel %vm208, %v2891, %v2928
    %2933 = vmatprep.subr.mxu0 0.0
    %2934 = vmatpush1.msra.mxu0 0.0
    %2935 = vmatprep.subr.mxu0 0.0
    %2936 = vmatpush1.msra.mxu0 0.0
    %2937 = vmatprep.subr.mxu0 0.0
    %2938 = vmatpush1.msra.mxu0 0.0
    %2939 = vmatprep.subr.mxu0 0.0
    %2940 = vmatpush1.msra.mxu0 0.0
    %2941 = vmatprep.subr.mxu0 0.0
    %2942 = vmatpush1.msra.mxu0 0.0
    %2943 = vmatprep.subr.mxu0 0.0
    %2944 = vmatpush1.msra.mxu0 0.0
    %2945 = vmatprep.subr.mxu0 0.0
    %2946 = vmatpush1.msra.mxu0 0.0
    %2947 = vmatprep.subr.mxu0 0.0
    %2948 = vmatpush1.msra.mxu0 0.0
    %2949 = vmatprep.subr.mxu0 0.0
    %2950 = vmatpush1.msra.mxu0 0.0
    %2951 = vmatprep.subr.mxu0 0.0
    %2952 = vmatpush1.msra.mxu0 0.0
    %2953 = vmatprep.subr.mxu0 0.0
    %2954 = vmatpush1.msra.mxu0 0.0
    %2955 = vmatprep.subr.mxu0 0.0
    %2956 = vmatpush1.msra.mxu0 0.0
    %2957 = vmatprep.subr.mxu0 0.0
    %2958 = vmatpush1.msra.mxu0 0.0
    %2959 = vmatprep.subr.mxu0 0.0
    %2960 = vmatpush1.msra.mxu0 0.0
    %2961 = vmatprep.subr.mxu0 0.0
    %2962 = vmatpush1.msra.mxu0 %v123
    %2963 = vmatprep.subr.mxu0 0.0
    %2964 = vmatpush1.msra.mxu0 %v122
    %2965 = vmatprep.subr.mxu0 0.0
    %2966 = vmatpush2.msra.mxu0 0.0
    %2967 = vmatprep.subr.mxu0 0.0
    %2968 = vmatpush2.msra.mxu0 0.0
    %2969 = vmatprep.subr.mxu0 0.0
    %2970 = vmatpush2.msra.mxu0 0.0
    %2971 = vmatprep.subr.mxu0 0.0
    %2972 = vmatpush2.msra.mxu0 0.0
    %2973 = vmatprep.subr.mxu0 0.0
    %2974 = vmatpush2.msra.mxu0 0.0
    %2975 = vmatprep.subr.mxu0 0.0
    %2976 = vmatpush2.msra.mxu0 0.0
    %2977 = vmatprep.subr.mxu0 0.0
    %2978 = vmatpush2.msra.mxu0 0.0
    %2979 = vmatprep.subr.mxu0 0.0
    %2980 = vmatpush2.msra.mxu0 0.0
    %2981 = vmatprep.subr.mxu0 0.0
    %2982 = vmatpush2.msra.mxu0 0.0
    %2983 = vmatprep.subr.mxu0 0.0
    %2984 = vmatpush2.msra.mxu0 0.0
    %2985 = vmatprep.subr.mxu0 0.0
    %2986 = vmatpush2.msra.mxu0 0.0
    %2987 = vmatprep.subr.mxu0 0.0
    %2988 = vmatpush2.msra.mxu0 0.0
    %2989 = vmatprep.subr.mxu0 0.0
    %2990 = vmatpush2.msra.mxu0 0.0
    %2991 = vmatprep.subr.mxu0 0.0
    %2992 = vmatpush2.msra.mxu0 0.0
    %2993 = vmatprep.subr.mxu0 0.0
    %2994 = vmatpush2.msra.mxu0 0.0
    %2995 = vmatprep.subr.mxu0 0.0
    %2996 = vmatpush2.msra.mxu0 0.0
    %2997 = vmatprep.mubr.f32.mxu0 0.0
    %2998 = vmatmul.mubr.f32.gmra.mxu0 %v459
    %v2999 = vpop.f32.mrf.mxu0
    %v3000 = vadd.f32 0.0, %v2999
    %v3001 = vpop.f32.mrf.mxu0
    %3002 = vdwg.mxu0
    %3003 = vmatprep.subr.mxu0 0.0
    %3004 = vmatpush1.msra.mxu0 %v105
    %3005 = vmatprep.subr.mxu0 0.0
    %3006 = vmatpush1.msra.mxu0 %v104
    %3007 = vmatprep.subr.mxu0 0.0
    %3008 = vmatpush1.msra.mxu0 %v103
    %3009 = vmatprep.subr.mxu0 0.0
    %3010 = vmatpush1.msra.mxu0 %v102
    %3011 = vmatprep.subr.mxu0 0.0
    %3012 = vmatpush1.msra.mxu0 %v101
    %3013 = vmatprep.subr.mxu0 0.0
    %3014 = vmatpush1.msra.mxu0 %v100
    %3015 = vmatprep.subr.mxu0 0.0
    %3016 = vmatpush1.msra.mxu0 %v99
    %3017 = vmatprep.subr.mxu0 0.0
    %3018 = vmatpush1.msra.mxu0 %v98
    %3019 = vmatprep.subr.mxu0 0.0
    %3020 = vmatpush1.msra.mxu0 %v97
    %3021 = vmatprep.subr.mxu0 0.0
    %3022 = vmatpush1.msra.mxu0 %v96
    %3023 = vmatprep.subr.mxu0 0.0
    %3024 = vmatpush1.msra.mxu0 %v95
    %3025 = vmatprep.subr.mxu0 0.0
    %3026 = vmatpush1.msra.mxu0 %v94
    %3027 = vmatprep.subr.mxu0 0.0
    %3028 = vmatpush1.msra.mxu0 %v93
    %3029 = vmatprep.subr.mxu0 0.0
    %3030 = vmatpush1.msra.mxu0 %v92
    %3031 = vmatprep.subr.mxu0 0.0
    %3032 = vmatpush1.msra.mxu0 %v91
    %3033 = vmatprep.subr.mxu0 0.0
    %3034 = vmatpush1.msra.mxu0 %v90
    %3035 = vmatprep.subr.mxu0 0.0
    %3036 = vmatpush2.msra.mxu0 %v121
    %3037 = vmatprep.subr.mxu0 0.0
    %3038 = vmatpush2.msra.mxu0 %v120
    %3039 = vmatprep.subr.mxu0 0.0
    %3040 = vmatpush2.msra.mxu0 %v119
    %3041 = vmatprep.subr.mxu0 0.0
    %3042 = vmatpush2.msra.mxu0 %v118
    %3043 = vmatprep.subr.mxu0 0.0
    %3044 = vmatpush2.msra.mxu0 %v117
    %3045 = vmatprep.subr.mxu0 0.0
    %3046 = vmatpush2.msra.mxu0 %v116
    %3047 = vmatprep.subr.mxu0 0.0
    %3048 = vmatpush2.msra.mxu0 %v115
    %3049 = vmatprep.subr.mxu0 0.0
    %3050 = vmatpush2.msra.mxu0 %v114
    %3051 = vmatprep.subr.mxu0 0.0
    %3052 = vmatpush2.msra.mxu0 %v113
    %3053 = vmatprep.subr.mxu0 0.0
    %3054 = vmatpush2.msra.mxu0 %v112
    %3055 = vmatprep.subr.mxu0 0.0
    %3056 = vmatpush2.msra.mxu0 %v111
    %3057 = vmatprep.subr.mxu0 0.0
    %3058 = vmatpush2.msra.mxu0 %v110
    %3059 = vmatprep.subr.mxu0 0.0
    %3060 = vmatpush2.msra.mxu0 %v109
    %3061 = vmatprep.subr.mxu0 0.0
    %3062 = vmatpush2.msra.mxu0 %v108
    %3063 = vmatprep.subr.mxu0 0.0
    %3064 = vmatpush2.msra.mxu0 %v107
    %3065 = vmatprep.subr.mxu0 0.0
    %3066 = vmatpush2.msra.mxu0 %v106
    %3067 = vmatprep.mubr.f32.mxu0 %v2932
    %3068 = vmatmul.mubr.f32.gmra.mxu0 %v2931
    %v3069 = vpop.f32.mrf.mxu0
    %v3070 = vadd.f32 %v3000, %v3069
    %v3071 = vpop.f32.mrf.mxu0
    %3072 = vdwg.mxu0
    %v3073 = vadd.f32 %v3070, %v359
    %v3074 = vxor.u32 %v3073, 2147483648
    %v3075 = vmul.f32 %v3074, 1.442695
    %v3076 = vpow.pop %v3075
    %v3077 = vadd.f32 %v3076, 1.0
    %v3078 = vrcp.pop %v3077
    %v3079 = vmul.f32 1.0, %v3078
    %v3080 = vtanh.pop %v3073
    %v3081 = vmul.f32 %v3079, %v379
    %3083 = vrot.lane.b32.xlu0 %v3080, 96
    %v3084 = vpop.permute.xlu0 %3083
    %v3086 = vmul.f32 %v3079, %v3084
    %3088 = vrot.lane.b32.xlu0 %v3086, 16
    %v3089 = vpop.permute.xlu0 %3088
    %v3091 = vadd.f32 %v3081, %v3089
    %v3092 = vtanh.pop %v3091
    %3094 = vrot.lane.b32.xlu0 %v3092, 32
    %v3095 = vpop.permute.xlu0 %3094
    %v3097 = vmul.f32 %v3079, %v3095
    %3098 = vmatprep.subr.mxu0 0.0
    %3099 = vmatpush1.msra.mxu0 0.0
    %3100 = vmatprep.subr.mxu0 0.0
    %3101 = vmatpush1.msra.mxu0 0.0
    %3102 = vmatprep.subr.mxu0 0.0
    %3103 = vmatpush1.msra.mxu0 0.0
    %3104 = vmatprep.subr.mxu0 0.0
    %3105 = vmatpush1.msra.mxu0 0.0
    %3106 = vmatprep.subr.mxu0 0.0
    %3107 = vmatpush1.msra.mxu0 0.0
    %3108 = vmatprep.subr.mxu0 0.0
    %3109 = vmatpush1.msra.mxu0 0.0
    %3110 = vmatprep.subr.mxu0 0.0
    %3111 = vmatpush1.msra.mxu0 0.0
    %3112 = vmatprep.subr.mxu0 0.0
    %3113 = vmatpush1.msra.mxu0 0.0
    %3114 = vmatprep.subr.mxu0 0.0
    %3115 = vmatpush1.msra.mxu0 0.0
    %3116 = vmatprep.subr.mxu0 0.0
    %3117 = vmatpush1.msra.mxu0 0.0
    %3118 = vmatprep.subr.mxu0 0.0
    %3119 = vmatpush1.msra.mxu0 0.0
    %3120 = vmatprep.subr.mxu0 0.0
    %3121 = vmatpush1.msra.mxu0 0.0
    %3122 = vmatprep.subr.mxu0 0.0
    %3123 = vmatpush1.msra.mxu0 0.0
    %3124 = vmatprep.subr.mxu0 0.0
    %3125 = vmatpush1.msra.mxu0 0.0
    %3126 = vmatprep.subr.mxu0 0.0
    %3127 = vmatpush1.msra.mxu0 %v128
    %3128 = vmatprep.subr.mxu0 0.0
    %3129 = vmatpush1.msra.mxu0 %v127
    %3130 = vmatprep.subr.mxu0 0.0
    %3131 = vmatpush2.msra.mxu0 0.0
    %3132 = vmatprep.subr.mxu0 0.0
    %3133 = vmatpush2.msra.mxu0 0.0
    %3134 = vmatprep.subr.mxu0 0.0
    %3135 = vmatpush2.msra.mxu0 0.0
    %3136 = vmatprep.subr.mxu0 0.0
    %3137 = vmatpush2.msra.mxu0 0.0
    %3138 = vmatprep.subr.mxu0 0.0
    %3139 = vmatpush2.msra.mxu0 0.0
    %3140 = vmatprep.subr.mxu0 0.0
    %3141 = vmatpush2.msra.mxu0 0.0
    %3142 = vmatprep.subr.mxu0 0.0
    %3143 = vmatpush2.msra.mxu0 0.0
    %3144 = vmatprep.subr.mxu0 0.0
    %3145 = vmatpush2.msra.mxu0 0.0
    %3146 = vmatprep.subr.mxu0 0.0
    %3147 = vmatpush2.msra.mxu0 0.0
    %3148 = vmatprep.subr.mxu0 0.0
    %3149 = vmatpush2.msra.mxu0 0.0
    %3150 = vmatprep.subr.mxu0 0.0
    %3151 = vmatpush2.msra.mxu0 0.0
    %3152 = vmatprep.subr.mxu0 0.0
    %3153 = vmatpush2.msra.mxu0 0.0
    %3154 = vmatprep.subr.mxu0 0.0
    %3155 = vmatpush2.msra.mxu0 0.0
    %3156 = vmatprep.subr.mxu0 0.0
    %3157 = vmatpush2.msra.mxu0 0.0
    %3158 = vmatprep.subr.mxu0 0.0
    %3159 = vmatpush2.msra.mxu0 0.0
    %3160 = vmatprep.subr.mxu0 0.0
    %3161 = vmatpush2.msra.mxu0 0.0
    %3162 = vmatprep.mubr.f32.mxu0 0.0
    %3163 = vmatmul.mubr.f32.gmra.mxu0 %v571
    %v3164 = vpop.f32.mrf.mxu0
    %v3165 = vadd.f32 0.0, %v3164
    %v3166 = vpop.f32.mrf.mxu0
    %3167 = vdwg.mxu0
    %3169 = vrot.lane.b32.xlu0 %v3097, 80
    %v3170 = vpop.permute.xlu0 %3169
    %v3171 = vsel %vm211, %v3170, 0
    %3173 = vmatprep.subr.mxu0 0.0
    %3174 = vmatpush1.msra.mxu0 0.0
    %3175 = vmatprep.subr.mxu0 0.0
    %3176 = vmatpush1.msra.mxu0 0.0
    %3177 = vmatprep.subr.mxu0 0.0
    %3178 = vmatpush1.msra.mxu0 0.0
    %3179 = vmatprep.subr.mxu0 0.0
    %3180 = vmatpush1.msra.mxu0 0.0
    %3181 = vmatprep.subr.mxu0 0.0
    %3182 = vmatpush1.msra.mxu0 0.0
    %3183 = vmatprep.subr.mxu0 0.0
    %3184 = vmatpush1.msra.mxu0 0.0
    %3185 = vmatprep.subr.mxu0 0.0
    %3186 = vmatpush1.msra.mxu0 0.0
    %3187 = vmatprep.subr.mxu0 0.0
    %3188 = vmatpush1.msra.mxu0 0.0
    %3189 = vmatprep.subr.mxu0 0.0
    %3190 = vmatpush1.msra.mxu0 0.0
    %3191 = vmatprep.subr.mxu0 0.0
    %3192 = vmatpush1.msra.mxu0 0.0
    %3193 = vmatprep.subr.mxu0 0.0
    %3194 = vmatpush1.msra.mxu0 0.0
    %3195 = vmatprep.subr.mxu0 0.0
    %3196 = vmatpush1.msra.mxu0 0.0
    %3197 = vmatprep.subr.mxu0 0.0
    %3198 = vmatpush1.msra.mxu0 0.0
    %3199 = vmatprep.subr.mxu0 0.0
    %3200 = vmatpush1.msra.mxu0 0.0
    %3201 = vmatprep.subr.mxu0 0.0
    %3202 = vmatpush1.msra.mxu0 %v126
    %3203 = vmatprep.subr.mxu0 0.0
    %3204 = vmatpush1.msra.mxu0 %v125
    %3205 = vmatprep.subr.mxu0 0.0
    %3206 = vmatpush2.msra.mxu0 0.0
    %3207 = vmatprep.subr.mxu0 0.0
    %3208 = vmatpush2.msra.mxu0 0.0
    %3209 = vmatprep.subr.mxu0 0.0
    %3210 = vmatpush2.msra.mxu0 0.0
    %3211 = vmatprep.subr.mxu0 0.0
    %3212 = vmatpush2.msra.mxu0 0.0
    %3213 = vmatprep.subr.mxu0 0.0
    %3214 = vmatpush2.msra.mxu0 0.0
    %3215 = vmatprep.subr.mxu0 0.0
    %3216 = vmatpush2.msra.mxu0 0.0
    %3217 = vmatprep.subr.mxu0 0.0
    %3218 = vmatpush2.msra.mxu0 0.0
    %3219 = vmatprep.subr.mxu0 0.0
    %3220 = vmatpush2.msra.mxu0 0.0
    %3221 = vmatprep.subr.mxu0 0.0
    %3222 = vmatpush2.msra.mxu0 0.0
    %3223 = vmatprep.subr.mxu0 0.0
    %3224 = vmatpush2.msra.mxu0 0.0
    %3225 = vmatprep.subr.mxu0 0.0
    %3226 = vmatpush2.msra.mxu0 0.0
    %3227 = vmatprep.subr.mxu0 0.0
    %3228 = vmatpush2.msra.mxu0 0.0
    %3229 = vmatprep.subr.mxu0 0.0
    %3230 = vmatpush2.msra.mxu0 0.0
    %3231 = vmatprep.subr.mxu0 0.0
    %3232 = vmatpush2.msra.mxu0 0.0
    %3233 = vmatprep.subr.mxu0 0.0
    %3234 = vmatpush2.msra.mxu0 0.0
    %3235 = vmatprep.subr.mxu0 0.0
    %3236 = vmatpush2.msra.mxu0 0.0
    %3237 = vmatprep.mubr.f32.mxu0 0.0
    %3238 = vmatmul.mubr.f32.gmra.mxu0 %v3171
    %v3239 = vpop.f32.mrf.mxu0
    %v3240 = vadd.f32 %v3165, %v3239
    %v3241 = vpop.f32.mrf.mxu0
    %3242 = vdwg.mxu0
    %v3243 = vadd.f32 %v3240, %v535
    %v3244 = vxor.u32 %v3243, 2147483648
    %v3245 = vmul.f32 %v3244, 1.442695
    %v3246 = vpow.pop %v3245
    %v3247 = vadd.f32 %v3246, 1.0
    %v3248 = vrcp.pop %v3247
    %v3249 = vmul.f32 1.0, %v3248
    %v3250 = vtanh.pop %v3243
    %v3251 = vmul.f32 %v3249, %v555
    %3253 = vrot.lane.b32.xlu0 %v3250, 96
    %v3254 = vpop.permute.xlu0 %3253
    %v3256 = vmul.f32 %v3249, %v3254
    %3258 = vrot.lane.b32.xlu0 %v3256, 16
    %v3259 = vpop.permute.xlu0 %3258
    %v3261 = vadd.f32 %v3251, %v3259
    %v3262 = vtanh.pop %v3261
    %3264 = vrot.lane.b32.xlu0 %v3262, 32
    %v3265 = vpop.permute.xlu0 %3264
    %v3267 = vmul.f32 %v3249, %v3265
    %3269 = vrot.lane.b32.xlu0 %v3267, 80
    %v3270 = vpop.permute.xlu0 %3269
    %v3271 = vsel %vm211, %v3270, 0
    %3273 = vmatprep.subr.mxu0 0.0
    %3274 = vmatpush1.msra.mxu0 0.0
    %3275 = vmatprep.subr.mxu0 0.0
    %3276 = vmatpush1.msra.mxu0 0.0
    %3277 = vmatprep.subr.mxu0 0.0
    %3278 = vmatpush1.msra.mxu0 0.0
    %3279 = vmatprep.subr.mxu0 0.0
    %3280 = vmatpush1.msra.mxu0 0.0
    %3281 = vmatprep.subr.mxu0 0.0
    %3282 = vmatpush1.msra.mxu0 0.0
    %3283 = vmatprep.subr.mxu0 0.0
    %3284 = vmatpush1.msra.mxu0 0.0
    %3285 = vmatprep.subr.mxu0 0.0
    %3286 = vmatpush1.msra.mxu0 0.0
    %3287 = vmatprep.subr.mxu0 0.0
    %3288 = vmatpush1.msra.mxu0 0.0
    %3289 = vmatprep.subr.mxu0 0.0
    %3290 = vmatpush1.msra.mxu0 0.0
    %3291 = vmatprep.subr.mxu0 0.0
    %3292 = vmatpush1.msra.mxu0 0.0
    %3293 = vmatprep.subr.mxu0 0.0
    %3294 = vmatpush1.msra.mxu0 0.0
    %3295 = vmatprep.subr.mxu0 0.0
    %3296 = vmatpush1.msra.mxu0 0.0
    %3297 = vmatprep.subr.mxu0 0.0
    %3298 = vmatpush1.msra.mxu0 0.0
    %3299 = vmatprep.subr.mxu0 0.0
    %3300 = vmatpush1.msra.mxu0 0.0
    %3301 = vmatprep.subr.mxu0 0.0
    %3302 = vmatpush1.msra.mxu0 %v131
    %3303 = vmatprep.subr.mxu0 0.0
    %3304 = vmatpush1.msra.mxu0 %v130
    %3305 = vmatprep.subr.mxu0 0.0
    %3306 = vmatpush2.msra.mxu0 0.0
    %3307 = vmatprep.subr.mxu0 0.0
    %3308 = vmatpush2.msra.mxu0 0.0
    %3309 = vmatprep.subr.mxu0 0.0
    %3310 = vmatpush2.msra.mxu0 0.0
    %3311 = vmatprep.subr.mxu0 0.0
    %3312 = vmatpush2.msra.mxu0 0.0
    %3313 = vmatprep.subr.mxu0 0.0
    %3314 = vmatpush2.msra.mxu0 0.0
    %3315 = vmatprep.subr.mxu0 0.0
    %3316 = vmatpush2.msra.mxu0 0.0
    %3317 = vmatprep.subr.mxu0 0.0
    %3318 = vmatpush2.msra.mxu0 0.0
    %3319 = vmatprep.subr.mxu0 0.0
    %3320 = vmatpush2.msra.mxu0 0.0
    %3321 = vmatprep.subr.mxu0 0.0
    %3322 = vmatpush2.msra.mxu0 0.0
    %3323 = vmatprep.subr.mxu0 0.0
    %3324 = vmatpush2.msra.mxu0 0.0
    %3325 = vmatprep.subr.mxu0 0.0
    %3326 = vmatpush2.msra.mxu0 0.0
    %3327 = vmatprep.subr.mxu0 0.0
    %3328 = vmatpush2.msra.mxu0 0.0
    %3329 = vmatprep.subr.mxu0 0.0
    %3330 = vmatpush2.msra.mxu0 0.0
    %3331 = vmatprep.subr.mxu0 0.0
    %3332 = vmatpush2.msra.mxu0 0.0
    %3333 = vmatprep.subr.mxu0 0.0
    %3334 = vmatpush2.msra.mxu0 0.0
    %3335 = vmatprep.subr.mxu0 0.0
    %3336 = vmatpush2.msra.mxu0 0.0
    %3337 = vmatprep.mubr.f32.mxu0 0.0
    %3338 = vmatmul.mubr.f32.gmra.mxu0 %v3271
    %v3339 = vpop.f32.mrf.mxu0
    %v3340 = vadd.f32 %v566, %v3339
    %v3341 = vpop.f32.mrf.mxu0
    %3342 = vdwg.mxu0
    %v3343 = vsel %vm643, %v3340, -inf
    %3344 = vmax.xlane.f32.xlu0 %v3343
    %v3345 = vpop.xlane.xlu0 %3344
    %v3346 = vsub.f32 %v3340, %v3345
    %v3347 = vmul.f32 %v3346, 1.442695
    %v3348 = vpow.pop %v3347
    %v3349 = vsel %vm643, %v3348, 0.0
    %3350 = vadd.xlane.f32.xlu0 %v3349
    %v3351 = vpop.xlane.xlu0 %3350
    %v3352 = vrcp.pop %v3351
    %v3353 = vmul.f32 %v3348, %v3352
    %s3354 = scalar_lea.vmem %s3, 2
    %v3355 = vld [vmem:[%s3354] sm:$0x1]
    %s3356 = scalar_lea.vmem %s4, 2
    %v3357 = vld [vmem:[%s3356] sm:$0x1]
    %v3358 = vsel %vm160, %v2857, 0.0
    %3359 = vadd.xlane.f32.xlu0 %v3358
    %v3360 = vpop.xlane.xlu0 %3359
    %v3361 = vsel %vm160, %v2858, 0.0
    %3362 = vadd.xlane.f32.xlu0 %v3361
    %v3363 = vpop.xlane.xlu0 %3362
    %v3364 = vmul.f32 %v3360, %v663
    %v3365 = vmul.f32 %v3363, %v663
    %v3366 = vsub.f32 %v2857, %v3364
    %v3367 = vsub.f32 %v2858, %v3365
    %v3368 = vmul.f32 %v3366, %v3366
    %v3369 = vmul.f32 %v3367, %v3367
    %v3370 = vsel %vm160, %v3368, 0.0
    %3371 = vadd.xlane.f32.xlu0 %v3370
    %v3372 = vpop.xlane.xlu0 %3371
    %v3373 = vsel %vm160, %v3369, 0.0
    %3374 = vadd.xlane.f32.xlu0 %v3373
    %v3375 = vpop.xlane.xlu0 %3374
    %v3376 = vmul.f32 %v3372, %v663
    %v3377 = vmul.f32 %v3375, %v663
    %v3378 = vadd.f32 %v3376, 1e-05
    %v3379 = vadd.f32 %v3377, 1e-05
    %v3380 = vrsqrt.pop %v3378
    %v3381 = vrsqrt.pop %v3379
    %v3382 = vmul.f32 %v3366, %v3380
    %v3383 = vmul.f32 %v3367, %v3381
    %v3385 = vlaneseq
    %v3386 = vshrl.u32 %v3385, 7
    %v3387 = vsub.s32 0, %v3386
    %v3388 = vrot.slane %v3355, %v3387
    %v3390 = vmul.f32 %v3382, %v3388
    %v3391 = vmul.f32 %v3383, %v3388
    %v3393 = vlaneseq
    %v3394 = vshrl.u32 %v3393, 7
    %v3395 = vsub.s32 0, %v3394
    %v3396 = vrot.slane %v3357, %v3395
    %v3398 = vadd.f32 %v3390, %v3396
    %v3399 = vadd.f32 %v3391, %v3396
    %s3400 = scalar_lea.vmem %s5, 64
    %v3401 = vld [vmem:[%s3400] sm:$0xff]
    %v3402 = vld [vmem:[%s3400 + $0x8] sm:$0xff]
    %v3403 = vld [vmem:[%s3400 + $0x10] sm:$0xff]
    %v3404 = vld [vmem:[%s3400 + $0x18] sm:$0xff]
    %s3405 = scalar_lea.vmem %s6, 2
    %v3406 = vld [vmem:[%s3405] sm:$0x1]
    %v3408 = vlaneseq
    %v3409 = vshrl.u32 %v3408, 7
    %v3410 = vsub.s32 0, %v3409
    %v3411 = vrot.slane %v3406, %v3410
    %v3414 = vsel %vm160, %v3398, 0
    %v3417 = vsel %vm160, %v3399, 0
    %3419 = vmatprep.subr.mxu0 0.0
    %3420 = vmatpush1.msra.mxu0 0.0
    %3421 = vmatprep.subr.mxu0 0.0
    %3422 = vmatpush1.msra.mxu0 0.0
    %3423 = vmatprep.subr.mxu0 0.0
    %3424 = vmatpush1.msra.mxu0 0.0
    %3425 = vmatprep.subr.mxu0 0.0
    %3426 = vmatpush1.msra.mxu0 0.0
    %3427 = vmatprep.subr.mxu0 0.0
    %3428 = vmatpush1.msra.mxu0 0.0
    %3429 = vmatprep.subr.mxu0 0.0
    %3430 = vmatpush1.msra.mxu0 0.0
    %3431 = vmatprep.subr.mxu0 0.0
    %3432 = vmatpush1.msra.mxu0 0.0
    %3433 = vmatprep.subr.mxu0 0.0
    %3434 = vmatpush1.msra.mxu0 0.0
    %3435 = vmatprep.subr.mxu0 0.0
    %3436 = vmatpush1.msra.mxu0 0.0
    %3437 = vmatprep.subr.mxu0 0.0
    %3438 = vmatpush1.msra.mxu0 0.0
    %3439 = vmatprep.subr.mxu0 0.0
    %3440 = vmatpush1.msra.mxu0 0.0
    %3441 = vmatprep.subr.mxu0 0.0
    %3442 = vmatpush1.msra.mxu0 0.0
    %3443 = vmatprep.subr.mxu0 0.0
    %3444 = vmatpush1.msra.mxu0 %v3404
    %3445 = vmatprep.subr.mxu0 0.0
    %3446 = vmatpush1.msra.mxu0 %v3403
    %3447 = vmatprep.subr.mxu0 0.0
    %3448 = vmatpush1.msra.mxu0 %v3402
    %3449 = vmatprep.subr.mxu0 0.0
    %3450 = vmatpush1.msra.mxu0 %v3401
    %3451 = vmatprep.subr.mxu0 0.0
    %3452 = vmatpush2.msra.mxu0 0.0
    %3453 = vmatprep.subr.mxu0 0.0
    %3454 = vmatpush2.msra.mxu0 0.0
    %3455 = vmatprep.subr.mxu0 0.0
    %3456 = vmatpush2.msra.mxu0 0.0
    %3457 = vmatprep.subr.mxu0 0.0
    %3458 = vmatpush2.msra.mxu0 0.0
    %3459 = vmatprep.subr.mxu0 0.0
    %3460 = vmatpush2.msra.mxu0 0.0
    %3461 = vmatprep.subr.mxu0 0.0
    %3462 = vmatpush2.msra.mxu0 0.0
    %3463 = vmatprep.subr.mxu0 0.0
    %3464 = vmatpush2.msra.mxu0 0.0
    %3465 = vmatprep.subr.mxu0 0.0
    %3466 = vmatpush2.msra.mxu0 0.0
    %3467 = vmatprep.subr.mxu0 0.0
    %3468 = vmatpush2.msra.mxu0 0.0
    %3469 = vmatprep.subr.mxu0 0.0
    %3470 = vmatpush2.msra.mxu0 0.0
    %3471 = vmatprep.subr.mxu0 0.0
    %3472 = vmatpush2.msra.mxu0 0.0
    %3473 = vmatprep.subr.mxu0 0.0
    %3474 = vmatpush2.msra.mxu0 0.0
    %3475 = vmatprep.subr.mxu0 0.0
    %3476 = vmatpush2.msra.mxu0 0.0
    %3477 = vmatprep.subr.mxu0 0.0
    %3478 = vmatpush2.msra.mxu0 0.0
    %3479 = vmatprep.subr.mxu0 0.0
    %3480 = vmatpush2.msra.mxu0 0.0
    %3481 = vmatprep.subr.mxu0 0.0
    %3482 = vmatpush2.msra.mxu0 0.0
    %3483 = vmatprep.mubr.f32.mxu0 0.0
    %3484 = vmatmul.mubr.f32.gmra.mxu0 %v3414
    %v3485 = vpop.f32.mrf.mxu0
    %v3486 = vadd.f32 %v3411, %v3485
    %v3487 = vpop.f32.mrf.mxu0
    %3488 = vmatprep.mubr.f32.mxu0 0.0
    %3489 = vmatmul.mubr.f32.gmra.mxu0 %v3417
    %v3490 = vpop.f32.mrf.mxu0
    %v3491 = vadd.f32 %v3411, %v3490
    %v3492 = vpop.f32.mrf.mxu0
    %3493 = vdwg.mxu0
    %s3494 = scalar_lea.vmem %s7, 64
    %v3495 = vld [vmem:[%s3494] sm:$0xff]
    %v3496 = vld [vmem:[%s3494 + $0x8] sm:$0xff]
    %v3497 = vld [vmem:[%s3494 + $0x10] sm:$0xff]
    %v3498 = vld [vmem:[%s3494 + $0x18] sm:$0xff]
    %s3499 = scalar_lea.vmem %s8, 2
    %v3500 = vld [vmem:[%s3499] sm:$0x1]
    %v3502 = vlaneseq
    %v3503 = vshrl.u32 %v3502, 7
    %v3504 = vsub.s32 0, %v3503
    %v3505 = vrot.slane %v3500, %v3504
    %v3507 = vadd.f32 %v3505, 0.0
    %3510 = vrot.lane.b32.xlu0 %v3486, 96
    %v3511 = vpop.permute.xlu0 %3510
    %3512 = vrot.lane.b32.xlu0 %v3491, 96
    %v3513 = vpop.permute.xlu0 %3512
    %v3514 = vsel %vm211, %v3486, 0
    %v3516 = vsel %vm211, %v3491, 0
    %v3518 = vsel %vm211, %v3511, 0
    %v3520 = vsel %vm211, %v3513, 0
    %3522 = vmatprep.subr.mxu0 0.0
    %3523 = vmatpush1.xpose.msra.mxu0 0.0
    %3524 = vmatprep.subr.mxu0 0.0
    %3525 = vmatpush1.xpose.msra.mxu0 0.0
    %3526 = vmatprep.subr.mxu0 0.0
    %3527 = vmatpush1.xpose.msra.mxu0 0.0
    %3528 = vmatprep.subr.mxu0 0.0
    %3529 = vmatpush1.xpose.msra.mxu0 0.0
    %3530 = vmatprep.subr.mxu0 0.0
    %3531 = vmatpush1.xpose.msra.mxu0 0.0
    %3532 = vmatprep.subr.mxu0 0.0
    %3533 = vmatpush1.xpose.msra.mxu0 0.0
    %3534 = vmatprep.subr.mxu0 0.0
    %3535 = vmatpush1.xpose.msra.mxu0 0.0
    %3536 = vmatprep.subr.mxu0 0.0
    %3537 = vmatpush1.xpose.msra.mxu0 0.0
    %3538 = vmatprep.subr.mxu0 0.0
    %3539 = vmatpush1.xpose.msra.mxu0 0.0
    %3540 = vmatprep.subr.mxu0 0.0
    %3541 = vmatpush1.xpose.msra.mxu0 0.0
    %3542 = vmatprep.subr.mxu0 0.0
    %3543 = vmatpush1.xpose.msra.mxu0 0.0
    %3544 = vmatprep.subr.mxu0 0.0
    %3545 = vmatpush1.xpose.msra.mxu0 0.0
    %3546 = vmatprep.subr.mxu0 0.0
    %3547 = vmatpush1.xpose.msra.mxu0 0.0
    %3548 = vmatprep.subr.mxu0 0.0
    %3549 = vmatpush1.xpose.msra.mxu0 0.0
    %3550 = vmatprep.subr.mxu0 0.0
    %3551 = vmatpush1.xpose.msra.mxu0 %v3520
    %3552 = vmatprep.subr.mxu0 0.0
    %3553 = vmatpush1.xpose.msra.mxu0 %v3518
    %3554 = vmatprep.subr.mxu0 0.0
    %3555 = vmatpush2.xpose.msra.mxu0 0.0
    %3556 = vmatprep.subr.mxu0 0.0
    %3557 = vmatpush2.xpose.msra.mxu0 0.0
    %3558 = vmatprep.subr.mxu0 0.0
    %3559 = vmatpush2.xpose.msra.mxu0 0.0
    %3560 = vmatprep.subr.mxu0 0.0
    %3561 = vmatpush2.xpose.msra.mxu0 0.0
    %3562 = vmatprep.subr.mxu0 0.0
    %3563 = vmatpush2.xpose.msra.mxu0 0.0
    %3564 = vmatprep.subr.mxu0 0.0
    %3565 = vmatpush2.xpose.msra.mxu0 0.0
    %3566 = vmatprep.subr.mxu0 0.0
    %3567 = vmatpush2.xpose.msra.mxu0 0.0
    %3568 = vmatprep.subr.mxu0 0.0
    %3569 = vmatpush2.xpose.msra.mxu0 0.0
    %3570 = vmatprep.subr.mxu0 0.0
    %3571 = vmatpush2.xpose.msra.mxu0 0.0
    %3572 = vmatprep.subr.mxu0 0.0
    %3573 = vmatpush2.xpose.msra.mxu0 0.0
    %3574 = vmatprep.subr.mxu0 0.0
    %3575 = vmatpush2.xpose.msra.mxu0 0.0
    %3576 = vmatprep.subr.mxu0 0.0
    %3577 = vmatpush2.xpose.msra.mxu0 0.0
    %3578 = vmatprep.subr.mxu0 0.0
    %3579 = vmatpush2.xpose.msra.mxu0 0.0
    %3580 = vmatprep.subr.mxu0 0.0
    %3581 = vmatpush2.xpose.msra.mxu0 0.0
    %3582 = vmatprep.subr.mxu0 0.0
    %3583 = vmatpush2.xpose.msra.mxu0 0.0
    %3584 = vmatprep.subr.mxu0 0.0
    %3585 = vmatpush2.xpose.msra.mxu0 0.0
    %3586 = vmatprep.mubr.f32.mxu0 0.0
    %3587 = vmatmul.mubr.f32.gmra.mxu0 %v3514
    %v3588 = vpop.f32.mrf.mxu0
    %v3589 = vadd.f32 0.0, %v3588
    %v3590 = vpop.f32.mrf.mxu0
    %3591 = vmatprep.mubr.f32.mxu0 0.0
    %3592 = vmatmul.mubr.f32.gmra.mxu0 %v3516
    %v3593 = vpop.f32.mrf.mxu0
    %v3594 = vadd.f32 0.0, %v3593
    %v3595 = vpop.f32.mrf.mxu0
    %3596 = vdwg.mxu0
    %v3597 = vmul.f32 %v3589, 0.25
    %v3598 = vmul.f32 %v3594, 0.25
    %v3599 = vadd.f32 %v3597, %v86
    %v3600 = vadd.f32 %v3598, %v87
    %v3601 = vsel %vm211, %v3599, -inf
    %3602 = vmax.xlane.f32.xlu0 %v3601
    %v3603 = vpop.xlane.xlu0 %3602
    %v3604 = vsel %vm211, %v3600, -inf
    %3605 = vmax.xlane.f32.xlu0 %v3604
    %v3606 = vpop.xlane.xlu0 %3605
    %v3607 = vsub.f32 %v3599, %v3603
    %v3608 = vsub.f32 %v3600, %v3606
    %v3609 = vmul.f32 %v3607, 1.442695
    %v3610 = vpow.pop %v3609
    %v3611 = vmul.f32 %v3608, 1.442695
    %v3612 = vpow.pop %v3611
    %v3613 = vsel %vm211, %v3610, 0.0
    %3614 = vadd.xlane.f32.xlu0 %v3613
    %v3615 = vpop.xlane.xlu0 %3614
    %v3616 = vsel %vm211, %v3612, 0.0
    %3617 = vadd.xlane.f32.xlu0 %v3616
    %v3618 = vpop.xlane.xlu0 %3617
    %v3619 = vrcp.pop %v3615
    %v3620 = vrcp.pop %v3618
    %v3621 = vmul.f32 %v3610, %v3619
    %v3622 = vmul.f32 %v3612, %v3620
    %3623 = vrot.lane.b32.xlu0 %v3486, 64
    %v3624 = vpop.permute.xlu0 %3623
    %3625 = vrot.lane.b32.xlu0 %v3491, 64
    %v3626 = vpop.permute.xlu0 %3625
    %v3630 = vsel %vm211, %v3621, 0
    %v3633 = vsel %vm211, %v3622, 0
    %3635 = vmatprep.subr.mxu0 0.0
    %3636 = vmatpush1.msra.mxu0 0.0
    %3637 = vmatprep.subr.mxu0 0.0
    %3638 = vmatpush1.msra.mxu0 0.0
    %3639 = vmatprep.subr.mxu0 0.0
    %3640 = vmatpush1.msra.mxu0 0.0
    %3641 = vmatprep.subr.mxu0 0.0
    %3642 = vmatpush1.msra.mxu0 0.0
    %3643 = vmatprep.subr.mxu0 0.0
    %3644 = vmatpush1.msra.mxu0 0.0
    %3645 = vmatprep.subr.mxu0 0.0
    %3646 = vmatpush1.msra.mxu0 0.0
    %3647 = vmatprep.subr.mxu0 0.0
    %3648 = vmatpush1.msra.mxu0 0.0
    %3649 = vmatprep.subr.mxu0 0.0
    %3650 = vmatpush1.msra.mxu0 0.0
    %3651 = vmatprep.subr.mxu0 0.0
    %3652 = vmatpush1.msra.mxu0 0.0
    %3653 = vmatprep.subr.mxu0 0.0
    %3654 = vmatpush1.msra.mxu0 0.0
    %3655 = vmatprep.subr.mxu0 0.0
    %3656 = vmatpush1.msra.mxu0 0.0
    %3657 = vmatprep.subr.mxu0 0.0
    %3658 = vmatpush1.msra.mxu0 0.0
    %3659 = vmatprep.subr.mxu0 0.0
    %3660 = vmatpush1.msra.mxu0 0.0
    %3661 = vmatprep.subr.mxu0 0.0
    %3662 = vmatpush1.msra.mxu0 0.0
    %3663 = vmatprep.subr.mxu0 0.0
    %3664 = vmatpush1.msra.mxu0 %v3626
    %3665 = vmatprep.subr.mxu0 0.0
    %3666 = vmatpush1.msra.mxu0 %v3624
    %3667 = vmatprep.subr.mxu0 0.0
    %3668 = vmatpush2.msra.mxu0 0.0
    %3669 = vmatprep.subr.mxu0 0.0
    %3670 = vmatpush2.msra.mxu0 0.0
    %3671 = vmatprep.subr.mxu0 0.0
    %3672 = vmatpush2.msra.mxu0 0.0
    %3673 = vmatprep.subr.mxu0 0.0
    %3674 = vmatpush2.msra.mxu0 0.0
    %3675 = vmatprep.subr.mxu0 0.0
    %3676 = vmatpush2.msra.mxu0 0.0
    %3677 = vmatprep.subr.mxu0 0.0
    %3678 = vmatpush2.msra.mxu0 0.0
    %3679 = vmatprep.subr.mxu0 0.0
    %3680 = vmatpush2.msra.mxu0 0.0
    %3681 = vmatprep.subr.mxu0 0.0
    %3682 = vmatpush2.msra.mxu0 0.0
    %3683 = vmatprep.subr.mxu0 0.0
    %3684 = vmatpush2.msra.mxu0 0.0
    %3685 = vmatprep.subr.mxu0 0.0
    %3686 = vmatpush2.msra.mxu0 0.0
    %3687 = vmatprep.subr.mxu0 0.0
    %3688 = vmatpush2.msra.mxu0 0.0
    %3689 = vmatprep.subr.mxu0 0.0
    %3690 = vmatpush2.msra.mxu0 0.0
    %3691 = vmatprep.subr.mxu0 0.0
    %3692 = vmatpush2.msra.mxu0 0.0
    %3693 = vmatprep.subr.mxu0 0.0
    %3694 = vmatpush2.msra.mxu0 0.0
    %3695 = vmatprep.subr.mxu0 0.0
    %3696 = vmatpush2.msra.mxu0 0.0
    %3697 = vmatprep.subr.mxu0 0.0
    %3698 = vmatpush2.msra.mxu0 0.0
    %3699 = vmatprep.mubr.f32.mxu0 0.0
    %3700 = vmatmul.mubr.f32.gmra.mxu0 %v3630
    %v3701 = vpop.f32.mrf.mxu0
    %v3702 = vadd.f32 0.0, %v3701
    %v3703 = vpop.f32.mrf.mxu0
    %3704 = vmatprep.mubr.f32.mxu0 0.0
    %3705 = vmatmul.mubr.f32.gmra.mxu0 %v3633
    %v3706 = vpop.f32.mrf.mxu0
    %v3707 = vadd.f32 0.0, %v3706
    %v3708 = vpop.f32.mrf.mxu0
    %3709 = vdwg.mxu0
    %v3711 = vsel %vm211, %v3702, 0
    %v3714 = vsel %vm211, %v3707, 0
    %3716 = vmatprep.subr.mxu0 0.0
    %3717 = vmatpush1.msra.mxu0 0.0
    %3718 = vmatprep.subr.mxu0 0.0
    %3719 = vmatpush1.msra.mxu0 0.0
    %3720 = vmatprep.subr.mxu0 0.0
    %3721 = vmatpush1.msra.mxu0 0.0
    %3722 = vmatprep.subr.mxu0 0.0
    %3723 = vmatpush1.msra.mxu0 0.0
    %3724 = vmatprep.subr.mxu0 0.0
    %3725 = vmatpush1.msra.mxu0 0.0
    %3726 = vmatprep.subr.mxu0 0.0
    %3727 = vmatpush1.msra.mxu0 0.0
    %3728 = vmatprep.subr.mxu0 0.0
    %3729 = vmatpush1.msra.mxu0 0.0
    %3730 = vmatprep.subr.mxu0 0.0
    %3731 = vmatpush1.msra.mxu0 0.0
    %3732 = vmatprep.subr.mxu0 0.0
    %3733 = vmatpush1.msra.mxu0 0.0
    %3734 = vmatprep.subr.mxu0 0.0
    %3735 = vmatpush1.msra.mxu0 0.0
    %3736 = vmatprep.subr.mxu0 0.0
    %3737 = vmatpush1.msra.mxu0 0.0
    %3738 = vmatprep.subr.mxu0 0.0
    %3739 = vmatpush1.msra.mxu0 0.0
    %3740 = vmatprep.subr.mxu0 0.0
    %3741 = vmatpush1.msra.mxu0 0.0
    %3742 = vmatprep.subr.mxu0 0.0
    %3743 = vmatpush1.msra.mxu0 0.0
    %3744 = vmatprep.subr.mxu0 0.0
    %3745 = vmatpush1.msra.mxu0 %v3496
    %3746 = vmatprep.subr.mxu0 0.0
    %3747 = vmatpush1.msra.mxu0 %v3495
    %3748 = vmatprep.subr.mxu0 0.0
    %3749 = vmatpush2.msra.mxu0 0.0
    %3750 = vmatprep.subr.mxu0 0.0
    %3751 = vmatpush2.msra.mxu0 0.0
    %3752 = vmatprep.subr.mxu0 0.0
    %3753 = vmatpush2.msra.mxu0 0.0
    %3754 = vmatprep.subr.mxu0 0.0
    %3755 = vmatpush2.msra.mxu0 0.0
    %3756 = vmatprep.subr.mxu0 0.0
    %3757 = vmatpush2.msra.mxu0 0.0
    %3758 = vmatprep.subr.mxu0 0.0
    %3759 = vmatpush2.msra.mxu0 0.0
    %3760 = vmatprep.subr.mxu0 0.0
    %3761 = vmatpush2.msra.mxu0 0.0
    %3762 = vmatprep.subr.mxu0 0.0
    %3763 = vmatpush2.msra.mxu0 0.0
    %3764 = vmatprep.subr.mxu0 0.0
    %3765 = vmatpush2.msra.mxu0 0.0
    %3766 = vmatprep.subr.mxu0 0.0
    %3767 = vmatpush2.msra.mxu0 0.0
    %3768 = vmatprep.subr.mxu0 0.0
    %3769 = vmatpush2.msra.mxu0 0.0
    %3770 = vmatprep.subr.mxu0 0.0
    %3771 = vmatpush2.msra.mxu0 0.0
    %3772 = vmatprep.subr.mxu0 0.0
    %3773 = vmatpush2.msra.mxu0 0.0
    %3774 = vmatprep.subr.mxu0 0.0
    %3775 = vmatpush2.msra.mxu0 0.0
    %3776 = vmatprep.subr.mxu0 0.0
    %3777 = vmatpush2.msra.mxu0 0.0
    %3778 = vmatprep.subr.mxu0 0.0
    %3779 = vmatpush2.msra.mxu0 0.0
    %3780 = vmatprep.mubr.f32.mxu0 0.0
    %3781 = vmatmul.mubr.f32.gmra.mxu0 %v3711
    %v3782 = vpop.f32.mrf.mxu0
    %v3783 = vadd.f32 0.0, %v3782
    %v3784 = vpop.f32.mrf.mxu0
    %3785 = vmatprep.mubr.f32.mxu0 0.0
    %3786 = vmatmul.mubr.f32.gmra.mxu0 %v3714
    %v3787 = vpop.f32.mrf.mxu0
    %v3788 = vadd.f32 0.0, %v3787
    %v3789 = vpop.f32.mrf.mxu0
    %3790 = vdwg.mxu0
    %v3791 = vadd.f32 %v3507, %v3783
    %v3792 = vadd.f32 %v3507, %v3788
    %3793 = vrot.lane.b32.xlu0 %v3486, 112
    %v3794 = vpop.permute.xlu0 %3793
    %3795 = vrot.lane.b32.xlu0 %v3491, 112
    %v3796 = vpop.permute.xlu0 %3795
    %3797 = vrot.lane.b32.xlu0 %v3486, 80
    %v3798 = vpop.permute.xlu0 %3797
    %3799 = vrot.lane.b32.xlu0 %v3491, 80
    %v3800 = vpop.permute.xlu0 %3799
    %v3801 = vsel %vm211, %v3794, 0
    %v3803 = vsel %vm211, %v3796, 0
    %v3805 = vsel %vm211, %v3798, 0
    %v3807 = vsel %vm211, %v3800, 0
    %3809 = vmatprep.subr.mxu0 0.0
    %3810 = vmatpush1.xpose.msra.mxu0 0.0
    %3811 = vmatprep.subr.mxu0 0.0
    %3812 = vmatpush1.xpose.msra.mxu0 0.0
    %3813 = vmatprep.subr.mxu0 0.0
    %3814 = vmatpush1.xpose.msra.mxu0 0.0
    %3815 = vmatprep.subr.mxu0 0.0
    %3816 = vmatpush1.xpose.msra.mxu0 0.0
    %3817 = vmatprep.subr.mxu0 0.0
    %3818 = vmatpush1.xpose.msra.mxu0 0.0
    %3819 = vmatprep.subr.mxu0 0.0
    %3820 = vmatpush1.xpose.msra.mxu0 0.0
    %3821 = vmatprep.subr.mxu0 0.0
    %3822 = vmatpush1.xpose.msra.mxu0 0.0
    %3823 = vmatprep.subr.mxu0 0.0
    %3824 = vmatpush1.xpose.msra.mxu0 0.0
    %3825 = vmatprep.subr.mxu0 0.0
    %3826 = vmatpush1.xpose.msra.mxu0 0.0
    %3827 = vmatprep.subr.mxu0 0.0
    %3828 = vmatpush1.xpose.msra.mxu0 0.0
    %3829 = vmatprep.subr.mxu0 0.0
    %3830 = vmatpush1.xpose.msra.mxu0 0.0
    %3831 = vmatprep.subr.mxu0 0.0
    %3832 = vmatpush1.xpose.msra.mxu0 0.0
    %3833 = vmatprep.subr.mxu0 0.0
    %3834 = vmatpush1.xpose.msra.mxu0 0.0
    %3835 = vmatprep.subr.mxu0 0.0
    %3836 = vmatpush1.xpose.msra.mxu0 0.0
    %3837 = vmatprep.subr.mxu0 0.0
    %3838 = vmatpush1.xpose.msra.mxu0 %v3807
    %3839 = vmatprep.subr.mxu0 0.0
    %3840 = vmatpush1.xpose.msra.mxu0 %v3805
    %3841 = vmatprep.subr.mxu0 0.0
    %3842 = vmatpush2.xpose.msra.mxu0 0.0
    %3843 = vmatprep.subr.mxu0 0.0
    %3844 = vmatpush2.xpose.msra.mxu0 0.0
    %3845 = vmatprep.subr.mxu0 0.0
    %3846 = vmatpush2.xpose.msra.mxu0 0.0
    %3847 = vmatprep.subr.mxu0 0.0
    %3848 = vmatpush2.xpose.msra.mxu0 0.0
    %3849 = vmatprep.subr.mxu0 0.0
    %3850 = vmatpush2.xpose.msra.mxu0 0.0
    %3851 = vmatprep.subr.mxu0 0.0
    %3852 = vmatpush2.xpose.msra.mxu0 0.0
    %3853 = vmatprep.subr.mxu0 0.0
    %3854 = vmatpush2.xpose.msra.mxu0 0.0
    %3855 = vmatprep.subr.mxu0 0.0
    %3856 = vmatpush2.xpose.msra.mxu0 0.0
    %3857 = vmatprep.subr.mxu0 0.0
    %3858 = vmatpush2.xpose.msra.mxu0 0.0
    %3859 = vmatprep.subr.mxu0 0.0
    %3860 = vmatpush2.xpose.msra.mxu0 0.0
    %3861 = vmatprep.subr.mxu0 0.0
    %3862 = vmatpush2.xpose.msra.mxu0 0.0
    %3863 = vmatprep.subr.mxu0 0.0
    %3864 = vmatpush2.xpose.msra.mxu0 0.0
    %3865 = vmatprep.subr.mxu0 0.0
    %3866 = vmatpush2.xpose.msra.mxu0 0.0
    %3867 = vmatprep.subr.mxu0 0.0
    %3868 = vmatpush2.xpose.msra.mxu0 0.0
    %3869 = vmatprep.subr.mxu0 0.0
    %3870 = vmatpush2.xpose.msra.mxu0 0.0
    %3871 = vmatprep.subr.mxu0 0.0
    %3872 = vmatpush2.xpose.msra.mxu0 0.0
    %3873 = vmatprep.mubr.f32.mxu0 0.0
    %3874 = vmatmul.mubr.f32.gmra.mxu0 %v3801
    %v3875 = vpop.f32.mrf.mxu0
    %v3876 = vadd.f32 0.0, %v3875
    %v3877 = vpop.f32.mrf.mxu0
    %3878 = vmatprep.mubr.f32.mxu0 0.0
    %3879 = vmatmul.mubr.f32.gmra.mxu0 %v3803
    %v3880 = vpop.f32.mrf.mxu0
    %v3881 = vadd.f32 0.0, %v3880
    %v3882 = vpop.f32.mrf.mxu0
    %3883 = vdwg.mxu0
    %v3884 = vmul.f32 %v3876, 0.25
    %v3885 = vmul.f32 %v3881, 0.25
    %v3886 = vadd.f32 %v3884, %v86
    %v3887 = vadd.f32 %v3885, %v87
    %v3888 = vsel %vm211, %v3886, -inf
    %3889 = vmax.xlane.f32.xlu0 %v3888
    %v3890 = vpop.xlane.xlu0 %3889
    %v3891 = vsel %vm211, %v3887, -inf
    %3892 = vmax.xlane.f32.xlu0 %v3891
    %v3893 = vpop.xlane.xlu0 %3892
    %v3894 = vsub.f32 %v3886, %v3890
    %v3895 = vsub.f32 %v3887, %v3893
    %v3896 = vmul.f32 %v3894, 1.442695
    %v3897 = vpow.pop %v3896
    %v3898 = vmul.f32 %v3895, 1.442695
    %v3899 = vpow.pop %v3898
    %v3900 = vsel %vm211, %v3897, 0.0
    %3901 = vadd.xlane.f32.xlu0 %v3900
    %v3902 = vpop.xlane.xlu0 %3901
    %v3903 = vsel %vm211, %v3899, 0.0
    %3904 = vadd.xlane.f32.xlu0 %v3903
    %v3905 = vpop.xlane.xlu0 %3904
    %v3906 = vrcp.pop %v3902
    %v3907 = vrcp.pop %v3905
    %v3908 = vmul.f32 %v3897, %v3906
    %v3909 = vmul.f32 %v3899, %v3907
    %3910 = vrot.lane.b32.xlu0 %v3486, 48
    %v3911 = vpop.permute.xlu0 %3910
    %3912 = vrot.lane.b32.xlu0 %v3491, 48
    %v3913 = vpop.permute.xlu0 %3912
    %v3917 = vsel %vm211, %v3908, 0
    %v3920 = vsel %vm211, %v3909, 0
    %3922 = vmatprep.subr.mxu0 0.0
    %3923 = vmatpush1.msra.mxu0 0.0
    %3924 = vmatprep.subr.mxu0 0.0
    %3925 = vmatpush1.msra.mxu0 0.0
    %3926 = vmatprep.subr.mxu0 0.0
    %3927 = vmatpush1.msra.mxu0 0.0
    %3928 = vmatprep.subr.mxu0 0.0
    %3929 = vmatpush1.msra.mxu0 0.0
    %3930 = vmatprep.subr.mxu0 0.0
    %3931 = vmatpush1.msra.mxu0 0.0
    %3932 = vmatprep.subr.mxu0 0.0
    %3933 = vmatpush1.msra.mxu0 0.0
    %3934 = vmatprep.subr.mxu0 0.0
    %3935 = vmatpush1.msra.mxu0 0.0
    %3936 = vmatprep.subr.mxu0 0.0
    %3937 = vmatpush1.msra.mxu0 0.0
    %3938 = vmatprep.subr.mxu0 0.0
    %3939 = vmatpush1.msra.mxu0 0.0
    %3940 = vmatprep.subr.mxu0 0.0
    %3941 = vmatpush1.msra.mxu0 0.0
    %3942 = vmatprep.subr.mxu0 0.0
    %3943 = vmatpush1.msra.mxu0 0.0
    %3944 = vmatprep.subr.mxu0 0.0
    %3945 = vmatpush1.msra.mxu0 0.0
    %3946 = vmatprep.subr.mxu0 0.0
    %3947 = vmatpush1.msra.mxu0 0.0
    %3948 = vmatprep.subr.mxu0 0.0
    %3949 = vmatpush1.msra.mxu0 0.0
    %3950 = vmatprep.subr.mxu0 0.0
    %3951 = vmatpush1.msra.mxu0 %v3913
    %3952 = vmatprep.subr.mxu0 0.0
    %3953 = vmatpush1.msra.mxu0 %v3911
    %3954 = vmatprep.subr.mxu0 0.0
    %3955 = vmatpush2.msra.mxu0 0.0
    %3956 = vmatprep.subr.mxu0 0.0
    %3957 = vmatpush2.msra.mxu0 0.0
    %3958 = vmatprep.subr.mxu0 0.0
    %3959 = vmatpush2.msra.mxu0 0.0
    %3960 = vmatprep.subr.mxu0 0.0
    %3961 = vmatpush2.msra.mxu0 0.0
    %3962 = vmatprep.subr.mxu0 0.0
    %3963 = vmatpush2.msra.mxu0 0.0
    %3964 = vmatprep.subr.mxu0 0.0
    %3965 = vmatpush2.msra.mxu0 0.0
    %3966 = vmatprep.subr.mxu0 0.0
    %3967 = vmatpush2.msra.mxu0 0.0
    %3968 = vmatprep.subr.mxu0 0.0
    %3969 = vmatpush2.msra.mxu0 0.0
    %3970 = vmatprep.subr.mxu0 0.0
    %3971 = vmatpush2.msra.mxu0 0.0
    %3972 = vmatprep.subr.mxu0 0.0
    %3973 = vmatpush2.msra.mxu0 0.0
    %3974 = vmatprep.subr.mxu0 0.0
    %3975 = vmatpush2.msra.mxu0 0.0
    %3976 = vmatprep.subr.mxu0 0.0
    %3977 = vmatpush2.msra.mxu0 0.0
    %3978 = vmatprep.subr.mxu0 0.0
    %3979 = vmatpush2.msra.mxu0 0.0
    %3980 = vmatprep.subr.mxu0 0.0
    %3981 = vmatpush2.msra.mxu0 0.0
    %3982 = vmatprep.subr.mxu0 0.0
    %3983 = vmatpush2.msra.mxu0 0.0
    %3984 = vmatprep.subr.mxu0 0.0
    %3985 = vmatpush2.msra.mxu0 0.0
    %3986 = vmatprep.mubr.f32.mxu0 0.0
    %3987 = vmatmul.mubr.f32.gmra.mxu0 %v3917
    %v3988 = vpop.f32.mrf.mxu0
    %v3989 = vadd.f32 0.0, %v3988
    %v3990 = vpop.f32.mrf.mxu0
    %3991 = vmatprep.mubr.f32.mxu0 0.0
    %3992 = vmatmul.mubr.f32.gmra.mxu0 %v3920
    %v3993 = vpop.f32.mrf.mxu0
    %v3994 = vadd.f32 0.0, %v3993
    %v3995 = vpop.f32.mrf.mxu0
    %3996 = vdwg.mxu0
    %v3998 = vsel %vm211, %v3989, 0
    %v4001 = vsel %vm211, %v3994, 0
    %4003 = vmatprep.subr.mxu0 0.0
    %4004 = vmatpush1.msra.mxu0 0.0
    %4005 = vmatprep.subr.mxu0 0.0
    %4006 = vmatpush1.msra.mxu0 0.0
    %4007 = vmatprep.subr.mxu0 0.0
    %4008 = vmatpush1.msra.mxu0 0.0
    %4009 = vmatprep.subr.mxu0 0.0
    %4010 = vmatpush1.msra.mxu0 0.0
    %4011 = vmatprep.subr.mxu0 0.0
    %4012 = vmatpush1.msra.mxu0 0.0
    %4013 = vmatprep.subr.mxu0 0.0
    %4014 = vmatpush1.msra.mxu0 0.0
    %4015 = vmatprep.subr.mxu0 0.0
    %4016 = vmatpush1.msra.mxu0 0.0
    %4017 = vmatprep.subr.mxu0 0.0
    %4018 = vmatpush1.msra.mxu0 0.0
    %4019 = vmatprep.subr.mxu0 0.0
    %4020 = vmatpush1.msra.mxu0 0.0
    %4021 = vmatprep.subr.mxu0 0.0
    %4022 = vmatpush1.msra.mxu0 0.0
    %4023 = vmatprep.subr.mxu0 0.0
    %4024 = vmatpush1.msra.mxu0 0.0
    %4025 = vmatprep.subr.mxu0 0.0
    %4026 = vmatpush1.msra.mxu0 0.0
    %4027 = vmatprep.subr.mxu0 0.0
    %4028 = vmatpush1.msra.mxu0 0.0
    %4029 = vmatprep.subr.mxu0 0.0
    %4030 = vmatpush1.msra.mxu0 0.0
    %4031 = vmatprep.subr.mxu0 0.0
    %4032 = vmatpush1.msra.mxu0 %v3498
    %4033 = vmatprep.subr.mxu0 0.0
    %4034 = vmatpush1.msra.mxu0 %v3497
    %4035 = vmatprep.subr.mxu0 0.0
    %4036 = vmatpush2.msra.mxu0 0.0
    %4037 = vmatprep.subr.mxu0 0.0
    %4038 = vmatpush2.msra.mxu0 0.0
    %4039 = vmatprep.subr.mxu0 0.0
    %4040 = vmatpush2.msra.mxu0 0.0
    %4041 = vmatprep.subr.mxu0 0.0
    %4042 = vmatpush2.msra.mxu0 0.0
    %4043 = vmatprep.subr.mxu0 0.0
    %4044 = vmatpush2.msra.mxu0 0.0
    %4045 = vmatprep.subr.mxu0 0.0
    %4046 = vmatpush2.msra.mxu0 0.0
    %4047 = vmatprep.subr.mxu0 0.0
    %4048 = vmatpush2.msra.mxu0 0.0
    %4049 = vmatprep.subr.mxu0 0.0
    %4050 = vmatpush2.msra.mxu0 0.0
    %4051 = vmatprep.subr.mxu0 0.0
    %4052 = vmatpush2.msra.mxu0 0.0
    %4053 = vmatprep.subr.mxu0 0.0
    %4054 = vmatpush2.msra.mxu0 0.0
    %4055 = vmatprep.subr.mxu0 0.0
    %4056 = vmatpush2.msra.mxu0 0.0
    %4057 = vmatprep.subr.mxu0 0.0
    %4058 = vmatpush2.msra.mxu0 0.0
    %4059 = vmatprep.subr.mxu0 0.0
    %4060 = vmatpush2.msra.mxu0 0.0
    %4061 = vmatprep.subr.mxu0 0.0
    %4062 = vmatpush2.msra.mxu0 0.0
    %4063 = vmatprep.subr.mxu0 0.0
    %4064 = vmatpush2.msra.mxu0 0.0
    %4065 = vmatprep.subr.mxu0 0.0
    %4066 = vmatpush2.msra.mxu0 0.0
    %4067 = vmatprep.mubr.f32.mxu0 0.0
    %4068 = vmatmul.mubr.f32.gmra.mxu0 %v3998
    %v4069 = vpop.f32.mrf.mxu0
    %v4070 = vadd.f32 0.0, %v4069
    %v4071 = vpop.f32.mrf.mxu0
    %4072 = vmatprep.mubr.f32.mxu0 0.0
    %4073 = vmatmul.mubr.f32.gmra.mxu0 %v4001
    %v4074 = vpop.f32.mrf.mxu0
    %v4075 = vadd.f32 0.0, %v4074
    %v4076 = vpop.f32.mrf.mxu0
    %4077 = vdwg.mxu0
    %v4078 = vadd.f32 %v3791, %v4070
    %v4079 = vadd.f32 %v3792, %v4075
    %v4080 = vadd.f32 %v2857, %v4078
    %v4081 = vadd.f32 %v2858, %v4079
    %s4082 = scalar_lea.vmem %s9, 2
    %v4083 = vld [vmem:[%s4082] sm:$0x1]
    %s4084 = scalar_lea.vmem %s10, 2
    %v4085 = vld [vmem:[%s4084] sm:$0x1]
    %v4086 = vsel %vm160, %v4080, 0.0
    %4087 = vadd.xlane.f32.xlu0 %v4086
    %v4088 = vpop.xlane.xlu0 %4087
    %v4089 = vsel %vm160, %v4081, 0.0
    %4090 = vadd.xlane.f32.xlu0 %v4089
    %v4091 = vpop.xlane.xlu0 %4090
    %v4092 = vmul.f32 %v4088, %v663
    %v4093 = vmul.f32 %v4091, %v663
    %v4094 = vsub.f32 %v4080, %v4092
    %v4095 = vsub.f32 %v4081, %v4093
    %v4096 = vmul.f32 %v4094, %v4094
    %v4097 = vmul.f32 %v4095, %v4095
    %v4098 = vsel %vm160, %v4096, 0.0
    %4099 = vadd.xlane.f32.xlu0 %v4098
    %v4100 = vpop.xlane.xlu0 %4099
    %v4101 = vsel %vm160, %v4097, 0.0
    %4102 = vadd.xlane.f32.xlu0 %v4101
    %v4103 = vpop.xlane.xlu0 %4102
    %v4104 = vmul.f32 %v4100, %v663
    %v4105 = vmul.f32 %v4103, %v663
    %v4106 = vadd.f32 %v4104, 1e-05
    %v4107 = vadd.f32 %v4105, 1e-05
    %v4108 = vrsqrt.pop %v4106
    %v4109 = vrsqrt.pop %v4107
    %v4110 = vmul.f32 %v4094, %v4108
    %v4111 = vmul.f32 %v4095, %v4109
    %v4113 = vlaneseq
    %v4114 = vshrl.u32 %v4113, 7
    %v4115 = vsub.s32 0, %v4114
    %v4116 = vrot.slane %v4083, %v4115
    %v4118 = vmul.f32 %v4110, %v4116
    %v4119 = vmul.f32 %v4111, %v4116
    %v4121 = vlaneseq
    %v4122 = vshrl.u32 %v4121, 7
    %v4123 = vsub.s32 0, %v4122
    %v4124 = vrot.slane %v4085, %v4123
    %v4126 = vadd.f32 %v4118, %v4124
    %v4127 = vadd.f32 %v4119, %v4124
    %s4128 = scalar_lea.vmem %s11, 64
    %v4129 = vld [vmem:[%s4128] sm:$0xff]
    %v4130 = vld [vmem:[%s4128 + $0x8] sm:$0xff]
    %v4131 = vld [vmem:[%s4128 + $0x10] sm:$0xff]
    %v4132 = vld [vmem:[%s4128 + $0x18] sm:$0xff]
    %s4133 = scalar_lea.vmem %s12, 2
    %v4134 = vld [vmem:[%s4133] sm:$0x1]
    %v4136 = vlaneseq
    %v4137 = vshrl.u32 %v4136, 7
    %v4138 = vsub.s32 0, %v4137
    %v4139 = vrot.slane %v4134, %v4138
    %v4142 = vsel %vm160, %v4126, 0
    %v4145 = vsel %vm160, %v4127, 0
    %4147 = vmatprep.subr.mxu0 0.0
    %4148 = vmatpush1.msra.mxu0 0.0
    %4149 = vmatprep.subr.mxu0 0.0
    %4150 = vmatpush1.msra.mxu0 0.0
    %4151 = vmatprep.subr.mxu0 0.0
    %4152 = vmatpush1.msra.mxu0 0.0
    %4153 = vmatprep.subr.mxu0 0.0
    %4154 = vmatpush1.msra.mxu0 0.0
    %4155 = vmatprep.subr.mxu0 0.0
    %4156 = vmatpush1.msra.mxu0 0.0
    %4157 = vmatprep.subr.mxu0 0.0
    %4158 = vmatpush1.msra.mxu0 0.0
    %4159 = vmatprep.subr.mxu0 0.0
    %4160 = vmatpush1.msra.mxu0 0.0
    %4161 = vmatprep.subr.mxu0 0.0
    %4162 = vmatpush1.msra.mxu0 0.0
    %4163 = vmatprep.subr.mxu0 0.0
    %4164 = vmatpush1.msra.mxu0 0.0
    %4165 = vmatprep.subr.mxu0 0.0
    %4166 = vmatpush1.msra.mxu0 0.0
    %4167 = vmatprep.subr.mxu0 0.0
    %4168 = vmatpush1.msra.mxu0 0.0
    %4169 = vmatprep.subr.mxu0 0.0
    %4170 = vmatpush1.msra.mxu0 0.0
    %4171 = vmatprep.subr.mxu0 0.0
    %4172 = vmatpush1.msra.mxu0 %v4132
    %4173 = vmatprep.subr.mxu0 0.0
    %4174 = vmatpush1.msra.mxu0 %v4131
    %4175 = vmatprep.subr.mxu0 0.0
    %4176 = vmatpush1.msra.mxu0 %v4130
    %4177 = vmatprep.subr.mxu0 0.0
    %4178 = vmatpush1.msra.mxu0 %v4129
    %4179 = vmatprep.subr.mxu0 0.0
    %4180 = vmatpush2.msra.mxu0 0.0
    %4181 = vmatprep.subr.mxu0 0.0
    %4182 = vmatpush2.msra.mxu0 0.0
    %4183 = vmatprep.subr.mxu0 0.0
    %4184 = vmatpush2.msra.mxu0 0.0
    %4185 = vmatprep.subr.mxu0 0.0
    %4186 = vmatpush2.msra.mxu0 0.0
    %4187 = vmatprep.subr.mxu0 0.0
    %4188 = vmatpush2.msra.mxu0 0.0
    %4189 = vmatprep.subr.mxu0 0.0
    %4190 = vmatpush2.msra.mxu0 0.0
    %4191 = vmatprep.subr.mxu0 0.0
    %4192 = vmatpush2.msra.mxu0 0.0
    %4193 = vmatprep.subr.mxu0 0.0
    %4194 = vmatpush2.msra.mxu0 0.0
    %4195 = vmatprep.subr.mxu0 0.0
    %4196 = vmatpush2.msra.mxu0 0.0
    %4197 = vmatprep.subr.mxu0 0.0
    %4198 = vmatpush2.msra.mxu0 0.0
    %4199 = vmatprep.subr.mxu0 0.0
    %4200 = vmatpush2.msra.mxu0 0.0
    %4201 = vmatprep.subr.mxu0 0.0
    %4202 = vmatpush2.msra.mxu0 0.0
    %4203 = vmatprep.subr.mxu0 0.0
    %4204 = vmatpush2.msra.mxu0 0.0
    %4205 = vmatprep.subr.mxu0 0.0
    %4206 = vmatpush2.msra.mxu0 0.0
    %4207 = vmatprep.subr.mxu0 0.0
    %4208 = vmatpush2.msra.mxu0 0.0
    %4209 = vmatprep.subr.mxu0 0.0
    %4210 = vmatpush2.msra.mxu0 0.0
    %4211 = vmatprep.mubr.f32.mxu0 0.0
    %4212 = vmatmul.mubr.f32.gmra.mxu0 %v4142
    %v4213 = vpop.f32.mrf.mxu0
    %v4214 = vadd.f32 %v4139, %v4213
    %v4215 = vpop.f32.mrf.mxu0
    %4216 = vmatprep.mubr.f32.mxu0 0.0
    %4217 = vmatmul.mubr.f32.gmra.mxu0 %v4145
    %v4218 = vpop.f32.mrf.mxu0
    %v4219 = vadd.f32 %v4139, %v4218
    %v4220 = vpop.f32.mrf.mxu0
    %4221 = vdwg.mxu0
    %v4222 = vmul.f32 %v4214, 0.5
    %v4223 = vmul.f32 %v4219, 0.5
    %v4224 = vmul.f32 %v4214, 0.70710677
    %v4225 = vmul.f32 %v4219, 0.70710677
    %vm4226 = vcmp.ge.f32.partialorder %v4224, 0.0
    %vm4227 = vcmp.ge.f32.partialorder %v4225, 0.0
    %v4228 = vsel %vm4226, 1.0, -1.0
    %v4229 = vsel %vm4227, 1.0, -1.0
    %v4230 = vand.u32 2147483647, %v4224
    %v4231 = vand.u32 2147483647, %v4225
    %v4232 = vmul.f32 %v4230, 0.3275911
    %v4233 = vmul.f32 %v4231, 0.3275911
    %v4234 = vadd.f32 %v4232, 1.0
    %v4235 = vadd.f32 %v4233, 1.0
    %v4236 = vrcp.pop %v4234
    %v4237 = vmul.f32 1.0, %v4236
    %v4238 = vrcp.pop %v4235
    %v4239 = vmul.f32 1.0, %v4238
    %v4240 = vmul.f32 %v4237, 1.0614054
    %v4241 = vmul.f32 %v4239, 1.0614054
    %v4242 = vadd.f32 %v4240, -1.4531521
    %v4243 = vadd.f32 %v4241, -1.4531521
    %v4244 = vmul.f32 %v4242, %v4237
    %v4245 = vmul.f32 %v4243, %v4239
    %v4246 = vadd.f32 %v4244, 1.4214138
    %v4247 = vadd.f32 %v4245, 1.4214138
    %v4248 = vmul.f32 %v4246, %v4237
    %v4249 = vmul.f32 %v4247, %v4239
    %v4250 = vadd.f32 %v4248, -0.28449672
    %v4251 = vadd.f32 %v4249, -0.28449672
    %v4252 = vmul.f32 %v4250, %v4237
    %v4253 = vmul.f32 %v4251, %v4239
    %v4254 = vadd.f32 %v4252, 0.2548296
    %v4255 = vadd.f32 %v4253, 0.2548296
    %v4256 = vmul.f32 %v4254, %v4237
    %v4257 = vmul.f32 %v4255, %v4239
    %v4258 = vsub.f32 0.0, %v4230
    %v4259 = vsub.f32 0.0, %v4231
    %v4260 = vmul.f32 %v4258, %v4230
    %v4261 = vmul.f32 %v4259, %v4231
    %v4262 = vmul.f32 %v4260, 1.442695
    %v4263 = vpow.pop %v4262
    %v4264 = vmul.f32 %v4261, 1.442695
    %v4265 = vpow.pop %v4264
    %v4266 = vmul.f32 %v4256, %v4263
    %v4267 = vmul.f32 %v4257, %v4265
    %v4268 = vsub.f32 1.0, %v4266
    %v4269 = vsub.f32 1.0, %v4267
    %v4270 = vmul.f32 %v4228, %v4268
    %v4271 = vmul.f32 %v4229, %v4269
    %v4272 = vadd.f32 %v4270, 1.0
    %v4273 = vadd.f32 %v4271, 1.0
    %v4274 = vmul.f32 %v4222, %v4272
    %v4275 = vmul.f32 %v4223, %v4273
    %s4276 = scalar_lea.vmem %s13, 256
    %v4277 = vld [vmem:[%s4276] sm:$0xff]
    %v4278 = vld [vmem:[%s4276 + $0x8] sm:$0xff]
    %v4279 = vld [vmem:[%s4276 + $0x10] sm:$0xff]
    %v4280 = vld [vmem:[%s4276 + $0x18] sm:$0xff]
    %v4281 = vld [vmem:[%s4276 + $0x20] sm:$0xff]
    %v4282 = vld [vmem:[%s4276 + $0x28] sm:$0xff]
    %v4283 = vld [vmem:[%s4276 + $0x30] sm:$0xff]
    %v4284 = vld [vmem:[%s4276 + $0x38] sm:$0xff]
    %v4285 = vld [vmem:[%s4276 + $0x40] sm:$0xff]
    %v4286 = vld [vmem:[%s4276 + $0x48] sm:$0xff]
    %v4287 = vld [vmem:[%s4276 + $0x50] sm:$0xff]
    %v4288 = vld [vmem:[%s4276 + $0x58] sm:$0xff]
    %v4289 = vld [vmem:[%s4276 + $0x60] sm:$0xff]
    %v4290 = vld [vmem:[%s4276 + $0x68] sm:$0xff]
    %v4291 = vld [vmem:[%s4276 + $0x70] sm:$0xff]
    %v4292 = vld [vmem:[%s4276 + $0x78] sm:$0xff]
    %s4293 = scalar_lea.vmem %s14, 2
    %v4294 = vld [vmem:[%s4293] sm:$0x1]
    %v4296 = vlaneseq
    %v4297 = vshrl.u32 %v4296, 7
    %v4298 = vsub.s32 0, %v4297
    %v4299 = vrot.slane %v4294, %v4298
    %4301 = vmatprep.subr.mxu0 0.0
    %4302 = vmatpush1.msra.mxu0 %v4292
    %4303 = vmatprep.subr.mxu0 0.0
    %4304 = vmatpush1.msra.mxu0 %v4291
    %4305 = vmatprep.subr.mxu0 0.0
    %4306 = vmatpush1.msra.mxu0 %v4290
    %4307 = vmatprep.subr.mxu0 0.0
    %4308 = vmatpush1.msra.mxu0 %v4289
    %4309 = vmatprep.subr.mxu0 0.0
    %4310 = vmatpush1.msra.mxu0 %v4288
    %4311 = vmatprep.subr.mxu0 0.0
    %4312 = vmatpush1.msra.mxu0 %v4287
    %4313 = vmatprep.subr.mxu0 0.0
    %4314 = vmatpush1.msra.mxu0 %v4286
    %4315 = vmatprep.subr.mxu0 0.0
    %4316 = vmatpush1.msra.mxu0 %v4285
    %4317 = vmatprep.subr.mxu0 0.0
    %4318 = vmatpush1.msra.mxu0 %v4284
    %4319 = vmatprep.subr.mxu0 0.0
    %4320 = vmatpush1.msra.mxu0 %v4283
    %4321 = vmatprep.subr.mxu0 0.0
    %4322 = vmatpush1.msra.mxu0 %v4282
    %4323 = vmatprep.subr.mxu0 0.0
    %4324 = vmatpush1.msra.mxu0 %v4281
    %4325 = vmatprep.subr.mxu0 0.0
    %4326 = vmatpush1.msra.mxu0 %v4280
    %4327 = vmatprep.subr.mxu0 0.0
    %4328 = vmatpush1.msra.mxu0 %v4279
    %4329 = vmatprep.subr.mxu0 0.0
    %4330 = vmatpush1.msra.mxu0 %v4278
    %4331 = vmatprep.subr.mxu0 0.0
    %4332 = vmatpush1.msra.mxu0 %v4277
    %4333 = vmatprep.subr.mxu0 0.0
    %4334 = vmatpush2.msra.mxu0 0.0
    %4335 = vmatprep.subr.mxu0 0.0
    %4336 = vmatpush2.msra.mxu0 0.0
    %4337 = vmatprep.subr.mxu0 0.0
    %4338 = vmatpush2.msra.mxu0 0.0
    %4339 = vmatprep.subr.mxu0 0.0
    %4340 = vmatpush2.msra.mxu0 0.0
    %4341 = vmatprep.subr.mxu0 0.0
    %4342 = vmatpush2.msra.mxu0 0.0
    %4343 = vmatprep.subr.mxu0 0.0
    %4344 = vmatpush2.msra.mxu0 0.0
    %4345 = vmatprep.subr.mxu0 0.0
    %4346 = vmatpush2.msra.mxu0 0.0
    %4347 = vmatprep.subr.mxu0 0.0
    %4348 = vmatpush2.msra.mxu0 0.0
    %4349 = vmatprep.subr.mxu0 0.0
    %4350 = vmatpush2.msra.mxu0 0.0
    %4351 = vmatprep.subr.mxu0 0.0
    %4352 = vmatpush2.msra.mxu0 0.0
    %4353 = vmatprep.subr.mxu0 0.0
    %4354 = vmatpush2.msra.mxu0 0.0
    %4355 = vmatprep.subr.mxu0 0.0
    %4356 = vmatpush2.msra.mxu0 0.0
    %4357 = vmatprep.subr.mxu0 0.0
    %4358 = vmatpush2.msra.mxu0 0.0
    %4359 = vmatprep.subr.mxu0 0.0
    %4360 = vmatpush2.msra.mxu0 0.0
    %4361 = vmatprep.subr.mxu0 0.0
    %4362 = vmatpush2.msra.mxu0 0.0
    %4363 = vmatprep.subr.mxu0 0.0
    %4364 = vmatpush2.msra.mxu0 0.0
    %4365 = vmatprep.mubr.f32.mxu0 0.0
    %4366 = vmatmul.mubr.f32.gmra.mxu0 %v4274
    %v4367 = vpop.f32.mrf.mxu0
    %v4368 = vadd.f32 %v4299, %v4367
    %v4369 = vpop.f32.mrf.mxu0
    %4370 = vmatprep.mubr.f32.mxu0 0.0
    %4371 = vmatmul.mubr.f32.gmra.mxu0 %v4275
    %v4372 = vpop.f32.mrf.mxu0
    %v4373 = vadd.f32 %v4299, %v4372
    %v4374 = vpop.f32.mrf.mxu0
    %4375 = vdwg.mxu0
    %v4376 = vadd.f32 %v4080, %v4368
    %v4377 = vadd.f32 %v4081, %v4373
    %v4379 = vsel %vm1675, %v3353, 0
    %4381 = vmatprep.subr.mxu0 0.0
    %4382 = vmatpush1.msra.mxu0 0.0
    %4383 = vmatprep.subr.mxu0 0.0
    %4384 = vmatpush1.msra.mxu0 0.0
    %4385 = vmatprep.subr.mxu0 0.0
    %4386 = vmatpush1.msra.mxu0 0.0
    %4387 = vmatprep.subr.mxu0 0.0
    %4388 = vmatpush1.msra.mxu0 0.0
    %4389 = vmatprep.subr.mxu0 0.0
    %4390 = vmatpush1.msra.mxu0 0.0
    %4391 = vmatprep.subr.mxu0 0.0
    %4392 = vmatpush1.msra.mxu0 0.0
    %4393 = vmatprep.subr.mxu0 0.0
    %4394 = vmatpush1.msra.mxu0 0.0
    %4395 = vmatprep.subr.mxu0 0.0
    %4396 = vmatpush1.msra.mxu0 0.0
    %4397 = vmatprep.subr.mxu0 0.0
    %4398 = vmatpush1.msra.mxu0 0.0
    %4399 = vmatprep.subr.mxu0 0.0
    %4400 = vmatpush1.msra.mxu0 0.0
    %4401 = vmatprep.subr.mxu0 0.0
    %4402 = vmatpush1.msra.mxu0 0.0
    %4403 = vmatprep.subr.mxu0 0.0
    %4404 = vmatpush1.msra.mxu0 0.0
    %4405 = vmatprep.subr.mxu0 0.0
    %4406 = vmatpush1.msra.mxu0 0.0
    %4407 = vmatprep.subr.mxu0 0.0
    %4408 = vmatpush1.msra.mxu0 0.0
    %4409 = vmatprep.subr.mxu0 0.0
    %4410 = vmatpush1.msra.mxu0 0.0
    %4411 = vmatprep.subr.mxu0 0.0
    %4412 = vmatpush1.msra.mxu0 %v4379
    %4413 = vmatprep.subr.mxu0 0.0
    %4414 = vmatpush2.msra.mxu0 0.0
    %4415 = vmatprep.subr.mxu0 0.0
    %4416 = vmatpush2.msra.mxu0 0.0
    %4417 = vmatprep.subr.mxu0 0.0
    %4418 = vmatpush2.msra.mxu0 0.0
    %4419 = vmatprep.subr.mxu0 0.0
    %4420 = vmatpush2.msra.mxu0 0.0
    %4421 = vmatprep.subr.mxu0 0.0
    %4422 = vmatpush2.msra.mxu0 0.0
    %4423 = vmatprep.subr.mxu0 0.0
    %4424 = vmatpush2.msra.mxu0 0.0
    %4425 = vmatprep.subr.mxu0 0.0
    %4426 = vmatpush2.msra.mxu0 0.0
    %4427 = vmatprep.subr.mxu0 0.0
    %4428 = vmatpush2.msra.mxu0 0.0
    %4429 = vmatprep.subr.mxu0 0.0
    %4430 = vmatpush2.msra.mxu0 0.0
    %4431 = vmatprep.subr.mxu0 0.0
    %4432 = vmatpush2.msra.mxu0 0.0
    %4433 = vmatprep.subr.mxu0 0.0
    %4434 = vmatpush2.msra.mxu0 0.0
    %4435 = vmatprep.subr.mxu0 0.0
    %4436 = vmatpush2.msra.mxu0 0.0
    %4437 = vmatprep.subr.mxu0 0.0
    %4438 = vmatpush2.msra.mxu0 0.0
    %4439 = vmatprep.subr.mxu0 0.0
    %4440 = vmatpush2.msra.mxu0 0.0
    %4441 = vmatprep.subr.mxu0 0.0
    %4442 = vmatpush2.msra.mxu0 0.0
    %4443 = vmatprep.subr.mxu0 0.0
    %4444 = vmatpush2.msra.mxu0 0.0
    %4445 = vmatprep.mubr.f32.mxu0 0.0
    %4446 = vmatmul.mubr.f32.gmra.mxu0 %v1670
    %v4447 = vpop.f32.mrf.mxu0
    %v4448 = vadd.f32 0.0, %v4447
    %v4449 = vpop.f32.mrf.mxu0
    %4450 = vmatprep.mubr.f32.mxu0 0.0
    %4451 = vmatmul.mubr.f32.gmra.mxu0 %v1673
    %v4452 = vpop.f32.mrf.mxu0
    %v4453 = vadd.f32 0.0, %v4452
    %v4454 = vpop.f32.mrf.mxu0
    %4455 = vdwg.mxu0
    %4457 = vset.pattern.permute.xlu0 0
    %4458 = vperm.xlu0 %4457, %v4448
    %v4459 = vpop.permute.xlu0 %4458
    %4462 = vset.pattern.permute.xlu0 0
    %4463 = vperm.xlu0 %4462, %v4453
    %v4464 = vpop.permute.xlu0 %4463
    %v4466 = vmul.f32 %v4376, %v4459
    %v4467 = vmul.f32 %v4377, %v4464
    %v4468 = vadd.f32 %v4466, 0.0
    %v4469 = vadd.f32 %v4467, 0.0
    %s4470 = scalar_lea.vmem %s3, 3
    %v4471 = vld [vmem:[%s4470] sm:$0x1]
    %s4472 = scalar_lea.vmem %s4, 3
    %v4473 = vld [vmem:[%s4472] sm:$0x1]
    %v4475 = vlaneseq
    %v4476 = vshrl.u32 %v4475, 7
    %v4477 = vsub.s32 0, %v4476
    %v4478 = vrot.slane %v4471, %v4477
    %v4480 = vmul.f32 %v3382, %v4478
    %v4481 = vmul.f32 %v3383, %v4478
    %v4483 = vlaneseq
    %v4484 = vshrl.u32 %v4483, 7
    %v4485 = vsub.s32 0, %v4484
    %v4486 = vrot.slane %v4473, %v4485
    %v4488 = vadd.f32 %v4480, %v4486
    %v4489 = vadd.f32 %v4481, %v4486
    %s4490 = scalar_lea.vmem %s5, 96
    %v4491 = vld [vmem:[%s4490] sm:$0xff]
    %v4492 = vld [vmem:[%s4490 + $0x8] sm:$0xff]
    %v4493 = vld [vmem:[%s4490 + $0x10] sm:$0xff]
    %v4494 = vld [vmem:[%s4490 + $0x18] sm:$0xff]
    %s4495 = scalar_lea.vmem %s6, 3
    %v4496 = vld [vmem:[%s4495] sm:$0x1]
    %v4498 = vlaneseq
    %v4499 = vshrl.u32 %v4498, 7
    %v4500 = vsub.s32 0, %v4499
    %v4501 = vrot.slane %v4496, %v4500
    %v4504 = vsel %vm160, %v4488, 0
    %v4507 = vsel %vm160, %v4489, 0
    %4509 = vmatprep.subr.mxu0 0.0
    %4510 = vmatpush1.msra.mxu0 0.0
    %4511 = vmatprep.subr.mxu0 0.0
    %4512 = vmatpush1.msra.mxu0 0.0
    %4513 = vmatprep.subr.mxu0 0.0
    %4514 = vmatpush1.msra.mxu0 0.0
    %4515 = vmatprep.subr.mxu0 0.0
    %4516 = vmatpush1.msra.mxu0 0.0
    %4517 = vmatprep.subr.mxu0 0.0
    %4518 = vmatpush1.msra.mxu0 0.0
    %4519 = vmatprep.subr.mxu0 0.0
    %4520 = vmatpush1.msra.mxu0 0.0
    %4521 = vmatprep.subr.mxu0 0.0
    %4522 = vmatpush1.msra.mxu0 0.0
    %4523 = vmatprep.subr.mxu0 0.0
    %4524 = vmatpush1.msra.mxu0 0.0
    %4525 = vmatprep.subr.mxu0 0.0
    %4526 = vmatpush1.msra.mxu0 0.0
    %4527 = vmatprep.subr.mxu0 0.0
    %4528 = vmatpush1.msra.mxu0 0.0
    %4529 = vmatprep.subr.mxu0 0.0
    %4530 = vmatpush1.msra.mxu0 0.0
    %4531 = vmatprep.subr.mxu0 0.0
    %4532 = vmatpush1.msra.mxu0 0.0
    %4533 = vmatprep.subr.mxu0 0.0
    %4534 = vmatpush1.msra.mxu0 %v4494
    %4535 = vmatprep.subr.mxu0 0.0
    %4536 = vmatpush1.msra.mxu0 %v4493
    %4537 = vmatprep.subr.mxu0 0.0
    %4538 = vmatpush1.msra.mxu0 %v4492
    %4539 = vmatprep.subr.mxu0 0.0
    %4540 = vmatpush1.msra.mxu0 %v4491
    %4541 = vmatprep.subr.mxu0 0.0
    %4542 = vmatpush2.msra.mxu0 0.0
    %4543 = vmatprep.subr.mxu0 0.0
    %4544 = vmatpush2.msra.mxu0 0.0
    %4545 = vmatprep.subr.mxu0 0.0
    %4546 = vmatpush2.msra.mxu0 0.0
    %4547 = vmatprep.subr.mxu0 0.0
    %4548 = vmatpush2.msra.mxu0 0.0
    %4549 = vmatprep.subr.mxu0 0.0
    %4550 = vmatpush2.msra.mxu0 0.0
    %4551 = vmatprep.subr.mxu0 0.0
    %4552 = vmatpush2.msra.mxu0 0.0
    %4553 = vmatprep.subr.mxu0 0.0
    %4554 = vmatpush2.msra.mxu0 0.0
    %4555 = vmatprep.subr.mxu0 0.0
    %4556 = vmatpush2.msra.mxu0 0.0
    %4557 = vmatprep.subr.mxu0 0.0
    %4558 = vmatpush2.msra.mxu0 0.0
    %4559 = vmatprep.subr.mxu0 0.0
    %4560 = vmatpush2.msra.mxu0 0.0
    %4561 = vmatprep.subr.mxu0 0.0
    %4562 = vmatpush2.msra.mxu0 0.0
    %4563 = vmatprep.subr.mxu0 0.0
    %4564 = vmatpush2.msra.mxu0 0.0
    %4565 = vmatprep.subr.mxu0 0.0
    %4566 = vmatpush2.msra.mxu0 0.0
    %4567 = vmatprep.subr.mxu0 0.0
    %4568 = vmatpush2.msra.mxu0 0.0
    %4569 = vmatprep.subr.mxu0 0.0
    %4570 = vmatpush2.msra.mxu0 0.0
    %4571 = vmatprep.subr.mxu0 0.0
    %4572 = vmatpush2.msra.mxu0 0.0
    %4573 = vmatprep.mubr.f32.mxu0 0.0
    %4574 = vmatmul.mubr.f32.gmra.mxu0 %v4504
    %v4575 = vpop.f32.mrf.mxu0
    %v4576 = vadd.f32 %v4501, %v4575
    %v4577 = vpop.f32.mrf.mxu0
    %4578 = vmatprep.mubr.f32.mxu0 0.0
    %4579 = vmatmul.mubr.f32.gmra.mxu0 %v4507
    %v4580 = vpop.f32.mrf.mxu0
    %v4581 = vadd.f32 %v4501, %v4580
    %v4582 = vpop.f32.mrf.mxu0
    %4583 = vdwg.mxu0
    %s4584 = scalar_lea.vmem %s7, 96
    %v4585 = vld [vmem:[%s4584] sm:$0xff]
    %v4586 = vld [vmem:[%s4584 + $0x8] sm:$0xff]
    %v4587 = vld [vmem:[%s4584 + $0x10] sm:$0xff]
    %v4588 = vld [vmem:[%s4584 + $0x18] sm:$0xff]
    %s4589 = scalar_lea.vmem %s8, 3
    %v4590 = vld [vmem:[%s4589] sm:$0x1]
    %v4592 = vlaneseq
    %v4593 = vshrl.u32 %v4592, 7
    %v4594 = vsub.s32 0, %v4593
    %v4595 = vrot.slane %v4590, %v4594
    %v4597 = vadd.f32 %v4595, 0.0
    %4600 = vrot.lane.b32.xlu0 %v4576, 96
    %v4601 = vpop.permute.xlu0 %4600
    %4602 = vrot.lane.b32.xlu0 %v4581, 96
    %v4603 = vpop.permute.xlu0 %4602
    %v4604 = vsel %vm211, %v4576, 0
    %v4606 = vsel %vm211, %v4581, 0
    %v4608 = vsel %vm211, %v4601, 0
    %v4610 = vsel %vm211, %v4603, 0
    %4612 = vmatprep.subr.mxu0 0.0
    %4613 = vmatpush1.xpose.msra.mxu0 0.0
    %4614 = vmatprep.subr.mxu0 0.0
    %4615 = vmatpush1.xpose.msra.mxu0 0.0
    %4616 = vmatprep.subr.mxu0 0.0
    %4617 = vmatpush1.xpose.msra.mxu0 0.0
    %4618 = vmatprep.subr.mxu0 0.0
    %4619 = vmatpush1.xpose.msra.mxu0 0.0
    %4620 = vmatprep.subr.mxu0 0.0
    %4621 = vmatpush1.xpose.msra.mxu0 0.0
    %4622 = vmatprep.subr.mxu0 0.0
    %4623 = vmatpush1.xpose.msra.mxu0 0.0
    %4624 = vmatprep.subr.mxu0 0.0
    %4625 = vmatpush1.xpose.msra.mxu0 0.0
    %4626 = vmatprep.subr.mxu0 0.0
    %4627 = vmatpush1.xpose.msra.mxu0 0.0
    %4628 = vmatprep.subr.mxu0 0.0
    %4629 = vmatpush1.xpose.msra.mxu0 0.0
    %4630 = vmatprep.subr.mxu0 0.0
    %4631 = vmatpush1.xpose.msra.mxu0 0.0
    %4632 = vmatprep.subr.mxu0 0.0
    %4633 = vmatpush1.xpose.msra.mxu0 0.0
    %4634 = vmatprep.subr.mxu0 0.0
    %4635 = vmatpush1.xpose.msra.mxu0 0.0
    %4636 = vmatprep.subr.mxu0 0.0
    %4637 = vmatpush1.xpose.msra.mxu0 0.0
    %4638 = vmatprep.subr.mxu0 0.0
    %4639 = vmatpush1.xpose.msra.mxu0 0.0
    %4640 = vmatprep.subr.mxu0 0.0
    %4641 = vmatpush1.xpose.msra.mxu0 %v4610
    %4642 = vmatprep.subr.mxu0 0.0
    %4643 = vmatpush1.xpose.msra.mxu0 %v4608
    %4644 = vmatprep.subr.mxu0 0.0
    %4645 = vmatpush2.xpose.msra.mxu0 0.0
    %4646 = vmatprep.subr.mxu0 0.0
    %4647 = vmatpush2.xpose.msra.mxu0 0.0
    %4648 = vmatprep.subr.mxu0 0.0
    %4649 = vmatpush2.xpose.msra.mxu0 0.0
    %4650 = vmatprep.subr.mxu0 0.0
    %4651 = vmatpush2.xpose.msra.mxu0 0.0
    %4652 = vmatprep.subr.mxu0 0.0
    %4653 = vmatpush2.xpose.msra.mxu0 0.0
    %4654 = vmatprep.subr.mxu0 0.0
    %4655 = vmatpush2.xpose.msra.mxu0 0.0
    %4656 = vmatprep.subr.mxu0 0.0
    %4657 = vmatpush2.xpose.msra.mxu0 0.0
    %4658 = vmatprep.subr.mxu0 0.0
    %4659 = vmatpush2.xpose.msra.mxu0 0.0
    %4660 = vmatprep.subr.mxu0 0.0
    %4661 = vmatpush2.xpose.msra.mxu0 0.0
    %4662 = vmatprep.subr.mxu0 0.0
    %4663 = vmatpush2.xpose.msra.mxu0 0.0
    %4664 = vmatprep.subr.mxu0 0.0
    %4665 = vmatpush2.xpose.msra.mxu0 0.0
    %4666 = vmatprep.subr.mxu0 0.0
    %4667 = vmatpush2.xpose.msra.mxu0 0.0
    %4668 = vmatprep.subr.mxu0 0.0
    %4669 = vmatpush2.xpose.msra.mxu0 0.0
    %4670 = vmatprep.subr.mxu0 0.0
    %4671 = vmatpush2.xpose.msra.mxu0 0.0
    %4672 = vmatprep.subr.mxu0 0.0
    %4673 = vmatpush2.xpose.msra.mxu0 0.0
    %4674 = vmatprep.subr.mxu0 0.0
    %4675 = vmatpush2.xpose.msra.mxu0 0.0
    %4676 = vmatprep.mubr.f32.mxu0 0.0
    %4677 = vmatmul.mubr.f32.gmra.mxu0 %v4604
    %v4678 = vpop.f32.mrf.mxu0
    %v4679 = vadd.f32 0.0, %v4678
    %v4680 = vpop.f32.mrf.mxu0
    %4681 = vmatprep.mubr.f32.mxu0 0.0
    %4682 = vmatmul.mubr.f32.gmra.mxu0 %v4606
    %v4683 = vpop.f32.mrf.mxu0
    %v4684 = vadd.f32 0.0, %v4683
    %v4685 = vpop.f32.mrf.mxu0
    %4686 = vdwg.mxu0
    %v4687 = vmul.f32 %v4679, 0.25
    %v4688 = vmul.f32 %v4684, 0.25
    %v4689 = vadd.f32 %v4687, %v86
    %v4690 = vadd.f32 %v4688, %v87
    %v4691 = vsel %vm211, %v4689, -inf
    %4692 = vmax.xlane.f32.xlu0 %v4691
    %v4693 = vpop.xlane.xlu0 %4692
    %v4694 = vsel %vm211, %v4690, -inf
    %4695 = vmax.xlane.f32.xlu0 %v4694
    %v4696 = vpop.xlane.xlu0 %4695
    %v4697 = vsub.f32 %v4689, %v4693
    %v4698 = vsub.f32 %v4690, %v4696
    %v4699 = vmul.f32 %v4697, 1.442695
    %v4700 = vpow.pop %v4699
    %v4701 = vmul.f32 %v4698, 1.442695
    %v4702 = vpow.pop %v4701
    %v4703 = vsel %vm211, %v4700, 0.0
    %4704 = vadd.xlane.f32.xlu0 %v4703
    %v4705 = vpop.xlane.xlu0 %4704
    %v4706 = vsel %vm211, %v4702, 0.0
    %4707 = vadd.xlane.f32.xlu0 %v4706
    %v4708 = vpop.xlane.xlu0 %4707
    %v4709 = vrcp.pop %v4705
    %v4710 = vrcp.pop %v4708
    %v4711 = vmul.f32 %v4700, %v4709
    %v4712 = vmul.f32 %v4702, %v4710
    %4713 = vrot.lane.b32.xlu0 %v4576, 64
    %v4714 = vpop.permute.xlu0 %4713
    %4715 = vrot.lane.b32.xlu0 %v4581, 64
    %v4716 = vpop.permute.xlu0 %4715
    %v4720 = vsel %vm211, %v4711, 0
    %v4723 = vsel %vm211, %v4712, 0
    %4725 = vmatprep.subr.mxu0 0.0
    %4726 = vmatpush1.msra.mxu0 0.0
    %4727 = vmatprep.subr.mxu0 0.0
    %4728 = vmatpush1.msra.mxu0 0.0
    %4729 = vmatprep.subr.mxu0 0.0
    %4730 = vmatpush1.msra.mxu0 0.0
    %4731 = vmatprep.subr.mxu0 0.0
    %4732 = vmatpush1.msra.mxu0 0.0
    %4733 = vmatprep.subr.mxu0 0.0
    %4734 = vmatpush1.msra.mxu0 0.0
    %4735 = vmatprep.subr.mxu0 0.0
    %4736 = vmatpush1.msra.mxu0 0.0
    %4737 = vmatprep.subr.mxu0 0.0
    %4738 = vmatpush1.msra.mxu0 0.0
    %4739 = vmatprep.subr.mxu0 0.0
    %4740 = vmatpush1.msra.mxu0 0.0
    %4741 = vmatprep.subr.mxu0 0.0
    %4742 = vmatpush1.msra.mxu0 0.0
    %4743 = vmatprep.subr.mxu0 0.0
    %4744 = vmatpush1.msra.mxu0 0.0
    %4745 = vmatprep.subr.mxu0 0.0
    %4746 = vmatpush1.msra.mxu0 0.0
    %4747 = vmatprep.subr.mxu0 0.0
    %4748 = vmatpush1.msra.mxu0 0.0
    %4749 = vmatprep.subr.mxu0 0.0
    %4750 = vmatpush1.msra.mxu0 0.0
    %4751 = vmatprep.subr.mxu0 0.0
    %4752 = vmatpush1.msra.mxu0 0.0
    %4753 = vmatprep.subr.mxu0 0.0
    %4754 = vmatpush1.msra.mxu0 %v4716
    %4755 = vmatprep.subr.mxu0 0.0
    %4756 = vmatpush1.msra.mxu0 %v4714
    %4757 = vmatprep.subr.mxu0 0.0
    %4758 = vmatpush2.msra.mxu0 0.0
    %4759 = vmatprep.subr.mxu0 0.0
    %4760 = vmatpush2.msra.mxu0 0.0
    %4761 = vmatprep.subr.mxu0 0.0
    %4762 = vmatpush2.msra.mxu0 0.0
    %4763 = vmatprep.subr.mxu0 0.0
    %4764 = vmatpush2.msra.mxu0 0.0
    %4765 = vmatprep.subr.mxu0 0.0
    %4766 = vmatpush2.msra.mxu0 0.0
    %4767 = vmatprep.subr.mxu0 0.0
    %4768 = vmatpush2.msra.mxu0 0.0
    %4769 = vmatprep.subr.mxu0 0.0
    %4770 = vmatpush2.msra.mxu0 0.0
    %4771 = vmatprep.subr.mxu0 0.0
    %4772 = vmatpush2.msra.mxu0 0.0
    %4773 = vmatprep.subr.mxu0 0.0
    %4774 = vmatpush2.msra.mxu0 0.0
    %4775 = vmatprep.subr.mxu0 0.0
    %4776 = vmatpush2.msra.mxu0 0.0
    %4777 = vmatprep.subr.mxu0 0.0
    %4778 = vmatpush2.msra.mxu0 0.0
    %4779 = vmatprep.subr.mxu0 0.0
    %4780 = vmatpush2.msra.mxu0 0.0
    %4781 = vmatprep.subr.mxu0 0.0
    %4782 = vmatpush2.msra.mxu0 0.0
    %4783 = vmatprep.subr.mxu0 0.0
    %4784 = vmatpush2.msra.mxu0 0.0
    %4785 = vmatprep.subr.mxu0 0.0
    %4786 = vmatpush2.msra.mxu0 0.0
    %4787 = vmatprep.subr.mxu0 0.0
    %4788 = vmatpush2.msra.mxu0 0.0
    %4789 = vmatprep.mubr.f32.mxu0 0.0
    %4790 = vmatmul.mubr.f32.gmra.mxu0 %v4720
    %v4791 = vpop.f32.mrf.mxu0
    %v4792 = vadd.f32 0.0, %v4791
    %v4793 = vpop.f32.mrf.mxu0
    %4794 = vmatprep.mubr.f32.mxu0 0.0
    %4795 = vmatmul.mubr.f32.gmra.mxu0 %v4723
    %v4796 = vpop.f32.mrf.mxu0
    %v4797 = vadd.f32 0.0, %v4796
    %v4798 = vpop.f32.mrf.mxu0
    %4799 = vdwg.mxu0
    %v4801 = vsel %vm211, %v4792, 0
    %v4804 = vsel %vm211, %v4797, 0
    %4806 = vmatprep.subr.mxu0 0.0
    %4807 = vmatpush1.msra.mxu0 0.0
    %4808 = vmatprep.subr.mxu0 0.0
    %4809 = vmatpush1.msra.mxu0 0.0
    %4810 = vmatprep.subr.mxu0 0.0
    %4811 = vmatpush1.msra.mxu0 0.0
    %4812 = vmatprep.subr.mxu0 0.0
    %4813 = vmatpush1.msra.mxu0 0.0
    %4814 = vmatprep.subr.mxu0 0.0
    %4815 = vmatpush1.msra.mxu0 0.0
    %4816 = vmatprep.subr.mxu0 0.0
    %4817 = vmatpush1.msra.mxu0 0.0
    %4818 = vmatprep.subr.mxu0 0.0
    %4819 = vmatpush1.msra.mxu0 0.0
    %4820 = vmatprep.subr.mxu0 0.0
    %4821 = vmatpush1.msra.mxu0 0.0
    %4822 = vmatprep.subr.mxu0 0.0
    %4823 = vmatpush1.msra.mxu0 0.0
    %4824 = vmatprep.subr.mxu0 0.0
    %4825 = vmatpush1.msra.mxu0 0.0
    %4826 = vmatprep.subr.mxu0 0.0
    %4827 = vmatpush1.msra.mxu0 0.0
    %4828 = vmatprep.subr.mxu0 0.0
    %4829 = vmatpush1.msra.mxu0 0.0
    %4830 = vmatprep.subr.mxu0 0.0
    %4831 = vmatpush1.msra.mxu0 0.0
    %4832 = vmatprep.subr.mxu0 0.0
    %4833 = vmatpush1.msra.mxu0 0.0
    %4834 = vmatprep.subr.mxu0 0.0
    %4835 = vmatpush1.msra.mxu0 %v4586
    %4836 = vmatprep.subr.mxu0 0.0
    %4837 = vmatpush1.msra.mxu0 %v4585
    %4838 = vmatprep.subr.mxu0 0.0
    %4839 = vmatpush2.msra.mxu0 0.0
    %4840 = vmatprep.subr.mxu0 0.0
    %4841 = vmatpush2.msra.mxu0 0.0
    %4842 = vmatprep.subr.mxu0 0.0
    %4843 = vmatpush2.msra.mxu0 0.0
    %4844 = vmatprep.subr.mxu0 0.0
    %4845 = vmatpush2.msra.mxu0 0.0
    %4846 = vmatprep.subr.mxu0 0.0
    %4847 = vmatpush2.msra.mxu0 0.0
    %4848 = vmatprep.subr.mxu0 0.0
    %4849 = vmatpush2.msra.mxu0 0.0
    %4850 = vmatprep.subr.mxu0 0.0
    %4851 = vmatpush2.msra.mxu0 0.0
    %4852 = vmatprep.subr.mxu0 0.0
    %4853 = vmatpush2.msra.mxu0 0.0
    %4854 = vmatprep.subr.mxu0 0.0
    %4855 = vmatpush2.msra.mxu0 0.0
    %4856 = vmatprep.subr.mxu0 0.0
    %4857 = vmatpush2.msra.mxu0 0.0
    %4858 = vmatprep.subr.mxu0 0.0
    %4859 = vmatpush2.msra.mxu0 0.0
    %4860 = vmatprep.subr.mxu0 0.0
    %4861 = vmatpush2.msra.mxu0 0.0
    %4862 = vmatprep.subr.mxu0 0.0
    %4863 = vmatpush2.msra.mxu0 0.0
    %4864 = vmatprep.subr.mxu0 0.0
    %4865 = vmatpush2.msra.mxu0 0.0
    %4866 = vmatprep.subr.mxu0 0.0
    %4867 = vmatpush2.msra.mxu0 0.0
    %4868 = vmatprep.subr.mxu0 0.0
    %4869 = vmatpush2.msra.mxu0 0.0
    %4870 = vmatprep.mubr.f32.mxu0 0.0
    %4871 = vmatmul.mubr.f32.gmra.mxu0 %v4801
    %v4872 = vpop.f32.mrf.mxu0
    %v4873 = vadd.f32 0.0, %v4872
    %v4874 = vpop.f32.mrf.mxu0
    %4875 = vmatprep.mubr.f32.mxu0 0.0
    %4876 = vmatmul.mubr.f32.gmra.mxu0 %v4804
    %v4877 = vpop.f32.mrf.mxu0
    %v4878 = vadd.f32 0.0, %v4877
    %v4879 = vpop.f32.mrf.mxu0
    %4880 = vdwg.mxu0
    %v4881 = vadd.f32 %v4597, %v4873
    %v4882 = vadd.f32 %v4597, %v4878
    %4883 = vrot.lane.b32.xlu0 %v4576, 112
    %v4884 = vpop.permute.xlu0 %4883
    %4885 = vrot.lane.b32.xlu0 %v4581, 112
    %v4886 = vpop.permute.xlu0 %4885
    %4887 = vrot.lane.b32.xlu0 %v4576, 80
    %v4888 = vpop.permute.xlu0 %4887
    %4889 = vrot.lane.b32.xlu0 %v4581, 80
    %v4890 = vpop.permute.xlu0 %4889
    %v4891 = vsel %vm211, %v4884, 0
    %v4893 = vsel %vm211, %v4886, 0
    %v4895 = vsel %vm211, %v4888, 0
    %v4897 = vsel %vm211, %v4890, 0
    %4899 = vmatprep.subr.mxu0 0.0
    %4900 = vmatpush1.xpose.msra.mxu0 0.0
    %4901 = vmatprep.subr.mxu0 0.0
    %4902 = vmatpush1.xpose.msra.mxu0 0.0
    %4903 = vmatprep.subr.mxu0 0.0
    %4904 = vmatpush1.xpose.msra.mxu0 0.0
    %4905 = vmatprep.subr.mxu0 0.0
    %4906 = vmatpush1.xpose.msra.mxu0 0.0
    %4907 = vmatprep.subr.mxu0 0.0
    %4908 = vmatpush1.xpose.msra.mxu0 0.0
    %4909 = vmatprep.subr.mxu0 0.0
    %4910 = vmatpush1.xpose.msra.mxu0 0.0
    %4911 = vmatprep.subr.mxu0 0.0
    %4912 = vmatpush1.xpose.msra.mxu0 0.0
    %4913 = vmatprep.subr.mxu0 0.0
    %4914 = vmatpush1.xpose.msra.mxu0 0.0
    %4915 = vmatprep.subr.mxu0 0.0
    %4916 = vmatpush1.xpose.msra.mxu0 0.0
    %4917 = vmatprep.subr.mxu0 0.0
    %4918 = vmatpush1.xpose.msra.mxu0 0.0
    %4919 = vmatprep.subr.mxu0 0.0
    %4920 = vmatpush1.xpose.msra.mxu0 0.0
    %4921 = vmatprep.subr.mxu0 0.0
    %4922 = vmatpush1.xpose.msra.mxu0 0.0
    %4923 = vmatprep.subr.mxu0 0.0
    %4924 = vmatpush1.xpose.msra.mxu0 0.0
    %4925 = vmatprep.subr.mxu0 0.0
    %4926 = vmatpush1.xpose.msra.mxu0 0.0
    %4927 = vmatprep.subr.mxu0 0.0
    %4928 = vmatpush1.xpose.msra.mxu0 %v4897
    %4929 = vmatprep.subr.mxu0 0.0
    %4930 = vmatpush1.xpose.msra.mxu0 %v4895
    %4931 = vmatprep.subr.mxu0 0.0
    %4932 = vmatpush2.xpose.msra.mxu0 0.0
    %4933 = vmatprep.subr.mxu0 0.0
    %4934 = vmatpush2.xpose.msra.mxu0 0.0
    %4935 = vmatprep.subr.mxu0 0.0
    %4936 = vmatpush2.xpose.msra.mxu0 0.0
    %4937 = vmatprep.subr.mxu0 0.0
    %4938 = vmatpush2.xpose.msra.mxu0 0.0
    %4939 = vmatprep.subr.mxu0 0.0
    %4940 = vmatpush2.xpose.msra.mxu0 0.0
    %4941 = vmatprep.subr.mxu0 0.0
    %4942 = vmatpush2.xpose.msra.mxu0 0.0
    %4943 = vmatprep.subr.mxu0 0.0
    %4944 = vmatpush2.xpose.msra.mxu0 0.0
    %4945 = vmatprep.subr.mxu0 0.0
    %4946 = vmatpush2.xpose.msra.mxu0 0.0
    %4947 = vmatprep.subr.mxu0 0.0
    %4948 = vmatpush2.xpose.msra.mxu0 0.0
    %4949 = vmatprep.subr.mxu0 0.0
    %4950 = vmatpush2.xpose.msra.mxu0 0.0
    %4951 = vmatprep.subr.mxu0 0.0
    %4952 = vmatpush2.xpose.msra.mxu0 0.0
    %4953 = vmatprep.subr.mxu0 0.0
    %4954 = vmatpush2.xpose.msra.mxu0 0.0
    %4955 = vmatprep.subr.mxu0 0.0
    %4956 = vmatpush2.xpose.msra.mxu0 0.0
    %4957 = vmatprep.subr.mxu0 0.0
    %4958 = vmatpush2.xpose.msra.mxu0 0.0
    %4959 = vmatprep.subr.mxu0 0.0
    %4960 = vmatpush2.xpose.msra.mxu0 0.0
    %4961 = vmatprep.subr.mxu0 0.0
    %4962 = vmatpush2.xpose.msra.mxu0 0.0
    %4963 = vmatprep.mubr.f32.mxu0 0.0
    %4964 = vmatmul.mubr.f32.gmra.mxu0 %v4891
    %v4965 = vpop.f32.mrf.mxu0
    %v4966 = vadd.f32 0.0, %v4965
    %v4967 = vpop.f32.mrf.mxu0
    %4968 = vmatprep.mubr.f32.mxu0 0.0
    %4969 = vmatmul.mubr.f32.gmra.mxu0 %v4893
    %v4970 = vpop.f32.mrf.mxu0
    %v4971 = vadd.f32 0.0, %v4970
    %v4972 = vpop.f32.mrf.mxu0
    %4973 = vdwg.mxu0
    %v4974 = vmul.f32 %v4966, 0.25
    %v4975 = vmul.f32 %v4971, 0.25
    %v4976 = vadd.f32 %v4974, %v86
    %v4977 = vadd.f32 %v4975, %v87
    %v4978 = vsel %vm211, %v4976, -inf
    %4979 = vmax.xlane.f32.xlu0 %v4978
    %v4980 = vpop.xlane.xlu0 %4979
    %v4981 = vsel %vm211, %v4977, -inf
    %4982 = vmax.xlane.f32.xlu0 %v4981
    %v4983 = vpop.xlane.xlu0 %4982
    %v4984 = vsub.f32 %v4976, %v4980
    %v4985 = vsub.f32 %v4977, %v4983
    %v4986 = vmul.f32 %v4984, 1.442695
    %v4987 = vpow.pop %v4986
    %v4988 = vmul.f32 %v4985, 1.442695
    %v4989 = vpow.pop %v4988
    %v4990 = vsel %vm211, %v4987, 0.0
    %4991 = vadd.xlane.f32.xlu0 %v4990
    %v4992 = vpop.xlane.xlu0 %4991
    %v4993 = vsel %vm211, %v4989, 0.0
    %4994 = vadd.xlane.f32.xlu0 %v4993
    %v4995 = vpop.xlane.xlu0 %4994
    %v4996 = vrcp.pop %v4992
    %v4997 = vrcp.pop %v4995
    %v4998 = vmul.f32 %v4987, %v4996
    %v4999 = vmul.f32 %v4989, %v4997
    %5000 = vrot.lane.b32.xlu0 %v4576, 48
    %v5001 = vpop.permute.xlu0 %5000
    %5002 = vrot.lane.b32.xlu0 %v4581, 48
    %v5003 = vpop.permute.xlu0 %5002
    %v5007 = vsel %vm211, %v4998, 0
    %v5010 = vsel %vm211, %v4999, 0
    %5012 = vmatprep.subr.mxu0 0.0
    %5013 = vmatpush1.msra.mxu0 0.0
    %5014 = vmatprep.subr.mxu0 0.0
    %5015 = vmatpush1.msra.mxu0 0.0
    %5016 = vmatprep.subr.mxu0 0.0
    %5017 = vmatpush1.msra.mxu0 0.0
    %5018 = vmatprep.subr.mxu0 0.0
    %5019 = vmatpush1.msra.mxu0 0.0
    %5020 = vmatprep.subr.mxu0 0.0
    %5021 = vmatpush1.msra.mxu0 0.0
    %5022 = vmatprep.subr.mxu0 0.0
    %5023 = vmatpush1.msra.mxu0 0.0
    %5024 = vmatprep.subr.mxu0 0.0
    %5025 = vmatpush1.msra.mxu0 0.0
    %5026 = vmatprep.subr.mxu0 0.0
    %5027 = vmatpush1.msra.mxu0 0.0
    %5028 = vmatprep.subr.mxu0 0.0
    %5029 = vmatpush1.msra.mxu0 0.0
    %5030 = vmatprep.subr.mxu0 0.0
    %5031 = vmatpush1.msra.mxu0 0.0
    %5032 = vmatprep.subr.mxu0 0.0
    %5033 = vmatpush1.msra.mxu0 0.0
    %5034 = vmatprep.subr.mxu0 0.0
    %5035 = vmatpush1.msra.mxu0 0.0
    %5036 = vmatprep.subr.mxu0 0.0
    %5037 = vmatpush1.msra.mxu0 0.0
    %5038 = vmatprep.subr.mxu0 0.0
    %5039 = vmatpush1.msra.mxu0 0.0
    %5040 = vmatprep.subr.mxu0 0.0
    %5041 = vmatpush1.msra.mxu0 %v5003
    %5042 = vmatprep.subr.mxu0 0.0
    %5043 = vmatpush1.msra.mxu0 %v5001
    %5044 = vmatprep.subr.mxu0 0.0
    %5045 = vmatpush2.msra.mxu0 0.0
    %5046 = vmatprep.subr.mxu0 0.0
    %5047 = vmatpush2.msra.mxu0 0.0
    %5048 = vmatprep.subr.mxu0 0.0
    %5049 = vmatpush2.msra.mxu0 0.0
    %5050 = vmatprep.subr.mxu0 0.0
    %5051 = vmatpush2.msra.mxu0 0.0
    %5052 = vmatprep.subr.mxu0 0.0
    %5053 = vmatpush2.msra.mxu0 0.0
    %5054 = vmatprep.subr.mxu0 0.0
    %5055 = vmatpush2.msra.mxu0 0.0
    %5056 = vmatprep.subr.mxu0 0.0
    %5057 = vmatpush2.msra.mxu0 0.0
    %5058 = vmatprep.subr.mxu0 0.0
    %5059 = vmatpush2.msra.mxu0 0.0
    %5060 = vmatprep.subr.mxu0 0.0
    %5061 = vmatpush2.msra.mxu0 0.0
    %5062 = vmatprep.subr.mxu0 0.0
    %5063 = vmatpush2.msra.mxu0 0.0
    %5064 = vmatprep.subr.mxu0 0.0
    %5065 = vmatpush2.msra.mxu0 0.0
    %5066 = vmatprep.subr.mxu0 0.0
    %5067 = vmatpush2.msra.mxu0 0.0
    %5068 = vmatprep.subr.mxu0 0.0
    %5069 = vmatpush2.msra.mxu0 0.0
    %5070 = vmatprep.subr.mxu0 0.0
    %5071 = vmatpush2.msra.mxu0 0.0
    %5072 = vmatprep.subr.mxu0 0.0
    %5073 = vmatpush2.msra.mxu0 0.0
    %5074 = vmatprep.subr.mxu0 0.0
    %5075 = vmatpush2.msra.mxu0 0.0
    %5076 = vmatprep.mubr.f32.mxu0 0.0
    %5077 = vmatmul.mubr.f32.gmra.mxu0 %v5007
    %v5078 = vpop.f32.mrf.mxu0
    %v5079 = vadd.f32 0.0, %v5078
    %v5080 = vpop.f32.mrf.mxu0
    %5081 = vmatprep.mubr.f32.mxu0 0.0
    %5082 = vmatmul.mubr.f32.gmra.mxu0 %v5010
    %v5083 = vpop.f32.mrf.mxu0
    %v5084 = vadd.f32 0.0, %v5083
    %v5085 = vpop.f32.mrf.mxu0
    %5086 = vdwg.mxu0
    %v5088 = vsel %vm211, %v5079, 0
    %v5091 = vsel %vm211, %v5084, 0
    %5093 = vmatprep.subr.mxu0 0.0
    %5094 = vmatpush1.msra.mxu0 0.0
    %5095 = vmatprep.subr.mxu0 0.0
    %5096 = vmatpush1.msra.mxu0 0.0
    %5097 = vmatprep.subr.mxu0 0.0
    %5098 = vmatpush1.msra.mxu0 0.0
    %5099 = vmatprep.subr.mxu0 0.0
    %5100 = vmatpush1.msra.mxu0 0.0
    %5101 = vmatprep.subr.mxu0 0.0
    %5102 = vmatpush1.msra.mxu0 0.0
    %5103 = vmatprep.subr.mxu0 0.0
    %5104 = vmatpush1.msra.mxu0 0.0
    %5105 = vmatprep.subr.mxu0 0.0
    %5106 = vmatpush1.msra.mxu0 0.0
    %5107 = vmatprep.subr.mxu0 0.0
    %5108 = vmatpush1.msra.mxu0 0.0
    %5109 = vmatprep.subr.mxu0 0.0
    %5110 = vmatpush1.msra.mxu0 0.0
    %5111 = vmatprep.subr.mxu0 0.0
    %5112 = vmatpush1.msra.mxu0 0.0
    %5113 = vmatprep.subr.mxu0 0.0
    %5114 = vmatpush1.msra.mxu0 0.0
    %5115 = vmatprep.subr.mxu0 0.0
    %5116 = vmatpush1.msra.mxu0 0.0
    %5117 = vmatprep.subr.mxu0 0.0
    %5118 = vmatpush1.msra.mxu0 0.0
    %5119 = vmatprep.subr.mxu0 0.0
    %5120 = vmatpush1.msra.mxu0 0.0
    %5121 = vmatprep.subr.mxu0 0.0
    %5122 = vmatpush1.msra.mxu0 %v4588
    %5123 = vmatprep.subr.mxu0 0.0
    %5124 = vmatpush1.msra.mxu0 %v4587
    %5125 = vmatprep.subr.mxu0 0.0
    %5126 = vmatpush2.msra.mxu0 0.0
    %5127 = vmatprep.subr.mxu0 0.0
    %5128 = vmatpush2.msra.mxu0 0.0
    %5129 = vmatprep.subr.mxu0 0.0
    %5130 = vmatpush2.msra.mxu0 0.0
    %5131 = vmatprep.subr.mxu0 0.0
    %5132 = vmatpush2.msra.mxu0 0.0
    %5133 = vmatprep.subr.mxu0 0.0
    %5134 = vmatpush2.msra.mxu0 0.0
    %5135 = vmatprep.subr.mxu0 0.0
    %5136 = vmatpush2.msra.mxu0 0.0
    %5137 = vmatprep.subr.mxu0 0.0
    %5138 = vmatpush2.msra.mxu0 0.0
    %5139 = vmatprep.subr.mxu0 0.0
    %5140 = vmatpush2.msra.mxu0 0.0
    %5141 = vmatprep.subr.mxu0 0.0
    %5142 = vmatpush2.msra.mxu0 0.0
    %5143 = vmatprep.subr.mxu0 0.0
    %5144 = vmatpush2.msra.mxu0 0.0
    %5145 = vmatprep.subr.mxu0 0.0
    %5146 = vmatpush2.msra.mxu0 0.0
    %5147 = vmatprep.subr.mxu0 0.0
    %5148 = vmatpush2.msra.mxu0 0.0
    %5149 = vmatprep.subr.mxu0 0.0
    %5150 = vmatpush2.msra.mxu0 0.0
    %5151 = vmatprep.subr.mxu0 0.0
    %5152 = vmatpush2.msra.mxu0 0.0
    %5153 = vmatprep.subr.mxu0 0.0
    %5154 = vmatpush2.msra.mxu0 0.0
    %5155 = vmatprep.subr.mxu0 0.0
    %5156 = vmatpush2.msra.mxu0 0.0
    %5157 = vmatprep.mubr.f32.mxu0 0.0
    %5158 = vmatmul.mubr.f32.gmra.mxu0 %v5088
    %v5159 = vpop.f32.mrf.mxu0
    %v5160 = vadd.f32 0.0, %v5159
    %v5161 = vpop.f32.mrf.mxu0
    %5162 = vmatprep.mubr.f32.mxu0 0.0
    %5163 = vmatmul.mubr.f32.gmra.mxu0 %v5091
    %v5164 = vpop.f32.mrf.mxu0
    %v5165 = vadd.f32 0.0, %v5164
    %v5166 = vpop.f32.mrf.mxu0
    %5167 = vdwg.mxu0
    %v5168 = vadd.f32 %v4881, %v5160
    %v5169 = vadd.f32 %v4882, %v5165
    %v5170 = vadd.f32 %v2857, %v5168
    %v5171 = vadd.f32 %v2858, %v5169
    %s5172 = scalar_lea.vmem %s9, 3
    %v5173 = vld [vmem:[%s5172] sm:$0x1]
    %s5174 = scalar_lea.vmem %s10, 3
    %v5175 = vld [vmem:[%s5174] sm:$0x1]
    %v5176 = vsel %vm160, %v5170, 0.0
    %5177 = vadd.xlane.f32.xlu0 %v5176
    %v5178 = vpop.xlane.xlu0 %5177
    %v5179 = vsel %vm160, %v5171, 0.0
    %5180 = vadd.xlane.f32.xlu0 %v5179
    %v5181 = vpop.xlane.xlu0 %5180
    %v5182 = vmul.f32 %v5178, %v663
    %v5183 = vmul.f32 %v5181, %v663
    %v5184 = vsub.f32 %v5170, %v5182
    %v5185 = vsub.f32 %v5171, %v5183
    %v5186 = vmul.f32 %v5184, %v5184
    %v5187 = vmul.f32 %v5185, %v5185
    %v5188 = vsel %vm160, %v5186, 0.0
    %5189 = vadd.xlane.f32.xlu0 %v5188
    %v5190 = vpop.xlane.xlu0 %5189
    %v5191 = vsel %vm160, %v5187, 0.0
    %5192 = vadd.xlane.f32.xlu0 %v5191
    %v5193 = vpop.xlane.xlu0 %5192
    %v5194 = vmul.f32 %v5190, %v663
    %v5195 = vmul.f32 %v5193, %v663
    %v5196 = vadd.f32 %v5194, 1e-05
    %v5197 = vadd.f32 %v5195, 1e-05
    %v5198 = vrsqrt.pop %v5196
    %v5199 = vrsqrt.pop %v5197
    %v5200 = vmul.f32 %v5184, %v5198
    %v5201 = vmul.f32 %v5185, %v5199
    %v5203 = vlaneseq
    %v5204 = vshrl.u32 %v5203, 7
    %v5205 = vsub.s32 0, %v5204
    %v5206 = vrot.slane %v5173, %v5205
    %v5208 = vmul.f32 %v5200, %v5206
    %v5209 = vmul.f32 %v5201, %v5206
    %v5211 = vlaneseq
    %v5212 = vshrl.u32 %v5211, 7
    %v5213 = vsub.s32 0, %v5212
    %v5214 = vrot.slane %v5175, %v5213
    %v5216 = vadd.f32 %v5208, %v5214
    %v5217 = vadd.f32 %v5209, %v5214
    %s5218 = scalar_lea.vmem %s11, 96
    %v5219 = vld [vmem:[%s5218] sm:$0xff]
    %v5220 = vld [vmem:[%s5218 + $0x8] sm:$0xff]
    %v5221 = vld [vmem:[%s5218 + $0x10] sm:$0xff]
    %v5222 = vld [vmem:[%s5218 + $0x18] sm:$0xff]
    %s5223 = scalar_lea.vmem %s12, 3
    %v5224 = vld [vmem:[%s5223] sm:$0x1]
    %v5226 = vlaneseq
    %v5227 = vshrl.u32 %v5226, 7
    %v5228 = vsub.s32 0, %v5227
    %v5229 = vrot.slane %v5224, %v5228
    %v5232 = vsel %vm160, %v5216, 0
    %v5235 = vsel %vm160, %v5217, 0
    %5237 = vmatprep.subr.mxu0 0.0
    %5238 = vmatpush1.msra.mxu0 0.0
    %5239 = vmatprep.subr.mxu0 0.0
    %5240 = vmatpush1.msra.mxu0 0.0
    %5241 = vmatprep.subr.mxu0 0.0
    %5242 = vmatpush1.msra.mxu0 0.0
    %5243 = vmatprep.subr.mxu0 0.0
    %5244 = vmatpush1.msra.mxu0 0.0
    %5245 = vmatprep.subr.mxu0 0.0
    %5246 = vmatpush1.msra.mxu0 0.0
    %5247 = vmatprep.subr.mxu0 0.0
    %5248 = vmatpush1.msra.mxu0 0.0
    %5249 = vmatprep.subr.mxu0 0.0
    %5250 = vmatpush1.msra.mxu0 0.0
    %5251 = vmatprep.subr.mxu0 0.0
    %5252 = vmatpush1.msra.mxu0 0.0
    %5253 = vmatprep.subr.mxu0 0.0
    %5254 = vmatpush1.msra.mxu0 0.0
    %5255 = vmatprep.subr.mxu0 0.0
    %5256 = vmatpush1.msra.mxu0 0.0
    %5257 = vmatprep.subr.mxu0 0.0
    %5258 = vmatpush1.msra.mxu0 0.0
    %5259 = vmatprep.subr.mxu0 0.0
    %5260 = vmatpush1.msra.mxu0 0.0
    %5261 = vmatprep.subr.mxu0 0.0
    %5262 = vmatpush1.msra.mxu0 %v5222
    %5263 = vmatprep.subr.mxu0 0.0
    %5264 = vmatpush1.msra.mxu0 %v5221
    %5265 = vmatprep.subr.mxu0 0.0
    %5266 = vmatpush1.msra.mxu0 %v5220
    %5267 = vmatprep.subr.mxu0 0.0
    %5268 = vmatpush1.msra.mxu0 %v5219
    %5269 = vmatprep.subr.mxu0 0.0
    %5270 = vmatpush2.msra.mxu0 0.0
    %5271 = vmatprep.subr.mxu0 0.0
    %5272 = vmatpush2.msra.mxu0 0.0
    %5273 = vmatprep.subr.mxu0 0.0
    %5274 = vmatpush2.msra.mxu0 0.0
    %5275 = vmatprep.subr.mxu0 0.0
    %5276 = vmatpush2.msra.mxu0 0.0
    %5277 = vmatprep.subr.mxu0 0.0
    %5278 = vmatpush2.msra.mxu0 0.0
    %5279 = vmatprep.subr.mxu0 0.0
    %5280 = vmatpush2.msra.mxu0 0.0
    %5281 = vmatprep.subr.mxu0 0.0
    %5282 = vmatpush2.msra.mxu0 0.0
    %5283 = vmatprep.subr.mxu0 0.0
    %5284 = vmatpush2.msra.mxu0 0.0
    %5285 = vmatprep.subr.mxu0 0.0
    %5286 = vmatpush2.msra.mxu0 0.0
    %5287 = vmatprep.subr.mxu0 0.0
    %5288 = vmatpush2.msra.mxu0 0.0
    %5289 = vmatprep.subr.mxu0 0.0
    %5290 = vmatpush2.msra.mxu0 0.0
    %5291 = vmatprep.subr.mxu0 0.0
    %5292 = vmatpush2.msra.mxu0 0.0
    %5293 = vmatprep.subr.mxu0 0.0
    %5294 = vmatpush2.msra.mxu0 0.0
    %5295 = vmatprep.subr.mxu0 0.0
    %5296 = vmatpush2.msra.mxu0 0.0
    %5297 = vmatprep.subr.mxu0 0.0
    %5298 = vmatpush2.msra.mxu0 0.0
    %5299 = vmatprep.subr.mxu0 0.0
    %5300 = vmatpush2.msra.mxu0 0.0
    %5301 = vmatprep.mubr.f32.mxu0 0.0
    %5302 = vmatmul.mubr.f32.gmra.mxu0 %v5232
    %v5303 = vpop.f32.mrf.mxu0
    %v5304 = vadd.f32 %v5229, %v5303
    %v5305 = vpop.f32.mrf.mxu0
    %5306 = vmatprep.mubr.f32.mxu0 0.0
    %5307 = vmatmul.mubr.f32.gmra.mxu0 %v5235
    %v5308 = vpop.f32.mrf.mxu0
    %v5309 = vadd.f32 %v5229, %v5308
    %v5310 = vpop.f32.mrf.mxu0
    %5311 = vdwg.mxu0
    %v5312 = vmul.f32 %v5304, 0.5
    %v5313 = vmul.f32 %v5309, 0.5
    %v5314 = vmul.f32 %v5304, 0.70710677
    %v5315 = vmul.f32 %v5309, 0.70710677
    %vm5316 = vcmp.ge.f32.partialorder %v5314, 0.0
    %vm5317 = vcmp.ge.f32.partialorder %v5315, 0.0
    %v5318 = vsel %vm5316, 1.0, -1.0
    %v5319 = vsel %vm5317, 1.0, -1.0
    %v5320 = vand.u32 2147483647, %v5314
    %v5321 = vand.u32 2147483647, %v5315
    %v5322 = vmul.f32 %v5320, 0.3275911
    %v5323 = vmul.f32 %v5321, 0.3275911
    %v5324 = vadd.f32 %v5322, 1.0
    %v5325 = vadd.f32 %v5323, 1.0
    %v5326 = vrcp.pop %v5324
    %v5327 = vmul.f32 1.0, %v5326
    %v5328 = vrcp.pop %v5325
    %v5329 = vmul.f32 1.0, %v5328
    %v5330 = vmul.f32 %v5327, 1.0614054
    %v5331 = vmul.f32 %v5329, 1.0614054
    %v5332 = vadd.f32 %v5330, -1.4531521
    %v5333 = vadd.f32 %v5331, -1.4531521
    %v5334 = vmul.f32 %v5332, %v5327
    %v5335 = vmul.f32 %v5333, %v5329
    %v5336 = vadd.f32 %v5334, 1.4214138
    %v5337 = vadd.f32 %v5335, 1.4214138
    %v5338 = vmul.f32 %v5336, %v5327
    %v5339 = vmul.f32 %v5337, %v5329
    %v5340 = vadd.f32 %v5338, -0.28449672
    %v5341 = vadd.f32 %v5339, -0.28449672
    %v5342 = vmul.f32 %v5340, %v5327
    %v5343 = vmul.f32 %v5341, %v5329
    %v5344 = vadd.f32 %v5342, 0.2548296
    %v5345 = vadd.f32 %v5343, 0.2548296
    %v5346 = vmul.f32 %v5344, %v5327
    %v5347 = vmul.f32 %v5345, %v5329
    %v5348 = vsub.f32 0.0, %v5320
    %v5349 = vsub.f32 0.0, %v5321
    %v5350 = vmul.f32 %v5348, %v5320
    %v5351 = vmul.f32 %v5349, %v5321
    %v5352 = vmul.f32 %v5350, 1.442695
    %v5353 = vpow.pop %v5352
    %v5354 = vmul.f32 %v5351, 1.442695
    %v5355 = vpow.pop %v5354
    %v5356 = vmul.f32 %v5346, %v5353
    %v5357 = vmul.f32 %v5347, %v5355
    %v5358 = vsub.f32 1.0, %v5356
    %v5359 = vsub.f32 1.0, %v5357
    %v5360 = vmul.f32 %v5318, %v5358
    %v5361 = vmul.f32 %v5319, %v5359
    %v5362 = vadd.f32 %v5360, 1.0
    %v5363 = vadd.f32 %v5361, 1.0
    %v5364 = vmul.f32 %v5312, %v5362
    %v5365 = vmul.f32 %v5313, %v5363
    %s5366 = scalar_lea.vmem %s13, 384
    %v5367 = vld [vmem:[%s5366] sm:$0xff]
    %v5368 = vld [vmem:[%s5366 + $0x8] sm:$0xff]
    %v5369 = vld [vmem:[%s5366 + $0x10] sm:$0xff]
    %v5370 = vld [vmem:[%s5366 + $0x18] sm:$0xff]
    %v5371 = vld [vmem:[%s5366 + $0x20] sm:$0xff]
    %v5372 = vld [vmem:[%s5366 + $0x28] sm:$0xff]
    %v5373 = vld [vmem:[%s5366 + $0x30] sm:$0xff]
    %v5374 = vld [vmem:[%s5366 + $0x38] sm:$0xff]
    %v5375 = vld [vmem:[%s5366 + $0x40] sm:$0xff]
    %v5376 = vld [vmem:[%s5366 + $0x48] sm:$0xff]
    %v5377 = vld [vmem:[%s5366 + $0x50] sm:$0xff]
    %v5378 = vld [vmem:[%s5366 + $0x58] sm:$0xff]
    %v5379 = vld [vmem:[%s5366 + $0x60] sm:$0xff]
    %v5380 = vld [vmem:[%s5366 + $0x68] sm:$0xff]
    %v5381 = vld [vmem:[%s5366 + $0x70] sm:$0xff]
    %v5382 = vld [vmem:[%s5366 + $0x78] sm:$0xff]
    %s5383 = scalar_lea.vmem %s14, 3
    %v5384 = vld [vmem:[%s5383] sm:$0x1]
    %v5386 = vlaneseq
    %v5387 = vshrl.u32 %v5386, 7
    %v5388 = vsub.s32 0, %v5387
    %v5389 = vrot.slane %v5384, %v5388
    %5391 = vmatprep.subr.mxu0 0.0
    %5392 = vmatpush1.msra.mxu0 %v5382
    %5393 = vmatprep.subr.mxu0 0.0
    %5394 = vmatpush1.msra.mxu0 %v5381
    %5395 = vmatprep.subr.mxu0 0.0
    %5396 = vmatpush1.msra.mxu0 %v5380
    %5397 = vmatprep.subr.mxu0 0.0
    %5398 = vmatpush1.msra.mxu0 %v5379
    %5399 = vmatprep.subr.mxu0 0.0
    %5400 = vmatpush1.msra.mxu0 %v5378
    %5401 = vmatprep.subr.mxu0 0.0
    %5402 = vmatpush1.msra.mxu0 %v5377
    %5403 = vmatprep.subr.mxu0 0.0
    %5404 = vmatpush1.msra.mxu0 %v5376
    %5405 = vmatprep.subr.mxu0 0.0
    %5406 = vmatpush1.msra.mxu0 %v5375
    %5407 = vmatprep.subr.mxu0 0.0
    %5408 = vmatpush1.msra.mxu0 %v5374
    %5409 = vmatprep.subr.mxu0 0.0
    %5410 = vmatpush1.msra.mxu0 %v5373
    %5411 = vmatprep.subr.mxu0 0.0
    %5412 = vmatpush1.msra.mxu0 %v5372
    %5413 = vmatprep.subr.mxu0 0.0
    %5414 = vmatpush1.msra.mxu0 %v5371
    %5415 = vmatprep.subr.mxu0 0.0
    %5416 = vmatpush1.msra.mxu0 %v5370
    %5417 = vmatprep.subr.mxu0 0.0
    %5418 = vmatpush1.msra.mxu0 %v5369
    %5419 = vmatprep.subr.mxu0 0.0
    %5420 = vmatpush1.msra.mxu0 %v5368
    %5421 = vmatprep.subr.mxu0 0.0
    %5422 = vmatpush1.msra.mxu0 %v5367
    %5423 = vmatprep.subr.mxu0 0.0
    %5424 = vmatpush2.msra.mxu0 0.0
    %5425 = vmatprep.subr.mxu0 0.0
    %5426 = vmatpush2.msra.mxu0 0.0
    %5427 = vmatprep.subr.mxu0 0.0
    %5428 = vmatpush2.msra.mxu0 0.0
    %5429 = vmatprep.subr.mxu0 0.0
    %5430 = vmatpush2.msra.mxu0 0.0
    %5431 = vmatprep.subr.mxu0 0.0
    %5432 = vmatpush2.msra.mxu0 0.0
    %5433 = vmatprep.subr.mxu0 0.0
    %5434 = vmatpush2.msra.mxu0 0.0
    %5435 = vmatprep.subr.mxu0 0.0
    %5436 = vmatpush2.msra.mxu0 0.0
    %5437 = vmatprep.subr.mxu0 0.0
    %5438 = vmatpush2.msra.mxu0 0.0
    %5439 = vmatprep.subr.mxu0 0.0
    %5440 = vmatpush2.msra.mxu0 0.0
    %5441 = vmatprep.subr.mxu0 0.0
    %5442 = vmatpush2.msra.mxu0 0.0
    %5443 = vmatprep.subr.mxu0 0.0
    %5444 = vmatpush2.msra.mxu0 0.0
    %5445 = vmatprep.subr.mxu0 0.0
    %5446 = vmatpush2.msra.mxu0 0.0
    %5447 = vmatprep.subr.mxu0 0.0
    %5448 = vmatpush2.msra.mxu0 0.0
    %5449 = vmatprep.subr.mxu0 0.0
    %5450 = vmatpush2.msra.mxu0 0.0
    %5451 = vmatprep.subr.mxu0 0.0
    %5452 = vmatpush2.msra.mxu0 0.0
    %5453 = vmatprep.subr.mxu0 0.0
    %5454 = vmatpush2.msra.mxu0 0.0
    %5455 = vmatprep.mubr.f32.mxu0 0.0
    %5456 = vmatmul.mubr.f32.gmra.mxu0 %v5364
    %v5457 = vpop.f32.mrf.mxu0
    %v5458 = vadd.f32 %v5389, %v5457
    %v5459 = vpop.f32.mrf.mxu0
    %5460 = vmatprep.mubr.f32.mxu0 0.0
    %5461 = vmatmul.mubr.f32.gmra.mxu0 %v5365
    %v5462 = vpop.f32.mrf.mxu0
    %v5463 = vadd.f32 %v5389, %v5462
    %v5464 = vpop.f32.mrf.mxu0
    %5465 = vdwg.mxu0
    %v5466 = vadd.f32 %v5170, %v5458
    %v5467 = vadd.f32 %v5171, %v5463
    %5468 = vrot.lane.b32.xlu0 %v3353, 127
    %v5469 = vpop.permute.xlu0 %5468
    %v5470 = vsel %vm1675, %v5469, 0
    %5472 = vmatprep.subr.mxu0 0.0
    %5473 = vmatpush1.msra.mxu0 0.0
    %5474 = vmatprep.subr.mxu0 0.0
    %5475 = vmatpush1.msra.mxu0 0.0
    %5476 = vmatprep.subr.mxu0 0.0
    %5477 = vmatpush1.msra.mxu0 0.0
    %5478 = vmatprep.subr.mxu0 0.0
    %5479 = vmatpush1.msra.mxu0 0.0
    %5480 = vmatprep.subr.mxu0 0.0
    %5481 = vmatpush1.msra.mxu0 0.0
    %5482 = vmatprep.subr.mxu0 0.0
    %5483 = vmatpush1.msra.mxu0 0.0
    %5484 = vmatprep.subr.mxu0 0.0
    %5485 = vmatpush1.msra.mxu0 0.0
    %5486 = vmatprep.subr.mxu0 0.0
    %5487 = vmatpush1.msra.mxu0 0.0
    %5488 = vmatprep.subr.mxu0 0.0
    %5489 = vmatpush1.msra.mxu0 0.0
    %5490 = vmatprep.subr.mxu0 0.0
    %5491 = vmatpush1.msra.mxu0 0.0
    %5492 = vmatprep.subr.mxu0 0.0
    %5493 = vmatpush1.msra.mxu0 0.0
    %5494 = vmatprep.subr.mxu0 0.0
    %5495 = vmatpush1.msra.mxu0 0.0
    %5496 = vmatprep.subr.mxu0 0.0
    %5497 = vmatpush1.msra.mxu0 0.0
    %5498 = vmatprep.subr.mxu0 0.0
    %5499 = vmatpush1.msra.mxu0 0.0
    %5500 = vmatprep.subr.mxu0 0.0
    %5501 = vmatpush1.msra.mxu0 0.0
    %5502 = vmatprep.subr.mxu0 0.0
    %5503 = vmatpush1.msra.mxu0 %v5470
    %5504 = vmatprep.subr.mxu0 0.0
    %5505 = vmatpush2.msra.mxu0 0.0
    %5506 = vmatprep.subr.mxu0 0.0
    %5507 = vmatpush2.msra.mxu0 0.0
    %5508 = vmatprep.subr.mxu0 0.0
    %5509 = vmatpush2.msra.mxu0 0.0
    %5510 = vmatprep.subr.mxu0 0.0
    %5511 = vmatpush2.msra.mxu0 0.0
    %5512 = vmatprep.subr.mxu0 0.0
    %5513 = vmatpush2.msra.mxu0 0.0
    %5514 = vmatprep.subr.mxu0 0.0
    %5515 = vmatpush2.msra.mxu0 0.0
    %5516 = vmatprep.subr.mxu0 0.0
    %5517 = vmatpush2.msra.mxu0 0.0
    %5518 = vmatprep.subr.mxu0 0.0
    %5519 = vmatpush2.msra.mxu0 0.0
    %5520 = vmatprep.subr.mxu0 0.0
    %5521 = vmatpush2.msra.mxu0 0.0
    %5522 = vmatprep.subr.mxu0 0.0
    %5523 = vmatpush2.msra.mxu0 0.0
    %5524 = vmatprep.subr.mxu0 0.0
    %5525 = vmatpush2.msra.mxu0 0.0
    %5526 = vmatprep.subr.mxu0 0.0
    %5527 = vmatpush2.msra.mxu0 0.0
    %5528 = vmatprep.subr.mxu0 0.0
    %5529 = vmatpush2.msra.mxu0 0.0
    %5530 = vmatprep.subr.mxu0 0.0
    %5531 = vmatpush2.msra.mxu0 0.0
    %5532 = vmatprep.subr.mxu0 0.0
    %5533 = vmatpush2.msra.mxu0 0.0
    %5534 = vmatprep.subr.mxu0 0.0
    %5535 = vmatpush2.msra.mxu0 0.0
    %5536 = vmatprep.mubr.f32.mxu0 0.0
    %5537 = vmatmul.mubr.f32.gmra.mxu0 %v1670
    %v5538 = vpop.f32.mrf.mxu0
    %v5539 = vadd.f32 0.0, %v5538
    %v5540 = vpop.f32.mrf.mxu0
    %5541 = vmatprep.mubr.f32.mxu0 0.0
    %5542 = vmatmul.mubr.f32.gmra.mxu0 %v1673
    %v5543 = vpop.f32.mrf.mxu0
    %v5544 = vadd.f32 0.0, %v5543
    %v5545 = vpop.f32.mrf.mxu0
    %5546 = vdwg.mxu0
    %5548 = vset.pattern.permute.xlu0 0
    %5549 = vperm.xlu0 %5548, %v5539
    %v5550 = vpop.permute.xlu0 %5549
    %5553 = vset.pattern.permute.xlu0 0
    %5554 = vperm.xlu0 %5553, %v5544
    %v5555 = vpop.permute.xlu0 %5554
    %v5557 = vmul.f32 %v5466, %v5550
    %v5558 = vmul.f32 %v5467, %v5555
    %v5559 = vadd.f32 %v4468, %v5557
    %v5560 = vadd.f32 %v4469, %v5558
    %v5562 = vrot.slane %v5559, 7
    %v5565 = vrot.slane %v5560, 6
    %v5567 = vsel %vm208, %v5562, %v5565
    %v5568 = vld [vmem:[%s23] sm:$0x1]
    %v5569 = vld [vmem:[%s24] sm:$0x1]
    %vm5570 = vcmask 254976
    %v5571 = vsel %vm5570, %v5567, 0.0
    %5572 = vadd.xlane.f32.xlu0 %v5571
    %v5573 = vpop.xlane.xlu0 %5572
    %v5574 = vmul.f32 %v5573, %v663
    %v5575 = vsub.f32 %v5567, %v5574
    %v5576 = vmul.f32 %v5575, %v5575
    %v5577 = vsel %vm5570, %v5576, 0.0
    %5578 = vadd.xlane.f32.xlu0 %v5577
    %v5579 = vpop.xlane.xlu0 %5578
    %v5580 = vmul.f32 %v5579, %v663
    %v5581 = vadd.f32 %v5580, 1e-05
    %v5582 = vrsqrt.pop %v5581
    %v5583 = vmul.f32 %v5575, %v5582
    %v5585 = vlaneseq
    %v5586 = vshrl.u32 %v5585, 7
    %v5587 = vsub.s32 0, %v5586
    %v5588 = vrot.slane %v5568, %v5587
    %v5590 = vmul.f32 %v5583, %v5588
    %v5592 = vlaneseq
    %v5593 = vshrl.u32 %v5592, 7
    %v5594 = vsub.s32 0, %v5593
    %v5595 = vrot.slane %v5569, %v5594
    %v5597 = vadd.f32 %v5590, %v5595
    %v5598 = vld [vmem:[%s25] sm:$0xff]
    %v5599 = vld [vmem:[%s25 + $0x8] sm:$0xff]
    %v5600 = vld [vmem:[%s25 + $0x10] sm:$0xff]
    %v5601 = vld [vmem:[%s25 + $0x18] sm:$0xff]
    %v5603 = vsel %vm160, %v5597, 0
    %5605 = vmatprep.subr.mxu0 0.0
    %5606 = vmatpush1.msra.mxu0 0.0
    %5607 = vmatprep.subr.mxu0 0.0
    %5608 = vmatpush1.msra.mxu0 0.0
    %5609 = vmatprep.subr.mxu0 0.0
    %5610 = vmatpush1.msra.mxu0 0.0
    %5611 = vmatprep.subr.mxu0 0.0
    %5612 = vmatpush1.msra.mxu0 0.0
    %5613 = vmatprep.subr.mxu0 0.0
    %5614 = vmatpush1.msra.mxu0 0.0
    %5615 = vmatprep.subr.mxu0 0.0
    %5616 = vmatpush1.msra.mxu0 0.0
    %5617 = vmatprep.subr.mxu0 0.0
    %5618 = vmatpush1.msra.mxu0 0.0
    %5619 = vmatprep.subr.mxu0 0.0
    %5620 = vmatpush1.msra.mxu0 0.0
    %5621 = vmatprep.subr.mxu0 0.0
    %5622 = vmatpush1.msra.mxu0 0.0
    %5623 = vmatprep.subr.mxu0 0.0
    %5624 = vmatpush1.msra.mxu0 0.0
    %5625 = vmatprep.subr.mxu0 0.0
    %5626 = vmatpush1.msra.mxu0 0.0
    %5627 = vmatprep.subr.mxu0 0.0
    %5628 = vmatpush1.msra.mxu0 0.0
    %5629 = vmatprep.subr.mxu0 0.0
    %5630 = vmatpush1.msra.mxu0 %v5601
    %5631 = vmatprep.subr.mxu0 0.0
    %5632 = vmatpush1.msra.mxu0 %v5600
    %5633 = vmatprep.subr.mxu0 0.0
    %5634 = vmatpush1.msra.mxu0 %v5599
    %5635 = vmatprep.subr.mxu0 0.0
    %5636 = vmatpush1.msra.mxu0 %v5598
    %5637 = vmatprep.subr.mxu0 0.0
    %5638 = vmatpush2.msra.mxu0 0.0
    %5639 = vmatprep.subr.mxu0 0.0
    %5640 = vmatpush2.msra.mxu0 0.0
    %5641 = vmatprep.subr.mxu0 0.0
    %5642 = vmatpush2.msra.mxu0 0.0
    %5643 = vmatprep.subr.mxu0 0.0
    %5644 = vmatpush2.msra.mxu0 0.0
    %5645 = vmatprep.subr.mxu0 0.0
    %5646 = vmatpush2.msra.mxu0 0.0
    %5647 = vmatprep.subr.mxu0 0.0
    %5648 = vmatpush2.msra.mxu0 0.0
    %5649 = vmatprep.subr.mxu0 0.0
    %5650 = vmatpush2.msra.mxu0 0.0
    %5651 = vmatprep.subr.mxu0 0.0
    %5652 = vmatpush2.msra.mxu0 0.0
    %5653 = vmatprep.subr.mxu0 0.0
    %5654 = vmatpush2.msra.mxu0 0.0
    %5655 = vmatprep.subr.mxu0 0.0
    %5656 = vmatpush2.msra.mxu0 0.0
    %5657 = vmatprep.subr.mxu0 0.0
    %5658 = vmatpush2.msra.mxu0 0.0
    %5659 = vmatprep.subr.mxu0 0.0
    %5660 = vmatpush2.msra.mxu0 0.0
    %5661 = vmatprep.subr.mxu0 0.0
    %5662 = vmatpush2.msra.mxu0 0.0
    %5663 = vmatprep.subr.mxu0 0.0
    %5664 = vmatpush2.msra.mxu0 0.0
    %5665 = vmatprep.subr.mxu0 0.0
    %5666 = vmatpush2.msra.mxu0 0.0
    %5667 = vmatprep.subr.mxu0 0.0
    %5668 = vmatpush2.msra.mxu0 0.0
    %5669 = vmatprep.mubr.f32.mxu0 0.0
    %5670 = vmatmul.mubr.f32.gmra.mxu0 %v5603
    %v5671 = vpop.f32.mrf.mxu0
    %v5672 = vadd.f32 0.0, %v5671
    %v5673 = vpop.f32.mrf.mxu0
    %5674 = vdwg.mxu0
    %vm5675 = vcmask 517120
    %5676 = vst.msk [vmem:[#allocation2] sm:$0x3] %vm5675, %v5672
    // Predicated region
    $region106: #{gw_gpt_forward.1} parent=1 // pred_check
      _
    $region107: #{gw_gpt_forward.1} parent=1 // pred_check_branch
      %5678 = sbr.rel (0) target = $region109
    $region108: #{gw_gpt_forward.1} parent=1 // pred_region
      %s5680 = ssub.s32 32, 32
      %5681 = vsyncadd [#allocation3], %s5680
      %s5683 = sshll.u32 [#allocation2], 4
      %s5684 = int_to_ptr.vmem [resolvable:$true] %s5683
      %5686 = dma.vmem_to_hbm [thread:$0]  %s5684, 32, %s26, [#allocation3]
    $region109: #{gw_gpt_forward.1} parent=1 // pred_fallthru
      _
    // Predicated region
    $region110: #{gw_gpt_forward.1} parent=1 // pred_check
      _
    $region111: #{gw_gpt_forward.1} parent=1 // pred_check_branch
      %5688 = sbr.rel (0) target = $region113
    $region112: #{gw_gpt_forward.1} parent=1 // pred_region
      %5689 = dma.done [#allocation3], 32
    $region113: #{gw_gpt_forward.1} parent=1 // pred_fallthru
      _
    %5690 = vsyncpa [#allocation3], 1

</llo_original>
